<compile_context>
chip_gen: v7x
topology: tpu7x:2x2x1
jax: 0.10.0
libtpu: 0.0.40
codegen_flags: <defaults>
</compile_context>

<pallas_src>
import functools
import numpy as np
import jax
import jax.numpy as jnp
from jax import lax
from jax.experimental import pallas as pl
from jax.experimental.pallas import tpu as pltpu

KH = KW = 7          # depthwise kernel (1, 7, 7)
PAD = 3              # 'same' padding for 7x7
XOFF = 8             # sublane-aligned start of the interior inside the padded X axis
LN_EPS = 1e-6
GRN_EPS = 1e-6
_SQRT1_2 = 0.7071067811865476


def _erf(x):
    # Abramowitz & Stegun 7.1.26 (|abs err| < 1.5e-7); avoids relying on an erf lowering.
    p = 0.3275911
    a1, a2, a3, a4, a5 = 0.254829592, -0.284496736, 1.421413741, -1.453152027, 1.061405429
    ax = jnp.abs(x)
    t = 1.0 / (1.0 + p * ax)
    poly = ((((a5 * t + a4) * t + a3) * t + a2) * t + a1) * t
    y = 1.0 - poly * jnp.exp(-ax * ax)
    return jnp.where(x < 0, -y, y)


def _gelu(x, exact):
    if exact:
        return 0.5 * x * (1.0 + _erf(x * _SQRT1_2))
    c = 0.7978845608028654  # sqrt(2/pi), tanh approximation
    return 0.5 * x * (1.0 + jnp.tanh(c * (x + 0.044715 * x * x * x)))


@functools.lru_cache(maxsize=None)
def _roll_direction():
    """+1 if pltpu.roll matches jnp.roll semantics, -1 if reversed, 0 -> use value slices."""
    def k(x_ref, o_ref):
        o_ref[...] = pltpu.roll(x_ref[...], 1, axis=0)
    try:
        x = jnp.zeros((8, 128), jnp.float32).at[0, 0].set(1.0)
        y = np.asarray(pl.pallas_call(
            k, out_shape=jax.ShapeDtypeStruct((8, 128), jnp.float32))(x))
        if y[1, 0] == 1.0:
            return 1
        if y[7, 0] == 1.0:
            return -1
    except Exception:
        pass
    return 0


def _block_kernel(x_ref,       # (1, Z, Y, X, C) input (also the residual)
                  dw_w_ref,    # (7, 7, C)
                  dw_b_ref,    # (1, C)
                  ln_w_ref,    # (1, C)
                  ln_b_ref,    # (1, C)
                  w1_ref,      # (C, 4C)  compute dtype
                  b1_ref,      # (1, 4C)
                  grn_g_ref,   # (1, 4C)
                  grn_b_ref,   # (1, 4C)
                  w2_ref,      # (4C, C)  compute dtype
                  b2_ref,      # (1, C)
                  o_ref,       # (1, Z*Y, X*C) lane-dense  |  (1, P, C) when C % 128 == 0
                  *scratch,
                  exact, stage_h1, fold_x, zb, unroll, roll_dir):
    if stage_h1:
        xpad_ref, hn_ref, h1_ref = scratch
    else:
        xpad_ref, hn_ref = scratch
        h1_ref = None
    _, Z, Y, X, C = x_ref.shape
    H = w1_ref.shape[1]
    YX = Y * X
    P = Z * YX
    Yp, Xp, _ = xpad_ref.shape
    R = Yp * Xp
    cdt = hn_ref.dtype
    fold_grn = not exact

    # ------------------------------------------------------------------ stage A
    # Depthwise (1,7,7) conv + LayerNorm, tiled by z.  The small reusable padded slab is
    # zeroed once; each z only overwrites the interior at a sublane-aligned offset (XOFF=8).
    xpad_ref[...] = jnp.zeros_like(xpad_ref)
    dw = dw_w_ref[...]
    dw_b = dw_b_ref[...]
    ln_w = ln_w_ref[...]
    ln_b = ln_b_ref[...]

    def conv_ln_z(z, carry):
        xpad_ref[PAD:PAD + Y, XOFF:XOFF + X, :] = x_ref[0, z]
        slab3 = xpad_ref[...]                       # (Yp, Xp, C), halos are zero
        slab2 = slab3.reshape(R, C)                 # free: Xp is a multiple of 8
        acc = None
        for kx in range(KW):
            off = XOFF - PAD + kx                   # = 5 + kx
            if kx == PAD or roll_dir == 0:
                xk = slab3[:, off:off + X, :]       # kx == PAD is sublane-aligned (off = 8)
            else:
                shift = (roll_dir * (PAD - kx)) % R
                xk = pltpu.roll(slab2, shift, axis=0).reshape(Yp, Xp, C)[:, XOFF:XOFF + X, :]
            for ky in range(KH):
                tap = xk[ky:ky + Y] * dw[ky, kx, :]
                acc = tap if acc is None else acc + tap
        h = acc.reshape(YX, C) + dw_b
        mu = jnp.mean(h, axis=-1, keepdims=True)
        d = h - mu
        var = jnp.mean(d * d, axis=-1, keepdims=True)
        hn = d * lax.rsqrt(var + LN_EPS) * ln_w + ln_b
        r0 = pl.multiple_of(z * YX, YX)
        hn_ref[pl.ds(r0, YX), :] = hn.astype(cdt)
        return carry

    lax.fori_loop(0, Z, conv_ln_z, 0, unroll=unroll)

    # ------------------------------------------------------------------ stage B
    # pwconv1 + GELU, GRN sum-of-squares (vreg carry); optionally stage h1 in VMEM.
    TR = zb * YX
    nt = Z // zb
    w1 = w1_ref[...]
    b1 = b1_ref[...]

    def mlp1(rows):
        z1 = jnp.dot(rows, w1, preferred_element_type=jnp.float32) + b1
        return _gelu(z1, exact)

    def phase1(t, ssq):
        r0 = pl.multiple_of(t * TR, TR)
        h1 = mlp1(hn_ref[pl.ds(r0, TR), :])
        if stage_h1:
            h1_ref[pl.ds(r0, TR), :] = h1.astype(cdt)
        return ssq + jnp.sum(h1 * h1, axis=0, keepdims=True)

    ssq = lax.fori_loop(0, nt, phase1, jnp.zeros((1, H), jnp.float32), unroll=unroll)

    gx = jnp.sqrt(ssq)                                        # (1, 4C)
    nx = gx / (jnp.mean(gx, axis=-1, keepdims=True) + GRN_EPS)
    coef = grn_g_ref[...] * nx + 1.0                          # g*(h*nx)+b+h == h*coef + b
    grn_b = grn_b_ref[...]
    b2 = b2_ref[...]
    if fold_grn:
        w2_f32 = w2_ref[...].astype(jnp.float32)
        w2 = (w2_f32 * coef.reshape(H, 1)).astype(cdt)        # fold GRN scale into w2
        b2 = jnp.sum(grn_b.reshape(H, 1) * w2_f32, axis=0, keepdims=True) + b2
    else:
        w2 = w2_ref[...]

    # ------------------------------------------------------------------ stage C
    # (GRN) + pwconv2 + residual.  Residual added in the natural (zb, Y, X, C) layout; only
    # the final store is lane-folded (and only when C % 128 != 0).
    def phase2(t, carry):
        r0 = pl.multiple_of(t * TR, TR)
        if stage_h1:
            h1 = h1_ref[pl.ds(r0, TR), :]
        else:
            h1 = mlp1(hn_ref[pl.ds(r0, TR), :]).astype(cdt)
        if not fold_grn:
            h1 = (h1.astype(jnp.float32) * coef + grn_b).astype(cdt)
        y = jnp.dot(h1, w2, preferred_element_type=jnp.float32) + b2
        z0 = pl.multiple_of(t * zb, zb)
        res = x_ref[0, pl.ds(z0, zb)]                         # (zb, Y, X, C)
        if fold_x:
            out = res + y.reshape(zb, Y, X, C)                # free row split when X % 8 == 0
            row0 = pl.multiple_of(t * zb * Y, zb * Y)
            o_ref[0, pl.ds(row0, zb * Y), :] = out.reshape(zb * Y, X * C)
        else:
            o_ref[0, pl.ds(r0, TR), :] = res.reshape(TR, C) + y
        return carry

    lax.fori_loop(0, nt, phase2, 0, unroll=unroll)


def _vmem_budget_bytes():
    """~80% of physical VMEM (Mosaic headroom): ~51 MiB on v7x, ~102 MiB on v5e/v6e."""
    cap = 64 * 2**20
    try:
        cap = int(pltpu.get_tpu_info().vmem_capacity_bytes)
    except Exception:
        pass
    return max(32 * 2**20, int(cap * 0.8))


def _pick_zb(Z, YX):
    """z-slices per MXU row tile: smallest divisor of Z reaching ~256 rows (else the largest)."""
    divs = [d for d in range(1, Z + 1) if Z % d == 0]
    for d in divs:
        if d * YX >= 256:
            return d
    return divs[-1]


def convnext_block_pallas_cl(x_cl, params, *, fast=True):
    """Channels-last core: x_cl (N, Z, Y, X, C) float32 -> (N, Z, Y, X, C) float32.

    No wrapper-side layout passes (reshapes only).  fast=True uses bf16 MXU operands
    (f32 accumulation) + tanh GELU + GRN folded into w2; fast=False is f32 / erf and
    matches the PyTorch reference tightly.
    """
    N, Z, Y, X, C = x_cl.shape
    H = 4 * C
    YX = Y * X
    P = Z * YX
    cdt = jnp.bfloat16 if fast else jnp.float32
    cdb = jnp.dtype(cdt).itemsize

    fold_x = (C % 128) != 0                 # lane-dense output only needed when C < 128-mult
    zb = _pick_zb(Z, YX)
    nt = Z // zb
    unroll = (Z <= 8) and (nt <= 8)
    Yp = Y + 2 * PAD
    Xp = -(-(X + XOFF + PAD) // 8) * 8
    roll_dir = _roll_direction()

    # VMEM footprint -> h1 staging decision + vmem_limit_bytes ------------------------
    budget = _vmem_budget_bytes()
    blk = P * C * 4                                         # one f32 activation block
    w_bytes = (KH * KW * C + 4 * C) * 4 + 2 * C * H * cdb + 3 * H * 4
    slab = Yp * Xp * C * 4
    tile_tmp = zb * YX * H * 4                              # one phase-tile h1 in f32
    base = 4 * blk + 2 * w_bytes + slab + P * C * cdb + 5 * slab + 3 * tile_tmp + H * C * 4
    est_staged = base + P * H * cdb
    stage_h1 = int(est_staged * 1.4) <= budget              # skip matmul1/GELU recompute if it fits
    est = est_staged if stage_h1 else base
    vmem_limit = int(min(max(int(est * 1.4), 32 * 2**20), budget))

    big_w = (2 * C * H * cdb) > (4 << 20)                   # single-buffer big resident weights

    def full(shape):
        k = len(shape)
        return pl.BlockSpec(shape, lambda n: (0,) * k)

    def wspec(shape):
        k = len(shape)
        if big_w:
            return pl.BlockSpec(shape, lambda n: (0,) * k, pipeline_mode=pl.Buffered(1))
        return pl.BlockSpec(shape, lambda n: (0,) * k)

    if fold_x:
        out_shape = jax.ShapeDtypeStruct((N, Z * Y, X * C), jnp.float32)
        out_spec = pl.BlockSpec((1, Z * Y, X * C), lambda n: (n, 0, 0))
    else:
        out_shape = jax.ShapeDtypeStruct((N, P, C), jnp.float32)
        out_spec = pl.BlockSpec((1, P, C), lambda n: (n, 0, 0))

    scratch = [pltpu.VMEM((Yp, Xp, C), jnp.float32),        # padded conv slab (one z-slice)
               pltpu.VMEM((P, C), cdt)]                     # post-LN rows
    if stage_h1:
        scratch.append(pltpu.VMEM((P, H), cdt))             # staged pwconv1+GELU output

    kernel = functools.partial(_block_kernel, exact=not fast, stage_h1=stage_h1,
                               fold_x=fold_x, zb=zb, unroll=unroll, roll_dir=roll_dir)

    out = pl.pallas_call(
        kernel,
        out_shape=out_shape,
        grid=(N,),
        in_specs=[
            pl.BlockSpec((1, Z, Y, X, C), lambda n: (n, 0, 0, 0, 0)),
            full((KH, KW, C)),
            full((1, C)), full((1, C)), full((1, C)),
            wspec((C, H)), full((1, H)), full((1, H)), full((1, H)),
            wspec((H, C)), full((1, C)),
        ],
        out_specs=out_spec,
        scratch_shapes=scratch,
        compiler_params=pltpu.CompilerParams(
            dimension_semantics=("parallel",),
            vmem_limit_bytes=vmem_limit,
        ),
    )(
        x_cl,
        params["dw_w"], params["dw_b"],
        params["ln_w"], params["ln_b"],
        params["w1"].astype(cdt), params["b1"],
        params["grn_g"], params["grn_b"],
        params["w2"].astype(cdt), params["b2"],
    )
    return out.reshape(N, Z, Y, X, C)


def convnext_block_pallas(x_nczyx, params, *, fast=True):
    """(N, C, Z, Y, X) adapter matching the PyTorch module interface.
    In a real network, chain `convnext_block_pallas_cl` (channels-last end-to-end) instead
    to avoid these two HBM transpose passes."""
    x_cl = jnp.transpose(x_nczyx, (0, 2, 3, 4, 1))
    y_cl = convnext_block_pallas_cl(x_cl, params, fast=fast)
    return jnp.transpose(y_cl, (0, 4, 1, 2, 3))


# ---------------- pure-JAX reference (independent path, for verification) ----------------
def convnext_block_ref(x_nczyx, params):
    N, C, Z, Y, X = x_nczyx.shape
    hp = lax.Precision.HIGHEST
    w_conv = jnp.transpose(params["dw_w"], (2, 0, 1))[:, None, None, :, :]   # (C,1,1,7,7)
    y = lax.conv_general_dilated(
        x_nczyx, w_conv,
        window_strides=(1, 1, 1),
        padding=[(0, 0), (PAD, PAD), (PAD, PAD)],
        dimension_numbers=("NCDHW", "OIDHW", "NCDHW"),
        feature_group_count=C,
        precision=hp,
    ) + params["dw_b"].reshape(1, C, 1, 1, 1)
    h = jnp.transpose(y, (0, 2, 3, 4, 1))                                    # (N,Z,Y,X,C)
    mu = jnp.mean(h, axis=-1, keepdims=True)
    var = jnp.mean((h - mu) ** 2, axis=-1, keepdims=True)
    h = (h - mu) / jnp.sqrt(var + LN_EPS)
    h = h * params["ln_w"].reshape(-1) + params["ln_b"].reshape(-1)
    h = jnp.dot(h, params["w1"], precision=hp) + params["b1"].reshape(-1)
    h = jax.nn.gelu(h, approximate=False)
    gx = jnp.sqrt(jnp.sum(h * h, axis=(1, 2, 3), keepdims=True))             # (N,1,1,1,4C)
    nxn = gx / (jnp.mean(gx, axis=-1, keepdims=True) + GRN_EPS)
    h = params["grn_g"].reshape(-1) * (h * nxn) + params["grn_b"].reshape(-1) + h
    h = jnp.dot(h, params["w2"], precision=hp) + params["b2"].reshape(-1)
    return x_nczyx + jnp.transpose(h, (0, 4, 1, 2, 3))


if __name__ == "__main__":
    N, C, Z, Y, X = 2, 32, 2, 8, 8
    H = 4 * C

    key = jax.random.PRNGKey(0)
    ks = jax.random.split(key, 11)
    params = {
        "dw_w":  0.1 * jax.random.normal(ks[0], (KH, KW, C), jnp.float32),
        "dw_b":  0.1 * jax.random.normal(ks[1], (1, C), jnp.float32),
        "ln_w":  1.0 + 0.05 * jax.random.normal(ks[2], (1, C), jnp.float32),
        "ln_b":  0.05 * jax.random.normal(ks[3], (1, C), jnp.float32),
        "w1":    0.1 * jax.random.normal(ks[4], (C, H), jnp.float32),
        "b1":    0.05 * jax.random.normal(ks[5], (1, H), jnp.float32),
        "grn_g": 0.1 * jax.random.normal(ks[6], (1, H), jnp.float32),
        "grn_b": 0.1 * jax.random.normal(ks[7], (1, H), jnp.float32),
        "w2":    0.1 * jax.random.normal(ks[8], (H, C), jnp.float32),
        "b2":    0.05 * jax.random.normal(ks[9], (1, C), jnp.float32),
    }
    x = jax.random.normal(ks[10], (N, C, Z, Y, X), jnp.float32)

    ref = jax.block_until_ready(convnext_block_ref(x, params))

    # exact mode: f32 MXU + erf GELU, unfused GRN -> tight match to the PyTorch semantics
    out_exact = jax.block_until_ready(convnext_block_pallas(x, params, fast=False))
    np.testing.assert_allclose(np.asarray(out_exact), np.asarray(ref), rtol=5e-4, atol=5e-4)

    # fast mode: bf16 MXU operands (f32 accumulation), tanh GELU, GRN folded into w2
    out_fast = jax.block_until_ready(convnext_block_pallas(x, params, fast=True))
    np.testing.assert_allclose(np.asarray(out_fast), np.asarray(ref), rtol=5e-2, atol=6e-2)

    print("KERNEL_OK")
</pallas_src>

<mosaic_0001>
module attributes {stable_mosaic.version = 11 : i64} {
  func.func @k(%arg0: memref<8x128xf32, #tpu.memory_space<vmem>>, %arg1: memref<8x128xf32, #tpu.memory_space<vmem>>) attributes {dimension_semantics = [], scalar_prefetch = 0 : i64, scratch_operands = 0 : i64, tpu.core_type = #tpu.core_type<tc>} {
    %c0 = arith.constant 0 : index
    %c0_0 = arith.constant 0 : index
    %0 = vector.load %arg0[%c0, %c0_0] : memref<8x128xf32, #tpu.memory_space<vmem>>, vector<8x128xf32>
    %c1_i32 = arith.constant 1 : i32
    %1 = tpu.dynamic_rotate %0 by %c1_i32 dim 0 : vector<8x128xf32>, i32 -> vector<8x128xf32>
    %c0_1 = arith.constant 0 : index
    %c0_2 = arith.constant 0 : index
    %2 = vector.load %arg1[%c0_1, %c0_2] : memref<8x128xf32, #tpu.memory_space<vmem>>, vector<8x128xf32>
    tpu.vector_store %arg1[%c0_1, %c0_2], %1 {strides = array<i32>} : memref<8x128xf32, #tpu.memory_space<vmem>>, vector<8x128xf32>,
    return
  }
}

module attributes {stable_mosaic.version = 11 : i64} {
  func.func @_block_kernel(%arg0: i32, %arg1: memref<1x2x8x8x32xf32, #tpu.memory_space<vmem>>, %arg2: memref<7x7x32xf32, #tpu.memory_space<vmem>>, %arg3: memref<1x32xf32, #tpu.memory_space<vmem>>, %arg4: memref<1x32xf32, #tpu.memory_space<vmem>>, %arg5: memref<1x32xf32, #tpu.memory_space<vmem>>, %arg6: memref<32x128xf32, #tpu.memory_space<vmem>>, %arg7: memref<1x128xf32, #tpu.memory_space<vmem>>, %arg8: memref<1x128xf32, #tpu.memory_space<vmem>>, %arg9: memref<1x128xf32, #tpu.memory_space<vmem>>, %arg10: memref<128x32xf32, #tpu.memory_space<vmem>>, %arg11: memref<1x32xf32, #tpu.memory_space<vmem>>, %arg12: memref<1x16x256xf32, #tpu.memory_space<vmem>>, %arg13: memref<14x24x32xf32, #tpu.memory_space<vmem>>, %arg14: memref<128x32xf32, #tpu.memory_space<vmem>>, %arg15: memref<128x128xf32, #tpu.memory_space<vmem>>) attributes {dimension_semantics = [#tpu.dimension_semantics<parallel>], iteration_bounds = array<i64: 2>, scalar_prefetch = 0 : i64, scratch_operands = 3 : i64, tpu.core_type = #tpu.core_type<tc>, window_params = [{transform_indices = @transform_0, window_bounds = array<i64: 1, 2, 8, 8, 32>}, {pipeline_mode = #tpu.pipeline_mode<synchronous>, transform_indices = @transform_1, window_bounds = array<i64: 7, 7, 32>}, {pipeline_mode = #tpu.pipeline_mode<synchronous>, transform_indices = @transform_2, window_bounds = array<i64: 1, 32>}, {pipeline_mode = #tpu.pipeline_mode<synchronous>, transform_indices = @transform_3, window_bounds = array<i64: 1, 32>}, {pipeline_mode = #tpu.pipeline_mode<synchronous>, transform_indices = @transform_4, window_bounds = array<i64: 1, 32>}, {pipeline_mode = #tpu.pipeline_mode<synchronous>, transform_indices = @transform_5, window_bounds = array<i64: 32, 128>}, {pipeline_mode = #tpu.pipeline_mode<synchronous>, transform_indices = @transform_6, window_bounds = array<i64: 1, 128>}, {pipeline_mode = #tpu.pipeline_mode<synchronous>, transform_indices = @transform_7, window_bounds = array<i64: 1, 128>}, {pipeline_mode = #tpu.pipeline_mode<synchronous>, transform_indices = @transform_8, window_bounds = array<i64: 1, 128>}, {pipeline_mode = #tpu.pipeline_mode<synchronous>, transform_indices = @transform_9, window_bounds = array<i64: 128, 32>}, {pipeline_mode = #tpu.pipeline_mode<synchronous>, transform_indices = @transform_10, window_bounds = array<i64: 1, 32>}, {transform_indices = @transform_11, window_bounds = array<i64: 1, 16, 256>}]} {
    %cst = arith.constant 0.000000e+00 : f32
    %0 = vector.broadcast %cst : f32 to vector<14x24x32xf32>
    %c0 = arith.constant 0 : index
    %c0_0 = arith.constant 0 : index
    %c0_1 = arith.constant 0 : index
    %1 = vector.load %arg13[%c0, %c0_0, %c0_1] : memref<14x24x32xf32, #tpu.memory_space<vmem>>, vector<14x24x32xf32>
    tpu.vector_store %arg13[%c0, %c0_0, %c0_1], %0 {strides = array<i32>} : memref<14x24x32xf32, #tpu.memory_space<vmem>>, vector<14x24x32xf32>,
    %c0_2 = arith.constant 0 : index
    %c0_3 = arith.constant 0 : index
    %c0_4 = arith.constant 0 : index
    %2 = vector.load %arg2[%c0_2, %c0_3, %c0_4] : memref<7x7x32xf32, #tpu.memory_space<vmem>>, vector<7x7x32xf32>
    %c0_5 = arith.constant 0 : index
    %c0_6 = arith.constant 0 : index
    %3 = vector.load %arg3[%c0_5, %c0_6] : memref<1x32xf32, #tpu.memory_space<vmem>>, vector<1x32xf32>
    %c0_7 = arith.constant 0 : index
    %c0_8 = arith.constant 0 : index
    %4 = vector.load %arg4[%c0_7, %c0_8] : memref<1x32xf32, #tpu.memory_space<vmem>>, vector<1x32xf32>
    %c0_9 = arith.constant 0 : index
    %c0_10 = arith.constant 0 : index
    %5 = vector.load %arg5[%c0_9, %c0_10] : memref<1x32xf32, #tpu.memory_space<vmem>>, vector<1x32xf32>
    %c0_i32 = arith.constant 0 : i32
    %c0_11 = arith.constant 0 : index
    %6 = arith.index_cast %c0_i32 : i32 to index
    %c0_12 = arith.constant 0 : index
    %c0_13 = arith.constant 0 : index
    %c0_14 = arith.constant 0 : index
    %7 = vector.load %arg1[%c0_11, %6, %c0_12, %c0_13, %c0_14] : memref<1x2x8x8x32xf32, #tpu.memory_space<vmem>>, vector<1x1x8x8x32xf32>
    %8 = vector.shape_cast %7 : vector<1x1x8x8x32xf32> to vector<8x8x32xf32>
    %c3 = arith.constant 3 : index
    %c8 = arith.constant 8 : index
    %c0_15 = arith.constant 0 : index
    %9 = vector.load %arg13[%c3, %c8, %c0_15] : memref<14x24x32xf32, #tpu.memory_space<vmem>>, vector<8x8x32xf32>
    tpu.vector_store %arg13[%c3, %c8, %c0_15], %8 {strides = array<i32>} : memref<14x24x32xf32, #tpu.memory_space<vmem>>, vector<8x8x32xf32>,
    %c0_16 = arith.constant 0 : index
    %c0_17 = arith.constant 0 : index
    %c0_18 = arith.constant 0 : index
    %10 = vector.load %arg13[%c0_16, %c0_17, %c0_18] : memref<14x24x32xf32, #tpu.memory_space<vmem>>, vector<14x24x32xf32>
    %11 = vector.extract_strided_slice %10 {offsets = [0, 5, 0], sizes = [14, 8, 32], strides = [1, 1, 1]} : vector<14x24x32xf32> to vector<14x8x32xf32>
    %12 = vector.extract_strided_slice %11 {offsets = [0, 0, 0], sizes = [8, 8, 32], strides = [1, 1, 1]} : vector<14x8x32xf32> to vector<8x8x32xf32>
    %13 = vector.extract_strided_slice %2 {offsets = [0, 0, 0], sizes = [1, 1, 32], strides = [1, 1, 1]} : vector<7x7x32xf32> to vector<1x1x32xf32>
    %14 = vector.shape_cast %13 : vector<1x1x32xf32> to vector<32xf32>
    %15 = vector.shape_cast %14 : vector<32xf32> to vector<1x1x32xf32>
    %16 = vector.broadcast %15 : vector<1x1x32xf32> to vector<8x8x32xf32>
    %17 = arith.mulf %12, %16 : vector<8x8x32xf32>
    %18 = vector.extract_strided_slice %11 {offsets = [1, 0, 0], sizes = [8, 8, 32], strides = [1, 1, 1]} : vector<14x8x32xf32> to vector<8x8x32xf32>
    %19 = vector.extract_strided_slice %2 {offsets = [1, 0, 0], sizes = [1, 1, 32], strides = [1, 1, 1]} : vector<7x7x32xf32> to vector<1x1x32xf32>
    %20 = vector.shape_cast %19 : vector<1x1x32xf32> to vector<32xf32>
    %21 = vector.shape_cast %20 : vector<32xf32> to vector<1x1x32xf32>
    %22 = vector.broadcast %21 : vector<1x1x32xf32> to vector<8x8x32xf32>
    %23 = arith.mulf %18, %22 : vector<8x8x32xf32>
    %24 = arith.addf %17, %23 : vector<8x8x32xf32>
    %25 = vector.extract_strided_slice %11 {offsets = [2, 0, 0], sizes = [8, 8, 32], strides = [1, 1, 1]} : vector<14x8x32xf32> to vector<8x8x32xf32>
    %26 = vector.extract_strided_slice %2 {offsets = [2, 0, 0], sizes = [1, 1, 32], strides = [1, 1, 1]} : vector<7x7x32xf32> to vector<1x1x32xf32>
    %27 = vector.shape_cast %26 : vector<1x1x32xf32> to vector<32xf32>
    %28 = vector.shape_cast %27 : vector<32xf32> to vector<1x1x32xf32>
    %29 = vector.broadcast %28 : vector<1x1x32xf32> to vector<8x8x32xf32>
    %30 = arith.mulf %25, %29 : vector<8x8x32xf32>
    %31 = arith.addf %24, %30 : vector<8x8x32xf32>
    %32 = vector.extract_strided_slice %11 {offsets = [3, 0, 0], sizes = [8, 8, 32], strides = [1, 1, 1]} : vector<14x8x32xf32> to vector<8x8x32xf32>
    %33 = vector.extract_strided_slice %2 {offsets = [3, 0, 0], sizes = [1, 1, 32], strides = [1, 1, 1]} : vector<7x7x32xf32> to vector<1x1x32xf32>
    %34 = vector.shape_cast %33 : vector<1x1x32xf32> to vector<32xf32>
    %35 = vector.shape_cast %34 : vector<32xf32> to vector<1x1x32xf32>
    %36 = vector.broadcast %35 : vector<1x1x32xf32> to vector<8x8x32xf32>
    %37 = arith.mulf %32, %36 : vector<8x8x32xf32>
    %38 = arith.addf %31, %37 : vector<8x8x32xf32>
    %39 = vector.extract_strided_slice %11 {offsets = [4, 0, 0], sizes = [8, 8, 32], strides = [1, 1, 1]} : vector<14x8x32xf32> to vector<8x8x32xf32>
    %40 = vector.extract_strided_slice %2 {offsets = [4, 0, 0], sizes = [1, 1, 32], strides = [1, 1, 1]} : vector<7x7x32xf32> to vector<1x1x32xf32>
    %41 = vector.shape_cast %40 : vector<1x1x32xf32> to vector<32xf32>
    %42 = vector.shape_cast %41 : vector<32xf32> to vector<1x1x32xf32>
    %43 = vector.broadcast %42 : vector<1x1x32xf32> to vector<8x8x32xf32>
    %44 = arith.mulf %39, %43 : vector<8x8x32xf32>
    %45 = arith.addf %38, %44 : vector<8x8x32xf32>
    %46 = vector.extract_strided_slice %11 {offsets = [5, 0, 0], sizes = [8, 8, 32], strides = [1, 1, 1]} : vector<14x8x32xf32> to vector<8x8x32xf32>
    %47 = vector.extract_strided_slice %2 {offsets = [5, 0, 0], sizes = [1, 1, 32], strides = [1, 1, 1]} : vector<7x7x32xf32> to vector<1x1x32xf32>
    %48 = vector.shape_cast %47 : vector<1x1x32xf32> to vector<32xf32>
    %49 = vector.shape_cast %48 : vector<32xf32> to vector<1x1x32xf32>
    %50 = vector.broadcast %49 : vector<1x1x32xf32> to vector<8x8x32xf32>
    %51 = arith.mulf %46, %50 : vector<8x8x32xf32>
    %52 = arith.addf %45, %51 : vector<8x8x32xf32>
    %53 = vector.extract_strided_slice %11 {offsets = [6, 0, 0], sizes = [8, 8, 32], strides = [1, 1, 1]} : vector<14x8x32xf32> to vector<8x8x32xf32>
    %54 = vector.extract_strided_slice %2 {offsets = [6, 0, 0], sizes = [1, 1, 32], strides = [1, 1, 1]} : vector<7x7x32xf32> to vector<1x1x32xf32>
    %55 = vector.shape_cast %54 : vector<1x1x32xf32> to vector<32xf32>
    %56 = vector.shape_cast %55 : vector<32xf32> to vector<1x1x32xf32>
    %57 = vector.broadcast %56 : vector<1x1x32xf32> to vector<8x8x32xf32>
    %58 = arith.mulf %53, %57 : vector<8x8x32xf32>
    %59 = arith.addf %52, %58 : vector<8x8x32xf32>
    %60 = vector.extract_strided_slice %10 {offsets = [0, 6, 0], sizes = [14, 8, 32], strides = [1, 1, 1]} : vector<14x24x32xf32> to vector<14x8x32xf32>
    %61 = vector.extract_strided_slice %60 {offsets = [0, 0, 0], sizes = [8, 8, 32], strides = [1, 1, 1]} : vector<14x8x32xf32> to vector<8x8x32xf32>
    %62 = vector.extract_strided_slice %2 {offsets = [0, 1, 0], sizes = [1, 1, 32], strides = [1, 1, 1]} : vector<7x7x32xf32> to vector<1x1x32xf32>
    %63 = vector.shape_cast %62 : vector<1x1x32xf32> to vector<32xf32>
    %64 = vector.shape_cast %63 : vector<32xf32> to vector<1x1x32xf32>
    %65 = vector.broadcast %64 : vector<1x1x32xf32> to vector<8x8x32xf32>
    %66 = arith.mulf %61, %65 : vector<8x8x32xf32>
    %67 = arith.addf %59, %66 : vector<8x8x32xf32>
    %68 = vector.extract_strided_slice %60 {offsets = [1, 0, 0], sizes = [8, 8, 32], strides = [1, 1, 1]} : vector<14x8x32xf32> to vector<8x8x32xf32>
    %69 = vector.extract_strided_slice %2 {offsets = [1, 1, 0], sizes = [1, 1, 32], strides = [1, 1, 1]} : vector<7x7x32xf32> to vector<1x1x32xf32>
    %70 = vector.shape_cast %69 : vector<1x1x32xf32> to vector<32xf32>
    %71 = vector.shape_cast %70 : vector<32xf32> to vector<1x1x32xf32>
    %72 = vector.broadcast %71 : vector<1x1x32xf32> to vector<8x8x32xf32>
    %73 = arith.mulf %68, %72 : vector<8x8x32xf32>
    %74 = arith.addf %67, %73 : vector<8x8x32xf32>
    %75 = vector.extract_strided_slice %60 {offsets = [2, 0, 0], sizes = [8, 8, 32], strides = [1, 1, 1]} : vector<14x8x32xf32> to vector<8x8x32xf32>
    %76 = vector.extract_strided_slice %2 {offsets = [2, 1, 0], sizes = [1, 1, 32], strides = [1, 1, 1]} : vector<7x7x32xf32> to vector<1x1x32xf32>
    %77 = vector.shape_cast %76 : vector<1x1x32xf32> to vector<32xf32>
    %78 = vector.shape_cast %77 : vector<32xf32> to vector<1x1x32xf32>
    %79 = vector.broadcast %78 : vector<1x1x32xf32> to vector<8x8x32xf32>
    %80 = arith.mulf %75, %79 : vector<8x8x32xf32>
    %81 = arith.addf %74, %80 : vector<8x8x32xf32>
    %82 = vector.extract_strided_slice %60 {offsets = [3, 0, 0], sizes = [8, 8, 32], strides = [1, 1, 1]} : vector<14x8x32xf32> to vector<8x8x32xf32>
    %83 = vector.extract_strided_slice %2 {offsets = [3, 1, 0], sizes = [1, 1, 32], strides = [1, 1, 1]} : vector<7x7x32xf32> to vector<1x1x32xf32>
    %84 = vector.shape_cast %83 : vector<1x1x32xf32> to vector<32xf32>
    %85 = vector.shape_cast %84 : vector<32xf32> to vector<1x1x32xf32>
    %86 = vector.broadcast %85 : vector<1x1x32xf32> to vector<8x8x32xf32>
    %87 = arith.mulf %82, %86 : vector<8x8x32xf32>
    %88 = arith.addf %81, %87 : vector<8x8x32xf32>
    %89 = vector.extract_strided_slice %60 {offsets = [4, 0, 0], sizes = [8, 8, 32], strides = [1, 1, 1]} : vector<14x8x32xf32> to vector<8x8x32xf32>
    %90 = vector.extract_strided_slice %2 {offsets = [4, 1, 0], sizes = [1, 1, 32], strides = [1, 1, 1]} : vector<7x7x32xf32> to vector<1x1x32xf32>
    %91 = vector.shape_cast %90 : vector<1x1x32xf32> to vector<32xf32>
    %92 = vector.shape_cast %91 : vector<32xf32> to vector<1x1x32xf32>
    %93 = vector.broadcast %92 : vector<1x1x32xf32> to vector<8x8x32xf32>
    %94 = arith.mulf %89, %93 : vector<8x8x32xf32>
    %95 = arith.addf %88, %94 : vector<8x8x32xf32>
    %96 = vector.extract_strided_slice %60 {offsets = [5, 0, 0], sizes = [8, 8, 32], strides = [1, 1, 1]} : vector<14x8x32xf32> to vector<8x8x32xf32>
    %97 = vector.extract_strided_slice %2 {offsets = [5, 1, 0], sizes = [1, 1, 32], strides = [1, 1, 1]} : vector<7x7x32xf32> to vector<1x1x32xf32>
    %98 = vector.shape_cast %97 : vector<1x1x32xf32> to vector<32xf32>
    %99 = vector.shape_cast %98 : vector<32xf32> to vector<1x1x32xf32>
    %100 = vector.broadcast %99 : vector<1x1x32xf32> to vector<8x8x32xf32>
    %101 = arith.mulf %96, %100 : vector<8x8x32xf32>
    %102 = arith.addf %95, %101 : vector<8x8x32xf32>
    %103 = vector.extract_strided_slice %60 {offsets = [6, 0, 0], sizes = [8, 8, 32], strides = [1, 1, 1]} : vector<14x8x32xf32> to vector<8x8x32xf32>
    %104 = vector.extract_strided_slice %2 {offsets = [6, 1, 0], sizes = [1, 1, 32], strides = [1, 1, 1]} : vector<7x7x32xf32> to vector<1x1x32xf32>
    %105 = vector.shape_cast %104 : vector<1x1x32xf32> to vector<32xf32>
    %106 = vector.shape_cast %105 : vector<32xf32> to vector<1x1x32xf32>
    %107 = vector.broadcast %106 : vector<1x1x32xf32> to vector<8x8x32xf32>
    %108 = arith.mulf %103, %107 : vector<8x8x32xf32>
    %109 = arith.addf %102, %108 : vector<8x8x32xf32>
    %110 = vector.extract_strided_slice %10 {offsets = [0, 7, 0], sizes = [14, 8, 32], strides = [1, 1, 1]} : vector<14x24x32xf32> to vector<14x8x32xf32>
    %111 = vector.extract_strided_slice %110 {offsets = [0, 0, 0], sizes = [8, 8, 32], strides = [1, 1, 1]} : vector<14x8x32xf32> to vector<8x8x32xf32>
    %112 = vector.extract_strided_slice %2 {offsets = [0, 2, 0], sizes = [1, 1, 32], strides = [1, 1, 1]} : vector<7x7x32xf32> to vector<1x1x32xf32>
    %113 = vector.shape_cast %112 : vector<1x1x32xf32> to vector<32xf32>
    %114 = vector.shape_cast %113 : vector<32xf32> to vector<1x1x32xf32>
    %115 = vector.broadcast %114 : vector<1x1x32xf32> to vector<8x8x32xf32>
    %116 = arith.mulf %111, %115 : vector<8x8x32xf32>
    %117 = arith.addf %109, %116 : vector<8x8x32xf32>
    %118 = vector.extract_strided_slice %110 {offsets = [1, 0, 0], sizes = [8, 8, 32], strides = [1, 1, 1]} : vector<14x8x32xf32> to vector<8x8x32xf32>
    %119 = vector.extract_strided_slice %2 {offsets = [1, 2, 0], sizes = [1, 1, 32], strides = [1, 1, 1]} : vector<7x7x32xf32> to vector<1x1x32xf32>
    %120 = vector.shape_cast %119 : vector<1x1x32xf32> to vector<32xf32>
    %121 = vector.shape_cast %120 : vector<32xf32> to vector<1x1x32xf32>
    %122 = vector.broadcast %121 : vector<1x1x32xf32> to vector<8x8x32xf32>
    %123 = arith.mulf %118, %122 : vector<8x8x32xf32>
    %124 = arith.addf %117, %123 : vector<8x8x32xf32>
    %125 = vector.extract_strided_slice %110 {offsets = [2, 0, 0], sizes = [8, 8, 32], strides = [1, 1, 1]} : vector<14x8x32xf32> to vector<8x8x32xf32>
    %126 = vector.extract_strided_slice %2 {offsets = [2, 2, 0], sizes = [1, 1, 32], strides = [1, 1, 1]} : vector<7x7x32xf32> to vector<1x1x32xf32>
    %127 = vector.shape_cast %126 : vector<1x1x32xf32> to vector<32xf32>
    %128 = vector.shape_cast %127 : vector<32xf32> to vector<1x1x32xf32>
    %129 = vector.broadcast %128 : vector<1x1x32xf32> to vector<8x8x32xf32>
    %130 = arith.mulf %125, %129 : vector<8x8x32xf32>
    %131 = arith.addf %124, %130 : vector<8x8x32xf32>
    %132 = vector.extract_strided_slice %110 {offsets = [3, 0, 0], sizes = [8, 8, 32], strides = [1, 1, 1]} : vector<14x8x32xf32> to vector<8x8x32xf32>
    %133 = vector.extract_strided_slice %2 {offsets = [3, 2, 0], sizes = [1, 1, 32], strides = [1, 1, 1]} : vector<7x7x32xf32> to vector<1x1x32xf32>
    %134 = vector.shape_cast %133 : vector<1x1x32xf32> to vector<32xf32>
    %135 = vector.shape_cast %134 : vector<32xf32> to vector<1x1x32xf32>
    %136 = vector.broadcast %135 : vector<1x1x32xf32> to vector<8x8x32xf32>
    %137 = arith.mulf %132, %136 : vector<8x8x32xf32>
    %138 = arith.addf %131, %137 : vector<8x8x32xf32>
    %139 = vector.extract_strided_slice %110 {offsets = [4, 0, 0], sizes = [8, 8, 32], strides = [1, 1, 1]} : vector<14x8x32xf32> to vector<8x8x32xf32>
    %140 = vector.extract_strided_slice %2 {offsets = [4, 2, 0], sizes = [1, 1, 32], strides = [1, 1, 1]} : vector<7x7x32xf32> to vector<1x1x32xf32>
    %141 = vector.shape_cast %140 : vector<1x1x32xf32> to vector<32xf32>
    %142 = vector.shape_cast %141 : vector<32xf32> to vector<1x1x32xf32>
    %143 = vector.broadcast %142 : vector<1x1x32xf32> to vector<8x8x32xf32>
    %144 = arith.mulf %139, %143 : vector<8x8x32xf32>
    %145 = arith.addf %138, %144 : vector<8x8x32xf32>
    %146 = vector.extract_strided_slice %110 {offsets = [5, 0, 0], sizes = [8, 8, 32], strides = [1, 1, 1]} : vector<14x8x32xf32> to vector<8x8x32xf32>
    %147 = vector.extract_strided_slice %2 {offsets = [5, 2, 0], sizes = [1, 1, 32], strides = [1, 1, 1]} : vector<7x7x32xf32> to vector<1x1x32xf32>
    %148 = vector.shape_cast %147 : vector<1x1x32xf32> to vector<32xf32>
    %149 = vector.shape_cast %148 : vector<32xf32> to vector<1x1x32xf32>
    %150 = vector.broadcast %149 : vector<1x1x32xf32> to vector<8x8x32xf32>
    %151 = arith.mulf %146, %150 : vector<8x8x32xf32>
    %152 = arith.addf %145, %151 : vector<8x8x32xf32>
    %153 = vector.extract_strided_slice %110 {offsets = [6, 0, 0], sizes = [8, 8, 32], strides = [1, 1, 1]} : vector<14x8x32xf32> to vector<8x8x32xf32>
    %154 = vector.extract_strided_slice %2 {offsets = [6, 2, 0], sizes = [1, 1, 32], strides = [1, 1, 1]} : vector<7x7x32xf32> to vector<1x1x32xf32>
    %155 = vector.shape_cast %154 : vector<1x1x32xf32> to vector<32xf32>
    %156 = vector.shape_cast %155 : vector<32xf32> to vector<1x1x32xf32>
    %157 = vector.broadcast %156 : vector<1x1x32xf32> to vector<8x8x32xf32>
    %158 = arith.mulf %153, %157 : vector<8x8x32xf32>
    %159 = arith.addf %152, %158 : vector<8x8x32xf32>
    %160 = vector.extract_strided_slice %10 {offsets = [0, 8, 0], sizes = [14, 8, 32], strides = [1, 1, 1]} : vector<14x24x32xf32> to vector<14x8x32xf32>
    %161 = vector.extract_strided_slice %160 {offsets = [0, 0, 0], sizes = [8, 8, 32], strides = [1, 1, 1]} : vector<14x8x32xf32> to vector<8x8x32xf32>
    %162 = vector.extract_strided_slice %2 {offsets = [0, 3, 0], sizes = [1, 1, 32], strides = [1, 1, 1]} : vector<7x7x32xf32> to vector<1x1x32xf32>
    %163 = vector.shape_cast %162 : vector<1x1x32xf32> to vector<32xf32>
    %164 = vector.shape_cast %163 : vector<32xf32> to vector<1x1x32xf32>
    %165 = vector.broadcast %164 : vector<1x1x32xf32> to vector<8x8x32xf32>
    %166 = arith.mulf %161, %165 : vector<8x8x32xf32>
    %167 = arith.addf %159, %166 : vector<8x8x32xf32>
    %168 = vector.extract_strided_slice %160 {offsets = [1, 0, 0], sizes = [8, 8, 32], strides = [1, 1, 1]} : vector<14x8x32xf32> to vector<8x8x32xf32>
    %169 = vector.extract_strided_slice %2 {offsets = [1, 3, 0], sizes = [1, 1, 32], strides = [1, 1, 1]} : vector<7x7x32xf32> to vector<1x1x32xf32>
    %170 = vector.shape_cast %169 : vector<1x1x32xf32> to vector<32xf32>
    %171 = vector.shape_cast %170 : vector<32xf32> to vector<1x1x32xf32>
    %172 = vector.broadcast %171 : vector<1x1x32xf32> to vector<8x8x32xf32>
    %173 = arith.mulf %168, %172 : vector<8x8x32xf32>
    %174 = arith.addf %167, %173 : vector<8x8x32xf32>
    %175 = vector.extract_strided_slice %160 {offsets = [2, 0, 0], sizes = [8, 8, 32], strides = [1, 1, 1]} : vector<14x8x32xf32> to vector<8x8x32xf32>
    %176 = vector.extract_strided_slice %2 {offsets = [2, 3, 0], sizes = [1, 1, 32], strides = [1, 1, 1]} : vector<7x7x32xf32> to vector<1x1x32xf32>
    %177 = vector.shape_cast %176 : vector<1x1x32xf32> to vector<32xf32>
    %178 = vector.shape_cast %177 : vector<32xf32> to vector<1x1x32xf32>
    %179 = vector.broadcast %178 : vector<1x1x32xf32> to vector<8x8x32xf32>
    %180 = arith.mulf %175, %179 : vector<8x8x32xf32>
    %181 = arith.addf %174, %180 : vector<8x8x32xf32>
    %182 = vector.extract_strided_slice %160 {offsets = [3, 0, 0], sizes = [8, 8, 32], strides = [1, 1, 1]} : vector<14x8x32xf32> to vector<8x8x32xf32>
    %183 = vector.extract_strided_slice %2 {offsets = [3, 3, 0], sizes = [1, 1, 32], strides = [1, 1, 1]} : vector<7x7x32xf32> to vector<1x1x32xf32>
    %184 = vector.shape_cast %183 : vector<1x1x32xf32> to vector<32xf32>
    %185 = vector.shape_cast %184 : vector<32xf32> to vector<1x1x32xf32>
    %186 = vector.broadcast %185 : vector<1x1x32xf32> to vector<8x8x32xf32>
    %187 = arith.mulf %182, %186 : vector<8x8x32xf32>
    %188 = arith.addf %181, %187 : vector<8x8x32xf32>
    %189 = vector.extract_strided_slice %160 {offsets = [4, 0, 0], sizes = [8, 8, 32], strides = [1, 1, 1]} : vector<14x8x32xf32> to vector<8x8x32xf32>
    %190 = vector.extract_strided_slice %2 {offsets = [4, 3, 0], sizes = [1, 1, 32], strides = [1, 1, 1]} : vector<7x7x32xf32> to vector<1x1x32xf32>
    %191 = vector.shape_cast %190 : vector<1x1x32xf32> to vector<32xf32>
    %192 = vector.shape_cast %191 : vector<32xf32> to vector<1x1x32xf32>
    %193 = vector.broadcast %192 : vector<1x1x32xf32> to vector<8x8x32xf32>
    %194 = arith.mulf %189, %193 : vector<8x8x32xf32>
    %195 = arith.addf %188, %194 : vector<8x8x32xf32>
    %196 = vector.extract_strided_slice %160 {offsets = [5, 0, 0], sizes = [8, 8, 32], strides = [1, 1, 1]} : vector<14x8x32xf32> to vector<8x8x32xf32>
    %197 = vector.extract_strided_slice %2 {offsets = [5, 3, 0], sizes = [1, 1, 32], strides = [1, 1, 1]} : vector<7x7x32xf32> to vector<1x1x32xf32>
    %198 = vector.shape_cast %197 : vector<1x1x32xf32> to vector<32xf32>
    %199 = vector.shape_cast %198 : vector<32xf32> to vector<1x1x32xf32>
    %200 = vector.broadcast %199 : vector<1x1x32xf32> to vector<8x8x32xf32>
    %201 = arith.mulf %196, %200 : vector<8x8x32xf32>
    %202 = arith.addf %195, %201 : vector<8x8x32xf32>
    %203 = vector.extract_strided_slice %160 {offsets = [6, 0, 0], sizes = [8, 8, 32], strides = [1, 1, 1]} : vector<14x8x32xf32> to vector<8x8x32xf32>
    %204 = vector.extract_strided_slice %2 {offsets = [6, 3, 0], sizes = [1, 1, 32], strides = [1, 1, 1]} : vector<7x7x32xf32> to vector<1x1x32xf32>
    %205 = vector.shape_cast %204 : vector<1x1x32xf32> to vector<32xf32>
    %206 = vector.shape_cast %205 : vector<32xf32> to vector<1x1x32xf32>
    %207 = vector.broadcast %206 : vector<1x1x32xf32> to vector<8x8x32xf32>
    %208 = arith.mulf %203, %207 : vector<8x8x32xf32>
    %209 = arith.addf %202, %208 : vector<8x8x32xf32>
    %210 = vector.extract_strided_slice %10 {offsets = [0, 9, 0], sizes = [14, 8, 32], strides = [1, 1, 1]} : vector<14x24x32xf32> to vector<14x8x32xf32>
    %211 = vector.extract_strided_slice %210 {offsets = [0, 0, 0], sizes = [8, 8, 32], strides = [1, 1, 1]} : vector<14x8x32xf32> to vector<8x8x32xf32>
    %212 = vector.extract_strided_slice %2 {offsets = [0, 4, 0], sizes = [1, 1, 32], strides = [1, 1, 1]} : vector<7x7x32xf32> to vector<1x1x32xf32>
    %213 = vector.shape_cast %212 : vector<1x1x32xf32> to vector<32xf32>
    %214 = vector.shape_cast %213 : vector<32xf32> to vector<1x1x32xf32>
    %215 = vector.broadcast %214 : vector<1x1x32xf32> to vector<8x8x32xf32>
    %216 = arith.mulf %211, %215 : vector<8x8x32xf32>
    %217 = arith.addf %209, %216 : vector<8x8x32xf32>
    %218 = vector.extract_strided_slice %210 {offsets = [1, 0, 0], sizes = [8, 8, 32], strides = [1, 1, 1]} : vector<14x8x32xf32> to vector<8x8x32xf32>
    %219 = vector.extract_strided_slice %2 {offsets = [1, 4, 0], sizes = [1, 1, 32], strides = [1, 1, 1]} : vector<7x7x32xf32> to vector<1x1x32xf32>
    %220 = vector.shape_cast %219 : vector<1x1x32xf32> to vector<32xf32>
    %221 = vector.shape_cast %220 : vector<32xf32> to vector<1x1x32xf32>
    %222 = vector.broadcast %221 : vector<1x1x32xf32> to vector<8x8x32xf32>
    %223 = arith.mulf %218, %222 : vector<8x8x32xf32>
    %224 = arith.addf %217, %223 : vector<8x8x32xf32>
    %225 = vector.extract_strided_slice %210 {offsets = [2, 0, 0], sizes = [8, 8, 32], strides = [1, 1, 1]} : vector<14x8x32xf32> to vector<8x8x32xf32>
    %226 = vector.extract_strided_slice %2 {offsets = [2, 4, 0], sizes = [1, 1, 32], strides = [1, 1, 1]} : vector<7x7x32xf32> to vector<1x1x32xf32>
    %227 = vector.shape_cast %226 : vector<1x1x32xf32> to vector<32xf32>
    %228 = vector.shape_cast %227 : vector<32xf32> to vector<1x1x32xf32>
    %229 = vector.broadcast %228 : vector<1x1x32xf32> to vector<8x8x32xf32>
    %230 = arith.mulf %225, %229 : vector<8x8x32xf32>
    %231 = arith.addf %224, %230 : vector<8x8x32xf32>
    %232 = vector.extract_strided_slice %210 {offsets = [3, 0, 0], sizes = [8, 8, 32], strides = [1, 1, 1]} : vector<14x8x32xf32> to vector<8x8x32xf32>
    %233 = vector.extract_strided_slice %2 {offsets = [3, 4, 0], sizes = [1, 1, 32], strides = [1, 1, 1]} : vector<7x7x32xf32> to vector<1x1x32xf32>
    %234 = vector.shape_cast %233 : vector<1x1x32xf32> to vector<32xf32>
    %235 = vector.shape_cast %234 : vector<32xf32> to vector<1x1x32xf32>
    %236 = vector.broadcast %235 : vector<1x1x32xf32> to vector<8x8x32xf32>
    %237 = arith.mulf %232, %236 : vector<8x8x32xf32>
    %238 = arith.addf %231, %237 : vector<8x8x32xf32>
    %239 = vector.extract_strided_slice %210 {offsets = [4, 0, 0], sizes = [8, 8, 32], strides = [1, 1, 1]} : vector<14x8x32xf32> to vector<8x8x32xf32>
    %240 = vector.extract_strided_slice %2 {offsets = [4, 4, 0], sizes = [1, 1, 32], strides = [1, 1, 1]} : vector<7x7x32xf32> to vector<1x1x32xf32>
    %241 = vector.shape_cast %240 : vector<1x1x32xf32> to vector<32xf32>
    %242 = vector.shape_cast %241 : vector<32xf32> to vector<1x1x32xf32>
    %243 = vector.broadcast %242 : vector<1x1x32xf32> to vector<8x8x32xf32>
    %244 = arith.mulf %239, %243 : vector<8x8x32xf32>
    %245 = arith.addf %238, %244 : vector<8x8x32xf32>
    %246 = vector.extract_strided_slice %210 {offsets = [5, 0, 0], sizes = [8, 8, 32], strides = [1, 1, 1]} : vector<14x8x32xf32> to vector<8x8x32xf32>
    %247 = vector.extract_strided_slice %2 {offsets = [5, 4, 0], sizes = [1, 1, 32], strides = [1, 1, 1]} : vector<7x7x32xf32> to vector<1x1x32xf32>
    %248 = vector.shape_cast %247 : vector<1x1x32xf32> to vector<32xf32>
    %249 = vector.shape_cast %248 : vector<32xf32> to vector<1x1x32xf32>
    %250 = vector.broadcast %249 : vector<1x1x32xf32> to vector<8x8x32xf32>
    %251 = arith.mulf %246, %250 : vector<8x8x32xf32>
    %252 = arith.addf %245, %251 : vector<8x8x32xf32>
    %253 = vector.extract_strided_slice %210 {offsets = [6, 0, 0], sizes = [8, 8, 32], strides = [1, 1, 1]} : vector<14x8x32xf32> to vector<8x8x32xf32>
    %254 = vector.extract_strided_slice %2 {offsets = [6, 4, 0], sizes = [1, 1, 32], strides = [1, 1, 1]} : vector<7x7x32xf32> to vector<1x1x32xf32>
    %255 = vector.shape_cast %254 : vector<1x1x32xf32> to vector<32xf32>
    %256 = vector.shape_cast %255 : vector<32xf32> to vector<1x1x32xf32>
    %257 = vector.broadcast %256 : vector<1x1x32xf32> to vector<8x8x32xf32>
    %258 = arith.mulf %253, %257 : vector<8x8x32xf32>
    %259 = arith.addf %252, %258 : vector<8x8x32xf32>
    %260 = vector.extract_strided_slice %10 {offsets = [0, 10, 0], sizes = [14, 8, 32], strides = [1, 1, 1]} : vector<14x24x32xf32> to vector<14x8x32xf32>
    %261 = vector.extract_strided_slice %260 {offsets = [0, 0, 0], sizes = [8, 8, 32], strides = [1, 1, 1]} : vector<14x8x32xf32> to vector<8x8x32xf32>
    %262 = vector.extract_strided_slice %2 {offsets = [0, 5, 0], sizes = [1, 1, 32], strides = [1, 1, 1]} : vector<7x7x32xf32> to vector<1x1x32xf32>
    %263 = vector.shape_cast %262 : vector<1x1x32xf32> to vector<32xf32>
    %264 = vector.shape_cast %263 : vector<32xf32> to vector<1x1x32xf32>
    %265 = vector.broadcast %264 : vector<1x1x32xf32> to vector<8x8x32xf32>
    %266 = arith.mulf %261, %265 : vector<8x8x32xf32>
    %267 = arith.addf %259, %266 : vector<8x8x32xf32>
    %268 = vector.extract_strided_slice %260 {offsets = [1, 0, 0], sizes = [8, 8, 32], strides = [1, 1, 1]} : vector<14x8x32xf32> to vector<8x8x32xf32>
    %269 = vector.extract_strided_slice %2 {offsets = [1, 5, 0], sizes = [1, 1, 32], strides = [1, 1, 1]} : vector<7x7x32xf32> to vector<1x1x32xf32>
    %270 = vector.shape_cast %269 : vector<1x1x32xf32> to vector<32xf32>
    %271 = vector.shape_cast %270 : vector<32xf32> to vector<1x1x32xf32>
    %272 = vector.broadcast %271 : vector<1x1x32xf32> to vector<8x8x32xf32>
    %273 = arith.mulf %268, %272 : vector<8x8x32xf32>
    %274 = arith.addf %267, %273 : vector<8x8x32xf32>
    %275 = vector.extract_strided_slice %260 {offsets = [2, 0, 0], sizes = [8, 8, 32], strides = [1, 1, 1]} : vector<14x8x32xf32> to vector<8x8x32xf32>
    %276 = vector.extract_strided_slice %2 {offsets = [2, 5, 0], sizes = [1, 1, 32], strides = [1, 1, 1]} : vector<7x7x32xf32> to vector<1x1x32xf32>
    %277 = vector.shape_cast %276 : vector<1x1x32xf32> to vector<32xf32>
    %278 = vector.shape_cast %277 : vector<32xf32> to vector<1x1x32xf32>
    %279 = vector.broadcast %278 : vector<1x1x32xf32> to vector<8x8x32xf32>
    %280 = arith.mulf %275, %279 : vector<8x8x32xf32>
    %281 = arith.addf %274, %280 : vector<8x8x32xf32>
    %282 = vector.extract_strided_slice %260 {offsets = [3, 0, 0], sizes = [8, 8, 32], strides = [1, 1, 1]} : vector<14x8x32xf32> to vector<8x8x32xf32>
    %283 = vector.extract_strided_slice %2 {offsets = [3, 5, 0], sizes = [1, 1, 32], strides = [1, 1, 1]} : vector<7x7x32xf32> to vector<1x1x32xf32>
    %284 = vector.shape_cast %283 : vector<1x1x32xf32> to vector<32xf32>
    %285 = vector.shape_cast %284 : vector<32xf32> to vector<1x1x32xf32>
    %286 = vector.broadcast %285 : vector<1x1x32xf32> to vector<8x8x32xf32>
    %287 = arith.mulf %282, %286 : vector<8x8x32xf32>
    %288 = arith.addf %281, %287 : vector<8x8x32xf32>
    %289 = vector.extract_strided_slice %260 {offsets = [4, 0, 0], sizes = [8, 8, 32], strides = [1, 1, 1]} : vector<14x8x32xf32> to vector<8x8x32xf32>
    %290 = vector.extract_strided_slice %2 {offsets = [4, 5, 0], sizes = [1, 1, 32], strides = [1, 1, 1]} : vector<7x7x32xf32> to vector<1x1x32xf32>
    %291 = vector.shape_cast %290 : vector<1x1x32xf32> to vector<32xf32>
    %292 = vector.shape_cast %291 : vector<32xf32> to vector<1x1x32xf32>
    %293 = vector.broadcast %292 : vector<1x1x32xf32> to vector<8x8x32xf32>
    %294 = arith.mulf %289, %293 : vector<8x8x32xf32>
    %295 = arith.addf %288, %294 : vector<8x8x32xf32>
    %296 = vector.extract_strided_slice %260 {offsets = [5, 0, 0], sizes = [8, 8, 32], strides = [1, 1, 1]} : vector<14x8x32xf32> to vector<8x8x32xf32>
    %297 = vector.extract_strided_slice %2 {offsets = [5, 5, 0], sizes = [1, 1, 32], strides = [1, 1, 1]} : vector<7x7x32xf32> to vector<1x1x32xf32>
    %298 = vector.shape_cast %297 : vector<1x1x32xf32> to vector<32xf32>
    %299 = vector.shape_cast %298 : vector<32xf32> to vector<1x1x32xf32>
    %300 = vector.broadcast %299 : vector<1x1x32xf32> to vector<8x8x32xf32>
    %301 = arith.mulf %296, %300 : vector<8x8x32xf32>
    %302 = arith.addf %295, %301 : vector<8x8x32xf32>
    %303 = vector.extract_strided_slice %260 {offsets = [6, 0, 0], sizes = [8, 8, 32], strides = [1, 1, 1]} : vector<14x8x32xf32> to vector<8x8x32xf32>
    %304 = vector.extract_strided_slice %2 {offsets = [6, 5, 0], sizes = [1, 1, 32], strides = [1, 1, 1]} : vector<7x7x32xf32> to vector<1x1x32xf32>
    %305 = vector.shape_cast %304 : vector<1x1x32xf32> to vector<32xf32>
    %306 = vector.shape_cast %305 : vector<32xf32> to vector<1x1x32xf32>
    %307 = vector.broadcast %306 : vector<1x1x32xf32> to vector<8x8x32xf32>
    %308 = arith.mulf %303, %307 : vector<8x8x32xf32>
    %309 = arith.addf %302, %308 : vector<8x8x32xf32>
    %310 = vector.extract_strided_slice %10 {offsets = [0, 11, 0], sizes = [14, 8, 32], strides = [1, 1, 1]} : vector<14x24x32xf32> to vector<14x8x32xf32>
    %311 = vector.extract_strided_slice %310 {offsets = [0, 0, 0], sizes = [8, 8, 32], strides = [1, 1, 1]} : vector<14x8x32xf32> to vector<8x8x32xf32>
    %312 = vector.extract_strided_slice %2 {offsets = [0, 6, 0], sizes = [1, 1, 32], strides = [1, 1, 1]} : vector<7x7x32xf32> to vector<1x1x32xf32>
    %313 = vector.shape_cast %312 : vector<1x1x32xf32> to vector<32xf32>
    %314 = vector.shape_cast %313 : vector<32xf32> to vector<1x1x32xf32>
    %315 = vector.broadcast %314 : vector<1x1x32xf32> to vector<8x8x32xf32>
    %316 = arith.mulf %311, %315 : vector<8x8x32xf32>
    %317 = arith.addf %309, %316 : vector<8x8x32xf32>
    %318 = vector.extract_strided_slice %310 {offsets = [1, 0, 0], sizes = [8, 8, 32], strides = [1, 1, 1]} : vector<14x8x32xf32> to vector<8x8x32xf32>
    %319 = vector.extract_strided_slice %2 {offsets = [1, 6, 0], sizes = [1, 1, 32], strides = [1, 1, 1]} : vector<7x7x32xf32> to vector<1x1x32xf32>
    %320 = vector.shape_cast %319 : vector<1x1x32xf32> to vector<32xf32>
    %321 = vector.shape_cast %320 : vector<32xf32> to vector<1x1x32xf32>
    %322 = vector.broadcast %321 : vector<1x1x32xf32> to vector<8x8x32xf32>
    %323 = arith.mulf %318, %322 : vector<8x8x32xf32>
    %324 = arith.addf %317, %323 : vector<8x8x32xf32>
    %325 = vector.extract_strided_slice %310 {offsets = [2, 0, 0], sizes = [8, 8, 32], strides = [1, 1, 1]} : vector<14x8x32xf32> to vector<8x8x32xf32>
    %326 = vector.extract_strided_slice %2 {offsets = [2, 6, 0], sizes = [1, 1, 32], strides = [1, 1, 1]} : vector<7x7x32xf32> to vector<1x1x32xf32>
    %327 = vector.shape_cast %326 : vector<1x1x32xf32> to vector<32xf32>
    %328 = vector.shape_cast %327 : vector<32xf32> to vector<1x1x32xf32>
    %329 = vector.broadcast %328 : vector<1x1x32xf32> to vector<8x8x32xf32>
    %330 = arith.mulf %325, %329 : vector<8x8x32xf32>
    %331 = arith.addf %324, %330 : vector<8x8x32xf32>
    %332 = vector.extract_strided_slice %310 {offsets = [3, 0, 0], sizes = [8, 8, 32], strides = [1, 1, 1]} : vector<14x8x32xf32> to vector<8x8x32xf32>
    %333 = vector.extract_strided_slice %2 {offsets = [3, 6, 0], sizes = [1, 1, 32], strides = [1, 1, 1]} : vector<7x7x32xf32> to vector<1x1x32xf32>
    %334 = vector.shape_cast %333 : vector<1x1x32xf32> to vector<32xf32>
    %335 = vector.shape_cast %334 : vector<32xf32> to vector<1x1x32xf32>
    %336 = vector.broadcast %335 : vector<1x1x32xf32> to vector<8x8x32xf32>
    %337 = arith.mulf %332, %336 : vector<8x8x32xf32>
    %338 = arith.addf %331, %337 : vector<8x8x32xf32>
    %339 = vector.extract_strided_slice %310 {offsets = [4, 0, 0], sizes = [8, 8, 32], strides = [1, 1, 1]} : vector<14x8x32xf32> to vector<8x8x32xf32>
    %340 = vector.extract_strided_slice %2 {offsets = [4, 6, 0], sizes = [1, 1, 32], strides = [1, 1, 1]} : vector<7x7x32xf32> to vector<1x1x32xf32>
    %341 = vector.shape_cast %340 : vector<1x1x32xf32> to vector<32xf32>
    %342 = vector.shape_cast %341 : vector<32xf32> to vector<1x1x32xf32>
    %343 = vector.broadcast %342 : vector<1x1x32xf32> to vector<8x8x32xf32>
    %344 = arith.mulf %339, %343 : vector<8x8x32xf32>
    %345 = arith.addf %338, %344 : vector<8x8x32xf32>
    %346 = vector.extract_strided_slice %310 {offsets = [5, 0, 0], sizes = [8, 8, 32], strides = [1, 1, 1]} : vector<14x8x32xf32> to vector<8x8x32xf32>
    %347 = vector.extract_strided_slice %2 {offsets = [5, 6, 0], sizes = [1, 1, 32], strides = [1, 1, 1]} : vector<7x7x32xf32> to vector<1x1x32xf32>
    %348 = vector.shape_cast %347 : vector<1x1x32xf32> to vector<32xf32>
    %349 = vector.shape_cast %348 : vector<32xf32> to vector<1x1x32xf32>
    %350 = vector.broadcast %349 : vector<1x1x32xf32> to vector<8x8x32xf32>
    %351 = arith.mulf %346, %350 : vector<8x8x32xf32>
    %352 = arith.addf %345, %351 : vector<8x8x32xf32>
    %353 = vector.extract_strided_slice %310 {offsets = [6, 0, 0], sizes = [8, 8, 32], strides = [1, 1, 1]} : vector<14x8x32xf32> to vector<8x8x32xf32>
    %354 = vector.extract_strided_slice %2 {offsets = [6, 6, 0], sizes = [1, 1, 32], strides = [1, 1, 1]} : vector<7x7x32xf32> to vector<1x1x32xf32>
    %355 = vector.shape_cast %354 : vector<1x1x32xf32> to vector<32xf32>
    %356 = vector.shape_cast %355 : vector<32xf32> to vector<1x1x32xf32>
    %357 = vector.broadcast %356 : vector<1x1x32xf32> to vector<8x8x32xf32>
    %358 = arith.mulf %353, %357 : vector<8x8x32xf32>
    %359 = arith.addf %352, %358 : vector<8x8x32xf32>
    %360 = vector.shape_cast %359 : vector<8x8x32xf32> to vector<64x32xf32>
    %361 = vector.broadcast %3 : vector<1x32xf32> to vector<64x32xf32>
    %362 = arith.addf %360, %361 : vector<64x32xf32>
    %cst_19 = arith.constant dense<0.000000e+00> : vector<64xf32>
    %363 = vector.multi_reduction <add>, %362, %cst_19 [1] : vector<64x32xf32> to vector<64xf32>
    %364 = vector.shape_cast %363 : vector<64xf32> to vector<64x1xf32>
    %cst_20 = arith.constant 3.200000e+01 : f32
    %365 = vector.broadcast %cst_20 : f32 to vector<64x1xf32>
    %366 = arith.divf %364, %365 : vector<64x1xf32>
    %367 = vector.broadcast %366 : vector<64x1xf32> to vector<64x32xf32>
    %368 = arith.subf %362, %367 : vector<64x32xf32>
    %369 = arith.mulf %368, %368 : vector<64x32xf32>
    %cst_21 = arith.constant dense<0.000000e+00> : vector<64xf32>
    %370 = vector.multi_reduction <add>, %369, %cst_21 [1] : vector<64x32xf32> to vector<64xf32>
    %371 = vector.shape_cast %370 : vector<64xf32> to vector<64x1xf32>
    %cst_22 = arith.constant 3.200000e+01 : f32
    %372 = vector.broadcast %cst_22 : f32 to vector<64x1xf32>
    %373 = arith.divf %371, %372 : vector<64x1xf32>
    %cst_23 = arith.constant 9.99999997E-7 : f32
    %374 = vector.broadcast %cst_23 : f32 to vector<64x1xf32>
    %375 = arith.addf %373, %374 : vector<64x1xf32>
    %376 = math.rsqrt %375 : vector<64x1xf32>
    %377 = vector.broadcast %376 : vector<64x1xf32> to vector<64x32xf32>
    %378 = arith.mulf %368, %377 : vector<64x32xf32>
    %379 = vector.broadcast %4 : vector<1x32xf32> to vector<64x32xf32>
    %380 = arith.mulf %378, %379 : vector<64x32xf32>
    %381 = vector.broadcast %5 : vector<1x32xf32> to vector<64x32xf32>
    %382 = arith.addf %380, %381 : vector<64x32xf32>
    %c64_i32 = arith.constant 64 : i32
    %383 = arith.muli %c0_i32, %c64_i32 : i32
    %384 = tpu.assume_multiple %383, 64 : i32
    %385 = arith.index_cast %384 : i32 to index
    %c0_24 = arith.constant 0 : index
    %386 = vector.load %arg14[%385, %c0_24] : memref<128x32xf32, #tpu.memory_space<vmem>>, vector<64x32xf32>
    tpu.vector_store %arg14[%385, %c0_24], %382 {strides = array<i32>} : memref<128x32xf32, #tpu.memory_space<vmem>>, vector<64x32xf32>,
    %c1_i32 = arith.constant 1 : i32
    %c0_25 = arith.constant 0 : index
    %387 = arith.index_cast %c1_i32 : i32 to index
    %c0_26 = arith.constant 0 : index
    %c0_27 = arith.constant 0 : index
    %c0_28 = arith.constant 0 : index
    %388 = vector.load %arg1[%c0_25, %387, %c0_26, %c0_27, %c0_28] : memref<1x2x8x8x32xf32, #tpu.memory_space<vmem>>, vector<1x1x8x8x32xf32>
    %389 = vector.shape_cast %388 : vector<1x1x8x8x32xf32> to vector<8x8x32xf32>
    %c3_29 = arith.constant 3 : index
    %c8_30 = arith.constant 8 : index
    %c0_31 = arith.constant 0 : index
    %390 = vector.load %arg13[%c3_29, %c8_30, %c0_31] : memref<14x24x32xf32, #tpu.memory_space<vmem>>, vector<8x8x32xf32>
    tpu.vector_store %arg13[%c3_29, %c8_30, %c0_31], %389 {strides = array<i32>} : memref<14x24x32xf32, #tpu.memory_space<vmem>>, vector<8x8x32xf32>,
    %c0_32 = arith.constant 0 : index
    %c0_33 = arith.constant 0 : index
    %c0_34 = arith.constant 0 : index
    %391 = vector.load %arg13[%c0_32, %c0_33, %c0_34] : memref<14x24x32xf32, #tpu.memory_space<vmem>>, vector<14x24x32xf32>
    %392 = vector.extract_strided_slice %391 {offsets = [0, 5, 0], sizes = [14, 8, 32], strides = [1, 1, 1]} : vector<14x24x32xf32> to vector<14x8x32xf32>
    %393 = vector.extract_strided_slice %392 {offsets = [0, 0, 0], sizes = [8, 8, 32], strides = [1, 1, 1]} : vector<14x8x32xf32> to vector<8x8x32xf32>
    %394 = vector.extract_strided_slice %2 {offsets = [0, 0, 0], sizes = [1, 1, 32], strides = [1, 1, 1]} : vector<7x7x32xf32> to vector<1x1x32xf32>
    %395 = vector.shape_cast %394 : vector<1x1x32xf32> to vector<32xf32>
    %396 = vector.shape_cast %395 : vector<32xf32> to vector<1x1x32xf32>
    %397 = vector.broadcast %396 : vector<1x1x32xf32> to vector<8x8x32xf32>
    %398 = arith.mulf %393, %397 : vector<8x8x32xf32>
    %399 = vector.extract_strided_slice %392 {offsets = [1, 0, 0], sizes = [8, 8, 32], strides = [1, 1, 1]} : vector<14x8x32xf32> to vector<8x8x32xf32>
    %400 = vector.extract_strided_slice %2 {offsets = [1, 0, 0], sizes = [1, 1, 32], strides = [1, 1, 1]} : vector<7x7x32xf32> to vector<1x1x32xf32>
    %401 = vector.shape_cast %400 : vector<1x1x32xf32> to vector<32xf32>
    %402 = vector.shape_cast %401 : vector<32xf32> to vector<1x1x32xf32>
    %403 = vector.broadcast %402 : vector<1x1x32xf32> to vector<8x8x32xf32>
    %404 = arith.mulf %399, %403 : vector<8x8x32xf32>
    %405 = arith.addf %398, %404 : vector<8x8x32xf32>
    %406 = vector.extract_strided_slice %392 {offsets = [2, 0, 0], sizes = [8, 8, 32], strides = [1, 1, 1]} : vector<14x8x32xf32> to vector<8x8x32xf32>
    %407 = vector.extract_strided_slice %2 {offsets = [2, 0, 0], sizes = [1, 1, 32], strides = [1, 1, 1]} : vector<7x7x32xf32> to vector<1x1x32xf32>
    %408 = vector.shape_cast %407 : vector<1x1x32xf32> to vector<32xf32>
    %409 = vector.shape_cast %408 : vector<32xf32> to vector<1x1x32xf32>
    %410 = vector.broadcast %409 : vector<1x1x32xf32> to vector<8x8x32xf32>
    %411 = arith.mulf %406, %410 : vector<8x8x32xf32>
    %412 = arith.addf %405, %411 : vector<8x8x32xf32>
    %413 = vector.extract_strided_slice %392 {offsets = [3, 0, 0], sizes = [8, 8, 32], strides = [1, 1, 1]} : vector<14x8x32xf32> to vector<8x8x32xf32>
    %414 = vector.extract_strided_slice %2 {offsets = [3, 0, 0], sizes = [1, 1, 32], strides = [1, 1, 1]} : vector<7x7x32xf32> to vector<1x1x32xf32>
    %415 = vector.shape_cast %414 : vector<1x1x32xf32> to vector<32xf32>
    %416 = vector.shape_cast %415 : vector<32xf32> to vector<1x1x32xf32>
    %417 = vector.broadcast %416 : vector<1x1x32xf32> to vector<8x8x32xf32>
    %418 = arith.mulf %413, %417 : vector<8x8x32xf32>
    %419 = arith.addf %412, %418 : vector<8x8x32xf32>
    %420 = vector.extract_strided_slice %392 {offsets = [4, 0, 0], sizes = [8, 8, 32], strides = [1, 1, 1]} : vector<14x8x32xf32> to vector<8x8x32xf32>
    %421 = vector.extract_strided_slice %2 {offsets = [4, 0, 0], sizes = [1, 1, 32], strides = [1, 1, 1]} : vector<7x7x32xf32> to vector<1x1x32xf32>
    %422 = vector.shape_cast %421 : vector<1x1x32xf32> to vector<32xf32>
    %423 = vector.shape_cast %422 : vector<32xf32> to vector<1x1x32xf32>
    %424 = vector.broadcast %423 : vector<1x1x32xf32> to vector<8x8x32xf32>
    %425 = arith.mulf %420, %424 : vector<8x8x32xf32>
    %426 = arith.addf %419, %425 : vector<8x8x32xf32>
    %427 = vector.extract_strided_slice %392 {offsets = [5, 0, 0], sizes = [8, 8, 32], strides = [1, 1, 1]} : vector<14x8x32xf32> to vector<8x8x32xf32>
    %428 = vector.extract_strided_slice %2 {offsets = [5, 0, 0], sizes = [1, 1, 32], strides = [1, 1, 1]} : vector<7x7x32xf32> to vector<1x1x32xf32>
    %429 = vector.shape_cast %428 : vector<1x1x32xf32> to vector<32xf32>
    %430 = vector.shape_cast %429 : vector<32xf32> to vector<1x1x32xf32>
    %431 = vector.broadcast %430 : vector<1x1x32xf32> to vector<8x8x32xf32>
    %432 = arith.mulf %427, %431 : vector<8x8x32xf32>
    %433 = arith.addf %426, %432 : vector<8x8x32xf32>
    %434 = vector.extract_strided_slice %392 {offsets = [6, 0, 0], sizes = [8, 8, 32], strides = [1, 1, 1]} : vector<14x8x32xf32> to vector<8x8x32xf32>
    %435 = vector.extract_strided_slice %2 {offsets = [6, 0, 0], sizes = [1, 1, 32], strides = [1, 1, 1]} : vector<7x7x32xf32> to vector<1x1x32xf32>
    %436 = vector.shape_cast %435 : vector<1x1x32xf32> to vector<32xf32>
    %437 = vector.shape_cast %436 : vector<32xf32> to vector<1x1x32xf32>
    %438 = vector.broadcast %437 : vector<1x1x32xf32> to vector<8x8x32xf32>
    %439 = arith.mulf %434, %438 : vector<8x8x32xf32>
    %440 = arith.addf %433, %439 : vector<8x8x32xf32>
    %441 = vector.extract_strided_slice %391 {offsets = [0, 6, 0], sizes = [14, 8, 32], strides = [1, 1, 1]} : vector<14x24x32xf32> to vector<14x8x32xf32>
    %442 = vector.extract_strided_slice %441 {offsets = [0, 0, 0], sizes = [8, 8, 32], strides = [1, 1, 1]} : vector<14x8x32xf32> to vector<8x8x32xf32>
    %443 = vector.extract_strided_slice %2 {offsets = [0, 1, 0], sizes = [1, 1, 32], strides = [1, 1, 1]} : vector<7x7x32xf32> to vector<1x1x32xf32>
    %444 = vector.shape_cast %443 : vector<1x1x32xf32> to vector<32xf32>
    %445 = vector.shape_cast %444 : vector<32xf32> to vector<1x1x32xf32>
    %446 = vector.broadcast %445 : vector<1x1x32xf32> to vector<8x8x32xf32>
    %447 = arith.mulf %442, %446 : vector<8x8x32xf32>
    %448 = arith.addf %440, %447 : vector<8x8x32xf32>
    %449 = vector.extract_strided_slice %441 {offsets = [1, 0, 0], sizes = [8, 8, 32], strides = [1, 1, 1]} : vector<14x8x32xf32> to vector<8x8x32xf32>
    %450 = vector.extract_strided_slice %2 {offsets = [1, 1, 0], sizes = [1, 1, 32], strides = [1, 1, 1]} : vector<7x7x32xf32> to vector<1x1x32xf32>
    %451 = vector.shape_cast %450 : vector<1x1x32xf32> to vector<32xf32>
    %452 = vector.shape_cast %451 : vector<32xf32> to vector<1x1x32xf32>
    %453 = vector.broadcast %452 : vector<1x1x32xf32> to vector<8x8x32xf32>
    %454 = arith.mulf %449, %453 : vector<8x8x32xf32>
    %455 = arith.addf %448, %454 : vector<8x8x32xf32>
    %456 = vector.extract_strided_slice %441 {offsets = [2, 0, 0], sizes = [8, 8, 32], strides = [1, 1, 1]} : vector<14x8x32xf32> to vector<8x8x32xf32>
    %457 = vector.extract_strided_slice %2 {offsets = [2, 1, 0], sizes = [1, 1, 32], strides = [1, 1, 1]} : vector<7x7x32xf32> to vector<1x1x32xf32>
    %458 = vector.shape_cast %457 : vector<1x1x32xf32> to vector<32xf32>
    %459 = vector.shape_cast %458 : vector<32xf32> to vector<1x1x32xf32>
    %460 = vector.broadcast %459 : vector<1x1x32xf32> to vector<8x8x32xf32>
    %461 = arith.mulf %456, %460 : vector<8x8x32xf32>
    %462 = arith.addf %455, %461 : vector<8x8x32xf32>
    %463 = vector.extract_strided_slice %441 {offsets = [3, 0, 0], sizes = [8, 8, 32], strides = [1, 1, 1]} : vector<14x8x32xf32> to vector<8x8x32xf32>
    %464 = vector.extract_strided_slice %2 {offsets = [3, 1, 0], sizes = [1, 1, 32], strides = [1, 1, 1]} : vector<7x7x32xf32> to vector<1x1x32xf32>
    %465 = vector.shape_cast %464 : vector<1x1x32xf32> to vector<32xf32>
    %466 = vector.shape_cast %465 : vector<32xf32> to vector<1x1x32xf32>
    %467 = vector.broadcast %466 : vector<1x1x32xf32> to vector<8x8x32xf32>
    %468 = arith.mulf %463, %467 : vector<8x8x32xf32>
    %469 = arith.addf %462, %468 : vector<8x8x32xf32>
    %470 = vector.extract_strided_slice %441 {offsets = [4, 0, 0], sizes = [8, 8, 32], strides = [1, 1, 1]} : vector<14x8x32xf32> to vector<8x8x32xf32>
    %471 = vector.extract_strided_slice %2 {offsets = [4, 1, 0], sizes = [1, 1, 32], strides = [1, 1, 1]} : vector<7x7x32xf32> to vector<1x1x32xf32>
    %472 = vector.shape_cast %471 : vector<1x1x32xf32> to vector<32xf32>
    %473 = vector.shape_cast %472 : vector<32xf32> to vector<1x1x32xf32>
    %474 = vector.broadcast %473 : vector<1x1x32xf32> to vector<8x8x32xf32>
    %475 = arith.mulf %470, %474 : vector<8x8x32xf32>
    %476 = arith.addf %469, %475 : vector<8x8x32xf32>
    %477 = vector.extract_strided_slice %441 {offsets = [5, 0, 0], sizes = [8, 8, 32], strides = [1, 1, 1]} : vector<14x8x32xf32> to vector<8x8x32xf32>
    %478 = vector.extract_strided_slice %2 {offsets = [5, 1, 0], sizes = [1, 1, 32], strides = [1, 1, 1]} : vector<7x7x32xf32> to vector<1x1x32xf32>
    %479 = vector.shape_cast %478 : vector<1x1x32xf32> to vector<32xf32>
    %480 = vector.shape_cast %479 : vector<32xf32> to vector<1x1x32xf32>
    %481 = vector.broadcast %480 : vector<1x1x32xf32> to vector<8x8x32xf32>
    %482 = arith.mulf %477, %481 : vector<8x8x32xf32>
    %483 = arith.addf %476, %482 : vector<8x8x32xf32>
    %484 = vector.extract_strided_slice %441 {offsets = [6, 0, 0], sizes = [8, 8, 32], strides = [1, 1, 1]} : vector<14x8x32xf32> to vector<8x8x32xf32>
    %485 = vector.extract_strided_slice %2 {offsets = [6, 1, 0], sizes = [1, 1, 32], strides = [1, 1, 1]} : vector<7x7x32xf32> to vector<1x1x32xf32>
    %486 = vector.shape_cast %485 : vector<1x1x32xf32> to vector<32xf32>
    %487 = vector.shape_cast %486 : vector<32xf32> to vector<1x1x32xf32>
    %488 = vector.broadcast %487 : vector<1x1x32xf32> to vector<8x8x32xf32>
    %489 = arith.mulf %484, %488 : vector<8x8x32xf32>
    %490 = arith.addf %483, %489 : vector<8x8x32xf32>
    %491 = vector.extract_strided_slice %391 {offsets = [0, 7, 0], sizes = [14, 8, 32], strides = [1, 1, 1]} : vector<14x24x32xf32> to vector<14x8x32xf32>
    %492 = vector.extract_strided_slice %491 {offsets = [0, 0, 0], sizes = [8, 8, 32], strides = [1, 1, 1]} : vector<14x8x32xf32> to vector<8x8x32xf32>
    %493 = vector.extract_strided_slice %2 {offsets = [0, 2, 0], sizes = [1, 1, 32], strides = [1, 1, 1]} : vector<7x7x32xf32> to vector<1x1x32xf32>
    %494 = vector.shape_cast %493 : vector<1x1x32xf32> to vector<32xf32>
    %495 = vector.shape_cast %494 : vector<32xf32> to vector<1x1x32xf32>
    %496 = vector.broadcast %495 : vector<1x1x32xf32> to vector<8x8x32xf32>
    %497 = arith.mulf %492, %496 : vector<8x8x32xf32>
    %498 = arith.addf %490, %497 : vector<8x8x32xf32>
    %499 = vector.extract_strided_slice %491 {offsets = [1, 0, 0], sizes = [8, 8, 32], strides = [1, 1, 1]} : vector<14x8x32xf32> to vector<8x8x32xf32>
    %500 = vector.extract_strided_slice %2 {offsets = [1, 2, 0], sizes = [1, 1, 32], strides = [1, 1, 1]} : vector<7x7x32xf32> to vector<1x1x32xf32>
    %501 = vector.shape_cast %500 : vector<1x1x32xf32> to vector<32xf32>
    %502 = vector.shape_cast %501 : vector<32xf32> to vector<1x1x32xf32>
    %503 = vector.broadcast %502 : vector<1x1x32xf32> to vector<8x8x32xf32>
    %504 = arith.mulf %499, %503 : vector<8x8x32xf32>
    %505 = arith.addf %498, %504 : vector<8x8x32xf32>
    %506 = vector.extract_strided_slice %491 {offsets = [2, 0, 0], sizes = [8, 8, 32], strides = [1, 1, 1]} : vector<14x8x32xf32> to vector<8x8x32xf32>
    %507 = vector.extract_strided_slice %2 {offsets = [2, 2, 0], sizes = [1, 1, 32], strides = [1, 1, 1]} : vector<7x7x32xf32> to vector<1x1x32xf32>
    %508 = vector.shape_cast %507 : vector<1x1x32xf32> to vector<32xf32>
    %509 = vector.shape_cast %508 : vector<32xf32> to vector<1x1x32xf32>
    %510 = vector.broadcast %509 : vector<1x1x32xf32> to vector<8x8x32xf32>
    %511 = arith.mulf %506, %510 : vector<8x8x32xf32>
    %512 = arith.addf %505, %511 : vector<8x8x32xf32>
    %513 = vector.extract_strided_slice %491 {offsets = [3, 0, 0], sizes = [8, 8, 32], strides = [1, 1, 1]} : vector<14x8x32xf32> to vector<8x8x32xf32>
    %514 = vector.extract_strided_slice %2 {offsets = [3, 2, 0], sizes = [1, 1, 32], strides = [1, 1, 1]} : vector<7x7x32xf32> to vector<1x1x32xf32>
    %515 = vector.shape_cast %514 : vector<1x1x32xf32> to vector<32xf32>
    %516 = vector.shape_cast %515 : vector<32xf32> to vector<1x1x32xf32>
    %517 = vector.broadcast %516 : vector<1x1x32xf32> to vector<8x8x32xf32>
    %518 = arith.mulf %513, %517 : vector<8x8x32xf32>
    %519 = arith.addf %512, %518 : vector<8x8x32xf32>
    %520 = vector.extract_strided_slice %491 {offsets = [4, 0, 0], sizes = [8, 8, 32], strides = [1, 1, 1]} : vector<14x8x32xf32> to vector<8x8x32xf32>
    %521 = vector.extract_strided_slice %2 {offsets = [4, 2, 0], sizes = [1, 1, 32], strides = [1, 1, 1]} : vector<7x7x32xf32> to vector<1x1x32xf32>
    %522 = vector.shape_cast %521 : vector<1x1x32xf32> to vector<32xf32>
    %523 = vector.shape_cast %522 : vector<32xf32> to vector<1x1x32xf32>
    %524 = vector.broadcast %523 : vector<1x1x32xf32> to vector<8x8x32xf32>
    %525 = arith.mulf %520, %524 : vector<8x8x32xf32>
    %526 = arith.addf %519, %525 : vector<8x8x32xf32>
    %527 = vector.extract_strided_slice %491 {offsets = [5, 0, 0], sizes = [8, 8, 32], strides = [1, 1, 1]} : vector<14x8x32xf32> to vector<8x8x32xf32>
    %528 = vector.extract_strided_slice %2 {offsets = [5, 2, 0], sizes = [1, 1, 32], strides = [1, 1, 1]} : vector<7x7x32xf32> to vector<1x1x32xf32>
    %529 = vector.shape_cast %528 : vector<1x1x32xf32> to vector<32xf32>
    %530 = vector.shape_cast %529 : vector<32xf32> to vector<1x1x32xf32>
    %531 = vector.broadcast %530 : vector<1x1x32xf32> to vector<8x8x32xf32>
    %532 = arith.mulf %527, %531 : vector<8x8x32xf32>
    %533 = arith.addf %526, %532 : vector<8x8x32xf32>
    %534 = vector.extract_strided_slice %491 {offsets = [6, 0, 0], sizes = [8, 8, 32], strides = [1, 1, 1]} : vector<14x8x32xf32> to vector<8x8x32xf32>
    %535 = vector.extract_strided_slice %2 {offsets = [6, 2, 0], sizes = [1, 1, 32], strides = [1, 1, 1]} : vector<7x7x32xf32> to vector<1x1x32xf32>
    %536 = vector.shape_cast %535 : vector<1x1x32xf32> to vector<32xf32>
    %537 = vector.shape_cast %536 : vector<32xf32> to vector<1x1x32xf32>
    %538 = vector.broadcast %537 : vector<1x1x32xf32> to vector<8x8x32xf32>
    %539 = arith.mulf %534, %538 : vector<8x8x32xf32>
    %540 = arith.addf %533, %539 : vector<8x8x32xf32>
    %541 = vector.extract_strided_slice %391 {offsets = [0, 8, 0], sizes = [14, 8, 32], strides = [1, 1, 1]} : vector<14x24x32xf32> to vector<14x8x32xf32>
    %542 = vector.extract_strided_slice %541 {offsets = [0, 0, 0], sizes = [8, 8, 32], strides = [1, 1, 1]} : vector<14x8x32xf32> to vector<8x8x32xf32>
    %543 = vector.extract_strided_slice %2 {offsets = [0, 3, 0], sizes = [1, 1, 32], strides = [1, 1, 1]} : vector<7x7x32xf32> to vector<1x1x32xf32>
    %544 = vector.shape_cast %543 : vector<1x1x32xf32> to vector<32xf32>
    %545 = vector.shape_cast %544 : vector<32xf32> to vector<1x1x32xf32>
    %546 = vector.broadcast %545 : vector<1x1x32xf32> to vector<8x8x32xf32>
    %547 = arith.mulf %542, %546 : vector<8x8x32xf32>
    %548 = arith.addf %540, %547 : vector<8x8x32xf32>
    %549 = vector.extract_strided_slice %541 {offsets = [1, 0, 0], sizes = [8, 8, 32], strides = [1, 1, 1]} : vector<14x8x32xf32> to vector<8x8x32xf32>
    %550 = vector.extract_strided_slice %2 {offsets = [1, 3, 0], sizes = [1, 1, 32], strides = [1, 1, 1]} : vector<7x7x32xf32> to vector<1x1x32xf32>
    %551 = vector.shape_cast %550 : vector<1x1x32xf32> to vector<32xf32>
    %552 = vector.shape_cast %551 : vector<32xf32> to vector<1x1x32xf32>
    %553 = vector.broadcast %552 : vector<1x1x32xf32> to vector<8x8x32xf32>
    %554 = arith.mulf %549, %553 : vector<8x8x32xf32>
    %555 = arith.addf %548, %554 : vector<8x8x32xf32>
    %556 = vector.extract_strided_slice %541 {offsets = [2, 0, 0], sizes = [8, 8, 32], strides = [1, 1, 1]} : vector<14x8x32xf32> to vector<8x8x32xf32>
    %557 = vector.extract_strided_slice %2 {offsets = [2, 3, 0], sizes = [1, 1, 32], strides = [1, 1, 1]} : vector<7x7x32xf32> to vector<1x1x32xf32>
    %558 = vector.shape_cast %557 : vector<1x1x32xf32> to vector<32xf32>
    %559 = vector.shape_cast %558 : vector<32xf32> to vector<1x1x32xf32>
    %560 = vector.broadcast %559 : vector<1x1x32xf32> to vector<8x8x32xf32>
    %561 = arith.mulf %556, %560 : vector<8x8x32xf32>
    %562 = arith.addf %555, %561 : vector<8x8x32xf32>
    %563 = vector.extract_strided_slice %541 {offsets = [3, 0, 0], sizes = [8, 8, 32], strides = [1, 1, 1]} : vector<14x8x32xf32> to vector<8x8x32xf32>
    %564 = vector.extract_strided_slice %2 {offsets = [3, 3, 0], sizes = [1, 1, 32], strides = [1, 1, 1]} : vector<7x7x32xf32> to vector<1x1x32xf32>
    %565 = vector.shape_cast %564 : vector<1x1x32xf32> to vector<32xf32>
    %566 = vector.shape_cast %565 : vector<32xf32> to vector<1x1x32xf32>
    %567 = vector.broadcast %566 : vector<1x1x32xf32> to vector<8x8x32xf32>
    %568 = arith.mulf %563, %567 : vector<8x8x32xf32>
    %569 = arith.addf %562, %568 : vector<8x8x32xf32>
    %570 = vector.extract_strided_slice %541 {offsets = [4, 0, 0], sizes = [8, 8, 32], strides = [1, 1, 1]} : vector<14x8x32xf32> to vector<8x8x32xf32>
    %571 = vector.extract_strided_slice %2 {offsets = [4, 3, 0], sizes = [1, 1, 32], strides = [1, 1, 1]} : vector<7x7x32xf32> to vector<1x1x32xf32>
    %572 = vector.shape_cast %571 : vector<1x1x32xf32> to vector<32xf32>
    %573 = vector.shape_cast %572 : vector<32xf32> to vector<1x1x32xf32>
    %574 = vector.broadcast %573 : vector<1x1x32xf32> to vector<8x8x32xf32>
    %575 = arith.mulf %570, %574 : vector<8x8x32xf32>
    %576 = arith.addf %569, %575 : vector<8x8x32xf32>
    %577 = vector.extract_strided_slice %541 {offsets = [5, 0, 0], sizes = [8, 8, 32], strides = [1, 1, 1]} : vector<14x8x32xf32> to vector<8x8x32xf32>
    %578 = vector.extract_strided_slice %2 {offsets = [5, 3, 0], sizes = [1, 1, 32], strides = [1, 1, 1]} : vector<7x7x32xf32> to vector<1x1x32xf32>
    %579 = vector.shape_cast %578 : vector<1x1x32xf32> to vector<32xf32>
    %580 = vector.shape_cast %579 : vector<32xf32> to vector<1x1x32xf32>
    %581 = vector.broadcast %580 : vector<1x1x32xf32> to vector<8x8x32xf32>
    %582 = arith.mulf %577, %581 : vector<8x8x32xf32>
    %583 = arith.addf %576, %582 : vector<8x8x32xf32>
    %584 = vector.extract_strided_slice %541 {offsets = [6, 0, 0], sizes = [8, 8, 32], strides = [1, 1, 1]} : vector<14x8x32xf32> to vector<8x8x32xf32>
    %585 = vector.extract_strided_slice %2 {offsets = [6, 3, 0], sizes = [1, 1, 32], strides = [1, 1, 1]} : vector<7x7x32xf32> to vector<1x1x32xf32>
    %586 = vector.shape_cast %585 : vector<1x1x32xf32> to vector<32xf32>
    %587 = vector.shape_cast %586 : vector<32xf32> to vector<1x1x32xf32>
    %588 = vector.broadcast %587 : vector<1x1x32xf32> to vector<8x8x32xf32>
    %589 = arith.mulf %584, %588 : vector<8x8x32xf32>
    %590 = arith.addf %583, %589 : vector<8x8x32xf32>
    %591 = vector.extract_strided_slice %391 {offsets = [0, 9, 0], sizes = [14, 8, 32], strides = [1, 1, 1]} : vector<14x24x32xf32> to vector<14x8x32xf32>
    %592 = vector.extract_strided_slice %591 {offsets = [0, 0, 0], sizes = [8, 8, 32], strides = [1, 1, 1]} : vector<14x8x32xf32> to vector<8x8x32xf32>
    %593 = vector.extract_strided_slice %2 {offsets = [0, 4, 0], sizes = [1, 1, 32], strides = [1, 1, 1]} : vector<7x7x32xf32> to vector<1x1x32xf32>
    %594 = vector.shape_cast %593 : vector<1x1x32xf32> to vector<32xf32>
    %595 = vector.shape_cast %594 : vector<32xf32> to vector<1x1x32xf32>
    %596 = vector.broadcast %595 : vector<1x1x32xf32> to vector<8x8x32xf32>
    %597 = arith.mulf %592, %596 : vector<8x8x32xf32>
    %598 = arith.addf %590, %597 : vector<8x8x32xf32>
    %599 = vector.extract_strided_slice %591 {offsets = [1, 0, 0], sizes = [8, 8, 32], strides = [1, 1, 1]} : vector<14x8x32xf32> to vector<8x8x32xf32>
    %600 = vector.extract_strided_slice %2 {offsets = [1, 4, 0], sizes = [1, 1, 32], strides = [1, 1, 1]} : vector<7x7x32xf32> to vector<1x1x32xf32>
    %601 = vector.shape_cast %600 : vector<1x1x32xf32> to vector<32xf32>
    %602 = vector.shape_cast %601 : vector<32xf32> to vector<1x1x32xf32>
    %603 = vector.broadcast %602 : vector<1x1x32xf32> to vector<8x8x32xf32>
    %604 = arith.mulf %599, %603 : vector<8x8x32xf32>
    %605 = arith.addf %598, %604 : vector<8x8x32xf32>
    %606 = vector.extract_strided_slice %591 {offsets = [2, 0, 0], sizes = [8, 8, 32], strides = [1, 1, 1]} : vector<14x8x32xf32> to vector<8x8x32xf32>
    %607 = vector.extract_strided_slice %2 {offsets = [2, 4, 0], sizes = [1, 1, 32], strides = [1, 1, 1]} : vector<7x7x32xf32> to vector<1x1x32xf32>
    %608 = vector.shape_cast %607 : vector<1x1x32xf32> to vector<32xf32>
    %609 = vector.shape_cast %608 : vector<32xf32> to vector<1x1x32xf32>
    %610 = vector.broadcast %609 : vector<1x1x32xf32> to vector<8x8x32xf32>
    %611 = arith.mulf %606, %610 : vector<8x8x32xf32>
    %612 = arith.addf %605, %611 : vector<8x8x32xf32>
    %613 = vector.extract_strided_slice %591 {offsets = [3, 0, 0], sizes = [8, 8, 32], strides = [1, 1, 1]} : vector<14x8x32xf32> to vector<8x8x32xf32>
    %614 = vector.extract_strided_slice %2 {offsets = [3, 4, 0], sizes = [1, 1, 32], strides = [1, 1, 1]} : vector<7x7x32xf32> to vector<1x1x32xf32>
    %615 = vector.shape_cast %614 : vector<1x1x32xf32> to vector<32xf32>
    %616 = vector.shape_cast %615 : vector<32xf32> to vector<1x1x32xf32>
    %617 = vector.broadcast %616 : vector<1x1x32xf32> to vector<8x8x32xf32>
    %618 = arith.mulf %613, %617 : vector<8x8x32xf32>
    %619 = arith.addf %612, %618 : vector<8x8x32xf32>
    %620 = vector.extract_strided_slice %591 {offsets = [4, 0, 0], sizes = [8, 8, 32], strides = [1, 1, 1]} : vector<14x8x32xf32> to vector<8x8x32xf32>
    %621 = vector.extract_strided_slice %2 {offsets = [4, 4, 0], sizes = [1, 1, 32], strides = [1, 1, 1]} : vector<7x7x32xf32> to vector<1x1x32xf32>
    %622 = vector.shape_cast %621 : vector<1x1x32xf32> to vector<32xf32>
    %623 = vector.shape_cast %622 : vector<32xf32> to vector<1x1x32xf32>
    %624 = vector.broadcast %623 : vector<1x1x32xf32> to vector<8x8x32xf32>
    %625 = arith.mulf %620, %624 : vector<8x8x32xf32>
    %626 = arith.addf %619, %625 : vector<8x8x32xf32>
    %627 = vector.extract_strided_slice %591 {offsets = [5, 0, 0], sizes = [8, 8, 32], strides = [1, 1, 1]} : vector<14x8x32xf32> to vector<8x8x32xf32>
    %628 = vector.extract_strided_slice %2 {offsets = [5, 4, 0], sizes = [1, 1, 32], strides = [1, 1, 1]} : vector<7x7x32xf32> to vector<1x1x32xf32>
    %629 = vector.shape_cast %628 : vector<1x1x32xf32> to vector<32xf32>
    %630 = vector.shape_cast %629 : vector<32xf32> to vector<1x1x32xf32>
    %631 = vector.broadcast %630 : vector<1x1x32xf32> to vector<8x8x32xf32>
    %632 = arith.mulf %627, %631 : vector<8x8x32xf32>
    %633 = arith.addf %626, %632 : vector<8x8x32xf32>
    %634 = vector.extract_strided_slice %591 {offsets = [6, 0, 0], sizes = [8, 8, 32], strides = [1, 1, 1]} : vector<14x8x32xf32> to vector<8x8x32xf32>
    %635 = vector.extract_strided_slice %2 {offsets = [6, 4, 0], sizes = [1, 1, 32], strides = [1, 1, 1]} : vector<7x7x32xf32> to vector<1x1x32xf32>
    %636 = vector.shape_cast %635 : vector<1x1x32xf32> to vector<32xf32>
    %637 = vector.shape_cast %636 : vector<32xf32> to vector<1x1x32xf32>
    %638 = vector.broadcast %637 : vector<1x1x32xf32> to vector<8x8x32xf32>
    %639 = arith.mulf %634, %638 : vector<8x8x32xf32>
    %640 = arith.addf %633, %639 : vector<8x8x32xf32>
    %641 = vector.extract_strided_slice %391 {offsets = [0, 10, 0], sizes = [14, 8, 32], strides = [1, 1, 1]} : vector<14x24x32xf32> to vector<14x8x32xf32>
    %642 = vector.extract_strided_slice %641 {offsets = [0, 0, 0], sizes = [8, 8, 32], strides = [1, 1, 1]} : vector<14x8x32xf32> to vector<8x8x32xf32>
    %643 = vector.extract_strided_slice %2 {offsets = [0, 5, 0], sizes = [1, 1, 32], strides = [1, 1, 1]} : vector<7x7x32xf32> to vector<1x1x32xf32>
    %644 = vector.shape_cast %643 : vector<1x1x32xf32> to vector<32xf32>
    %645 = vector.shape_cast %644 : vector<32xf32> to vector<1x1x32xf32>
    %646 = vector.broadcast %645 : vector<1x1x32xf32> to vector<8x8x32xf32>
    %647 = arith.mulf %642, %646 : vector<8x8x32xf32>
    %648 = arith.addf %640, %647 : vector<8x8x32xf32>
    %649 = vector.extract_strided_slice %641 {offsets = [1, 0, 0], sizes = [8, 8, 32], strides = [1, 1, 1]} : vector<14x8x32xf32> to vector<8x8x32xf32>
    %650 = vector.extract_strided_slice %2 {offsets = [1, 5, 0], sizes = [1, 1, 32], strides = [1, 1, 1]} : vector<7x7x32xf32> to vector<1x1x32xf32>
    %651 = vector.shape_cast %650 : vector<1x1x32xf32> to vector<32xf32>
    %652 = vector.shape_cast %651 : vector<32xf32> to vector<1x1x32xf32>
    %653 = vector.broadcast %652 : vector<1x1x32xf32> to vector<8x8x32xf32>
    %654 = arith.mulf %649, %653 : vector<8x8x32xf32>
    %655 = arith.addf %648, %654 : vector<8x8x32xf32>
    %656 = vector.extract_strided_slice %641 {offsets = [2, 0, 0], sizes = [8, 8, 32], strides = [1, 1, 1]} : vector<14x8x32xf32> to vector<8x8x32xf32>
    %657 = vector.extract_strided_slice %2 {offsets = [2, 5, 0], sizes = [1, 1, 32], strides = [1, 1, 1]} : vector<7x7x32xf32> to vector<1x1x32xf32>
    %658 = vector.shape_cast %657 : vector<1x1x32xf32> to vector<32xf32>
    %659 = vector.shape_cast %658 : vector<32xf32> to vector<1x1x32xf32>
    %660 = vector.broadcast %659 : vector<1x1x32xf32> to vector<8x8x32xf32>
    %661 = arith.mulf %656, %660 : vector<8x8x32xf32>
    %662 = arith.addf %655, %661 : vector<8x8x32xf32>
    %663 = vector.extract_strided_slice %641 {offsets = [3, 0, 0], sizes = [8, 8, 32], strides = [1, 1, 1]} : vector<14x8x32xf32> to vector<8x8x32xf32>
    %664 = vector.extract_strided_slice %2 {offsets = [3, 5, 0], sizes = [1, 1, 32], strides = [1, 1, 1]} : vector<7x7x32xf32> to vector<1x1x32xf32>
    %665 = vector.shape_cast %664 : vector<1x1x32xf32> to vector<32xf32>
    %666 = vector.shape_cast %665 : vector<32xf32> to vector<1x1x32xf32>
    %667 = vector.broadcast %666 : vector<1x1x32xf32> to vector<8x8x32xf32>
    %668 = arith.mulf %663, %667 : vector<8x8x32xf32>
    %669 = arith.addf %662, %668 : vector<8x8x32xf32>
    %670 = vector.extract_strided_slice %641 {offsets = [4, 0, 0], sizes = [8, 8, 32], strides = [1, 1, 1]} : vector<14x8x32xf32> to vector<8x8x32xf32>
    %671 = vector.extract_strided_slice %2 {offsets = [4, 5, 0], sizes = [1, 1, 32], strides = [1, 1, 1]} : vector<7x7x32xf32> to vector<1x1x32xf32>
    %672 = vector.shape_cast %671 : vector<1x1x32xf32> to vector<32xf32>
    %673 = vector.shape_cast %672 : vector<32xf32> to vector<1x1x32xf32>
    %674 = vector.broadcast %673 : vector<1x1x32xf32> to vector<8x8x32xf32>
    %675 = arith.mulf %670, %674 : vector<8x8x32xf32>
    %676 = arith.addf %669, %675 : vector<8x8x32xf32>
    %677 = vector.extract_strided_slice %641 {offsets = [5, 0, 0], sizes = [8, 8, 32], strides = [1, 1, 1]} : vector<14x8x32xf32> to vector<8x8x32xf32>
    %678 = vector.extract_strided_slice %2 {offsets = [5, 5, 0], sizes = [1, 1, 32], strides = [1, 1, 1]} : vector<7x7x32xf32> to vector<1x1x32xf32>
    %679 = vector.shape_cast %678 : vector<1x1x32xf32> to vector<32xf32>
    %680 = vector.shape_cast %679 : vector<32xf32> to vector<1x1x32xf32>
    %681 = vector.broadcast %680 : vector<1x1x32xf32> to vector<8x8x32xf32>
    %682 = arith.mulf %677, %681 : vector<8x8x32xf32>
    %683 = arith.addf %676, %682 : vector<8x8x32xf32>
    %684 = vector.extract_strided_slice %641 {offsets = [6, 0, 0], sizes = [8, 8, 32], strides = [1, 1, 1]} : vector<14x8x32xf32> to vector<8x8x32xf32>
    %685 = vector.extract_strided_slice %2 {offsets = [6, 5, 0], sizes = [1, 1, 32], strides = [1, 1, 1]} : vector<7x7x32xf32> to vector<1x1x32xf32>
    %686 = vector.shape_cast %685 : vector<1x1x32xf32> to vector<32xf32>
    %687 = vector.shape_cast %686 : vector<32xf32> to vector<1x1x32xf32>
    %688 = vector.broadcast %687 : vector<1x1x32xf32> to vector<8x8x32xf32>
    %689 = arith.mulf %684, %688 : vector<8x8x32xf32>
    %690 = arith.addf %683, %689 : vector<8x8x32xf32>
    %691 = vector.extract_strided_slice %391 {offsets = [0, 11, 0], sizes = [14, 8, 32], strides = [1, 1, 1]} : vector<14x24x32xf32> to vector<14x8x32xf32>
    %692 = vector.extract_strided_slice %691 {offsets = [0, 0, 0], sizes = [8, 8, 32], strides = [1, 1, 1]} : vector<14x8x32xf32> to vector<8x8x32xf32>
    %693 = vector.extract_strided_slice %2 {offsets = [0, 6, 0], sizes = [1, 1, 32], strides = [1, 1, 1]} : vector<7x7x32xf32> to vector<1x1x32xf32>
    %694 = vector.shape_cast %693 : vector<1x1x32xf32> to vector<32xf32>
    %695 = vector.shape_cast %694 : vector<32xf32> to vector<1x1x32xf32>
    %696 = vector.broadcast %695 : vector<1x1x32xf32> to vector<8x8x32xf32>
    %697 = arith.mulf %692, %696 : vector<8x8x32xf32>
    %698 = arith.addf %690, %697 : vector<8x8x32xf32>
    %699 = vector.extract_strided_slice %691 {offsets = [1, 0, 0], sizes = [8, 8, 32], strides = [1, 1, 1]} : vector<14x8x32xf32> to vector<8x8x32xf32>
    %700 = vector.extract_strided_slice %2 {offsets = [1, 6, 0], sizes = [1, 1, 32], strides = [1, 1, 1]} : vector<7x7x32xf32> to vector<1x1x32xf32>
    %701 = vector.shape_cast %700 : vector<1x1x32xf32> to vector<32xf32>
    %702 = vector.shape_cast %701 : vector<32xf32> to vector<1x1x32xf32>
    %703 = vector.broadcast %702 : vector<1x1x32xf32> to vector<8x8x32xf32>
    %704 = arith.mulf %699, %703 : vector<8x8x32xf32>
    %705 = arith.addf %698, %704 : vector<8x8x32xf32>
    %706 = vector.extract_strided_slice %691 {offsets = [2, 0, 0], sizes = [8, 8, 32], strides = [1, 1, 1]} : vector<14x8x32xf32> to vector<8x8x32xf32>
    %707 = vector.extract_strided_slice %2 {offsets = [2, 6, 0], sizes = [1, 1, 32], strides = [1, 1, 1]} : vector<7x7x32xf32> to vector<1x1x32xf32>
    %708 = vector.shape_cast %707 : vector<1x1x32xf32> to vector<32xf32>
    %709 = vector.shape_cast %708 : vector<32xf32> to vector<1x1x32xf32>
    %710 = vector.broadcast %709 : vector<1x1x32xf32> to vector<8x8x32xf32>
    %711 = arith.mulf %706, %710 : vector<8x8x32xf32>
    %712 = arith.addf %705, %711 : vector<8x8x32xf32>
    %713 = vector.extract_strided_slice %691 {offsets = [3, 0, 0], sizes = [8, 8, 32], strides = [1, 1, 1]} : vector<14x8x32xf32> to vector<8x8x32xf32>
    %714 = vector.extract_strided_slice %2 {offsets = [3, 6, 0], sizes = [1, 1, 32], strides = [1, 1, 1]} : vector<7x7x32xf32> to vector<1x1x32xf32>
    %715 = vector.shape_cast %714 : vector<1x1x32xf32> to vector<32xf32>
    %716 = vector.shape_cast %715 : vector<32xf32> to vector<1x1x32xf32>
    %717 = vector.broadcast %716 : vector<1x1x32xf32> to vector<8x8x32xf32>
    %718 = arith.mulf %713, %717 : vector<8x8x32xf32>
    %719 = arith.addf %712, %718 : vector<8x8x32xf32>
    %720 = vector.extract_strided_slice %691 {offsets = [4, 0, 0], sizes = [8, 8, 32], strides = [1, 1, 1]} : vector<14x8x32xf32> to vector<8x8x32xf32>
    %721 = vector.extract_strided_slice %2 {offsets = [4, 6, 0], sizes = [1, 1, 32], strides = [1, 1, 1]} : vector<7x7x32xf32> to vector<1x1x32xf32>
    %722 = vector.shape_cast %721 : vector<1x1x32xf32> to vector<32xf32>
    %723 = vector.shape_cast %722 : vector<32xf32> to vector<1x1x32xf32>
    %724 = vector.broadcast %723 : vector<1x1x32xf32> to vector<8x8x32xf32>
    %725 = arith.mulf %720, %724 : vector<8x8x32xf32>
    %726 = arith.addf %719, %725 : vector<8x8x32xf32>
    %727 = vector.extract_strided_slice %691 {offsets = [5, 0, 0], sizes = [8, 8, 32], strides = [1, 1, 1]} : vector<14x8x32xf32> to vector<8x8x32xf32>
    %728 = vector.extract_strided_slice %2 {offsets = [5, 6, 0], sizes = [1, 1, 32], strides = [1, 1, 1]} : vector<7x7x32xf32> to vector<1x1x32xf32>
    %729 = vector.shape_cast %728 : vector<1x1x32xf32> to vector<32xf32>
    %730 = vector.shape_cast %729 : vector<32xf32> to vector<1x1x32xf32>
    %731 = vector.broadcast %730 : vector<1x1x32xf32> to vector<8x8x32xf32>
    %732 = arith.mulf %727, %731 : vector<8x8x32xf32>
    %733 = arith.addf %726, %732 : vector<8x8x32xf32>
    %734 = vector.extract_strided_slice %691 {offsets = [6, 0, 0], sizes = [8, 8, 32], strides = [1, 1, 1]} : vector<14x8x32xf32> to vector<8x8x32xf32>
    %735 = vector.extract_strided_slice %2 {offsets = [6, 6, 0], sizes = [1, 1, 32], strides = [1, 1, 1]} : vector<7x7x32xf32> to vector<1x1x32xf32>
    %736 = vector.shape_cast %735 : vector<1x1x32xf32> to vector<32xf32>
    %737 = vector.shape_cast %736 : vector<32xf32> to vector<1x1x32xf32>
    %738 = vector.broadcast %737 : vector<1x1x32xf32> to vector<8x8x32xf32>
    %739 = arith.mulf %734, %738 : vector<8x8x32xf32>
    %740 = arith.addf %733, %739 : vector<8x8x32xf32>
    %741 = vector.shape_cast %740 : vector<8x8x32xf32> to vector<64x32xf32>
    %742 = vector.broadcast %3 : vector<1x32xf32> to vector<64x32xf32>
    %743 = arith.addf %741, %742 : vector<64x32xf32>
    %cst_35 = arith.constant dense<0.000000e+00> : vector<64xf32>
    %744 = vector.multi_reduction <add>, %743, %cst_35 [1] : vector<64x32xf32> to vector<64xf32>
    %745 = vector.shape_cast %744 : vector<64xf32> to vector<64x1xf32>
    %cst_36 = arith.constant 3.200000e+01 : f32
    %746 = vector.broadcast %cst_36 : f32 to vector<64x1xf32>
    %747 = arith.divf %745, %746 : vector<64x1xf32>
    %748 = vector.broadcast %747 : vector<64x1xf32> to vector<64x32xf32>
    %749 = arith.subf %743, %748 : vector<64x32xf32>
    %750 = arith.mulf %749, %749 : vector<64x32xf32>
    %cst_37 = arith.constant dense<0.000000e+00> : vector<64xf32>
    %751 = vector.multi_reduction <add>, %750, %cst_37 [1] : vector<64x32xf32> to vector<64xf32>
    %752 = vector.shape_cast %751 : vector<64xf32> to vector<64x1xf32>
    %cst_38 = arith.constant 3.200000e+01 : f32
    %753 = vector.broadcast %cst_38 : f32 to vector<64x1xf32>
    %754 = arith.divf %752, %753 : vector<64x1xf32>
    %cst_39 = arith.constant 9.99999997E-7 : f32
    %755 = vector.broadcast %cst_39 : f32 to vector<64x1xf32>
    %756 = arith.addf %754, %755 : vector<64x1xf32>
    %757 = math.rsqrt %756 : vector<64x1xf32>
    %758 = vector.broadcast %757 : vector<64x1xf32> to vector<64x32xf32>
    %759 = arith.mulf %749, %758 : vector<64x32xf32>
    %760 = vector.broadcast %4 : vector<1x32xf32> to vector<64x32xf32>
    %761 = arith.mulf %759, %760 : vector<64x32xf32>
    %762 = vector.broadcast %5 : vector<1x32xf32> to vector<64x32xf32>
    %763 = arith.addf %761, %762 : vector<64x32xf32>
    %c64_i32_40 = arith.constant 64 : i32
    %764 = arith.muli %c1_i32, %c64_i32_40 : i32
    %765 = tpu.assume_multiple %764, 64 : i32
    %766 = arith.index_cast %765 : i32 to index
    %c0_41 = arith.constant 0 : index
    %767 = vector.load %arg14[%766, %c0_41] : memref<128x32xf32, #tpu.memory_space<vmem>>, vector<64x32xf32>
    tpu.vector_store %arg14[%766, %c0_41], %763 {strides = array<i32>} : memref<128x32xf32, #tpu.memory_space<vmem>>, vector<64x32xf32>,
    %c2_i32 = arith.constant 2 : i32
    %c0_42 = arith.constant 0 : index
    %c0_43 = arith.constant 0 : index
    %768 = vector.load %arg6[%c0_42, %c0_43] : memref<32x128xf32, #tpu.memory_space<vmem>>, vector<32x128xf32>
    %c0_44 = arith.constant 0 : index
    %c0_45 = arith.constant 0 : index
    %769 = vector.load %arg7[%c0_44, %c0_45] : memref<1x128xf32, #tpu.memory_space<vmem>>, vector<1x128xf32>
    %cst_46 = arith.constant 0.000000e+00 : f32
    %770 = vector.broadcast %cst_46 : f32 to vector<1x128xf32>
    %c0_i32_47 = arith.constant 0 : i32
    %c128_i32 = arith.constant 128 : i32
    %771 = arith.muli %c0_i32_47, %c128_i32 : i32
    %772 = tpu.assume_multiple %771, 128 : i32
    %773 = arith.index_cast %772 : i32 to index
    %c0_48 = arith.constant 0 : index
    %774 = vector.load %arg14[%773, %c0_48] : memref<128x32xf32, #tpu.memory_space<vmem>>, vector<128x32xf32>
    %cst_49 = arith.constant dense<0.000000e+00> : vector<128x128xf32>
    %775 = tpu.matmul %774, %768, %cst_49 {dimension_numbers = #tpu.dot_dimension_numbers<[1], [0], [0], [1], [0, 0, 1, 1], [], []>} : vector<128x32xf32>, vector<32x128xf32>, vector<128x128xf32> -> vector<128x128xf32>
    %776 = vector.broadcast %769 : vector<1x128xf32> to vector<128x128xf32>
    %777 = arith.addf %775, %776 : vector<128x128xf32>
    %cst_50 = arith.constant 5.000000e-01 : f32
    %778 = vector.broadcast %cst_50 : f32 to vector<128x128xf32>
    %779 = arith.mulf %778, %777 : vector<128x128xf32>
    %cst_51 = arith.constant 0.707106769 : f32
    %780 = vector.broadcast %cst_51 : f32 to vector<128x128xf32>
    %781 = arith.mulf %777, %780 : vector<128x128xf32>
    %782 = math.absf %781 : vector<128x128xf32>
    %cst_52 = arith.constant 0.327591091 : f32
    %783 = vector.broadcast %cst_52 : f32 to vector<128x128xf32>
    %784 = arith.mulf %783, %782 : vector<128x128xf32>
    %cst_53 = arith.constant 1.000000e+00 : f32
    %785 = vector.broadcast %cst_53 : f32 to vector<128x128xf32>
    %786 = arith.addf %785, %784 : vector<128x128xf32>
    %cst_54 = arith.constant 1.000000e+00 : f32
    %787 = vector.broadcast %cst_54 : f32 to vector<128x128xf32>
    %788 = arith.divf %787, %786 : vector<128x128xf32>
    %cst_55 = arith.constant 1.06140542 : f32
    %789 = vector.broadcast %cst_55 : f32 to vector<128x128xf32>
    %790 = arith.mulf %789, %788 : vector<128x128xf32>
    %cst_56 = arith.constant -1.45315206 : f32
    %791 = vector.broadcast %cst_56 : f32 to vector<128x128xf32>
    %792 = arith.addf %790, %791 : vector<128x128xf32>
    %793 = arith.mulf %792, %788 : vector<128x128xf32>
    %cst_57 = arith.constant 1.42141378 : f32
    %794 = vector.broadcast %cst_57 : f32 to vector<128x128xf32>
    %795 = arith.addf %793, %794 : vector<128x128xf32>
    %796 = arith.mulf %795, %788 : vector<128x128xf32>
    %cst_58 = arith.constant -0.284496725 : f32
    %797 = vector.broadcast %cst_58 : f32 to vector<128x128xf32>
    %798 = arith.addf %796, %797 : vector<128x128xf32>
    %799 = arith.mulf %798, %788 : vector<128x128xf32>
    %cst_59 = arith.constant 0.254829586 : f32
    %800 = vector.broadcast %cst_59 : f32 to vector<128x128xf32>
    %801 = arith.addf %799, %800 : vector<128x128xf32>
    %802 = arith.mulf %801, %788 : vector<128x128xf32>
    %cst_60 = arith.constant 0.000000e+00 : f32
    %803 = vector.broadcast %cst_60 : f32 to vector<128x128xf32>
    %804 = arith.subf %803, %782 : vector<128x128xf32>
    %805 = arith.mulf %804, %782 : vector<128x128xf32>
    %806 = math.exp %805 : vector<128x128xf32>
    %807 = arith.mulf %802, %806 : vector<128x128xf32>
    %cst_61 = arith.constant 1.000000e+00 : f32
    %808 = vector.broadcast %cst_61 : f32 to vector<128x128xf32>
    %809 = arith.subf %808, %807 : vector<128x128xf32>
    %cst_62 = arith.constant 0.000000e+00 : f32
    %810 = vector.broadcast %cst_62 : f32 to vector<128x128xf32>
    %811 = arith.cmpf olt, %781, %810 : vector<128x128xf32>
    %cst_63 = arith.constant 0.000000e+00 : f32
    %812 = vector.broadcast %cst_63 : f32 to vector<128x128xf32>
    %813 = arith.subf %812, %809 : vector<128x128xf32>
    %814 = arith.select %811, %813, %809 : vector<128x128xi1>, vector<128x128xf32>
    %cst_64 = arith.constant 1.000000e+00 : f32
    %815 = vector.broadcast %cst_64 : f32 to vector<128x128xf32>
    %816 = arith.addf %815, %814 : vector<128x128xf32>
    %817 = arith.mulf %779, %816 : vector<128x128xf32>
    %818 = arith.index_cast %772 : i32 to index
    %c0_65 = arith.constant 0 : index
    %819 = vector.load %arg15[%818, %c0_65] : memref<128x128xf32, #tpu.memory_space<vmem>>, vector<128x128xf32>
    tpu.vector_store %arg15[%818, %c0_65], %817 {strides = array<i32>} : memref<128x128xf32, #tpu.memory_space<vmem>>, vector<128x128xf32>,
    %820 = arith.mulf %817, %817 : vector<128x128xf32>
    %cst_66 = arith.constant dense<0.000000e+00> : vector<128xf32>
    %821 = vector.multi_reduction <add>, %820, %cst_66 [0] : vector<128x128xf32> to vector<128xf32>
    %822 = vector.shape_cast %821 : vector<128xf32> to vector<1x128xf32>
    %823 = arith.addf %770, %822 : vector<1x128xf32>
    %c1_i32_67 = arith.constant 1 : i32
    %824 = math.sqrt %823 : vector<1x128xf32>
    %cst_68 = arith.constant dense<0.000000e+00> : vector<1xf32>
    %825 = vector.multi_reduction <add>, %824, %cst_68 [1] : vector<1x128xf32> to vector<1xf32>
    %826 = vector.shape_cast %825 : vector<1xf32> to vector<1x1xf32>
    %cst_69 = arith.constant 1.280000e+02 : f32
    %827 = vector.broadcast %cst_69 : f32 to vector<1x1xf32>
    %828 = arith.divf %826, %827 : vector<1x1xf32>
    %cst_70 = arith.constant 9.99999997E-7 : f32
    %829 = vector.broadcast %cst_70 : f32 to vector<1x1xf32>
    %830 = arith.addf %828, %829 : vector<1x1xf32>
    %831 = vector.broadcast %830 : vector<1x1xf32> to vector<1x128xf32>
    %832 = arith.divf %824, %831 : vector<1x128xf32>
    %c0_71 = arith.constant 0 : index
    %c0_72 = arith.constant 0 : index
    %833 = vector.load %arg8[%c0_71, %c0_72] : memref<1x128xf32, #tpu.memory_space<vmem>>, vector<1x128xf32>
    %834 = arith.mulf %833, %832 : vector<1x128xf32>
    %cst_73 = arith.constant 1.000000e+00 : f32
    %835 = vector.broadcast %cst_73 : f32 to vector<1x128xf32>
    %836 = arith.addf %834, %835 : vector<1x128xf32>
    %c0_74 = arith.constant 0 : index
    %c0_75 = arith.constant 0 : index
    %837 = vector.load %arg9[%c0_74, %c0_75] : memref<1x128xf32, #tpu.memory_space<vmem>>, vector<1x128xf32>
    %c0_76 = arith.constant 0 : index
    %c0_77 = arith.constant 0 : index
    %838 = vector.load %arg11[%c0_76, %c0_77] : memref<1x32xf32, #tpu.memory_space<vmem>>, vector<1x32xf32>
    %c0_78 = arith.constant 0 : index
    %c0_79 = arith.constant 0 : index
    %839 = vector.load %arg10[%c0_78, %c0_79] : memref<128x32xf32, #tpu.memory_space<vmem>>, vector<128x32xf32>
    %c0_i32_80 = arith.constant 0 : i32
    %c128_i32_81 = arith.constant 128 : i32
    %840 = arith.muli %c0_i32_80, %c128_i32_81 : i32
    %841 = tpu.assume_multiple %840, 128 : i32
    %842 = arith.index_cast %841 : i32 to index
    %c0_82 = arith.constant 0 : index
    %843 = vector.load %arg15[%842, %c0_82] : memref<128x128xf32, #tpu.memory_space<vmem>>, vector<128x128xf32>
    %844 = vector.broadcast %836 : vector<1x128xf32> to vector<128x128xf32>
    %845 = arith.mulf %843, %844 : vector<128x128xf32>
    %846 = vector.broadcast %837 : vector<1x128xf32> to vector<128x128xf32>
    %847 = arith.addf %845, %846 : vector<128x128xf32>
    %cst_83 = arith.constant dense<0.000000e+00> : vector<128x32xf32>
    %848 = tpu.matmul %847, %839, %cst_83 {dimension_numbers = #tpu.dot_dimension_numbers<[1], [0], [0], [1], [0, 0, 1, 1], [], []>} : vector<128x128xf32>, vector<128x32xf32>, vector<128x32xf32> -> vector<128x32xf32>
    %849 = vector.broadcast %838 : vector<1x32xf32> to vector<128x32xf32>
    %850 = arith.addf %848, %849 : vector<128x32xf32>
    %c2_i32_84 = arith.constant 2 : i32
    %851 = arith.muli %c0_i32_80, %c2_i32_84 : i32
    %852 = tpu.assume_multiple %851, 2 : i32
    %c0_85 = arith.constant 0 : index
    %853 = arith.index_cast %852 : i32 to index
    %c0_86 = arith.constant 0 : index
    %c0_87 = arith.constant 0 : index
    %c0_88 = arith.constant 0 : index
    %854 = vector.load %arg1[%c0_85, %853, %c0_86, %c0_87, %c0_88] : memref<1x2x8x8x32xf32, #tpu.memory_space<vmem>>, vector<1x2x8x8x32xf32>
    %855 = vector.shape_cast %854 : vector<1x2x8x8x32xf32> to vector<2x8x8x32xf32>
    %856 = vector.shape_cast %850 : vector<128x32xf32> to vector<2x8x8x32xf32>
    %857 = arith.addf %855, %856 : vector<2x8x8x32xf32>
    %c2_i32_89 = arith.constant 2 : i32
    %858 = arith.muli %c0_i32_80, %c2_i32_89 : i32
    %c8_i32 = arith.constant 8 : i32
    %859 = arith.muli %858, %c8_i32 : i32
    %860 = tpu.assume_multiple %859, 16 : i32
    %861 = vector.shape_cast %857 : vector<2x8x8x32xf32> to vector<16x256xf32>
    %c0_90 = arith.constant 0 : index
    %862 = arith.index_cast %860 : i32 to index
    %c0_91 = arith.constant 0 : index
    %863 = vector.load %arg12[%c0_90, %862, %c0_91] : memref<1x16x256xf32, #tpu.memory_space<vmem>>, vector<1x16x256xf32>
    %864 = vector.shape_cast %863 : vector<1x16x256xf32> to vector<16x256xf32>
    %865 = vector.shape_cast %861 : vector<16x256xf32> to vector<1x16x256xf32>
    tpu.vector_store %arg12[%c0_90, %862, %c0_91], %865 {strides = array<i32>} : memref<1x16x256xf32, #tpu.memory_space<vmem>>, vector<1x16x256xf32>,
    %c1_i32_92 = arith.constant 1 : i32
    return
  }
  func.func @transform_0(%arg0: i32) -> (i32, i32, i32, i32, i32) {
    %c0_i32 = arith.constant 0 : i32
    %c0_i32_0 = arith.constant 0 : i32
    %c0_i32_1 = arith.constant 0 : i32
    %c0_i32_2 = arith.constant 0 : i32
    %c0_i32_3 = arith.constant 0 : i32
    return %arg0, %c0_i32, %c0_i32_0, %c0_i32_1, %c0_i32_2 : i32, i32, i32, i32, i32
  }
  func.func @transform_1(%arg0: i32) -> (i32, i32, i32) {
    %c0_i32 = arith.constant 0 : i32
    %c0_i32_0 = arith.constant 0 : i32
    %c0_i32_1 = arith.constant 0 : i32
    %c0_i32_2 = arith.constant 0 : i32
    return %c0_i32, %c0_i32_0, %c0_i32_1 : i32, i32, i32
  }
  func.func @transform_2(%arg0: i32) -> (i32, i32) {
    %c0_i32 = arith.constant 0 : i32
    %c0_i32_0 = arith.constant 0 : i32
    %c0_i32_1 = arith.constant 0 : i32
    return %c0_i32, %c0_i32_0 : i32, i32
  }
  func.func @transform_3(%arg0: i32) -> (i32, i32) {
    %c0_i32 = arith.constant 0 : i32
    %c0_i32_0 = arith.constant 0 : i32
    %c0_i32_1 = arith.constant 0 : i32
    return %c0_i32, %c0_i32_0 : i32, i32
  }
  func.func @transform_4(%arg0: i32) -> (i32, i32) {
    %c0_i32 = arith.constant 0 : i32
    %c0_i32_0 = arith.constant 0 : i32
    %c0_i32_1 = arith.constant 0 : i32
    return %c0_i32, %c0_i32_0 : i32, i32
  }
  func.func @transform_5(%arg0: i32) -> (i32, i32) {
    %c0_i32 = arith.constant 0 : i32
    %c0_i32_0 = arith.constant 0 : i32
    %c0_i32_1 = arith.constant 0 : i32
    return %c0_i32, %c0_i32_0 : i32, i32
  }
  func.func @transform_6(%arg0: i32) -> (i32, i32) {
    %c0_i32 = arith.constant 0 : i32
    %c0_i32_0 = arith.constant 0 : i32
    %c0_i32_1 = arith.constant 0 : i32
    return %c0_i32, %c0_i32_0 : i32, i32
  }
  func.func @transform_7(%arg0: i32) -> (i32, i32) {
    %c0_i32 = arith.constant 0 : i32
    %c0_i32_0 = arith.constant 0 : i32
    %c0_i32_1 = arith.constant 0 : i32
    return %c0_i32, %c0_i32_0 : i32, i32
  }
  func.func @transform_8(%arg0: i32) -> (i32, i32) {
    %c0_i32 = arith.constant 0 : i32
    %c0_i32_0 = arith.constant 0 : i32
    %c0_i32_1 = arith.constant 0 : i32
    return %c0_i32, %c0_i32_0 : i32, i32
  }
  func.func @transform_9(%arg0: i32) -> (i32, i32) {
    %c0_i32 = arith.constant 0 : i32
    %c0_i32_0 = arith.constant 0 : i32
    %c0_i32_1 = arith.constant 0 : i32
    return %c0_i32, %c0_i32_0 : i32, i32
  }
  func.func @transform_10(%arg0: i32) -> (i32, i32) {
    %c0_i32 = arith.constant 0 : i32
    %c0_i32_0 = arith.constant 0 : i32
    %c0_i32_1 = arith.constant 0 : i32
    return %c0_i32, %c0_i32_0 : i32, i32
  }
  func.func @transform_11(%arg0: i32) -> (i32, i32, i32) {
    %c0_i32 = arith.constant 0 : i32
    %c0_i32_0 = arith.constant 0 : i32
    %c0_i32_1 = arith.constant 0 : i32
    return %arg0, %c0_i32, %c0_i32_0 : i32, i32, i32
  }
}

</mosaic_0001>

<llo_original>
// kernel: tpu_custom_call.1
$region0: #{tpu_custom_call.1}
  #allocation0 [shape = 'u32[]', space=smem, size = 0x4, offset = 0x4, fixed_abs, tag = 'smem constant byte address 0x4 - core index']
  #allocation1 [shape = 'u32[144,128]{1,0:T(1,128)}', space=vmem, size = 0x12000, scoped, tag = 'internal scratch']
  %s0 = inlined_call_operand.hbm [shape: f32[8,128], index: 0, kind: input, shape index: {}]
  %s1 = inlined_call_operand.hbm [shape: f32[8,128], index: 1, kind: output, shape index: {}]
  %s2 = sld [smem:[#allocation0]]
  $region18: #{tpu_custom_call.1} parent=0
    _
  %s4 = ssub.s32 1, %s2
  %s5 = scalar_select 0, %s4, %s2
  $region1: #{tpu_custom_call.1} parent=0
    #allocation2 [shape = 'u8[4096]{0}', space=vmem, size = 0x1000, scoped, tag = 'input window, operand 0, single buffered']
    #allocation3 [shape = 's32[1]{0}', space=sflag, size = 0x4, scoped, tag = 'scoped memory for tpu_custom_call.1']
    #allocation4 [shape = 's32[1]{0}', space=sflag, size = 0x4, scoped, tag = 'scoped memory for tpu_custom_call.1']
    #allocation5 [shape = 'u8[4096]{0}', space=vmem, size = 0x1000, scoped, tag = 'output window, operand 0, single buffered']
    %6 = vsyncpa [#allocation3], 0
    %7 = vsyncpa [#allocation4], 0
    // Predicated region
    $region2: #{tpu_custom_call.1} parent=1 // pred_check
      _
    $region3: #{tpu_custom_call.1} parent=1 // pred_check_branch
      %9 = sbr.rel (0) target = $region5
    $region4: #{tpu_custom_call.1} parent=1 // pred_region
      %s11 = ssub.s32 128, 128
      %12 = vsyncadd [#allocation3], %s11
      %s14 = sshll.u32 [#allocation2], 4
      %s15 = int_to_ptr.vmem [resolvable:$true] %s14
      %17 = dma.hbm_to_vmem [thread:$0]  %s0, 128, %s15, [#allocation3]
    $region5: #{tpu_custom_call.1} parent=1 // pred_fallthru
      _
    // Predicated region
    $region6: #{tpu_custom_call.1} parent=1 // pred_check
      _
    $region7: #{tpu_custom_call.1} parent=1 // pred_check_branch
      %19 = sbr.rel (0) target = $region9
    $region8: #{tpu_custom_call.1} parent=1 // pred_region
      %20 = dma.done [#allocation3], 128
    $region9: #{tpu_custom_call.1} parent=1 // pred_fallthru
      _
    %v21 = vld [vmem:[#allocation2] sm:$0xff]
    %v22 = vrot.slane %v21, 7
    %23 = vst [vmem:[#allocation5] sm:$0xff] %v22
    // Predicated region
    $region10: #{tpu_custom_call.1} parent=1 // pred_check
      _
    $region11: #{tpu_custom_call.1} parent=1 // pred_check_branch
      %25 = sbr.rel (0) target = $region13
    $region12: #{tpu_custom_call.1} parent=1 // pred_region
      %s27 = ssub.s32 128, 128
      %28 = vsyncadd [#allocation4], %s27
      %s30 = sshll.u32 [#allocation5], 4
      %s31 = int_to_ptr.vmem [resolvable:$true] %s30
      %33 = dma.vmem_to_hbm [thread:$0]  %s31, 128, %s1, [#allocation4]
    $region13: #{tpu_custom_call.1} parent=1 // pred_fallthru
      _
    // Predicated region
    $region14: #{tpu_custom_call.1} parent=1 // pred_check
      _
    $region15: #{tpu_custom_call.1} parent=1 // pred_check_branch
      %35 = sbr.rel (0) target = $region17
    $region16: #{tpu_custom_call.1} parent=1 // pred_region
      %36 = dma.done [#allocation4], 128
    $region17: #{tpu_custom_call.1} parent=1 // pred_fallthru
      _
    %37 = vsyncpa [#allocation3], 1
    %38 = vsyncpa [#allocation4], 1

// kernel: tpu_custom_call.1
$region0: #{tpu_custom_call.1}
  #allocation0 [shape = 'u32[]', space=smem, size = 0x4, offset = 0x4, fixed_abs, tag = 'smem constant byte address 0x4 - core index']
  #allocation1 [shape = 'u32[144,128]{1,0:T(1,128)}', space=vmem, size = 0x12000, scoped, tag = 'internal scratch']
  #allocation2 [shape = 'f32[14,24,32]{2,1,0:T(8,128)}', space=vmem, size = 0x2a000, scoped, tag = 'scratch operand']
  #allocation3 [shape = 'f32[128,32]{1,0:T(8,128)}', space=vmem, size = 0x10000, scoped, tag = 'scratch operand']
  #allocation4 [shape = 'f32[128,128]{1,0:T(8,128)}', space=vmem, size = 0x10000, scoped, tag = 'scratch operand']
  %s0 = inlined_call_operand.hbm [shape: f32[2,2,8,8,32], index: 0, kind: input, shape index: {}]
  %s1 = inlined_call_operand.vmem [shape: f32[7,7,32], index: 1, kind: input, shape index: {}]
  %s2 = inlined_call_operand.vmem [shape: f32[1,32], index: 2, kind: input, shape index: {}]
  %s3 = inlined_call_operand.vmem [shape: f32[1,32], index: 3, kind: input, shape index: {}]
  %s4 = inlined_call_operand.vmem [shape: f32[1,32], index: 4, kind: input, shape index: {}]
  %s5 = inlined_call_operand.vmem [shape: f32[32,128], index: 5, kind: input, shape index: {}]
  %s6 = inlined_call_operand.vmem [shape: f32[1,128], index: 6, kind: input, shape index: {}]
  %s7 = inlined_call_operand.vmem [shape: f32[1,128], index: 7, kind: input, shape index: {}]
  %s8 = inlined_call_operand.vmem [shape: f32[1,128], index: 8, kind: input, shape index: {}]
  %s9 = inlined_call_operand.vmem [shape: f32[128,32], index: 9, kind: input, shape index: {}]
  %s10 = inlined_call_operand.vmem [shape: f32[1,32], index: 10, kind: input, shape index: {}]
  %s11 = inlined_call_operand.hbm [shape: f32[2,16,256], index: 11, kind: output, shape index: {}]
  %s12 = sld [smem:[#allocation0]]
  $region81: #{tpu_custom_call.1} parent=0
    _
  %s14 = ssub.s32 1, %s12
  %s15 = scalar_select 0, %s14, %s12
  $region1: #{tpu_custom_call.1} parent=0
    #allocation5 [shape = 'u8[131072]{0}', space=vmem, size = 0x20000, scoped, tag = 'input window, operand 0']
    #allocation6 [shape = 's32[2]{0}', space=sflag, size = 0x8, scoped, tag = 'scoped memory for tpu_custom_call.1']
    #allocation7 [shape = 's32[2]{0}', space=sflag, size = 0x8, scoped, tag = 'scoped memory for tpu_custom_call.1']
    #allocation8 [shape = 'u8[32768]{0}', space=vmem, size = 0x8000, scoped, tag = 'output window, operand 0']
    %16 = vsyncpa [#allocation6], 0
    %s17 = scalar_lea.sflag [#allocation6], 1
    %18 = vsyncpa %s17, 0
    %19 = vsyncpa [#allocation7], 0
    %s20 = scalar_lea.sflag [#allocation7], 1
    %21 = vsyncpa %s20, 0
    loop: start=0, step=1, limit=4
    $region2: #{tpu_custom_call.1} parent=1 // loop_pre_header
      _
    $region3: #{tpu_custom_call.1} parent=1 // loop_header
      %s23 = sphi 0, %s27
      %p24 = scmp.ge.s32.totalorder %s23, 4
      %s33 = sphi 0, %s35
      %s36 = sphi 0, %s33
      %s37 = sphi 0, %s36
      %s53 = sphi 0, %s37
      %s57 = sphi 0, %s57
      %s59 = sphi 0, %s57
      %s60 = sphi 0, %s59
      %s74 = sphi 0, %s60
      %s78 = sphi 0, %s78
      %s80 = sphi 0, %s78
      %s81 = sphi 0, %s80
      %s95 = sphi 0, %s81
      %s99 = sphi 0, %s99
      %s101 = sphi 0, %s99
      %s102 = sphi 0, %s101
      %s116 = sphi 0, %s102
      %s120 = sphi 0, %s120
      %s122 = sphi 0, %s120
      %s123 = sphi 0, %s122
      %s137 = sphi 0, %s123
      %s141 = sphi 0, %s141
      %s143 = sphi 0, %s141
      %s144 = sphi 0, %s143
      %s158 = sphi 0, %s144
      %s162 = sphi 0, %s162
      %s164 = sphi 0, %s162
      %s165 = sphi 0, %s164
      %s179 = sphi 0, %s165
      %s183 = sphi 0, %s183
      %s185 = sphi 0, %s183
      %s186 = sphi 0, %s185
      %s200 = sphi 0, %s186
      %s204 = sphi 0, %s204
      %s206 = sphi 0, %s204
      %s207 = sphi 0, %s206
      %s221 = sphi 0, %s207
      %s225 = sphi 0, %s225
      %s227 = sphi 0, %s225
      %s228 = sphi 0, %s227
      %s242 = sphi 0, %s228
      %s246 = sphi 0, %s246
      %s248 = sphi 0, %s246
      %s249 = sphi 0, %s248
      %s263 = sphi 0, %s249
      %s269 = sphi 0, %s271
      %s272 = sphi 0, %s269
      %s273 = sphi 0, %s272
      %s289 = sphi 0, %s273
    $region4: #{tpu_custom_call.1} parent=1 // loop_header_branch
      %26 = sbr.rel (%p24) target = $region8
    $region5: #{tpu_custom_call.1} parent=1 // loop_body
      %s28 = ssub.s32 %s23, 1
      %s29 = ssub.s32 %s23, 2
      %s30 = sadd.s32 %s23, 1
      %s31 = ssub.s32 %s23, %s30
      %p32 = scmp.eq.s32.totalorder %s31, 0
      %s34 = sadd.s32 %s33, 1
      %s35 = scalar_select %p32, %s33, %s34
      %p38 = pneg %p32
      %p39 = scmp.eq.s32.totalorder %s23, 1
      %p40 = por %p38, %p39
      %p41 = scmp.ne.s32.totalorder %s33, %s36
      %p42 = scmp.eq.s32.totalorder %s23, 0
      %p43 = por %p41, %p42
      %p44 = scmp.ne.s32.totalorder %s33, %s36
      %p45 = scmp.eq.s32.totalorder %s28, 1
      %p46 = por %p44, %p45
      %p47 = scmp.ne.s32.totalorder %s36, %s37
      %p48 = scmp.eq.s32.totalorder %s28, 0
      %p49 = por %p47, %p48
      %p50 = scmp.ne.s32.totalorder %s36, %s37
      %p51 = scmp.eq.s32.totalorder %s29, 1
      %p52 = por %p50, %p51
      %p54 = scmp.ne.s32.totalorder %s37, %s53
      %p55 = scmp.eq.s32.totalorder %s29, 0
      %p56 = por %p54, %p55
      %s58 = sadd.s32 %s57, 1
      %p61 = scmp.eq.s32.totalorder %s23, 1
      %p62 = scmp.ne.s32.totalorder %s57, %s59
      %p63 = scmp.eq.s32.totalorder %s23, 0
      %p64 = por %p62, %p63
      %p65 = scmp.ne.s32.totalorder %s57, %s59
      %p66 = scmp.eq.s32.totalorder %s28, 1
      %p67 = por %p65, %p66
      %p68 = scmp.ne.s32.totalorder %s59, %s60
      %p69 = scmp.eq.s32.totalorder %s28, 0
      %p70 = por %p68, %p69
      %p71 = scmp.ne.s32.totalorder %s59, %s60
      %p72 = scmp.eq.s32.totalorder %s29, 1
      %p73 = por %p71, %p72
      %p75 = scmp.ne.s32.totalorder %s60, %s74
      %p76 = scmp.eq.s32.totalorder %s29, 0
      %p77 = por %p75, %p76
      %s79 = sadd.s32 %s78, 1
      %p82 = scmp.eq.s32.totalorder %s23, 1
      %p83 = scmp.ne.s32.totalorder %s78, %s80
      %p84 = scmp.eq.s32.totalorder %s23, 0
      %p85 = por %p83, %p84
      %p86 = scmp.ne.s32.totalorder %s78, %s80
      %p87 = scmp.eq.s32.totalorder %s28, 1
      %p88 = por %p86, %p87
      %p89 = scmp.ne.s32.totalorder %s80, %s81
      %p90 = scmp.eq.s32.totalorder %s28, 0
      %p91 = por %p89, %p90
      %p92 = scmp.ne.s32.totalorder %s80, %s81
      %p93 = scmp.eq.s32.totalorder %s29, 1
      %p94 = por %p92, %p93
      %p96 = scmp.ne.s32.totalorder %s81, %s95
      %p97 = scmp.eq.s32.totalorder %s29, 0
      %p98 = por %p96, %p97
      %s100 = sadd.s32 %s99, 1
      %p103 = scmp.eq.s32.totalorder %s23, 1
      %p104 = scmp.ne.s32.totalorder %s99, %s101
      %p105 = scmp.eq.s32.totalorder %s23, 0
      %p106 = por %p104, %p105
      %p107 = scmp.ne.s32.totalorder %s99, %s101
      %p108 = scmp.eq.s32.totalorder %s28, 1
      %p109 = por %p107, %p108
      %p110 = scmp.ne.s32.totalorder %s101, %s102
      %p111 = scmp.eq.s32.totalorder %s28, 0
      %p112 = por %p110, %p111
      %p113 = scmp.ne.s32.totalorder %s101, %s102
      %p114 = scmp.eq.s32.totalorder %s29, 1
      %p115 = por %p113, %p114
      %p117 = scmp.ne.s32.totalorder %s102, %s116
      %p118 = scmp.eq.s32.totalorder %s29, 0
      %p119 = por %p117, %p118
      %s121 = sadd.s32 %s120, 1
      %p124 = scmp.eq.s32.totalorder %s23, 1
      %p125 = scmp.ne.s32.totalorder %s120, %s122
      %p126 = scmp.eq.s32.totalorder %s23, 0
      %p127 = por %p125, %p126
      %p128 = scmp.ne.s32.totalorder %s120, %s122
      %p129 = scmp.eq.s32.totalorder %s28, 1
      %p130 = por %p128, %p129
      %p131 = scmp.ne.s32.totalorder %s122, %s123
      %p132 = scmp.eq.s32.totalorder %s28, 0
      %p133 = por %p131, %p132
      %p134 = scmp.ne.s32.totalorder %s122, %s123
      %p135 = scmp.eq.s32.totalorder %s29, 1
      %p136 = por %p134, %p135
      %p138 = scmp.ne.s32.totalorder %s123, %s137
      %p139 = scmp.eq.s32.totalorder %s29, 0
      %p140 = por %p138, %p139
      %s142 = sadd.s32 %s141, 1
      %p145 = scmp.eq.s32.totalorder %s23, 1
      %p146 = scmp.ne.s32.totalorder %s141, %s143
      %p147 = scmp.eq.s32.totalorder %s23, 0
      %p148 = por %p146, %p147
      %p149 = scmp.ne.s32.totalorder %s141, %s143
      %p150 = scmp.eq.s32.totalorder %s28, 1
      %p151 = por %p149, %p150
      %p152 = scmp.ne.s32.totalorder %s143, %s144
      %p153 = scmp.eq.s32.totalorder %s28, 0
      %p154 = por %p152, %p153
      %p155 = scmp.ne.s32.totalorder %s143, %s144
      %p156 = scmp.eq.s32.totalorder %s29, 1
      %p157 = por %p155, %p156
      %p159 = scmp.ne.s32.totalorder %s144, %s158
      %p160 = scmp.eq.s32.totalorder %s29, 0
      %p161 = por %p159, %p160
      %s163 = sadd.s32 %s162, 1
      %p166 = scmp.eq.s32.totalorder %s23, 1
      %p167 = scmp.ne.s32.totalorder %s162, %s164
      %p168 = scmp.eq.s32.totalorder %s23, 0
      %p169 = por %p167, %p168
      %p170 = scmp.ne.s32.totalorder %s162, %s164
      %p171 = scmp.eq.s32.totalorder %s28, 1
      %p172 = por %p170, %p171
      %p173 = scmp.ne.s32.totalorder %s164, %s165
      %p174 = scmp.eq.s32.totalorder %s28, 0
      %p175 = por %p173, %p174
      %p176 = scmp.ne.s32.totalorder %s164, %s165
      %p177 = scmp.eq.s32.totalorder %s29, 1
      %p178 = por %p176, %p177
      %p180 = scmp.ne.s32.totalorder %s165, %s179
      %p181 = scmp.eq.s32.totalorder %s29, 0
      %p182 = por %p180, %p181
      %s184 = sadd.s32 %s183, 1
      %p187 = scmp.eq.s32.totalorder %s23, 1
      %p188 = scmp.ne.s32.totalorder %s183, %s185
      %p189 = scmp.eq.s32.totalorder %s23, 0
      %p190 = por %p188, %p189
      %p191 = scmp.ne.s32.totalorder %s183, %s185
      %p192 = scmp.eq.s32.totalorder %s28, 1
      %p193 = por %p191, %p192
      %p194 = scmp.ne.s32.totalorder %s185, %s186
      %p195 = scmp.eq.s32.totalorder %s28, 0
      %p196 = por %p194, %p195
      %p197 = scmp.ne.s32.totalorder %s185, %s186
      %p198 = scmp.eq.s32.totalorder %s29, 1
      %p199 = por %p197, %p198
      %p201 = scmp.ne.s32.totalorder %s186, %s200
      %p202 = scmp.eq.s32.totalorder %s29, 0
      %p203 = por %p201, %p202
      %s205 = sadd.s32 %s204, 1
      %p208 = scmp.eq.s32.totalorder %s23, 1
      %p209 = scmp.ne.s32.totalorder %s204, %s206
      %p210 = scmp.eq.s32.totalorder %s23, 0
      %p211 = por %p209, %p210
      %p212 = scmp.ne.s32.totalorder %s204, %s206
      %p213 = scmp.eq.s32.totalorder %s28, 1
      %p214 = por %p212, %p213
      %p215 = scmp.ne.s32.totalorder %s206, %s207
      %p216 = scmp.eq.s32.totalorder %s28, 0
      %p217 = por %p215, %p216
      %p218 = scmp.ne.s32.totalorder %s206, %s207
      %p219 = scmp.eq.s32.totalorder %s29, 1
      %p220 = por %p218, %p219
      %p222 = scmp.ne.s32.totalorder %s207, %s221
      %p223 = scmp.eq.s32.totalorder %s29, 0
      %p224 = por %p222, %p223
      %s226 = sadd.s32 %s225, 1
      %p229 = scmp.eq.s32.totalorder %s23, 1
      %p230 = scmp.ne.s32.totalorder %s225, %s227
      %p231 = scmp.eq.s32.totalorder %s23, 0
      %p232 = por %p230, %p231
      %p233 = scmp.ne.s32.totalorder %s225, %s227
      %p234 = scmp.eq.s32.totalorder %s28, 1
      %p235 = por %p233, %p234
      %p236 = scmp.ne.s32.totalorder %s227, %s228
      %p237 = scmp.eq.s32.totalorder %s28, 0
      %p238 = por %p236, %p237
      %p239 = scmp.ne.s32.totalorder %s227, %s228
      %p240 = scmp.eq.s32.totalorder %s29, 1
      %p241 = por %p239, %p240
      %p243 = scmp.ne.s32.totalorder %s228, %s242
      %p244 = scmp.eq.s32.totalorder %s29, 0
      %p245 = por %p243, %p244
      %s247 = sadd.s32 %s246, 1
      %p250 = scmp.eq.s32.totalorder %s23, 1
      %p251 = scmp.ne.s32.totalorder %s246, %s248
      %p252 = scmp.eq.s32.totalorder %s23, 0
      %p253 = por %p251, %p252
      %p254 = scmp.ne.s32.totalorder %s246, %s248
      %p255 = scmp.eq.s32.totalorder %s28, 1
      %p256 = por %p254, %p255
      %p257 = scmp.ne.s32.totalorder %s248, %s249
      %p258 = scmp.eq.s32.totalorder %s28, 0
      %p259 = por %p257, %p258
      %p260 = scmp.ne.s32.totalorder %s248, %s249
      %p261 = scmp.eq.s32.totalorder %s29, 1
      %p262 = por %p260, %p261
      %p264 = scmp.ne.s32.totalorder %s249, %s263
      %p265 = scmp.eq.s32.totalorder %s29, 0
      %p266 = por %p264, %p265
      %s267 = ssub.s32 %s23, %s30
      %p268 = scmp.eq.s32.totalorder %s267, 0
      %s270 = sadd.s32 %s269, 1
      %s271 = scalar_select %p268, %s269, %s270
      %p274 = pneg %p268
      %p275 = scmp.eq.s32.totalorder %s23, 1
      %p276 = por %p274, %p275
      %p277 = scmp.ne.s32.totalorder %s269, %s272
      %p278 = scmp.eq.s32.totalorder %s23, 0
      %p279 = por %p277, %p278
      %p280 = scmp.ne.s32.totalorder %s269, %s272
      %p281 = scmp.eq.s32.totalorder %s28, 1
      %p282 = por %p280, %p281
      %p283 = scmp.ne.s32.totalorder %s272, %s273
      %p284 = scmp.eq.s32.totalorder %s28, 0
      %p285 = por %p283, %p284
      %p286 = scmp.ne.s32.totalorder %s272, %s273
      %p287 = scmp.eq.s32.totalorder %s29, 1
      %p288 = por %p286, %p287
      %p290 = scmp.ne.s32.totalorder %s273, %s289
      %p291 = scmp.eq.s32.totalorder %s29, 0
      %p292 = por %p290, %p291
      %p293 = scmp.le.s32.totalorder 1, %s23
      %p294 = scmp.lt.s32.totalorder %s23, 3
      %p295 = pnand %p293, %p294
      %p296 = pneg %p295
      // Predicated region
      $region9: #{tpu_custom_call.1} parent=5 // pred_check
        _
      $region10: #{tpu_custom_call.1} parent=5 // pred_check_branch
        %298 = sbr.rel (%p295) target = $region12
      $region11: #{tpu_custom_call.1} parent=5 // pred_region
        %s299 = ssub.s32 %s23, 1
        // Predicated region
        $region13: #{tpu_custom_call.1} parent=11 // pred_check
          %p300 = pneg %p70
        $region14: #{tpu_custom_call.1} parent=11 // pred_check_branch
          %302 = sbr.rel (%p300) target = $region16
        $region15: #{tpu_custom_call.1} parent=11 // pred_region
          _
        $region16: #{tpu_custom_call.1} parent=11 // pred_fallthru
          _
        // Predicated region
        $region17: #{tpu_custom_call.1} parent=11 // pred_check
          %p303 = pneg %p91
        $region18: #{tpu_custom_call.1} parent=11 // pred_check_branch
          %305 = sbr.rel (%p303) target = $region20
        $region19: #{tpu_custom_call.1} parent=11 // pred_region
          _
        $region20: #{tpu_custom_call.1} parent=11 // pred_fallthru
          _
        // Predicated region
        $region21: #{tpu_custom_call.1} parent=11 // pred_check
          %p306 = pneg %p112
        $region22: #{tpu_custom_call.1} parent=11 // pred_check_branch
          %308 = sbr.rel (%p306) target = $region24
        $region23: #{tpu_custom_call.1} parent=11 // pred_region
          _
        $region24: #{tpu_custom_call.1} parent=11 // pred_fallthru
          _
        // Predicated region
        $region25: #{tpu_custom_call.1} parent=11 // pred_check
          %p309 = pneg %p133
        $region26: #{tpu_custom_call.1} parent=11 // pred_check_branch
          %311 = sbr.rel (%p309) target = $region28
        $region27: #{tpu_custom_call.1} parent=11 // pred_region
          _
        $region28: #{tpu_custom_call.1} parent=11 // pred_fallthru
          _
        // Predicated region
        $region29: #{tpu_custom_call.1} parent=11 // pred_check
          %p312 = pneg %p154
        $region30: #{tpu_custom_call.1} parent=11 // pred_check_branch
          %314 = sbr.rel (%p312) target = $region32
        $region31: #{tpu_custom_call.1} parent=11 // pred_region
          _
        $region32: #{tpu_custom_call.1} parent=11 // pred_fallthru
          _
        // Predicated region
        $region33: #{tpu_custom_call.1} parent=11 // pred_check
          %p315 = pneg %p175
        $region34: #{tpu_custom_call.1} parent=11 // pred_check_branch
          %317 = sbr.rel (%p315) target = $region36
        $region35: #{tpu_custom_call.1} parent=11 // pred_region
          _
        $region36: #{tpu_custom_call.1} parent=11 // pred_fallthru
          _
        // Predicated region
        $region37: #{tpu_custom_call.1} parent=11 // pred_check
          %p318 = pneg %p196
        $region38: #{tpu_custom_call.1} parent=11 // pred_check_branch
          %320 = sbr.rel (%p318) target = $region40
        $region39: #{tpu_custom_call.1} parent=11 // pred_region
          _
        $region40: #{tpu_custom_call.1} parent=11 // pred_fallthru
          _
        // Predicated region
        $region41: #{tpu_custom_call.1} parent=11 // pred_check
          %p321 = pneg %p217
        $region42: #{tpu_custom_call.1} parent=11 // pred_check_branch
          %323 = sbr.rel (%p321) target = $region44
        $region43: #{tpu_custom_call.1} parent=11 // pred_region
          _
        $region44: #{tpu_custom_call.1} parent=11 // pred_fallthru
          _
        // Predicated region
        $region45: #{tpu_custom_call.1} parent=11 // pred_check
          %p324 = pneg %p238
        $region46: #{tpu_custom_call.1} parent=11 // pred_check_branch
          %326 = sbr.rel (%p324) target = $region48
        $region47: #{tpu_custom_call.1} parent=11 // pred_region
          _
        $region48: #{tpu_custom_call.1} parent=11 // pred_fallthru
          _
        // Predicated region
        $region49: #{tpu_custom_call.1} parent=11 // pred_check
          %p327 = pneg %p259
        $region50: #{tpu_custom_call.1} parent=11 // pred_check_branch
          %329 = sbr.rel (%p327) target = $region52
        $region51: #{tpu_custom_call.1} parent=11 // pred_region
          _
        $region52: #{tpu_custom_call.1} parent=11 // pred_fallthru
          _
      $region12: #{tpu_custom_call.1} parent=5 // pred_fallthru
        _
      %p330 = scmp.lt.s32.totalorder %s23, 2
      // Predicated region
      $region53: #{tpu_custom_call.1} parent=5 // pred_check
        %p331 = pneg %p330
      $region54: #{tpu_custom_call.1} parent=5 // pred_check_branch
        %333 = sbr.rel (%p331) target = $region56
      $region55: #{tpu_custom_call.1} parent=5 // pred_region
        // Predicated region
        $region57: #{tpu_custom_call.1} parent=55 // pred_check
          %p334 = pneg %p43
        $region58: #{tpu_custom_call.1} parent=55 // pred_check_branch
          %336 = sbr.rel (%p334) target = $region60
        $region59: #{tpu_custom_call.1} parent=55 // pred_region
          %s337 = sand.u32 %s33, 1
          %s338 = scalar_lea.sflag [#allocation6], %s337
          %s339 = sand.u32 %s33, 1
          %s340 = smul.addr %s339, 128
          %s341 = scalar_lea.vmem [#allocation5], %s340
          %s343 = ssub.s32 2048, 2048
          %344 = vsyncadd %s338, %s343
          %s345 = smul.addr %s23, 16
          %s346 = smul.addr %s345, 128
          %s347 = scalar_lea.hbm %s0, %s346
          %s348 = sshll.u32 %s341, 4
          %s349 = int_to_ptr.vmem [resolvable:$true] %s348
          %354 = dma.hbm_to_vmem [thread:$0]  %s347, 2048, %s349, %s338, 128, 128, 8
        $region60: #{tpu_custom_call.1} parent=55 // pred_fallthru
          _
      $region56: #{tpu_custom_call.1} parent=5 // pred_fallthru
        _
      %p355 = scmp.le.s32.totalorder 1, %s23
      %p356 = scmp.lt.s32.totalorder %s23, 3
      %p357 = pnand %p355, %p356
      %p358 = pneg %p357
      // Predicated region
      $region61: #{tpu_custom_call.1} parent=5 // pred_check
        _
      $region62: #{tpu_custom_call.1} parent=5 // pred_check_branch
        %360 = sbr.rel (%p357) target = $region64
      $region63: #{tpu_custom_call.1} parent=5 // pred_region
        %s361 = ssub.s32 %s23, 1
        %s362 = sand.u32 %s36, 1
        %s363 = scalar_lea.sflag [#allocation6], %s362
        %s364 = sand.u32 %s36, 1
        %s365 = smul.addr %s364, 128
        %s366 = scalar_lea.vmem [#allocation5], %s365
        // Predicated region
        $region65: #{tpu_custom_call.1} parent=63 // pred_check
          %p367 = pneg %p49
        $region66: #{tpu_custom_call.1} parent=63 // pred_check_branch
          %369 = sbr.rel (%p367) target = $region68
        $region67: #{tpu_custom_call.1} parent=63 // pred_region
          %370 = dma.done %s363, 2048
        $region68: #{tpu_custom_call.1} parent=63 // pred_fallthru
          _
        %s371 = sand.u32 %s36, 1
        %s372 = scalar_lea.sflag [#allocation6], %s371
        %s373 = sand.u32 %s36, 1
        %s374 = smul.addr %s373, 128
        %s375 = scalar_lea.vmem [#allocation5], %s374
        %p376 = pneg %p49
        %p377 = pneg %p46
        %p378 = pneg %p70
        %p379 = pneg %p67
        %p380 = pneg %p91
        %p381 = pneg %p88
        %p382 = pneg %p112
        %p383 = pneg %p109
        %p384 = pneg %p133
        %p385 = pneg %p130
        %p386 = pneg %p154
        %p387 = pneg %p151
        %p388 = pneg %p175
        %p389 = pneg %p172
        %p390 = pneg %p196
        %p391 = pneg %p193
        %p392 = pneg %p217
        %p393 = pneg %p214
        %p394 = pneg %p238
        %p395 = pneg %p235
        %p396 = pneg %p259
        %p397 = pneg %p256
        %p398 = pneg %p285
        %p399 = pneg %p282
        %s400 = sand.u32 %s272, 1
        %s401 = scalar_lea.sflag [#allocation7], %s400
        %s402 = sand.u32 %s272, 1
        %s403 = smul.addr %s402, 32
        %s404 = scalar_lea.vmem [#allocation8], %s403
        %vm405 = vcmask 261120
        %406 = vst.msk [vmem:[#allocation2] sm:$0xff] %vm405, 0.0
        %407 = vst.msk [vmem:[#allocation2 + $0x8] sm:$0xff] %vm405, 0.0
        %408 = vst.msk [vmem:[#allocation2 + $0x10] sm:$0xff] %vm405, 0.0
        %409 = vst.msk [vmem:[#allocation2 + $0x18] sm:$0xff] %vm405, 0.0
        %410 = vst.msk [vmem:[#allocation2 + $0x20] sm:$0xff] %vm405, 0.0
        %411 = vst.msk [vmem:[#allocation2 + $0x28] sm:$0xff] %vm405, 0.0
        %412 = vst.msk [vmem:[#allocation2 + $0x30] sm:$0xff] %vm405, 0.0
        %413 = vst.msk [vmem:[#allocation2 + $0x38] sm:$0xff] %vm405, 0.0
        %414 = vst.msk [vmem:[#allocation2 + $0x40] sm:$0xff] %vm405, 0.0
        %415 = vst.msk [vmem:[#allocation2 + $0x48] sm:$0xff] %vm405, 0.0
        %416 = vst.msk [vmem:[#allocation2 + $0x50] sm:$0xff] %vm405, 0.0
        %417 = vst.msk [vmem:[#allocation2 + $0x58] sm:$0xff] %vm405, 0.0
        %418 = vst.msk [vmem:[#allocation2 + $0x60] sm:$0xff] %vm405, 0.0
        %419 = vst.msk [vmem:[#allocation2 + $0x68] sm:$0xff] %vm405, 0.0
        %420 = vst.msk [vmem:[#allocation2 + $0x70] sm:$0xff] %vm405, 0.0
        %421 = vst.msk [vmem:[#allocation2 + $0x78] sm:$0xff] %vm405, 0.0
        %422 = vst.msk [vmem:[#allocation2 + $0x80] sm:$0xff] %vm405, 0.0
        %423 = vst.msk [vmem:[#allocation2 + $0x88] sm:$0xff] %vm405, 0.0
        %424 = vst.msk [vmem:[#allocation2 + $0x90] sm:$0xff] %vm405, 0.0
        %425 = vst.msk [vmem:[#allocation2 + $0x98] sm:$0xff] %vm405, 0.0
        %426 = vst.msk [vmem:[#allocation2 + $0xa0] sm:$0xff] %vm405, 0.0
        %427 = vst.msk [vmem:[#allocation2 + $0xa8] sm:$0xff] %vm405, 0.0
        %428 = vst.msk [vmem:[#allocation2 + $0xb0] sm:$0xff] %vm405, 0.0
        %429 = vst.msk [vmem:[#allocation2 + $0xb8] sm:$0xff] %vm405, 0.0
        %430 = vst.msk [vmem:[#allocation2 + $0xc0] sm:$0xff] %vm405, 0.0
        %431 = vst.msk [vmem:[#allocation2 + $0xc8] sm:$0xff] %vm405, 0.0
        %432 = vst.msk [vmem:[#allocation2 + $0xd0] sm:$0xff] %vm405, 0.0
        %433 = vst.msk [vmem:[#allocation2 + $0xd8] sm:$0xff] %vm405, 0.0
        %434 = vst.msk [vmem:[#allocation2 + $0xe0] sm:$0xff] %vm405, 0.0
        %435 = vst.msk [vmem:[#allocation2 + $0xe8] sm:$0xff] %vm405, 0.0
        %436 = vst.msk [vmem:[#allocation2 + $0xf0] sm:$0xff] %vm405, 0.0
        %437 = vst.msk [vmem:[#allocation2 + $0xf8] sm:$0xff] %vm405, 0.0
        %438 = vst.msk [vmem:[#allocation2 + $0x100] sm:$0xff] %vm405, 0.0
        %439 = vst.msk [vmem:[#allocation2 + $0x108] sm:$0xff] %vm405, 0.0
        %440 = vst.msk [vmem:[#allocation2 + $0x110] sm:$0xff] %vm405, 0.0
        %441 = vst.msk [vmem:[#allocation2 + $0x118] sm:$0xff] %vm405, 0.0
        %442 = vst.msk [vmem:[#allocation2 + $0x120] sm:$0xff] %vm405, 0.0
        %443 = vst.msk [vmem:[#allocation2 + $0x128] sm:$0xff] %vm405, 0.0
        %444 = vst.msk [vmem:[#allocation2 + $0x130] sm:$0xff] %vm405, 0.0
        %445 = vst.msk [vmem:[#allocation2 + $0x138] sm:$0xff] %vm405, 0.0
        %446 = vst.msk [vmem:[#allocation2 + $0x140] sm:$0xff] %vm405, 0.0
        %447 = vst.msk [vmem:[#allocation2 + $0x148] sm:$0xff] %vm405, 0.0
        %v448 = vld [vmem:[%s1] sm:$0x7f]
        %v449 = vld [vmem:[%s1 + $0x8] sm:$0x7f]
        %v450 = vld [vmem:[%s1 + $0x10] sm:$0x7f]
        %v451 = vld [vmem:[%s1 + $0x18] sm:$0x7f]
        %v452 = vld [vmem:[%s1 + $0x20] sm:$0x7f]
        %v453 = vld [vmem:[%s1 + $0x28] sm:$0x7f]
        %v454 = vld [vmem:[%s1 + $0x30] sm:$0x7f]
        %v455 = vld [vmem:[%s2] sm:$0x1]
        %v456 = vld [vmem:[%s3] sm:$0x1]
        %v457 = vld [vmem:[%s4] sm:$0x1]
        %v458 = vld [vmem:[%s366] sm:$0xff]
        %v459 = vld [vmem:[%s366 + $0x8] sm:$0xff]
        %v460 = vld [vmem:[%s366 + $0x10] sm:$0xff]
        %v461 = vld [vmem:[%s366 + $0x18] sm:$0xff]
        %v462 = vld [vmem:[%s366 + $0x20] sm:$0xff]
        %v463 = vld [vmem:[%s366 + $0x28] sm:$0xff]
        %v464 = vld [vmem:[%s366 + $0x30] sm:$0xff]
        %v465 = vld [vmem:[%s366 + $0x38] sm:$0xff]
        %s466 = scalar_lea.vmem [#allocation2], 72
        %467 = vst.msk [vmem:[%s466 + $0x8] sm:$0xff] %vm405, %v458
        %468 = vst.msk [vmem:[%s466 + $0x20] sm:$0xff] %vm405, %v459
        %469 = vst.msk [vmem:[%s466 + $0x38] sm:$0xff] %vm405, %v460
        %470 = vst.msk [vmem:[%s466 + $0x50] sm:$0xff] %vm405, %v461
        %471 = vst.msk [vmem:[%s466 + $0x68] sm:$0xff] %vm405, %v462
        %472 = vst.msk [vmem:[%s466 + $0x80] sm:$0xff] %vm405, %v463
        %473 = vst.msk [vmem:[%s466 + $0x98] sm:$0xff] %vm405, %v464
        %474 = vst.msk [vmem:[%s466 + $0xb0] sm:$0xff] %vm405, %v465
        %v475 = vld [vmem:[#allocation2] sm:$0xff]
        %v476 = vld [vmem:[#allocation2 + $0x8] sm:$0xff]
        %v477 = vld [vmem:[#allocation2 + $0x10] sm:$0xff]
        %v478 = vld [vmem:[#allocation2 + $0x18] sm:$0xff]
        %v479 = vld [vmem:[#allocation2 + $0x20] sm:$0xff]
        %v480 = vld [vmem:[#allocation2 + $0x28] sm:$0xff]
        %v481 = vld [vmem:[#allocation2 + $0x30] sm:$0xff]
        %v482 = vld [vmem:[#allocation2 + $0x38] sm:$0xff]
        %v483 = vld [vmem:[#allocation2 + $0x40] sm:$0xff]
        %v484 = vld [vmem:[#allocation2 + $0x48] sm:$0xff]
        %v485 = vld [vmem:[#allocation2 + $0x50] sm:$0xff]
        %v486 = vld [vmem:[#allocation2 + $0x58] sm:$0xff]
        %v487 = vld [vmem:[#allocation2 + $0x60] sm:$0xff]
        %v488 = vld [vmem:[#allocation2 + $0x68] sm:$0xff]
        %v489 = vld [vmem:[#allocation2 + $0x70] sm:$0xff]
        %v490 = vld [vmem:[#allocation2 + $0x78] sm:$0xff]
        %v491 = vld [vmem:[#allocation2 + $0x80] sm:$0xff]
        %v492 = vld [vmem:[#allocation2 + $0x88] sm:$0xff]
        %v493 = vld [vmem:[#allocation2 + $0x90] sm:$0xff]
        %v494 = vld [vmem:[#allocation2 + $0x98] sm:$0xff]
        %v495 = vld [vmem:[#allocation2 + $0xa0] sm:$0xff]
        %v496 = vld [vmem:[#allocation2 + $0xa8] sm:$0xff]
        %v497 = vld [vmem:[#allocation2 + $0xb0] sm:$0xff]
        %v498 = vld [vmem:[#allocation2 + $0xb8] sm:$0xff]
        %v499 = vld [vmem:[#allocation2 + $0xc0] sm:$0xff]
        %v500 = vld [vmem:[#allocation2 + $0xc8] sm:$0xff]
        %v501 = vld [vmem:[#allocation2 + $0xd0] sm:$0xff]
        %v502 = vld [vmem:[#allocation2 + $0xd8] sm:$0xff]
        %v503 = vld [vmem:[#allocation2 + $0xe0] sm:$0xff]
        %v504 = vld [vmem:[#allocation2 + $0xe8] sm:$0xff]
        %v505 = vld [vmem:[#allocation2 + $0xf0] sm:$0xff]
        %v506 = vld [vmem:[#allocation2 + $0xf8] sm:$0xff]
        %v507 = vld [vmem:[#allocation2 + $0x100] sm:$0xff]
        %v508 = vld [vmem:[#allocation2 + $0x108] sm:$0xff]
        %v509 = vld [vmem:[#allocation2 + $0x110] sm:$0xff]
        %v510 = vld [vmem:[#allocation2 + $0x118] sm:$0xff]
        %v511 = vld [vmem:[#allocation2 + $0x120] sm:$0xff]
        %v512 = vld [vmem:[#allocation2 + $0x128] sm:$0xff]
        %v513 = vld [vmem:[#allocation2 + $0x130] sm:$0xff]
        %v514 = vld [vmem:[#allocation2 + $0x138] sm:$0xff]
        %v515 = vld [vmem:[#allocation2 + $0x140] sm:$0xff]
        %v516 = vld [vmem:[#allocation2 + $0x148] sm:$0xff]
        %v517 = vlaneseq
        %v518 = vshrl.u32 %v517, 7
        %v519 = vsub.s32 0, %v518
        %v520 = vrot.slane %v448, %v519
        %v521 = vmul.f32 %v475, %v520
        %v522 = vmul.f32 %v476, %v520
        %v523 = vmul.f32 %v478, %v520
        %v524 = vmul.f32 %v479, %v520
        %v525 = vmul.f32 %v481, %v520
        %v526 = vmul.f32 %v482, %v520
        %v527 = vmul.f32 %v484, %v520
        %v528 = vmul.f32 %v485, %v520
        %v529 = vmul.f32 %v487, %v520
        %v530 = vmul.f32 %v488, %v520
        %v531 = vmul.f32 %v490, %v520
        %v532 = vmul.f32 %v491, %v520
        %v533 = vmul.f32 %v493, %v520
        %v534 = vmul.f32 %v494, %v520
        %v535 = vmul.f32 %v496, %v520
        %v536 = vmul.f32 %v497, %v520
        %v537 = vlaneseq
        %v538 = vshrl.u32 %v537, 7
        %v539 = vsub.s32 0, %v538
        %v540 = vrot.slane %v449, %v539
        %v541 = vmul.f32 %v478, %v540
        %v542 = vmul.f32 %v479, %v540
        %v543 = vmul.f32 %v481, %v540
        %v544 = vmul.f32 %v482, %v540
        %v545 = vmul.f32 %v484, %v540
        %v546 = vmul.f32 %v485, %v540
        %v547 = vmul.f32 %v487, %v540
        %v548 = vmul.f32 %v488, %v540
        %v549 = vmul.f32 %v490, %v540
        %v550 = vmul.f32 %v491, %v540
        %v551 = vmul.f32 %v493, %v540
        %v552 = vmul.f32 %v494, %v540
        %v553 = vmul.f32 %v496, %v540
        %v554 = vmul.f32 %v497, %v540
        %v555 = vmul.f32 %v499, %v540
        %v556 = vmul.f32 %v500, %v540
        %v557 = vadd.f32 %v521, %v541
        %v558 = vadd.f32 %v522, %v542
        %v559 = vadd.f32 %v523, %v543
        %v560 = vadd.f32 %v524, %v544
        %v561 = vadd.f32 %v525, %v545
        %v562 = vadd.f32 %v526, %v546
        %v563 = vadd.f32 %v527, %v547
        %v564 = vadd.f32 %v528, %v548
        %v565 = vadd.f32 %v529, %v549
        %v566 = vadd.f32 %v530, %v550
        %v567 = vadd.f32 %v531, %v551
        %v568 = vadd.f32 %v532, %v552
        %v569 = vadd.f32 %v533, %v553
        %v570 = vadd.f32 %v534, %v554
        %v571 = vadd.f32 %v535, %v555
        %v572 = vadd.f32 %v536, %v556
        %v573 = vlaneseq
        %v574 = vshrl.u32 %v573, 7
        %v575 = vsub.s32 0, %v574
        %v576 = vrot.slane %v450, %v575
        %v577 = vmul.f32 %v481, %v576
        %v578 = vmul.f32 %v482, %v576
        %v579 = vmul.f32 %v484, %v576
        %v580 = vmul.f32 %v485, %v576
        %v581 = vmul.f32 %v487, %v576
        %v582 = vmul.f32 %v488, %v576
        %v583 = vmul.f32 %v490, %v576
        %v584 = vmul.f32 %v491, %v576
        %v585 = vmul.f32 %v493, %v576
        %v586 = vmul.f32 %v494, %v576
        %v587 = vmul.f32 %v496, %v576
        %v588 = vmul.f32 %v497, %v576
        %v589 = vmul.f32 %v499, %v576
        %v590 = vmul.f32 %v500, %v576
        %v591 = vmul.f32 %v502, %v576
        %v592 = vmul.f32 %v503, %v576
        %v593 = vadd.f32 %v557, %v577
        %v594 = vadd.f32 %v558, %v578
        %v595 = vadd.f32 %v559, %v579
        %v596 = vadd.f32 %v560, %v580
        %v597 = vadd.f32 %v561, %v581
        %v598 = vadd.f32 %v562, %v582
        %v599 = vadd.f32 %v563, %v583
        %v600 = vadd.f32 %v564, %v584
        %v601 = vadd.f32 %v565, %v585
        %v602 = vadd.f32 %v566, %v586
        %v603 = vadd.f32 %v567, %v587
        %v604 = vadd.f32 %v568, %v588
        %v605 = vadd.f32 %v569, %v589
        %v606 = vadd.f32 %v570, %v590
        %v607 = vadd.f32 %v571, %v591
        %v608 = vadd.f32 %v572, %v592
        %v609 = vlaneseq
        %v610 = vshrl.u32 %v609, 7
        %v611 = vsub.s32 0, %v610
        %v612 = vrot.slane %v451, %v611
        %v613 = vmul.f32 %v484, %v612
        %v614 = vmul.f32 %v485, %v612
        %v615 = vmul.f32 %v487, %v612
        %v616 = vmul.f32 %v488, %v612
        %v617 = vmul.f32 %v490, %v612
        %v618 = vmul.f32 %v491, %v612
        %v619 = vmul.f32 %v493, %v612
        %v620 = vmul.f32 %v494, %v612
        %v621 = vmul.f32 %v496, %v612
        %v622 = vmul.f32 %v497, %v612
        %v623 = vmul.f32 %v499, %v612
        %v624 = vmul.f32 %v500, %v612
        %v625 = vmul.f32 %v502, %v612
        %v626 = vmul.f32 %v503, %v612
        %v627 = vmul.f32 %v505, %v612
        %v628 = vmul.f32 %v506, %v612
        %v629 = vadd.f32 %v593, %v613
        %v630 = vadd.f32 %v594, %v614
        %v631 = vadd.f32 %v595, %v615
        %v632 = vadd.f32 %v596, %v616
        %v633 = vadd.f32 %v597, %v617
        %v634 = vadd.f32 %v598, %v618
        %v635 = vadd.f32 %v599, %v619
        %v636 = vadd.f32 %v600, %v620
        %v637 = vadd.f32 %v601, %v621
        %v638 = vadd.f32 %v602, %v622
        %v639 = vadd.f32 %v603, %v623
        %v640 = vadd.f32 %v604, %v624
        %v641 = vadd.f32 %v605, %v625
        %v642 = vadd.f32 %v606, %v626
        %v643 = vadd.f32 %v607, %v627
        %v644 = vadd.f32 %v608, %v628
        %v645 = vlaneseq
        %v646 = vshrl.u32 %v645, 7
        %v647 = vsub.s32 0, %v646
        %v648 = vrot.slane %v452, %v647
        %v649 = vmul.f32 %v487, %v648
        %v650 = vmul.f32 %v488, %v648
        %v651 = vmul.f32 %v490, %v648
        %v652 = vmul.f32 %v491, %v648
        %v653 = vmul.f32 %v493, %v648
        %v654 = vmul.f32 %v494, %v648
        %v655 = vmul.f32 %v496, %v648
        %v656 = vmul.f32 %v497, %v648
        %v657 = vmul.f32 %v499, %v648
        %v658 = vmul.f32 %v500, %v648
        %v659 = vmul.f32 %v502, %v648
        %v660 = vmul.f32 %v503, %v648
        %v661 = vmul.f32 %v505, %v648
        %v662 = vmul.f32 %v506, %v648
        %v663 = vmul.f32 %v508, %v648
        %v664 = vmul.f32 %v509, %v648
        %v665 = vadd.f32 %v629, %v649
        %v666 = vadd.f32 %v630, %v650
        %v667 = vadd.f32 %v631, %v651
        %v668 = vadd.f32 %v632, %v652
        %v669 = vadd.f32 %v633, %v653
        %v670 = vadd.f32 %v634, %v654
        %v671 = vadd.f32 %v635, %v655
        %v672 = vadd.f32 %v636, %v656
        %v673 = vadd.f32 %v637, %v657
        %v674 = vadd.f32 %v638, %v658
        %v675 = vadd.f32 %v639, %v659
        %v676 = vadd.f32 %v640, %v660
        %v677 = vadd.f32 %v641, %v661
        %v678 = vadd.f32 %v642, %v662
        %v679 = vadd.f32 %v643, %v663
        %v680 = vadd.f32 %v644, %v664
        %v681 = vlaneseq
        %v682 = vshrl.u32 %v681, 7
        %v683 = vsub.s32 0, %v682
        %v684 = vrot.slane %v453, %v683
        %v685 = vmul.f32 %v490, %v684
        %v686 = vmul.f32 %v491, %v684
        %v687 = vmul.f32 %v493, %v684
        %v688 = vmul.f32 %v494, %v684
        %v689 = vmul.f32 %v496, %v684
        %v690 = vmul.f32 %v497, %v684
        %v691 = vmul.f32 %v499, %v684
        %v692 = vmul.f32 %v500, %v684
        %v693 = vmul.f32 %v502, %v684
        %v694 = vmul.f32 %v503, %v684
        %v695 = vmul.f32 %v505, %v684
        %v696 = vmul.f32 %v506, %v684
        %v697 = vmul.f32 %v508, %v684
        %v698 = vmul.f32 %v509, %v684
        %v699 = vmul.f32 %v511, %v684
        %v700 = vmul.f32 %v512, %v684
        %v701 = vadd.f32 %v665, %v685
        %v702 = vadd.f32 %v666, %v686
        %v703 = vadd.f32 %v667, %v687
        %v704 = vadd.f32 %v668, %v688
        %v705 = vadd.f32 %v669, %v689
        %v706 = vadd.f32 %v670, %v690
        %v707 = vadd.f32 %v671, %v691
        %v708 = vadd.f32 %v672, %v692
        %v709 = vadd.f32 %v673, %v693
        %v710 = vadd.f32 %v674, %v694
        %v711 = vadd.f32 %v675, %v695
        %v712 = vadd.f32 %v676, %v696
        %v713 = vadd.f32 %v677, %v697
        %v714 = vadd.f32 %v678, %v698
        %v715 = vadd.f32 %v679, %v699
        %v716 = vadd.f32 %v680, %v700
        %v717 = vlaneseq
        %v718 = vshrl.u32 %v717, 7
        %v719 = vsub.s32 0, %v718
        %v720 = vrot.slane %v454, %v719
        %v721 = vmul.f32 %v493, %v720
        %v722 = vmul.f32 %v494, %v720
        %v723 = vmul.f32 %v496, %v720
        %v724 = vmul.f32 %v497, %v720
        %v725 = vmul.f32 %v499, %v720
        %v726 = vmul.f32 %v500, %v720
        %v727 = vmul.f32 %v502, %v720
        %v728 = vmul.f32 %v503, %v720
        %v729 = vmul.f32 %v505, %v720
        %v730 = vmul.f32 %v506, %v720
        %v731 = vmul.f32 %v508, %v720
        %v732 = vmul.f32 %v509, %v720
        %v733 = vmul.f32 %v511, %v720
        %v734 = vmul.f32 %v512, %v720
        %v735 = vmul.f32 %v514, %v720
        %v736 = vmul.f32 %v515, %v720
        %v737 = vadd.f32 %v701, %v721
        %v738 = vadd.f32 %v702, %v722
        %v739 = vadd.f32 %v703, %v723
        %v740 = vadd.f32 %v704, %v724
        %v741 = vadd.f32 %v705, %v725
        %v742 = vadd.f32 %v706, %v726
        %v743 = vadd.f32 %v707, %v727
        %v744 = vadd.f32 %v708, %v728
        %v745 = vadd.f32 %v709, %v729
        %v746 = vadd.f32 %v710, %v730
        %v747 = vadd.f32 %v711, %v731
        %v748 = vadd.f32 %v712, %v732
        %v749 = vadd.f32 %v713, %v733
        %v750 = vadd.f32 %v714, %v734
        %v751 = vadd.f32 %v715, %v735
        %v752 = vadd.f32 %v716, %v736
        %v753 = vlaneseq
        %v754 = vshrl.u32 %v753, 7
        %v755 = vsub.s32 1, %v754
        %v756 = vrot.slane %v448, %v755
        %v757 = vmul.f32 %v475, %v756
        %v758 = vmul.f32 %v476, %v756
        %v759 = vmul.f32 %v478, %v756
        %v760 = vmul.f32 %v479, %v756
        %v761 = vmul.f32 %v481, %v756
        %v762 = vmul.f32 %v482, %v756
        %v763 = vmul.f32 %v484, %v756
        %v764 = vmul.f32 %v485, %v756
        %v765 = vmul.f32 %v487, %v756
        %v766 = vmul.f32 %v488, %v756
        %v767 = vmul.f32 %v490, %v756
        %v768 = vmul.f32 %v491, %v756
        %v769 = vmul.f32 %v493, %v756
        %v770 = vmul.f32 %v494, %v756
        %v771 = vmul.f32 %v496, %v756
        %v772 = vmul.f32 %v497, %v756
        %vm789 = vcmask 1046528
        %v790 = vrot.slane %v757, 1
        %v791 = vrot.slane %v758, 1
        %v792 = vsel %vm789, %v790, %v791
        %v793 = vrot.slane %v759, 1
        %v794 = vrot.slane %v760, 1
        %v795 = vsel %vm789, %v793, %v794
        %v796 = vrot.slane %v761, 1
        %v797 = vrot.slane %v762, 1
        %v798 = vsel %vm789, %v796, %v797
        %v799 = vrot.slane %v763, 1
        %v800 = vrot.slane %v764, 1
        %v801 = vsel %vm789, %v799, %v800
        %v802 = vrot.slane %v765, 1
        %v803 = vrot.slane %v766, 1
        %v804 = vsel %vm789, %v802, %v803
        %v805 = vrot.slane %v767, 1
        %v806 = vrot.slane %v768, 1
        %v807 = vsel %vm789, %v805, %v806
        %v808 = vrot.slane %v769, 1
        %v809 = vrot.slane %v770, 1
        %v810 = vsel %vm789, %v808, %v809
        %v811 = vrot.slane %v771, 1
        %v812 = vrot.slane %v772, 1
        %v813 = vsel %vm789, %v811, %v812
        %v830 = vadd.f32 %v737, %v792
        %v831 = vadd.f32 %v738, %v791
        %v832 = vadd.f32 %v739, %v795
        %v833 = vadd.f32 %v740, %v794
        %v834 = vadd.f32 %v741, %v798
        %v835 = vadd.f32 %v742, %v797
        %v836 = vadd.f32 %v743, %v801
        %v837 = vadd.f32 %v744, %v800
        %v838 = vadd.f32 %v745, %v804
        %v839 = vadd.f32 %v746, %v803
        %v840 = vadd.f32 %v747, %v807
        %v841 = vadd.f32 %v748, %v806
        %v842 = vadd.f32 %v749, %v810
        %v843 = vadd.f32 %v750, %v809
        %v844 = vadd.f32 %v751, %v813
        %v845 = vadd.f32 %v752, %v812
        %v846 = vlaneseq
        %v847 = vshrl.u32 %v846, 7
        %v848 = vsub.s32 1, %v847
        %v849 = vrot.slane %v449, %v848
        %v850 = vmul.f32 %v478, %v849
        %v851 = vmul.f32 %v479, %v849
        %v852 = vmul.f32 %v481, %v849
        %v853 = vmul.f32 %v482, %v849
        %v854 = vmul.f32 %v484, %v849
        %v855 = vmul.f32 %v485, %v849
        %v856 = vmul.f32 %v487, %v849
        %v857 = vmul.f32 %v488, %v849
        %v858 = vmul.f32 %v490, %v849
        %v859 = vmul.f32 %v491, %v849
        %v860 = vmul.f32 %v493, %v849
        %v861 = vmul.f32 %v494, %v849
        %v862 = vmul.f32 %v496, %v849
        %v863 = vmul.f32 %v497, %v849
        %v864 = vmul.f32 %v499, %v849
        %v865 = vmul.f32 %v500, %v849
        %v882 = vrot.slane %v850, 1
        %v883 = vrot.slane %v851, 1
        %v884 = vsel %vm789, %v882, %v883
        %v885 = vrot.slane %v852, 1
        %v886 = vrot.slane %v853, 1
        %v887 = vsel %vm789, %v885, %v886
        %v888 = vrot.slane %v854, 1
        %v889 = vrot.slane %v855, 1
        %v890 = vsel %vm789, %v888, %v889
        %v891 = vrot.slane %v856, 1
        %v892 = vrot.slane %v857, 1
        %v893 = vsel %vm789, %v891, %v892
        %v894 = vrot.slane %v858, 1
        %v895 = vrot.slane %v859, 1
        %v896 = vsel %vm789, %v894, %v895
        %v897 = vrot.slane %v860, 1
        %v898 = vrot.slane %v861, 1
        %v899 = vsel %vm789, %v897, %v898
        %v900 = vrot.slane %v862, 1
        %v901 = vrot.slane %v863, 1
        %v902 = vsel %vm789, %v900, %v901
        %v903 = vrot.slane %v864, 1
        %v904 = vrot.slane %v865, 1
        %v905 = vsel %vm789, %v903, %v904
        %v922 = vadd.f32 %v830, %v884
        %v923 = vadd.f32 %v831, %v883
        %v924 = vadd.f32 %v832, %v887
        %v925 = vadd.f32 %v833, %v886
        %v926 = vadd.f32 %v834, %v890
        %v927 = vadd.f32 %v835, %v889
        %v928 = vadd.f32 %v836, %v893
        %v929 = vadd.f32 %v837, %v892
        %v930 = vadd.f32 %v838, %v896
        %v931 = vadd.f32 %v839, %v895
        %v932 = vadd.f32 %v840, %v899
        %v933 = vadd.f32 %v841, %v898
        %v934 = vadd.f32 %v842, %v902
        %v935 = vadd.f32 %v843, %v901
        %v936 = vadd.f32 %v844, %v905
        %v937 = vadd.f32 %v845, %v904
        %v938 = vlaneseq
        %v939 = vshrl.u32 %v938, 7
        %v940 = vsub.s32 1, %v939
        %v941 = vrot.slane %v450, %v940
        %v942 = vmul.f32 %v481, %v941
        %v943 = vmul.f32 %v482, %v941
        %v944 = vmul.f32 %v484, %v941
        %v945 = vmul.f32 %v485, %v941
        %v946 = vmul.f32 %v487, %v941
        %v947 = vmul.f32 %v488, %v941
        %v948 = vmul.f32 %v490, %v941
        %v949 = vmul.f32 %v491, %v941
        %v950 = vmul.f32 %v493, %v941
        %v951 = vmul.f32 %v494, %v941
        %v952 = vmul.f32 %v496, %v941
        %v953 = vmul.f32 %v497, %v941
        %v954 = vmul.f32 %v499, %v941
        %v955 = vmul.f32 %v500, %v941
        %v956 = vmul.f32 %v502, %v941
        %v957 = vmul.f32 %v503, %v941
        %v974 = vrot.slane %v942, 1
        %v975 = vrot.slane %v943, 1
        %v976 = vsel %vm789, %v974, %v975
        %v977 = vrot.slane %v944, 1
        %v978 = vrot.slane %v945, 1
        %v979 = vsel %vm789, %v977, %v978
        %v980 = vrot.slane %v946, 1
        %v981 = vrot.slane %v947, 1
        %v982 = vsel %vm789, %v980, %v981
        %v983 = vrot.slane %v948, 1
        %v984 = vrot.slane %v949, 1
        %v985 = vsel %vm789, %v983, %v984
        %v986 = vrot.slane %v950, 1
        %v987 = vrot.slane %v951, 1
        %v988 = vsel %vm789, %v986, %v987
        %v989 = vrot.slane %v952, 1
        %v990 = vrot.slane %v953, 1
        %v991 = vsel %vm789, %v989, %v990
        %v992 = vrot.slane %v954, 1
        %v993 = vrot.slane %v955, 1
        %v994 = vsel %vm789, %v992, %v993
        %v995 = vrot.slane %v956, 1
        %v996 = vrot.slane %v957, 1
        %v997 = vsel %vm789, %v995, %v996
        %v1014 = vadd.f32 %v922, %v976
        %v1015 = vadd.f32 %v923, %v975
        %v1016 = vadd.f32 %v924, %v979
        %v1017 = vadd.f32 %v925, %v978
        %v1018 = vadd.f32 %v926, %v982
        %v1019 = vadd.f32 %v927, %v981
        %v1020 = vadd.f32 %v928, %v985
        %v1021 = vadd.f32 %v929, %v984
        %v1022 = vadd.f32 %v930, %v988
        %v1023 = vadd.f32 %v931, %v987
        %v1024 = vadd.f32 %v932, %v991
        %v1025 = vadd.f32 %v933, %v990
        %v1026 = vadd.f32 %v934, %v994
        %v1027 = vadd.f32 %v935, %v993
        %v1028 = vadd.f32 %v936, %v997
        %v1029 = vadd.f32 %v937, %v996
        %v1030 = vlaneseq
        %v1031 = vshrl.u32 %v1030, 7
        %v1032 = vsub.s32 1, %v1031
        %v1033 = vrot.slane %v451, %v1032
        %v1034 = vmul.f32 %v484, %v1033
        %v1035 = vmul.f32 %v485, %v1033
        %v1036 = vmul.f32 %v487, %v1033
        %v1037 = vmul.f32 %v488, %v1033
        %v1038 = vmul.f32 %v490, %v1033
        %v1039 = vmul.f32 %v491, %v1033
        %v1040 = vmul.f32 %v493, %v1033
        %v1041 = vmul.f32 %v494, %v1033
        %v1042 = vmul.f32 %v496, %v1033
        %v1043 = vmul.f32 %v497, %v1033
        %v1044 = vmul.f32 %v499, %v1033
        %v1045 = vmul.f32 %v500, %v1033
        %v1046 = vmul.f32 %v502, %v1033
        %v1047 = vmul.f32 %v503, %v1033
        %v1048 = vmul.f32 %v505, %v1033
        %v1049 = vmul.f32 %v506, %v1033
        %v1066 = vrot.slane %v1034, 1
        %v1067 = vrot.slane %v1035, 1
        %v1068 = vsel %vm789, %v1066, %v1067
        %v1069 = vrot.slane %v1036, 1
        %v1070 = vrot.slane %v1037, 1
        %v1071 = vsel %vm789, %v1069, %v1070
        %v1072 = vrot.slane %v1038, 1
        %v1073 = vrot.slane %v1039, 1
        %v1074 = vsel %vm789, %v1072, %v1073
        %v1075 = vrot.slane %v1040, 1
        %v1076 = vrot.slane %v1041, 1
        %v1077 = vsel %vm789, %v1075, %v1076
        %v1078 = vrot.slane %v1042, 1
        %v1079 = vrot.slane %v1043, 1
        %v1080 = vsel %vm789, %v1078, %v1079
        %v1081 = vrot.slane %v1044, 1
        %v1082 = vrot.slane %v1045, 1
        %v1083 = vsel %vm789, %v1081, %v1082
        %v1084 = vrot.slane %v1046, 1
        %v1085 = vrot.slane %v1047, 1
        %v1086 = vsel %vm789, %v1084, %v1085
        %v1087 = vrot.slane %v1048, 1
        %v1088 = vrot.slane %v1049, 1
        %v1089 = vsel %vm789, %v1087, %v1088
        %v1106 = vadd.f32 %v1014, %v1068
        %v1107 = vadd.f32 %v1015, %v1067
        %v1108 = vadd.f32 %v1016, %v1071
        %v1109 = vadd.f32 %v1017, %v1070
        %v1110 = vadd.f32 %v1018, %v1074
        %v1111 = vadd.f32 %v1019, %v1073
        %v1112 = vadd.f32 %v1020, %v1077
        %v1113 = vadd.f32 %v1021, %v1076
        %v1114 = vadd.f32 %v1022, %v1080
        %v1115 = vadd.f32 %v1023, %v1079
        %v1116 = vadd.f32 %v1024, %v1083
        %v1117 = vadd.f32 %v1025, %v1082
        %v1118 = vadd.f32 %v1026, %v1086
        %v1119 = vadd.f32 %v1027, %v1085
        %v1120 = vadd.f32 %v1028, %v1089
        %v1121 = vadd.f32 %v1029, %v1088
        %v1122 = vlaneseq
        %v1123 = vshrl.u32 %v1122, 7
        %v1124 = vsub.s32 1, %v1123
        %v1125 = vrot.slane %v452, %v1124
        %v1126 = vmul.f32 %v487, %v1125
        %v1127 = vmul.f32 %v488, %v1125
        %v1128 = vmul.f32 %v490, %v1125
        %v1129 = vmul.f32 %v491, %v1125
        %v1130 = vmul.f32 %v493, %v1125
        %v1131 = vmul.f32 %v494, %v1125
        %v1132 = vmul.f32 %v496, %v1125
        %v1133 = vmul.f32 %v497, %v1125
        %v1134 = vmul.f32 %v499, %v1125
        %v1135 = vmul.f32 %v500, %v1125
        %v1136 = vmul.f32 %v502, %v1125
        %v1137 = vmul.f32 %v503, %v1125
        %v1138 = vmul.f32 %v505, %v1125
        %v1139 = vmul.f32 %v506, %v1125
        %v1140 = vmul.f32 %v508, %v1125
        %v1141 = vmul.f32 %v509, %v1125
        %v1158 = vrot.slane %v1126, 1
        %v1159 = vrot.slane %v1127, 1
        %v1160 = vsel %vm789, %v1158, %v1159
        %v1161 = vrot.slane %v1128, 1
        %v1162 = vrot.slane %v1129, 1
        %v1163 = vsel %vm789, %v1161, %v1162
        %v1164 = vrot.slane %v1130, 1
        %v1165 = vrot.slane %v1131, 1
        %v1166 = vsel %vm789, %v1164, %v1165
        %v1167 = vrot.slane %v1132, 1
        %v1168 = vrot.slane %v1133, 1
        %v1169 = vsel %vm789, %v1167, %v1168
        %v1170 = vrot.slane %v1134, 1
        %v1171 = vrot.slane %v1135, 1
        %v1172 = vsel %vm789, %v1170, %v1171
        %v1173 = vrot.slane %v1136, 1
        %v1174 = vrot.slane %v1137, 1
        %v1175 = vsel %vm789, %v1173, %v1174
        %v1176 = vrot.slane %v1138, 1
        %v1177 = vrot.slane %v1139, 1
        %v1178 = vsel %vm789, %v1176, %v1177
        %v1179 = vrot.slane %v1140, 1
        %v1180 = vrot.slane %v1141, 1
        %v1181 = vsel %vm789, %v1179, %v1180
        %v1198 = vadd.f32 %v1106, %v1160
        %v1199 = vadd.f32 %v1107, %v1159
        %v1200 = vadd.f32 %v1108, %v1163
        %v1201 = vadd.f32 %v1109, %v1162
        %v1202 = vadd.f32 %v1110, %v1166
        %v1203 = vadd.f32 %v1111, %v1165
        %v1204 = vadd.f32 %v1112, %v1169
        %v1205 = vadd.f32 %v1113, %v1168
        %v1206 = vadd.f32 %v1114, %v1172
        %v1207 = vadd.f32 %v1115, %v1171
        %v1208 = vadd.f32 %v1116, %v1175
        %v1209 = vadd.f32 %v1117, %v1174
        %v1210 = vadd.f32 %v1118, %v1178
        %v1211 = vadd.f32 %v1119, %v1177
        %v1212 = vadd.f32 %v1120, %v1181
        %v1213 = vadd.f32 %v1121, %v1180
        %v1214 = vlaneseq
        %v1215 = vshrl.u32 %v1214, 7
        %v1216 = vsub.s32 1, %v1215
        %v1217 = vrot.slane %v453, %v1216
        %v1218 = vmul.f32 %v490, %v1217
        %v1219 = vmul.f32 %v491, %v1217
        %v1220 = vmul.f32 %v493, %v1217
        %v1221 = vmul.f32 %v494, %v1217
        %v1222 = vmul.f32 %v496, %v1217
        %v1223 = vmul.f32 %v497, %v1217
        %v1224 = vmul.f32 %v499, %v1217
        %v1225 = vmul.f32 %v500, %v1217
        %v1226 = vmul.f32 %v502, %v1217
        %v1227 = vmul.f32 %v503, %v1217
        %v1228 = vmul.f32 %v505, %v1217
        %v1229 = vmul.f32 %v506, %v1217
        %v1230 = vmul.f32 %v508, %v1217
        %v1231 = vmul.f32 %v509, %v1217
        %v1232 = vmul.f32 %v511, %v1217
        %v1233 = vmul.f32 %v512, %v1217
        %v1250 = vrot.slane %v1218, 1
        %v1251 = vrot.slane %v1219, 1
        %v1252 = vsel %vm789, %v1250, %v1251
        %v1253 = vrot.slane %v1220, 1
        %v1254 = vrot.slane %v1221, 1
        %v1255 = vsel %vm789, %v1253, %v1254
        %v1256 = vrot.slane %v1222, 1
        %v1257 = vrot.slane %v1223, 1
        %v1258 = vsel %vm789, %v1256, %v1257
        %v1259 = vrot.slane %v1224, 1
        %v1260 = vrot.slane %v1225, 1
        %v1261 = vsel %vm789, %v1259, %v1260
        %v1262 = vrot.slane %v1226, 1
        %v1263 = vrot.slane %v1227, 1
        %v1264 = vsel %vm789, %v1262, %v1263
        %v1265 = vrot.slane %v1228, 1
        %v1266 = vrot.slane %v1229, 1
        %v1267 = vsel %vm789, %v1265, %v1266
        %v1268 = vrot.slane %v1230, 1
        %v1269 = vrot.slane %v1231, 1
        %v1270 = vsel %vm789, %v1268, %v1269
        %v1271 = vrot.slane %v1232, 1
        %v1272 = vrot.slane %v1233, 1
        %v1273 = vsel %vm789, %v1271, %v1272
        %v1290 = vadd.f32 %v1198, %v1252
        %v1291 = vadd.f32 %v1199, %v1251
        %v1292 = vadd.f32 %v1200, %v1255
        %v1293 = vadd.f32 %v1201, %v1254
        %v1294 = vadd.f32 %v1202, %v1258
        %v1295 = vadd.f32 %v1203, %v1257
        %v1296 = vadd.f32 %v1204, %v1261
        %v1297 = vadd.f32 %v1205, %v1260
        %v1298 = vadd.f32 %v1206, %v1264
        %v1299 = vadd.f32 %v1207, %v1263
        %v1300 = vadd.f32 %v1208, %v1267
        %v1301 = vadd.f32 %v1209, %v1266
        %v1302 = vadd.f32 %v1210, %v1270
        %v1303 = vadd.f32 %v1211, %v1269
        %v1304 = vadd.f32 %v1212, %v1273
        %v1305 = vadd.f32 %v1213, %v1272
        %v1306 = vlaneseq
        %v1307 = vshrl.u32 %v1306, 7
        %v1308 = vsub.s32 1, %v1307
        %v1309 = vrot.slane %v454, %v1308
        %v1310 = vmul.f32 %v493, %v1309
        %v1311 = vmul.f32 %v494, %v1309
        %v1312 = vmul.f32 %v496, %v1309
        %v1313 = vmul.f32 %v497, %v1309
        %v1314 = vmul.f32 %v499, %v1309
        %v1315 = vmul.f32 %v500, %v1309
        %v1316 = vmul.f32 %v502, %v1309
        %v1317 = vmul.f32 %v503, %v1309
        %v1318 = vmul.f32 %v505, %v1309
        %v1319 = vmul.f32 %v506, %v1309
        %v1320 = vmul.f32 %v508, %v1309
        %v1321 = vmul.f32 %v509, %v1309
        %v1322 = vmul.f32 %v511, %v1309
        %v1323 = vmul.f32 %v512, %v1309
        %v1324 = vmul.f32 %v514, %v1309
        %v1325 = vmul.f32 %v515, %v1309
        %v1342 = vrot.slane %v1310, 1
        %v1343 = vrot.slane %v1311, 1
        %v1344 = vsel %vm789, %v1342, %v1343
        %v1345 = vrot.slane %v1312, 1
        %v1346 = vrot.slane %v1313, 1
        %v1347 = vsel %vm789, %v1345, %v1346
        %v1348 = vrot.slane %v1314, 1
        %v1349 = vrot.slane %v1315, 1
        %v1350 = vsel %vm789, %v1348, %v1349
        %v1351 = vrot.slane %v1316, 1
        %v1352 = vrot.slane %v1317, 1
        %v1353 = vsel %vm789, %v1351, %v1352
        %v1354 = vrot.slane %v1318, 1
        %v1355 = vrot.slane %v1319, 1
        %v1356 = vsel %vm789, %v1354, %v1355
        %v1357 = vrot.slane %v1320, 1
        %v1358 = vrot.slane %v1321, 1
        %v1359 = vsel %vm789, %v1357, %v1358
        %v1360 = vrot.slane %v1322, 1
        %v1361 = vrot.slane %v1323, 1
        %v1362 = vsel %vm789, %v1360, %v1361
        %v1363 = vrot.slane %v1324, 1
        %v1364 = vrot.slane %v1325, 1
        %v1365 = vsel %vm789, %v1363, %v1364
        %v1382 = vadd.f32 %v1290, %v1344
        %v1383 = vadd.f32 %v1291, %v1343
        %v1384 = vadd.f32 %v1292, %v1347
        %v1385 = vadd.f32 %v1293, %v1346
        %v1386 = vadd.f32 %v1294, %v1350
        %v1387 = vadd.f32 %v1295, %v1349
        %v1388 = vadd.f32 %v1296, %v1353
        %v1389 = vadd.f32 %v1297, %v1352
        %v1390 = vadd.f32 %v1298, %v1356
        %v1391 = vadd.f32 %v1299, %v1355
        %v1392 = vadd.f32 %v1300, %v1359
        %v1393 = vadd.f32 %v1301, %v1358
        %v1394 = vadd.f32 %v1302, %v1362
        %v1395 = vadd.f32 %v1303, %v1361
        %v1396 = vadd.f32 %v1304, %v1365
        %v1397 = vadd.f32 %v1305, %v1364
        %v1398 = vlaneseq
        %v1399 = vshrl.u32 %v1398, 7
        %v1400 = vsub.s32 2, %v1399
        %v1401 = vrot.slane %v448, %v1400
        %v1402 = vmul.f32 %v475, %v1401
        %v1403 = vmul.f32 %v476, %v1401
        %v1404 = vmul.f32 %v478, %v1401
        %v1405 = vmul.f32 %v479, %v1401
        %v1406 = vmul.f32 %v481, %v1401
        %v1407 = vmul.f32 %v482, %v1401
        %v1408 = vmul.f32 %v484, %v1401
        %v1409 = vmul.f32 %v485, %v1401
        %v1410 = vmul.f32 %v487, %v1401
        %v1411 = vmul.f32 %v488, %v1401
        %v1412 = vmul.f32 %v490, %v1401
        %v1413 = vmul.f32 %v491, %v1401
        %v1414 = vmul.f32 %v493, %v1401
        %v1415 = vmul.f32 %v494, %v1401
        %v1416 = vmul.f32 %v496, %v1401
        %v1417 = vmul.f32 %v497, %v1401
        %vm1434 = vcmask 1045504
        %v1435 = vrot.slane %v1402, 2
        %v1436 = vrot.slane %v1403, 2
        %v1437 = vsel %vm1434, %v1435, %v1436
        %v1438 = vrot.slane %v1404, 2
        %v1439 = vrot.slane %v1405, 2
        %v1440 = vsel %vm1434, %v1438, %v1439
        %v1441 = vrot.slane %v1406, 2
        %v1442 = vrot.slane %v1407, 2
        %v1443 = vsel %vm1434, %v1441, %v1442
        %v1444 = vrot.slane %v1408, 2
        %v1445 = vrot.slane %v1409, 2
        %v1446 = vsel %vm1434, %v1444, %v1445
        %v1447 = vrot.slane %v1410, 2
        %v1448 = vrot.slane %v1411, 2
        %v1449 = vsel %vm1434, %v1447, %v1448
        %v1450 = vrot.slane %v1412, 2
        %v1451 = vrot.slane %v1413, 2
        %v1452 = vsel %vm1434, %v1450, %v1451
        %v1453 = vrot.slane %v1414, 2
        %v1454 = vrot.slane %v1415, 2
        %v1455 = vsel %vm1434, %v1453, %v1454
        %v1456 = vrot.slane %v1416, 2
        %v1457 = vrot.slane %v1417, 2
        %v1458 = vsel %vm1434, %v1456, %v1457
        %v1475 = vadd.f32 %v1382, %v1437
        %v1476 = vadd.f32 %v1383, %v1436
        %v1477 = vadd.f32 %v1384, %v1440
        %v1478 = vadd.f32 %v1385, %v1439
        %v1479 = vadd.f32 %v1386, %v1443
        %v1480 = vadd.f32 %v1387, %v1442
        %v1481 = vadd.f32 %v1388, %v1446
        %v1482 = vadd.f32 %v1389, %v1445
        %v1483 = vadd.f32 %v1390, %v1449
        %v1484 = vadd.f32 %v1391, %v1448
        %v1485 = vadd.f32 %v1392, %v1452
        %v1486 = vadd.f32 %v1393, %v1451
        %v1487 = vadd.f32 %v1394, %v1455
        %v1488 = vadd.f32 %v1395, %v1454
        %v1489 = vadd.f32 %v1396, %v1458
        %v1490 = vadd.f32 %v1397, %v1457
        %v1491 = vlaneseq
        %v1492 = vshrl.u32 %v1491, 7
        %v1493 = vsub.s32 2, %v1492
        %v1494 = vrot.slane %v449, %v1493
        %v1495 = vmul.f32 %v478, %v1494
        %v1496 = vmul.f32 %v479, %v1494
        %v1497 = vmul.f32 %v481, %v1494
        %v1498 = vmul.f32 %v482, %v1494
        %v1499 = vmul.f32 %v484, %v1494
        %v1500 = vmul.f32 %v485, %v1494
        %v1501 = vmul.f32 %v487, %v1494
        %v1502 = vmul.f32 %v488, %v1494
        %v1503 = vmul.f32 %v490, %v1494
        %v1504 = vmul.f32 %v491, %v1494
        %v1505 = vmul.f32 %v493, %v1494
        %v1506 = vmul.f32 %v494, %v1494
        %v1507 = vmul.f32 %v496, %v1494
        %v1508 = vmul.f32 %v497, %v1494
        %v1509 = vmul.f32 %v499, %v1494
        %v1510 = vmul.f32 %v500, %v1494
        %v1527 = vrot.slane %v1495, 2
        %v1528 = vrot.slane %v1496, 2
        %v1529 = vsel %vm1434, %v1527, %v1528
        %v1530 = vrot.slane %v1497, 2
        %v1531 = vrot.slane %v1498, 2
        %v1532 = vsel %vm1434, %v1530, %v1531
        %v1533 = vrot.slane %v1499, 2
        %v1534 = vrot.slane %v1500, 2
        %v1535 = vsel %vm1434, %v1533, %v1534
        %v1536 = vrot.slane %v1501, 2
        %v1537 = vrot.slane %v1502, 2
        %v1538 = vsel %vm1434, %v1536, %v1537
        %v1539 = vrot.slane %v1503, 2
        %v1540 = vrot.slane %v1504, 2
        %v1541 = vsel %vm1434, %v1539, %v1540
        %v1542 = vrot.slane %v1505, 2
        %v1543 = vrot.slane %v1506, 2
        %v1544 = vsel %vm1434, %v1542, %v1543
        %v1545 = vrot.slane %v1507, 2
        %v1546 = vrot.slane %v1508, 2
        %v1547 = vsel %vm1434, %v1545, %v1546
        %v1548 = vrot.slane %v1509, 2
        %v1549 = vrot.slane %v1510, 2
        %v1550 = vsel %vm1434, %v1548, %v1549
        %v1567 = vadd.f32 %v1475, %v1529
        %v1568 = vadd.f32 %v1476, %v1528
        %v1569 = vadd.f32 %v1477, %v1532
        %v1570 = vadd.f32 %v1478, %v1531
        %v1571 = vadd.f32 %v1479, %v1535
        %v1572 = vadd.f32 %v1480, %v1534
        %v1573 = vadd.f32 %v1481, %v1538
        %v1574 = vadd.f32 %v1482, %v1537
        %v1575 = vadd.f32 %v1483, %v1541
        %v1576 = vadd.f32 %v1484, %v1540
        %v1577 = vadd.f32 %v1485, %v1544
        %v1578 = vadd.f32 %v1486, %v1543
        %v1579 = vadd.f32 %v1487, %v1547
        %v1580 = vadd.f32 %v1488, %v1546
        %v1581 = vadd.f32 %v1489, %v1550
        %v1582 = vadd.f32 %v1490, %v1549
        %v1583 = vlaneseq
        %v1584 = vshrl.u32 %v1583, 7
        %v1585 = vsub.s32 2, %v1584
        %v1586 = vrot.slane %v450, %v1585
        %v1587 = vmul.f32 %v481, %v1586
        %v1588 = vmul.f32 %v482, %v1586
        %v1589 = vmul.f32 %v484, %v1586
        %v1590 = vmul.f32 %v485, %v1586
        %v1591 = vmul.f32 %v487, %v1586
        %v1592 = vmul.f32 %v488, %v1586
        %v1593 = vmul.f32 %v490, %v1586
        %v1594 = vmul.f32 %v491, %v1586
        %v1595 = vmul.f32 %v493, %v1586
        %v1596 = vmul.f32 %v494, %v1586
        %v1597 = vmul.f32 %v496, %v1586
        %v1598 = vmul.f32 %v497, %v1586
        %v1599 = vmul.f32 %v499, %v1586
        %v1600 = vmul.f32 %v500, %v1586
        %v1601 = vmul.f32 %v502, %v1586
        %v1602 = vmul.f32 %v503, %v1586
        %v1619 = vrot.slane %v1587, 2
        %v1620 = vrot.slane %v1588, 2
        %v1621 = vsel %vm1434, %v1619, %v1620
        %v1622 = vrot.slane %v1589, 2
        %v1623 = vrot.slane %v1590, 2
        %v1624 = vsel %vm1434, %v1622, %v1623
        %v1625 = vrot.slane %v1591, 2
        %v1626 = vrot.slane %v1592, 2
        %v1627 = vsel %vm1434, %v1625, %v1626
        %v1628 = vrot.slane %v1593, 2
        %v1629 = vrot.slane %v1594, 2
        %v1630 = vsel %vm1434, %v1628, %v1629
        %v1631 = vrot.slane %v1595, 2
        %v1632 = vrot.slane %v1596, 2
        %v1633 = vsel %vm1434, %v1631, %v1632
        %v1634 = vrot.slane %v1597, 2
        %v1635 = vrot.slane %v1598, 2
        %v1636 = vsel %vm1434, %v1634, %v1635
        %v1637 = vrot.slane %v1599, 2
        %v1638 = vrot.slane %v1600, 2
        %v1639 = vsel %vm1434, %v1637, %v1638
        %v1640 = vrot.slane %v1601, 2
        %v1641 = vrot.slane %v1602, 2
        %v1642 = vsel %vm1434, %v1640, %v1641
        %v1659 = vadd.f32 %v1567, %v1621
        %v1660 = vadd.f32 %v1568, %v1620
        %v1661 = vadd.f32 %v1569, %v1624
        %v1662 = vadd.f32 %v1570, %v1623
        %v1663 = vadd.f32 %v1571, %v1627
        %v1664 = vadd.f32 %v1572, %v1626
        %v1665 = vadd.f32 %v1573, %v1630
        %v1666 = vadd.f32 %v1574, %v1629
        %v1667 = vadd.f32 %v1575, %v1633
        %v1668 = vadd.f32 %v1576, %v1632
        %v1669 = vadd.f32 %v1577, %v1636
        %v1670 = vadd.f32 %v1578, %v1635
        %v1671 = vadd.f32 %v1579, %v1639
        %v1672 = vadd.f32 %v1580, %v1638
        %v1673 = vadd.f32 %v1581, %v1642
        %v1674 = vadd.f32 %v1582, %v1641
        %v1675 = vlaneseq
        %v1676 = vshrl.u32 %v1675, 7
        %v1677 = vsub.s32 2, %v1676
        %v1678 = vrot.slane %v451, %v1677
        %v1679 = vmul.f32 %v484, %v1678
        %v1680 = vmul.f32 %v485, %v1678
        %v1681 = vmul.f32 %v487, %v1678
        %v1682 = vmul.f32 %v488, %v1678
        %v1683 = vmul.f32 %v490, %v1678
        %v1684 = vmul.f32 %v491, %v1678
        %v1685 = vmul.f32 %v493, %v1678
        %v1686 = vmul.f32 %v494, %v1678
        %v1687 = vmul.f32 %v496, %v1678
        %v1688 = vmul.f32 %v497, %v1678
        %v1689 = vmul.f32 %v499, %v1678
        %v1690 = vmul.f32 %v500, %v1678
        %v1691 = vmul.f32 %v502, %v1678
        %v1692 = vmul.f32 %v503, %v1678
        %v1693 = vmul.f32 %v505, %v1678
        %v1694 = vmul.f32 %v506, %v1678
        %v1711 = vrot.slane %v1679, 2
        %v1712 = vrot.slane %v1680, 2
        %v1713 = vsel %vm1434, %v1711, %v1712
        %v1714 = vrot.slane %v1681, 2
        %v1715 = vrot.slane %v1682, 2
        %v1716 = vsel %vm1434, %v1714, %v1715
        %v1717 = vrot.slane %v1683, 2
        %v1718 = vrot.slane %v1684, 2
        %v1719 = vsel %vm1434, %v1717, %v1718
        %v1720 = vrot.slane %v1685, 2
        %v1721 = vrot.slane %v1686, 2
        %v1722 = vsel %vm1434, %v1720, %v1721
        %v1723 = vrot.slane %v1687, 2
        %v1724 = vrot.slane %v1688, 2
        %v1725 = vsel %vm1434, %v1723, %v1724
        %v1726 = vrot.slane %v1689, 2
        %v1727 = vrot.slane %v1690, 2
        %v1728 = vsel %vm1434, %v1726, %v1727
        %v1729 = vrot.slane %v1691, 2
        %v1730 = vrot.slane %v1692, 2
        %v1731 = vsel %vm1434, %v1729, %v1730
        %v1732 = vrot.slane %v1693, 2
        %v1733 = vrot.slane %v1694, 2
        %v1734 = vsel %vm1434, %v1732, %v1733
        %v1751 = vadd.f32 %v1659, %v1713
        %v1752 = vadd.f32 %v1660, %v1712
        %v1753 = vadd.f32 %v1661, %v1716
        %v1754 = vadd.f32 %v1662, %v1715
        %v1755 = vadd.f32 %v1663, %v1719
        %v1756 = vadd.f32 %v1664, %v1718
        %v1757 = vadd.f32 %v1665, %v1722
        %v1758 = vadd.f32 %v1666, %v1721
        %v1759 = vadd.f32 %v1667, %v1725
        %v1760 = vadd.f32 %v1668, %v1724
        %v1761 = vadd.f32 %v1669, %v1728
        %v1762 = vadd.f32 %v1670, %v1727
        %v1763 = vadd.f32 %v1671, %v1731
        %v1764 = vadd.f32 %v1672, %v1730
        %v1765 = vadd.f32 %v1673, %v1734
        %v1766 = vadd.f32 %v1674, %v1733
        %v1767 = vlaneseq
        %v1768 = vshrl.u32 %v1767, 7
        %v1769 = vsub.s32 2, %v1768
        %v1770 = vrot.slane %v452, %v1769
        %v1771 = vmul.f32 %v487, %v1770
        %v1772 = vmul.f32 %v488, %v1770
        %v1773 = vmul.f32 %v490, %v1770
        %v1774 = vmul.f32 %v491, %v1770
        %v1775 = vmul.f32 %v493, %v1770
        %v1776 = vmul.f32 %v494, %v1770
        %v1777 = vmul.f32 %v496, %v1770
        %v1778 = vmul.f32 %v497, %v1770
        %v1779 = vmul.f32 %v499, %v1770
        %v1780 = vmul.f32 %v500, %v1770
        %v1781 = vmul.f32 %v502, %v1770
        %v1782 = vmul.f32 %v503, %v1770
        %v1783 = vmul.f32 %v505, %v1770
        %v1784 = vmul.f32 %v506, %v1770
        %v1785 = vmul.f32 %v508, %v1770
        %v1786 = vmul.f32 %v509, %v1770
        %v1803 = vrot.slane %v1771, 2
        %v1804 = vrot.slane %v1772, 2
        %v1805 = vsel %vm1434, %v1803, %v1804
        %v1806 = vrot.slane %v1773, 2
        %v1807 = vrot.slane %v1774, 2
        %v1808 = vsel %vm1434, %v1806, %v1807
        %v1809 = vrot.slane %v1775, 2
        %v1810 = vrot.slane %v1776, 2
        %v1811 = vsel %vm1434, %v1809, %v1810
        %v1812 = vrot.slane %v1777, 2
        %v1813 = vrot.slane %v1778, 2
        %v1814 = vsel %vm1434, %v1812, %v1813
        %v1815 = vrot.slane %v1779, 2
        %v1816 = vrot.slane %v1780, 2
        %v1817 = vsel %vm1434, %v1815, %v1816
        %v1818 = vrot.slane %v1781, 2
        %v1819 = vrot.slane %v1782, 2
        %v1820 = vsel %vm1434, %v1818, %v1819
        %v1821 = vrot.slane %v1783, 2
        %v1822 = vrot.slane %v1784, 2
        %v1823 = vsel %vm1434, %v1821, %v1822
        %v1824 = vrot.slane %v1785, 2
        %v1825 = vrot.slane %v1786, 2
        %v1826 = vsel %vm1434, %v1824, %v1825
        %v1843 = vadd.f32 %v1751, %v1805
        %v1844 = vadd.f32 %v1752, %v1804
        %v1845 = vadd.f32 %v1753, %v1808
        %v1846 = vadd.f32 %v1754, %v1807
        %v1847 = vadd.f32 %v1755, %v1811
        %v1848 = vadd.f32 %v1756, %v1810
        %v1849 = vadd.f32 %v1757, %v1814
        %v1850 = vadd.f32 %v1758, %v1813
        %v1851 = vadd.f32 %v1759, %v1817
        %v1852 = vadd.f32 %v1760, %v1816
        %v1853 = vadd.f32 %v1761, %v1820
        %v1854 = vadd.f32 %v1762, %v1819
        %v1855 = vadd.f32 %v1763, %v1823
        %v1856 = vadd.f32 %v1764, %v1822
        %v1857 = vadd.f32 %v1765, %v1826
        %v1858 = vadd.f32 %v1766, %v1825
        %v1859 = vlaneseq
        %v1860 = vshrl.u32 %v1859, 7
        %v1861 = vsub.s32 2, %v1860
        %v1862 = vrot.slane %v453, %v1861
        %v1863 = vmul.f32 %v490, %v1862
        %v1864 = vmul.f32 %v491, %v1862
        %v1865 = vmul.f32 %v493, %v1862
        %v1866 = vmul.f32 %v494, %v1862
        %v1867 = vmul.f32 %v496, %v1862
        %v1868 = vmul.f32 %v497, %v1862
        %v1869 = vmul.f32 %v499, %v1862
        %v1870 = vmul.f32 %v500, %v1862
        %v1871 = vmul.f32 %v502, %v1862
        %v1872 = vmul.f32 %v503, %v1862
        %v1873 = vmul.f32 %v505, %v1862
        %v1874 = vmul.f32 %v506, %v1862
        %v1875 = vmul.f32 %v508, %v1862
        %v1876 = vmul.f32 %v509, %v1862
        %v1877 = vmul.f32 %v511, %v1862
        %v1878 = vmul.f32 %v512, %v1862
        %v1895 = vrot.slane %v1863, 2
        %v1896 = vrot.slane %v1864, 2
        %v1897 = vsel %vm1434, %v1895, %v1896
        %v1898 = vrot.slane %v1865, 2
        %v1899 = vrot.slane %v1866, 2
        %v1900 = vsel %vm1434, %v1898, %v1899
        %v1901 = vrot.slane %v1867, 2
        %v1902 = vrot.slane %v1868, 2
        %v1903 = vsel %vm1434, %v1901, %v1902
        %v1904 = vrot.slane %v1869, 2
        %v1905 = vrot.slane %v1870, 2
        %v1906 = vsel %vm1434, %v1904, %v1905
        %v1907 = vrot.slane %v1871, 2
        %v1908 = vrot.slane %v1872, 2
        %v1909 = vsel %vm1434, %v1907, %v1908
        %v1910 = vrot.slane %v1873, 2
        %v1911 = vrot.slane %v1874, 2
        %v1912 = vsel %vm1434, %v1910, %v1911
        %v1913 = vrot.slane %v1875, 2
        %v1914 = vrot.slane %v1876, 2
        %v1915 = vsel %vm1434, %v1913, %v1914
        %v1916 = vrot.slane %v1877, 2
        %v1917 = vrot.slane %v1878, 2
        %v1918 = vsel %vm1434, %v1916, %v1917
        %v1935 = vadd.f32 %v1843, %v1897
        %v1936 = vadd.f32 %v1844, %v1896
        %v1937 = vadd.f32 %v1845, %v1900
        %v1938 = vadd.f32 %v1846, %v1899
        %v1939 = vadd.f32 %v1847, %v1903
        %v1940 = vadd.f32 %v1848, %v1902
        %v1941 = vadd.f32 %v1849, %v1906
        %v1942 = vadd.f32 %v1850, %v1905
        %v1943 = vadd.f32 %v1851, %v1909
        %v1944 = vadd.f32 %v1852, %v1908
        %v1945 = vadd.f32 %v1853, %v1912
        %v1946 = vadd.f32 %v1854, %v1911
        %v1947 = vadd.f32 %v1855, %v1915
        %v1948 = vadd.f32 %v1856, %v1914
        %v1949 = vadd.f32 %v1857, %v1918
        %v1950 = vadd.f32 %v1858, %v1917
        %v1951 = vlaneseq
        %v1952 = vshrl.u32 %v1951, 7
        %v1953 = vsub.s32 2, %v1952
        %v1954 = vrot.slane %v454, %v1953
        %v1955 = vmul.f32 %v493, %v1954
        %v1956 = vmul.f32 %v494, %v1954
        %v1957 = vmul.f32 %v496, %v1954
        %v1958 = vmul.f32 %v497, %v1954
        %v1959 = vmul.f32 %v499, %v1954
        %v1960 = vmul.f32 %v500, %v1954
        %v1961 = vmul.f32 %v502, %v1954
        %v1962 = vmul.f32 %v503, %v1954
        %v1963 = vmul.f32 %v505, %v1954
        %v1964 = vmul.f32 %v506, %v1954
        %v1965 = vmul.f32 %v508, %v1954
        %v1966 = vmul.f32 %v509, %v1954
        %v1967 = vmul.f32 %v511, %v1954
        %v1968 = vmul.f32 %v512, %v1954
        %v1969 = vmul.f32 %v514, %v1954
        %v1970 = vmul.f32 %v515, %v1954
        %v1987 = vrot.slane %v1955, 2
        %v1988 = vrot.slane %v1956, 2
        %v1989 = vsel %vm1434, %v1987, %v1988
        %v1990 = vrot.slane %v1957, 2
        %v1991 = vrot.slane %v1958, 2
        %v1992 = vsel %vm1434, %v1990, %v1991
        %v1993 = vrot.slane %v1959, 2
        %v1994 = vrot.slane %v1960, 2
        %v1995 = vsel %vm1434, %v1993, %v1994
        %v1996 = vrot.slane %v1961, 2
        %v1997 = vrot.slane %v1962, 2
        %v1998 = vsel %vm1434, %v1996, %v1997
        %v1999 = vrot.slane %v1963, 2
        %v2000 = vrot.slane %v1964, 2
        %v2001 = vsel %vm1434, %v1999, %v2000
        %v2002 = vrot.slane %v1965, 2
        %v2003 = vrot.slane %v1966, 2
        %v2004 = vsel %vm1434, %v2002, %v2003
        %v2005 = vrot.slane %v1967, 2
        %v2006 = vrot.slane %v1968, 2
        %v2007 = vsel %vm1434, %v2005, %v2006
        %v2008 = vrot.slane %v1969, 2
        %v2009 = vrot.slane %v1970, 2
        %v2010 = vsel %vm1434, %v2008, %v2009
        %v2027 = vadd.f32 %v1935, %v1989
        %v2028 = vadd.f32 %v1936, %v1988
        %v2029 = vadd.f32 %v1937, %v1992
        %v2030 = vadd.f32 %v1938, %v1991
        %v2031 = vadd.f32 %v1939, %v1995
        %v2032 = vadd.f32 %v1940, %v1994
        %v2033 = vadd.f32 %v1941, %v1998
        %v2034 = vadd.f32 %v1942, %v1997
        %v2035 = vadd.f32 %v1943, %v2001
        %v2036 = vadd.f32 %v1944, %v2000
        %v2037 = vadd.f32 %v1945, %v2004
        %v2038 = vadd.f32 %v1946, %v2003
        %v2039 = vadd.f32 %v1947, %v2007
        %v2040 = vadd.f32 %v1948, %v2006
        %v2041 = vadd.f32 %v1949, %v2010
        %v2042 = vadd.f32 %v1950, %v2009
        %v2043 = vlaneseq
        %v2044 = vshrl.u32 %v2043, 7
        %v2045 = vsub.s32 3, %v2044
        %v2046 = vrot.slane %v448, %v2045
        %v2047 = vmul.f32 %v476, %v2046
        %v2048 = vmul.f32 %v479, %v2046
        %v2049 = vmul.f32 %v482, %v2046
        %v2050 = vmul.f32 %v485, %v2046
        %v2051 = vmul.f32 %v488, %v2046
        %v2052 = vmul.f32 %v491, %v2046
        %v2053 = vmul.f32 %v494, %v2046
        %v2054 = vmul.f32 %v497, %v2046
        %v2063 = vrot.slane %v2047, 3
        %v2064 = vrot.slane %v2048, 3
        %v2065 = vrot.slane %v2049, 3
        %v2066 = vrot.slane %v2050, 3
        %v2067 = vrot.slane %v2051, 3
        %v2068 = vrot.slane %v2052, 3
        %v2069 = vrot.slane %v2053, 3
        %v2070 = vrot.slane %v2054, 3
        %v2079 = vadd.f32 %v2027, %v2063
        %v2080 = vadd.f32 %v2028, %v2063
        %v2081 = vadd.f32 %v2029, %v2064
        %v2082 = vadd.f32 %v2030, %v2064
        %v2083 = vadd.f32 %v2031, %v2065
        %v2084 = vadd.f32 %v2032, %v2065
        %v2085 = vadd.f32 %v2033, %v2066
        %v2086 = vadd.f32 %v2034, %v2066
        %v2087 = vadd.f32 %v2035, %v2067
        %v2088 = vadd.f32 %v2036, %v2067
        %v2089 = vadd.f32 %v2037, %v2068
        %v2090 = vadd.f32 %v2038, %v2068
        %v2091 = vadd.f32 %v2039, %v2069
        %v2092 = vadd.f32 %v2040, %v2069
        %v2093 = vadd.f32 %v2041, %v2070
        %v2094 = vadd.f32 %v2042, %v2070
        %v2095 = vlaneseq
        %v2096 = vshrl.u32 %v2095, 7
        %v2097 = vsub.s32 3, %v2096
        %v2098 = vrot.slane %v449, %v2097
        %v2099 = vmul.f32 %v479, %v2098
        %v2100 = vmul.f32 %v482, %v2098
        %v2101 = vmul.f32 %v485, %v2098
        %v2102 = vmul.f32 %v488, %v2098
        %v2103 = vmul.f32 %v491, %v2098
        %v2104 = vmul.f32 %v494, %v2098
        %v2105 = vmul.f32 %v497, %v2098
        %v2106 = vmul.f32 %v500, %v2098
        %v2115 = vrot.slane %v2099, 3
        %v2116 = vrot.slane %v2100, 3
        %v2117 = vrot.slane %v2101, 3
        %v2118 = vrot.slane %v2102, 3
        %v2119 = vrot.slane %v2103, 3
        %v2120 = vrot.slane %v2104, 3
        %v2121 = vrot.slane %v2105, 3
        %v2122 = vrot.slane %v2106, 3
        %v2131 = vadd.f32 %v2079, %v2115
        %v2132 = vadd.f32 %v2080, %v2115
        %v2133 = vadd.f32 %v2081, %v2116
        %v2134 = vadd.f32 %v2082, %v2116
        %v2135 = vadd.f32 %v2083, %v2117
        %v2136 = vadd.f32 %v2084, %v2117
        %v2137 = vadd.f32 %v2085, %v2118
        %v2138 = vadd.f32 %v2086, %v2118
        %v2139 = vadd.f32 %v2087, %v2119
        %v2140 = vadd.f32 %v2088, %v2119
        %v2141 = vadd.f32 %v2089, %v2120
        %v2142 = vadd.f32 %v2090, %v2120
        %v2143 = vadd.f32 %v2091, %v2121
        %v2144 = vadd.f32 %v2092, %v2121
        %v2145 = vadd.f32 %v2093, %v2122
        %v2146 = vadd.f32 %v2094, %v2122
        %v2147 = vlaneseq
        %v2148 = vshrl.u32 %v2147, 7
        %v2149 = vsub.s32 3, %v2148
        %v2150 = vrot.slane %v450, %v2149
        %v2151 = vmul.f32 %v482, %v2150
        %v2152 = vmul.f32 %v485, %v2150
        %v2153 = vmul.f32 %v488, %v2150
        %v2154 = vmul.f32 %v491, %v2150
        %v2155 = vmul.f32 %v494, %v2150
        %v2156 = vmul.f32 %v497, %v2150
        %v2157 = vmul.f32 %v500, %v2150
        %v2158 = vmul.f32 %v503, %v2150
        %v2167 = vrot.slane %v2151, 3
        %v2168 = vrot.slane %v2152, 3
        %v2169 = vrot.slane %v2153, 3
        %v2170 = vrot.slane %v2154, 3
        %v2171 = vrot.slane %v2155, 3
        %v2172 = vrot.slane %v2156, 3
        %v2173 = vrot.slane %v2157, 3
        %v2174 = vrot.slane %v2158, 3
        %v2183 = vadd.f32 %v2131, %v2167
        %v2184 = vadd.f32 %v2132, %v2167
        %v2185 = vadd.f32 %v2133, %v2168
        %v2186 = vadd.f32 %v2134, %v2168
        %v2187 = vadd.f32 %v2135, %v2169
        %v2188 = vadd.f32 %v2136, %v2169
        %v2189 = vadd.f32 %v2137, %v2170
        %v2190 = vadd.f32 %v2138, %v2170
        %v2191 = vadd.f32 %v2139, %v2171
        %v2192 = vadd.f32 %v2140, %v2171
        %v2193 = vadd.f32 %v2141, %v2172
        %v2194 = vadd.f32 %v2142, %v2172
        %v2195 = vadd.f32 %v2143, %v2173
        %v2196 = vadd.f32 %v2144, %v2173
        %v2197 = vadd.f32 %v2145, %v2174
        %v2198 = vadd.f32 %v2146, %v2174
        %v2199 = vlaneseq
        %v2200 = vshrl.u32 %v2199, 7
        %v2201 = vsub.s32 3, %v2200
        %v2202 = vrot.slane %v451, %v2201
        %v2203 = vmul.f32 %v485, %v2202
        %v2204 = vmul.f32 %v488, %v2202
        %v2205 = vmul.f32 %v491, %v2202
        %v2206 = vmul.f32 %v494, %v2202
        %v2207 = vmul.f32 %v497, %v2202
        %v2208 = vmul.f32 %v500, %v2202
        %v2209 = vmul.f32 %v503, %v2202
        %v2210 = vmul.f32 %v506, %v2202
        %v2219 = vrot.slane %v2203, 3
        %v2220 = vrot.slane %v2204, 3
        %v2221 = vrot.slane %v2205, 3
        %v2222 = vrot.slane %v2206, 3
        %v2223 = vrot.slane %v2207, 3
        %v2224 = vrot.slane %v2208, 3
        %v2225 = vrot.slane %v2209, 3
        %v2226 = vrot.slane %v2210, 3
        %v2235 = vadd.f32 %v2183, %v2219
        %v2236 = vadd.f32 %v2184, %v2219
        %v2237 = vadd.f32 %v2185, %v2220
        %v2238 = vadd.f32 %v2186, %v2220
        %v2239 = vadd.f32 %v2187, %v2221
        %v2240 = vadd.f32 %v2188, %v2221
        %v2241 = vadd.f32 %v2189, %v2222
        %v2242 = vadd.f32 %v2190, %v2222
        %v2243 = vadd.f32 %v2191, %v2223
        %v2244 = vadd.f32 %v2192, %v2223
        %v2245 = vadd.f32 %v2193, %v2224
        %v2246 = vadd.f32 %v2194, %v2224
        %v2247 = vadd.f32 %v2195, %v2225
        %v2248 = vadd.f32 %v2196, %v2225
        %v2249 = vadd.f32 %v2197, %v2226
        %v2250 = vadd.f32 %v2198, %v2226
        %v2251 = vlaneseq
        %v2252 = vshrl.u32 %v2251, 7
        %v2253 = vsub.s32 3, %v2252
        %v2254 = vrot.slane %v452, %v2253
        %v2255 = vmul.f32 %v488, %v2254
        %v2256 = vmul.f32 %v491, %v2254
        %v2257 = vmul.f32 %v494, %v2254
        %v2258 = vmul.f32 %v497, %v2254
        %v2259 = vmul.f32 %v500, %v2254
        %v2260 = vmul.f32 %v503, %v2254
        %v2261 = vmul.f32 %v506, %v2254
        %v2262 = vmul.f32 %v509, %v2254
        %v2271 = vrot.slane %v2255, 3
        %v2272 = vrot.slane %v2256, 3
        %v2273 = vrot.slane %v2257, 3
        %v2274 = vrot.slane %v2258, 3
        %v2275 = vrot.slane %v2259, 3
        %v2276 = vrot.slane %v2260, 3
        %v2277 = vrot.slane %v2261, 3
        %v2278 = vrot.slane %v2262, 3
        %v2287 = vadd.f32 %v2235, %v2271
        %v2288 = vadd.f32 %v2236, %v2271
        %v2289 = vadd.f32 %v2237, %v2272
        %v2290 = vadd.f32 %v2238, %v2272
        %v2291 = vadd.f32 %v2239, %v2273
        %v2292 = vadd.f32 %v2240, %v2273
        %v2293 = vadd.f32 %v2241, %v2274
        %v2294 = vadd.f32 %v2242, %v2274
        %v2295 = vadd.f32 %v2243, %v2275
        %v2296 = vadd.f32 %v2244, %v2275
        %v2297 = vadd.f32 %v2245, %v2276
        %v2298 = vadd.f32 %v2246, %v2276
        %v2299 = vadd.f32 %v2247, %v2277
        %v2300 = vadd.f32 %v2248, %v2277
        %v2301 = vadd.f32 %v2249, %v2278
        %v2302 = vadd.f32 %v2250, %v2278
        %v2303 = vlaneseq
        %v2304 = vshrl.u32 %v2303, 7
        %v2305 = vsub.s32 3, %v2304
        %v2306 = vrot.slane %v453, %v2305
        %v2307 = vmul.f32 %v491, %v2306
        %v2308 = vmul.f32 %v494, %v2306
        %v2309 = vmul.f32 %v497, %v2306
        %v2310 = vmul.f32 %v500, %v2306
        %v2311 = vmul.f32 %v503, %v2306
        %v2312 = vmul.f32 %v506, %v2306
        %v2313 = vmul.f32 %v509, %v2306
        %v2314 = vmul.f32 %v512, %v2306
        %v2323 = vrot.slane %v2307, 3
        %v2324 = vrot.slane %v2308, 3
        %v2325 = vrot.slane %v2309, 3
        %v2326 = vrot.slane %v2310, 3
        %v2327 = vrot.slane %v2311, 3
        %v2328 = vrot.slane %v2312, 3
        %v2329 = vrot.slane %v2313, 3
        %v2330 = vrot.slane %v2314, 3
        %v2339 = vadd.f32 %v2287, %v2323
        %v2340 = vadd.f32 %v2288, %v2323
        %v2341 = vadd.f32 %v2289, %v2324
        %v2342 = vadd.f32 %v2290, %v2324
        %v2343 = vadd.f32 %v2291, %v2325
        %v2344 = vadd.f32 %v2292, %v2325
        %v2345 = vadd.f32 %v2293, %v2326
        %v2346 = vadd.f32 %v2294, %v2326
        %v2347 = vadd.f32 %v2295, %v2327
        %v2348 = vadd.f32 %v2296, %v2327
        %v2349 = vadd.f32 %v2297, %v2328
        %v2350 = vadd.f32 %v2298, %v2328
        %v2351 = vadd.f32 %v2299, %v2329
        %v2352 = vadd.f32 %v2300, %v2329
        %v2353 = vadd.f32 %v2301, %v2330
        %v2354 = vadd.f32 %v2302, %v2330
        %v2355 = vlaneseq
        %v2356 = vshrl.u32 %v2355, 7
        %v2357 = vsub.s32 3, %v2356
        %v2358 = vrot.slane %v454, %v2357
        %v2359 = vmul.f32 %v494, %v2358
        %v2360 = vmul.f32 %v497, %v2358
        %v2361 = vmul.f32 %v500, %v2358
        %v2362 = vmul.f32 %v503, %v2358
        %v2363 = vmul.f32 %v506, %v2358
        %v2364 = vmul.f32 %v509, %v2358
        %v2365 = vmul.f32 %v512, %v2358
        %v2366 = vmul.f32 %v515, %v2358
        %v2375 = vrot.slane %v2359, 3
        %v2376 = vrot.slane %v2360, 3
        %v2377 = vrot.slane %v2361, 3
        %v2378 = vrot.slane %v2362, 3
        %v2379 = vrot.slane %v2363, 3
        %v2380 = vrot.slane %v2364, 3
        %v2381 = vrot.slane %v2365, 3
        %v2382 = vrot.slane %v2366, 3
        %v2391 = vadd.f32 %v2339, %v2375
        %v2392 = vadd.f32 %v2340, %v2375
        %v2393 = vadd.f32 %v2341, %v2376
        %v2394 = vadd.f32 %v2342, %v2376
        %v2395 = vadd.f32 %v2343, %v2377
        %v2396 = vadd.f32 %v2344, %v2377
        %v2397 = vadd.f32 %v2345, %v2378
        %v2398 = vadd.f32 %v2346, %v2378
        %v2399 = vadd.f32 %v2347, %v2379
        %v2400 = vadd.f32 %v2348, %v2379
        %v2401 = vadd.f32 %v2349, %v2380
        %v2402 = vadd.f32 %v2350, %v2380
        %v2403 = vadd.f32 %v2351, %v2381
        %v2404 = vadd.f32 %v2352, %v2381
        %v2405 = vadd.f32 %v2353, %v2382
        %v2406 = vadd.f32 %v2354, %v2382
        %v2407 = vlaneseq
        %v2408 = vshrl.u32 %v2407, 7
        %v2409 = vsub.s32 4, %v2408
        %v2410 = vrot.slane %v448, %v2409
        %v2411 = vmul.f32 %v476, %v2410
        %v2412 = vmul.f32 %v477, %v2410
        %v2413 = vmul.f32 %v479, %v2410
        %v2414 = vmul.f32 %v480, %v2410
        %v2415 = vmul.f32 %v482, %v2410
        %v2416 = vmul.f32 %v483, %v2410
        %v2417 = vmul.f32 %v485, %v2410
        %v2418 = vmul.f32 %v486, %v2410
        %v2419 = vmul.f32 %v488, %v2410
        %v2420 = vmul.f32 %v489, %v2410
        %v2421 = vmul.f32 %v491, %v2410
        %v2422 = vmul.f32 %v492, %v2410
        %v2423 = vmul.f32 %v494, %v2410
        %v2424 = vmul.f32 %v495, %v2410
        %v2425 = vmul.f32 %v497, %v2410
        %v2426 = vmul.f32 %v498, %v2410
        %vm2443 = vcmask 1043456
        %v2444 = vrot.slane %v2411, 4
        %v2445 = vrot.slane %v2412, 4
        %v2446 = vsel %vm2443, %v2444, %v2445
        %v2447 = vrot.slane %v2413, 4
        %v2448 = vrot.slane %v2414, 4
        %v2449 = vsel %vm2443, %v2447, %v2448
        %v2450 = vrot.slane %v2415, 4
        %v2451 = vrot.slane %v2416, 4
        %v2452 = vsel %vm2443, %v2450, %v2451
        %v2453 = vrot.slane %v2417, 4
        %v2454 = vrot.slane %v2418, 4
        %v2455 = vsel %vm2443, %v2453, %v2454
        %v2456 = vrot.slane %v2419, 4
        %v2457 = vrot.slane %v2420, 4
        %v2458 = vsel %vm2443, %v2456, %v2457
        %v2459 = vrot.slane %v2421, 4
        %v2460 = vrot.slane %v2422, 4
        %v2461 = vsel %vm2443, %v2459, %v2460
        %v2462 = vrot.slane %v2423, 4
        %v2463 = vrot.slane %v2424, 4
        %v2464 = vsel %vm2443, %v2462, %v2463
        %v2465 = vrot.slane %v2425, 4
        %v2466 = vrot.slane %v2426, 4
        %v2467 = vsel %vm2443, %v2465, %v2466
        %v2484 = vadd.f32 %v2391, %v2444
        %v2485 = vadd.f32 %v2392, %v2446
        %v2486 = vadd.f32 %v2393, %v2447
        %v2487 = vadd.f32 %v2394, %v2449
        %v2488 = vadd.f32 %v2395, %v2450
        %v2489 = vadd.f32 %v2396, %v2452
        %v2490 = vadd.f32 %v2397, %v2453
        %v2491 = vadd.f32 %v2398, %v2455
        %v2492 = vadd.f32 %v2399, %v2456
        %v2493 = vadd.f32 %v2400, %v2458
        %v2494 = vadd.f32 %v2401, %v2459
        %v2495 = vadd.f32 %v2402, %v2461
        %v2496 = vadd.f32 %v2403, %v2462
        %v2497 = vadd.f32 %v2404, %v2464
        %v2498 = vadd.f32 %v2405, %v2465
        %v2499 = vadd.f32 %v2406, %v2467
        %v2500 = vlaneseq
        %v2501 = vshrl.u32 %v2500, 7
        %v2502 = vsub.s32 4, %v2501
        %v2503 = vrot.slane %v449, %v2502
        %v2504 = vmul.f32 %v479, %v2503
        %v2505 = vmul.f32 %v480, %v2503
        %v2506 = vmul.f32 %v482, %v2503
        %v2507 = vmul.f32 %v483, %v2503
        %v2508 = vmul.f32 %v485, %v2503
        %v2509 = vmul.f32 %v486, %v2503
        %v2510 = vmul.f32 %v488, %v2503
        %v2511 = vmul.f32 %v489, %v2503
        %v2512 = vmul.f32 %v491, %v2503
        %v2513 = vmul.f32 %v492, %v2503
        %v2514 = vmul.f32 %v494, %v2503
        %v2515 = vmul.f32 %v495, %v2503
        %v2516 = vmul.f32 %v497, %v2503
        %v2517 = vmul.f32 %v498, %v2503
        %v2518 = vmul.f32 %v500, %v2503
        %v2519 = vmul.f32 %v501, %v2503
        %v2536 = vrot.slane %v2504, 4
        %v2537 = vrot.slane %v2505, 4
        %v2538 = vsel %vm2443, %v2536, %v2537
        %v2539 = vrot.slane %v2506, 4
        %v2540 = vrot.slane %v2507, 4
        %v2541 = vsel %vm2443, %v2539, %v2540
        %v2542 = vrot.slane %v2508, 4
        %v2543 = vrot.slane %v2509, 4
        %v2544 = vsel %vm2443, %v2542, %v2543
        %v2545 = vrot.slane %v2510, 4
        %v2546 = vrot.slane %v2511, 4
        %v2547 = vsel %vm2443, %v2545, %v2546
        %v2548 = vrot.slane %v2512, 4
        %v2549 = vrot.slane %v2513, 4
        %v2550 = vsel %vm2443, %v2548, %v2549
        %v2551 = vrot.slane %v2514, 4
        %v2552 = vrot.slane %v2515, 4
        %v2553 = vsel %vm2443, %v2551, %v2552
        %v2554 = vrot.slane %v2516, 4
        %v2555 = vrot.slane %v2517, 4
        %v2556 = vsel %vm2443, %v2554, %v2555
        %v2557 = vrot.slane %v2518, 4
        %v2558 = vrot.slane %v2519, 4
        %v2559 = vsel %vm2443, %v2557, %v2558
        %v2576 = vadd.f32 %v2484, %v2536
        %v2577 = vadd.f32 %v2485, %v2538
        %v2578 = vadd.f32 %v2486, %v2539
        %v2579 = vadd.f32 %v2487, %v2541
        %v2580 = vadd.f32 %v2488, %v2542
        %v2581 = vadd.f32 %v2489, %v2544
        %v2582 = vadd.f32 %v2490, %v2545
        %v2583 = vadd.f32 %v2491, %v2547
        %v2584 = vadd.f32 %v2492, %v2548
        %v2585 = vadd.f32 %v2493, %v2550
        %v2586 = vadd.f32 %v2494, %v2551
        %v2587 = vadd.f32 %v2495, %v2553
        %v2588 = vadd.f32 %v2496, %v2554
        %v2589 = vadd.f32 %v2497, %v2556
        %v2590 = vadd.f32 %v2498, %v2557
        %v2591 = vadd.f32 %v2499, %v2559
        %v2592 = vlaneseq
        %v2593 = vshrl.u32 %v2592, 7
        %v2594 = vsub.s32 4, %v2593
        %v2595 = vrot.slane %v450, %v2594
        %v2596 = vmul.f32 %v482, %v2595
        %v2597 = vmul.f32 %v483, %v2595
        %v2598 = vmul.f32 %v485, %v2595
        %v2599 = vmul.f32 %v486, %v2595
        %v2600 = vmul.f32 %v488, %v2595
        %v2601 = vmul.f32 %v489, %v2595
        %v2602 = vmul.f32 %v491, %v2595
        %v2603 = vmul.f32 %v492, %v2595
        %v2604 = vmul.f32 %v494, %v2595
        %v2605 = vmul.f32 %v495, %v2595
        %v2606 = vmul.f32 %v497, %v2595
        %v2607 = vmul.f32 %v498, %v2595
        %v2608 = vmul.f32 %v500, %v2595
        %v2609 = vmul.f32 %v501, %v2595
        %v2610 = vmul.f32 %v503, %v2595
        %v2611 = vmul.f32 %v504, %v2595
        %v2628 = vrot.slane %v2596, 4
        %v2629 = vrot.slane %v2597, 4
        %v2630 = vsel %vm2443, %v2628, %v2629
        %v2631 = vrot.slane %v2598, 4
        %v2632 = vrot.slane %v2599, 4
        %v2633 = vsel %vm2443, %v2631, %v2632
        %v2634 = vrot.slane %v2600, 4
        %v2635 = vrot.slane %v2601, 4
        %v2636 = vsel %vm2443, %v2634, %v2635
        %v2637 = vrot.slane %v2602, 4
        %v2638 = vrot.slane %v2603, 4
        %v2639 = vsel %vm2443, %v2637, %v2638
        %v2640 = vrot.slane %v2604, 4
        %v2641 = vrot.slane %v2605, 4
        %v2642 = vsel %vm2443, %v2640, %v2641
        %v2643 = vrot.slane %v2606, 4
        %v2644 = vrot.slane %v2607, 4
        %v2645 = vsel %vm2443, %v2643, %v2644
        %v2646 = vrot.slane %v2608, 4
        %v2647 = vrot.slane %v2609, 4
        %v2648 = vsel %vm2443, %v2646, %v2647
        %v2649 = vrot.slane %v2610, 4
        %v2650 = vrot.slane %v2611, 4
        %v2651 = vsel %vm2443, %v2649, %v2650
        %v2668 = vadd.f32 %v2576, %v2628
        %v2669 = vadd.f32 %v2577, %v2630
        %v2670 = vadd.f32 %v2578, %v2631
        %v2671 = vadd.f32 %v2579, %v2633
        %v2672 = vadd.f32 %v2580, %v2634
        %v2673 = vadd.f32 %v2581, %v2636
        %v2674 = vadd.f32 %v2582, %v2637
        %v2675 = vadd.f32 %v2583, %v2639
        %v2676 = vadd.f32 %v2584, %v2640
        %v2677 = vadd.f32 %v2585, %v2642
        %v2678 = vadd.f32 %v2586, %v2643
        %v2679 = vadd.f32 %v2587, %v2645
        %v2680 = vadd.f32 %v2588, %v2646
        %v2681 = vadd.f32 %v2589, %v2648
        %v2682 = vadd.f32 %v2590, %v2649
        %v2683 = vadd.f32 %v2591, %v2651
        %v2684 = vlaneseq
        %v2685 = vshrl.u32 %v2684, 7
        %v2686 = vsub.s32 4, %v2685
        %v2687 = vrot.slane %v451, %v2686
        %v2688 = vmul.f32 %v485, %v2687
        %v2689 = vmul.f32 %v486, %v2687
        %v2690 = vmul.f32 %v488, %v2687
        %v2691 = vmul.f32 %v489, %v2687
        %v2692 = vmul.f32 %v491, %v2687
        %v2693 = vmul.f32 %v492, %v2687
        %v2694 = vmul.f32 %v494, %v2687
        %v2695 = vmul.f32 %v495, %v2687
        %v2696 = vmul.f32 %v497, %v2687
        %v2697 = vmul.f32 %v498, %v2687
        %v2698 = vmul.f32 %v500, %v2687
        %v2699 = vmul.f32 %v501, %v2687
        %v2700 = vmul.f32 %v503, %v2687
        %v2701 = vmul.f32 %v504, %v2687
        %v2702 = vmul.f32 %v506, %v2687
        %v2703 = vmul.f32 %v507, %v2687
        %v2720 = vrot.slane %v2688, 4
        %v2721 = vrot.slane %v2689, 4
        %v2722 = vsel %vm2443, %v2720, %v2721
        %v2723 = vrot.slane %v2690, 4
        %v2724 = vrot.slane %v2691, 4
        %v2725 = vsel %vm2443, %v2723, %v2724
        %v2726 = vrot.slane %v2692, 4
        %v2727 = vrot.slane %v2693, 4
        %v2728 = vsel %vm2443, %v2726, %v2727
        %v2729 = vrot.slane %v2694, 4
        %v2730 = vrot.slane %v2695, 4
        %v2731 = vsel %vm2443, %v2729, %v2730
        %v2732 = vrot.slane %v2696, 4
        %v2733 = vrot.slane %v2697, 4
        %v2734 = vsel %vm2443, %v2732, %v2733
        %v2735 = vrot.slane %v2698, 4
        %v2736 = vrot.slane %v2699, 4
        %v2737 = vsel %vm2443, %v2735, %v2736
        %v2738 = vrot.slane %v2700, 4
        %v2739 = vrot.slane %v2701, 4
        %v2740 = vsel %vm2443, %v2738, %v2739
        %v2741 = vrot.slane %v2702, 4
        %v2742 = vrot.slane %v2703, 4
        %v2743 = vsel %vm2443, %v2741, %v2742
        %v2760 = vadd.f32 %v2668, %v2720
        %v2761 = vadd.f32 %v2669, %v2722
        %v2762 = vadd.f32 %v2670, %v2723
        %v2763 = vadd.f32 %v2671, %v2725
        %v2764 = vadd.f32 %v2672, %v2726
        %v2765 = vadd.f32 %v2673, %v2728
        %v2766 = vadd.f32 %v2674, %v2729
        %v2767 = vadd.f32 %v2675, %v2731
        %v2768 = vadd.f32 %v2676, %v2732
        %v2769 = vadd.f32 %v2677, %v2734
        %v2770 = vadd.f32 %v2678, %v2735
        %v2771 = vadd.f32 %v2679, %v2737
        %v2772 = vadd.f32 %v2680, %v2738
        %v2773 = vadd.f32 %v2681, %v2740
        %v2774 = vadd.f32 %v2682, %v2741
        %v2775 = vadd.f32 %v2683, %v2743
        %v2776 = vlaneseq
        %v2777 = vshrl.u32 %v2776, 7
        %v2778 = vsub.s32 4, %v2777
        %v2779 = vrot.slane %v452, %v2778
        %v2780 = vmul.f32 %v488, %v2779
        %v2781 = vmul.f32 %v489, %v2779
        %v2782 = vmul.f32 %v491, %v2779
        %v2783 = vmul.f32 %v492, %v2779
        %v2784 = vmul.f32 %v494, %v2779
        %v2785 = vmul.f32 %v495, %v2779
        %v2786 = vmul.f32 %v497, %v2779
        %v2787 = vmul.f32 %v498, %v2779
        %v2788 = vmul.f32 %v500, %v2779
        %v2789 = vmul.f32 %v501, %v2779
        %v2790 = vmul.f32 %v503, %v2779
        %v2791 = vmul.f32 %v504, %v2779
        %v2792 = vmul.f32 %v506, %v2779
        %v2793 = vmul.f32 %v507, %v2779
        %v2794 = vmul.f32 %v509, %v2779
        %v2795 = vmul.f32 %v510, %v2779
        %v2812 = vrot.slane %v2780, 4
        %v2813 = vrot.slane %v2781, 4
        %v2814 = vsel %vm2443, %v2812, %v2813
        %v2815 = vrot.slane %v2782, 4
        %v2816 = vrot.slane %v2783, 4
        %v2817 = vsel %vm2443, %v2815, %v2816
        %v2818 = vrot.slane %v2784, 4
        %v2819 = vrot.slane %v2785, 4
        %v2820 = vsel %vm2443, %v2818, %v2819
        %v2821 = vrot.slane %v2786, 4
        %v2822 = vrot.slane %v2787, 4
        %v2823 = vsel %vm2443, %v2821, %v2822
        %v2824 = vrot.slane %v2788, 4
        %v2825 = vrot.slane %v2789, 4
        %v2826 = vsel %vm2443, %v2824, %v2825
        %v2827 = vrot.slane %v2790, 4
        %v2828 = vrot.slane %v2791, 4
        %v2829 = vsel %vm2443, %v2827, %v2828
        %v2830 = vrot.slane %v2792, 4
        %v2831 = vrot.slane %v2793, 4
        %v2832 = vsel %vm2443, %v2830, %v2831
        %v2833 = vrot.slane %v2794, 4
        %v2834 = vrot.slane %v2795, 4
        %v2835 = vsel %vm2443, %v2833, %v2834
        %v2852 = vadd.f32 %v2760, %v2812
        %v2853 = vadd.f32 %v2761, %v2814
        %v2854 = vadd.f32 %v2762, %v2815
        %v2855 = vadd.f32 %v2763, %v2817
        %v2856 = vadd.f32 %v2764, %v2818
        %v2857 = vadd.f32 %v2765, %v2820
        %v2858 = vadd.f32 %v2766, %v2821
        %v2859 = vadd.f32 %v2767, %v2823
        %v2860 = vadd.f32 %v2768, %v2824
        %v2861 = vadd.f32 %v2769, %v2826
        %v2862 = vadd.f32 %v2770, %v2827
        %v2863 = vadd.f32 %v2771, %v2829
        %v2864 = vadd.f32 %v2772, %v2830
        %v2865 = vadd.f32 %v2773, %v2832
        %v2866 = vadd.f32 %v2774, %v2833
        %v2867 = vadd.f32 %v2775, %v2835
        %v2868 = vlaneseq
        %v2869 = vshrl.u32 %v2868, 7
        %v2870 = vsub.s32 4, %v2869
        %v2871 = vrot.slane %v453, %v2870
        %v2872 = vmul.f32 %v491, %v2871
        %v2873 = vmul.f32 %v492, %v2871
        %v2874 = vmul.f32 %v494, %v2871
        %v2875 = vmul.f32 %v495, %v2871
        %v2876 = vmul.f32 %v497, %v2871
        %v2877 = vmul.f32 %v498, %v2871
        %v2878 = vmul.f32 %v500, %v2871
        %v2879 = vmul.f32 %v501, %v2871
        %v2880 = vmul.f32 %v503, %v2871
        %v2881 = vmul.f32 %v504, %v2871
        %v2882 = vmul.f32 %v506, %v2871
        %v2883 = vmul.f32 %v507, %v2871
        %v2884 = vmul.f32 %v509, %v2871
        %v2885 = vmul.f32 %v510, %v2871
        %v2886 = vmul.f32 %v512, %v2871
        %v2887 = vmul.f32 %v513, %v2871
        %v2904 = vrot.slane %v2872, 4
        %v2905 = vrot.slane %v2873, 4
        %v2906 = vsel %vm2443, %v2904, %v2905
        %v2907 = vrot.slane %v2874, 4
        %v2908 = vrot.slane %v2875, 4
        %v2909 = vsel %vm2443, %v2907, %v2908
        %v2910 = vrot.slane %v2876, 4
        %v2911 = vrot.slane %v2877, 4
        %v2912 = vsel %vm2443, %v2910, %v2911
        %v2913 = vrot.slane %v2878, 4
        %v2914 = vrot.slane %v2879, 4
        %v2915 = vsel %vm2443, %v2913, %v2914
        %v2916 = vrot.slane %v2880, 4
        %v2917 = vrot.slane %v2881, 4
        %v2918 = vsel %vm2443, %v2916, %v2917
        %v2919 = vrot.slane %v2882, 4
        %v2920 = vrot.slane %v2883, 4
        %v2921 = vsel %vm2443, %v2919, %v2920
        %v2922 = vrot.slane %v2884, 4
        %v2923 = vrot.slane %v2885, 4
        %v2924 = vsel %vm2443, %v2922, %v2923
        %v2925 = vrot.slane %v2886, 4
        %v2926 = vrot.slane %v2887, 4
        %v2927 = vsel %vm2443, %v2925, %v2926
        %v2944 = vadd.f32 %v2852, %v2904
        %v2945 = vadd.f32 %v2853, %v2906
        %v2946 = vadd.f32 %v2854, %v2907
        %v2947 = vadd.f32 %v2855, %v2909
        %v2948 = vadd.f32 %v2856, %v2910
        %v2949 = vadd.f32 %v2857, %v2912
        %v2950 = vadd.f32 %v2858, %v2913
        %v2951 = vadd.f32 %v2859, %v2915
        %v2952 = vadd.f32 %v2860, %v2916
        %v2953 = vadd.f32 %v2861, %v2918
        %v2954 = vadd.f32 %v2862, %v2919
        %v2955 = vadd.f32 %v2863, %v2921
        %v2956 = vadd.f32 %v2864, %v2922
        %v2957 = vadd.f32 %v2865, %v2924
        %v2958 = vadd.f32 %v2866, %v2925
        %v2959 = vadd.f32 %v2867, %v2927
        %v2960 = vlaneseq
        %v2961 = vshrl.u32 %v2960, 7
        %v2962 = vsub.s32 4, %v2961
        %v2963 = vrot.slane %v454, %v2962
        %v2964 = vmul.f32 %v494, %v2963
        %v2965 = vmul.f32 %v495, %v2963
        %v2966 = vmul.f32 %v497, %v2963
        %v2967 = vmul.f32 %v498, %v2963
        %v2968 = vmul.f32 %v500, %v2963
        %v2969 = vmul.f32 %v501, %v2963
        %v2970 = vmul.f32 %v503, %v2963
        %v2971 = vmul.f32 %v504, %v2963
        %v2972 = vmul.f32 %v506, %v2963
        %v2973 = vmul.f32 %v507, %v2963
        %v2974 = vmul.f32 %v509, %v2963
        %v2975 = vmul.f32 %v510, %v2963
        %v2976 = vmul.f32 %v512, %v2963
        %v2977 = vmul.f32 %v513, %v2963
        %v2978 = vmul.f32 %v515, %v2963
        %v2979 = vmul.f32 %v516, %v2963
        %v2996 = vrot.slane %v2964, 4
        %v2997 = vrot.slane %v2965, 4
        %v2998 = vsel %vm2443, %v2996, %v2997
        %v2999 = vrot.slane %v2966, 4
        %v3000 = vrot.slane %v2967, 4
        %v3001 = vsel %vm2443, %v2999, %v3000
        %v3002 = vrot.slane %v2968, 4
        %v3003 = vrot.slane %v2969, 4
        %v3004 = vsel %vm2443, %v3002, %v3003
        %v3005 = vrot.slane %v2970, 4
        %v3006 = vrot.slane %v2971, 4
        %v3007 = vsel %vm2443, %v3005, %v3006
        %v3008 = vrot.slane %v2972, 4
        %v3009 = vrot.slane %v2973, 4
        %v3010 = vsel %vm2443, %v3008, %v3009
        %v3011 = vrot.slane %v2974, 4
        %v3012 = vrot.slane %v2975, 4
        %v3013 = vsel %vm2443, %v3011, %v3012
        %v3014 = vrot.slane %v2976, 4
        %v3015 = vrot.slane %v2977, 4
        %v3016 = vsel %vm2443, %v3014, %v3015
        %v3017 = vrot.slane %v2978, 4
        %v3018 = vrot.slane %v2979, 4
        %v3019 = vsel %vm2443, %v3017, %v3018
        %v3036 = vadd.f32 %v2944, %v2996
        %v3037 = vadd.f32 %v2945, %v2998
        %v3038 = vadd.f32 %v2946, %v2999
        %v3039 = vadd.f32 %v2947, %v3001
        %v3040 = vadd.f32 %v2948, %v3002
        %v3041 = vadd.f32 %v2949, %v3004
        %v3042 = vadd.f32 %v2950, %v3005
        %v3043 = vadd.f32 %v2951, %v3007
        %v3044 = vadd.f32 %v2952, %v3008
        %v3045 = vadd.f32 %v2953, %v3010
        %v3046 = vadd.f32 %v2954, %v3011
        %v3047 = vadd.f32 %v2955, %v3013
        %v3048 = vadd.f32 %v2956, %v3014
        %v3049 = vadd.f32 %v2957, %v3016
        %v3050 = vadd.f32 %v2958, %v3017
        %v3051 = vadd.f32 %v2959, %v3019
        %v3052 = vlaneseq
        %v3053 = vshrl.u32 %v3052, 7
        %v3054 = vsub.s32 5, %v3053
        %v3055 = vrot.slane %v448, %v3054
        %v3056 = vmul.f32 %v476, %v3055
        %v3057 = vmul.f32 %v477, %v3055
        %v3058 = vmul.f32 %v479, %v3055
        %v3059 = vmul.f32 %v480, %v3055
        %v3060 = vmul.f32 %v482, %v3055
        %v3061 = vmul.f32 %v483, %v3055
        %v3062 = vmul.f32 %v485, %v3055
        %v3063 = vmul.f32 %v486, %v3055
        %v3064 = vmul.f32 %v488, %v3055
        %v3065 = vmul.f32 %v489, %v3055
        %v3066 = vmul.f32 %v491, %v3055
        %v3067 = vmul.f32 %v492, %v3055
        %v3068 = vmul.f32 %v494, %v3055
        %v3069 = vmul.f32 %v495, %v3055
        %v3070 = vmul.f32 %v497, %v3055
        %v3071 = vmul.f32 %v498, %v3055
        %vm3088 = vcmask 1042432
        %v3089 = vrot.slane %v3056, 5
        %v3090 = vrot.slane %v3057, 5
        %v3091 = vsel %vm3088, %v3089, %v3090
        %v3092 = vrot.slane %v3058, 5
        %v3093 = vrot.slane %v3059, 5
        %v3094 = vsel %vm3088, %v3092, %v3093
        %v3095 = vrot.slane %v3060, 5
        %v3096 = vrot.slane %v3061, 5
        %v3097 = vsel %vm3088, %v3095, %v3096
        %v3098 = vrot.slane %v3062, 5
        %v3099 = vrot.slane %v3063, 5
        %v3100 = vsel %vm3088, %v3098, %v3099
        %v3101 = vrot.slane %v3064, 5
        %v3102 = vrot.slane %v3065, 5
        %v3103 = vsel %vm3088, %v3101, %v3102
        %v3104 = vrot.slane %v3066, 5
        %v3105 = vrot.slane %v3067, 5
        %v3106 = vsel %vm3088, %v3104, %v3105
        %v3107 = vrot.slane %v3068, 5
        %v3108 = vrot.slane %v3069, 5
        %v3109 = vsel %vm3088, %v3107, %v3108
        %v3110 = vrot.slane %v3070, 5
        %v3111 = vrot.slane %v3071, 5
        %v3112 = vsel %vm3088, %v3110, %v3111
        %v3129 = vadd.f32 %v3036, %v3089
        %v3130 = vadd.f32 %v3037, %v3091
        %v3131 = vadd.f32 %v3038, %v3092
        %v3132 = vadd.f32 %v3039, %v3094
        %v3133 = vadd.f32 %v3040, %v3095
        %v3134 = vadd.f32 %v3041, %v3097
        %v3135 = vadd.f32 %v3042, %v3098
        %v3136 = vadd.f32 %v3043, %v3100
        %v3137 = vadd.f32 %v3044, %v3101
        %v3138 = vadd.f32 %v3045, %v3103
        %v3139 = vadd.f32 %v3046, %v3104
        %v3140 = vadd.f32 %v3047, %v3106
        %v3141 = vadd.f32 %v3048, %v3107
        %v3142 = vadd.f32 %v3049, %v3109
        %v3143 = vadd.f32 %v3050, %v3110
        %v3144 = vadd.f32 %v3051, %v3112
        %v3145 = vlaneseq
        %v3146 = vshrl.u32 %v3145, 7
        %v3147 = vsub.s32 5, %v3146
        %v3148 = vrot.slane %v449, %v3147
        %v3149 = vmul.f32 %v479, %v3148
        %v3150 = vmul.f32 %v480, %v3148
        %v3151 = vmul.f32 %v482, %v3148
        %v3152 = vmul.f32 %v483, %v3148
        %v3153 = vmul.f32 %v485, %v3148
        %v3154 = vmul.f32 %v486, %v3148
        %v3155 = vmul.f32 %v488, %v3148
        %v3156 = vmul.f32 %v489, %v3148
        %v3157 = vmul.f32 %v491, %v3148
        %v3158 = vmul.f32 %v492, %v3148
        %v3159 = vmul.f32 %v494, %v3148
        %v3160 = vmul.f32 %v495, %v3148
        %v3161 = vmul.f32 %v497, %v3148
        %v3162 = vmul.f32 %v498, %v3148
        %v3163 = vmul.f32 %v500, %v3148
        %v3164 = vmul.f32 %v501, %v3148
        %v3181 = vrot.slane %v3149, 5
        %v3182 = vrot.slane %v3150, 5
        %v3183 = vsel %vm3088, %v3181, %v3182
        %v3184 = vrot.slane %v3151, 5
        %v3185 = vrot.slane %v3152, 5
        %v3186 = vsel %vm3088, %v3184, %v3185
        %v3187 = vrot.slane %v3153, 5
        %v3188 = vrot.slane %v3154, 5
        %v3189 = vsel %vm3088, %v3187, %v3188
        %v3190 = vrot.slane %v3155, 5
        %v3191 = vrot.slane %v3156, 5
        %v3192 = vsel %vm3088, %v3190, %v3191
        %v3193 = vrot.slane %v3157, 5
        %v3194 = vrot.slane %v3158, 5
        %v3195 = vsel %vm3088, %v3193, %v3194
        %v3196 = vrot.slane %v3159, 5
        %v3197 = vrot.slane %v3160, 5
        %v3198 = vsel %vm3088, %v3196, %v3197
        %v3199 = vrot.slane %v3161, 5
        %v3200 = vrot.slane %v3162, 5
        %v3201 = vsel %vm3088, %v3199, %v3200
        %v3202 = vrot.slane %v3163, 5
        %v3203 = vrot.slane %v3164, 5
        %v3204 = vsel %vm3088, %v3202, %v3203
        %v3221 = vadd.f32 %v3129, %v3181
        %v3222 = vadd.f32 %v3130, %v3183
        %v3223 = vadd.f32 %v3131, %v3184
        %v3224 = vadd.f32 %v3132, %v3186
        %v3225 = vadd.f32 %v3133, %v3187
        %v3226 = vadd.f32 %v3134, %v3189
        %v3227 = vadd.f32 %v3135, %v3190
        %v3228 = vadd.f32 %v3136, %v3192
        %v3229 = vadd.f32 %v3137, %v3193
        %v3230 = vadd.f32 %v3138, %v3195
        %v3231 = vadd.f32 %v3139, %v3196
        %v3232 = vadd.f32 %v3140, %v3198
        %v3233 = vadd.f32 %v3141, %v3199
        %v3234 = vadd.f32 %v3142, %v3201
        %v3235 = vadd.f32 %v3143, %v3202
        %v3236 = vadd.f32 %v3144, %v3204
        %v3237 = vlaneseq
        %v3238 = vshrl.u32 %v3237, 7
        %v3239 = vsub.s32 5, %v3238
        %v3240 = vrot.slane %v450, %v3239
        %v3241 = vmul.f32 %v482, %v3240
        %v3242 = vmul.f32 %v483, %v3240
        %v3243 = vmul.f32 %v485, %v3240
        %v3244 = vmul.f32 %v486, %v3240
        %v3245 = vmul.f32 %v488, %v3240
        %v3246 = vmul.f32 %v489, %v3240
        %v3247 = vmul.f32 %v491, %v3240
        %v3248 = vmul.f32 %v492, %v3240
        %v3249 = vmul.f32 %v494, %v3240
        %v3250 = vmul.f32 %v495, %v3240
        %v3251 = vmul.f32 %v497, %v3240
        %v3252 = vmul.f32 %v498, %v3240
        %v3253 = vmul.f32 %v500, %v3240
        %v3254 = vmul.f32 %v501, %v3240
        %v3255 = vmul.f32 %v503, %v3240
        %v3256 = vmul.f32 %v504, %v3240
        %v3273 = vrot.slane %v3241, 5
        %v3274 = vrot.slane %v3242, 5
        %v3275 = vsel %vm3088, %v3273, %v3274
        %v3276 = vrot.slane %v3243, 5
        %v3277 = vrot.slane %v3244, 5
        %v3278 = vsel %vm3088, %v3276, %v3277
        %v3279 = vrot.slane %v3245, 5
        %v3280 = vrot.slane %v3246, 5
        %v3281 = vsel %vm3088, %v3279, %v3280
        %v3282 = vrot.slane %v3247, 5
        %v3283 = vrot.slane %v3248, 5
        %v3284 = vsel %vm3088, %v3282, %v3283
        %v3285 = vrot.slane %v3249, 5
        %v3286 = vrot.slane %v3250, 5
        %v3287 = vsel %vm3088, %v3285, %v3286
        %v3288 = vrot.slane %v3251, 5
        %v3289 = vrot.slane %v3252, 5
        %v3290 = vsel %vm3088, %v3288, %v3289
        %v3291 = vrot.slane %v3253, 5
        %v3292 = vrot.slane %v3254, 5
        %v3293 = vsel %vm3088, %v3291, %v3292
        %v3294 = vrot.slane %v3255, 5
        %v3295 = vrot.slane %v3256, 5
        %v3296 = vsel %vm3088, %v3294, %v3295
        %v3313 = vadd.f32 %v3221, %v3273
        %v3314 = vadd.f32 %v3222, %v3275
        %v3315 = vadd.f32 %v3223, %v3276
        %v3316 = vadd.f32 %v3224, %v3278
        %v3317 = vadd.f32 %v3225, %v3279
        %v3318 = vadd.f32 %v3226, %v3281
        %v3319 = vadd.f32 %v3227, %v3282
        %v3320 = vadd.f32 %v3228, %v3284
        %v3321 = vadd.f32 %v3229, %v3285
        %v3322 = vadd.f32 %v3230, %v3287
        %v3323 = vadd.f32 %v3231, %v3288
        %v3324 = vadd.f32 %v3232, %v3290
        %v3325 = vadd.f32 %v3233, %v3291
        %v3326 = vadd.f32 %v3234, %v3293
        %v3327 = vadd.f32 %v3235, %v3294
        %v3328 = vadd.f32 %v3236, %v3296
        %v3329 = vlaneseq
        %v3330 = vshrl.u32 %v3329, 7
        %v3331 = vsub.s32 5, %v3330
        %v3332 = vrot.slane %v451, %v3331
        %v3333 = vmul.f32 %v485, %v3332
        %v3334 = vmul.f32 %v486, %v3332
        %v3335 = vmul.f32 %v488, %v3332
        %v3336 = vmul.f32 %v489, %v3332
        %v3337 = vmul.f32 %v491, %v3332
        %v3338 = vmul.f32 %v492, %v3332
        %v3339 = vmul.f32 %v494, %v3332
        %v3340 = vmul.f32 %v495, %v3332
        %v3341 = vmul.f32 %v497, %v3332
        %v3342 = vmul.f32 %v498, %v3332
        %v3343 = vmul.f32 %v500, %v3332
        %v3344 = vmul.f32 %v501, %v3332
        %v3345 = vmul.f32 %v503, %v3332
        %v3346 = vmul.f32 %v504, %v3332
        %v3347 = vmul.f32 %v506, %v3332
        %v3348 = vmul.f32 %v507, %v3332
        %v3365 = vrot.slane %v3333, 5
        %v3366 = vrot.slane %v3334, 5
        %v3367 = vsel %vm3088, %v3365, %v3366
        %v3368 = vrot.slane %v3335, 5
        %v3369 = vrot.slane %v3336, 5
        %v3370 = vsel %vm3088, %v3368, %v3369
        %v3371 = vrot.slane %v3337, 5
        %v3372 = vrot.slane %v3338, 5
        %v3373 = vsel %vm3088, %v3371, %v3372
        %v3374 = vrot.slane %v3339, 5
        %v3375 = vrot.slane %v3340, 5
        %v3376 = vsel %vm3088, %v3374, %v3375
        %v3377 = vrot.slane %v3341, 5
        %v3378 = vrot.slane %v3342, 5
        %v3379 = vsel %vm3088, %v3377, %v3378
        %v3380 = vrot.slane %v3343, 5
        %v3381 = vrot.slane %v3344, 5
        %v3382 = vsel %vm3088, %v3380, %v3381
        %v3383 = vrot.slane %v3345, 5
        %v3384 = vrot.slane %v3346, 5
        %v3385 = vsel %vm3088, %v3383, %v3384
        %v3386 = vrot.slane %v3347, 5
        %v3387 = vrot.slane %v3348, 5
        %v3388 = vsel %vm3088, %v3386, %v3387
        %v3405 = vadd.f32 %v3313, %v3365
        %v3406 = vadd.f32 %v3314, %v3367
        %v3407 = vadd.f32 %v3315, %v3368
        %v3408 = vadd.f32 %v3316, %v3370
        %v3409 = vadd.f32 %v3317, %v3371
        %v3410 = vadd.f32 %v3318, %v3373
        %v3411 = vadd.f32 %v3319, %v3374
        %v3412 = vadd.f32 %v3320, %v3376
        %v3413 = vadd.f32 %v3321, %v3377
        %v3414 = vadd.f32 %v3322, %v3379
        %v3415 = vadd.f32 %v3323, %v3380
        %v3416 = vadd.f32 %v3324, %v3382
        %v3417 = vadd.f32 %v3325, %v3383
        %v3418 = vadd.f32 %v3326, %v3385
        %v3419 = vadd.f32 %v3327, %v3386
        %v3420 = vadd.f32 %v3328, %v3388
        %v3421 = vlaneseq
        %v3422 = vshrl.u32 %v3421, 7
        %v3423 = vsub.s32 5, %v3422
        %v3424 = vrot.slane %v452, %v3423
        %v3425 = vmul.f32 %v488, %v3424
        %v3426 = vmul.f32 %v489, %v3424
        %v3427 = vmul.f32 %v491, %v3424
        %v3428 = vmul.f32 %v492, %v3424
        %v3429 = vmul.f32 %v494, %v3424
        %v3430 = vmul.f32 %v495, %v3424
        %v3431 = vmul.f32 %v497, %v3424
        %v3432 = vmul.f32 %v498, %v3424
        %v3433 = vmul.f32 %v500, %v3424
        %v3434 = vmul.f32 %v501, %v3424
        %v3435 = vmul.f32 %v503, %v3424
        %v3436 = vmul.f32 %v504, %v3424
        %v3437 = vmul.f32 %v506, %v3424
        %v3438 = vmul.f32 %v507, %v3424
        %v3439 = vmul.f32 %v509, %v3424
        %v3440 = vmul.f32 %v510, %v3424
        %v3457 = vrot.slane %v3425, 5
        %v3458 = vrot.slane %v3426, 5
        %v3459 = vsel %vm3088, %v3457, %v3458
        %v3460 = vrot.slane %v3427, 5
        %v3461 = vrot.slane %v3428, 5
        %v3462 = vsel %vm3088, %v3460, %v3461
        %v3463 = vrot.slane %v3429, 5
        %v3464 = vrot.slane %v3430, 5
        %v3465 = vsel %vm3088, %v3463, %v3464
        %v3466 = vrot.slane %v3431, 5
        %v3467 = vrot.slane %v3432, 5
        %v3468 = vsel %vm3088, %v3466, %v3467
        %v3469 = vrot.slane %v3433, 5
        %v3470 = vrot.slane %v3434, 5
        %v3471 = vsel %vm3088, %v3469, %v3470
        %v3472 = vrot.slane %v3435, 5
        %v3473 = vrot.slane %v3436, 5
        %v3474 = vsel %vm3088, %v3472, %v3473
        %v3475 = vrot.slane %v3437, 5
        %v3476 = vrot.slane %v3438, 5
        %v3477 = vsel %vm3088, %v3475, %v3476
        %v3478 = vrot.slane %v3439, 5
        %v3479 = vrot.slane %v3440, 5
        %v3480 = vsel %vm3088, %v3478, %v3479
        %v3497 = vadd.f32 %v3405, %v3457
        %v3498 = vadd.f32 %v3406, %v3459
        %v3499 = vadd.f32 %v3407, %v3460
        %v3500 = vadd.f32 %v3408, %v3462
        %v3501 = vadd.f32 %v3409, %v3463
        %v3502 = vadd.f32 %v3410, %v3465
        %v3503 = vadd.f32 %v3411, %v3466
        %v3504 = vadd.f32 %v3412, %v3468
        %v3505 = vadd.f32 %v3413, %v3469
        %v3506 = vadd.f32 %v3414, %v3471
        %v3507 = vadd.f32 %v3415, %v3472
        %v3508 = vadd.f32 %v3416, %v3474
        %v3509 = vadd.f32 %v3417, %v3475
        %v3510 = vadd.f32 %v3418, %v3477
        %v3511 = vadd.f32 %v3419, %v3478
        %v3512 = vadd.f32 %v3420, %v3480
        %v3513 = vlaneseq
        %v3514 = vshrl.u32 %v3513, 7
        %v3515 = vsub.s32 5, %v3514
        %v3516 = vrot.slane %v453, %v3515
        %v3517 = vmul.f32 %v491, %v3516
        %v3518 = vmul.f32 %v492, %v3516
        %v3519 = vmul.f32 %v494, %v3516
        %v3520 = vmul.f32 %v495, %v3516
        %v3521 = vmul.f32 %v497, %v3516
        %v3522 = vmul.f32 %v498, %v3516
        %v3523 = vmul.f32 %v500, %v3516
        %v3524 = vmul.f32 %v501, %v3516
        %v3525 = vmul.f32 %v503, %v3516
        %v3526 = vmul.f32 %v504, %v3516
        %v3527 = vmul.f32 %v506, %v3516
        %v3528 = vmul.f32 %v507, %v3516
        %v3529 = vmul.f32 %v509, %v3516
        %v3530 = vmul.f32 %v510, %v3516
        %v3531 = vmul.f32 %v512, %v3516
        %v3532 = vmul.f32 %v513, %v3516
        %v3549 = vrot.slane %v3517, 5
        %v3550 = vrot.slane %v3518, 5
        %v3551 = vsel %vm3088, %v3549, %v3550
        %v3552 = vrot.slane %v3519, 5
        %v3553 = vrot.slane %v3520, 5
        %v3554 = vsel %vm3088, %v3552, %v3553
        %v3555 = vrot.slane %v3521, 5
        %v3556 = vrot.slane %v3522, 5
        %v3557 = vsel %vm3088, %v3555, %v3556
        %v3558 = vrot.slane %v3523, 5
        %v3559 = vrot.slane %v3524, 5
        %v3560 = vsel %vm3088, %v3558, %v3559
        %v3561 = vrot.slane %v3525, 5
        %v3562 = vrot.slane %v3526, 5
        %v3563 = vsel %vm3088, %v3561, %v3562
        %v3564 = vrot.slane %v3527, 5
        %v3565 = vrot.slane %v3528, 5
        %v3566 = vsel %vm3088, %v3564, %v3565
        %v3567 = vrot.slane %v3529, 5
        %v3568 = vrot.slane %v3530, 5
        %v3569 = vsel %vm3088, %v3567, %v3568
        %v3570 = vrot.slane %v3531, 5
        %v3571 = vrot.slane %v3532, 5
        %v3572 = vsel %vm3088, %v3570, %v3571
        %v3589 = vadd.f32 %v3497, %v3549
        %v3590 = vadd.f32 %v3498, %v3551
        %v3591 = vadd.f32 %v3499, %v3552
        %v3592 = vadd.f32 %v3500, %v3554
        %v3593 = vadd.f32 %v3501, %v3555
        %v3594 = vadd.f32 %v3502, %v3557
        %v3595 = vadd.f32 %v3503, %v3558
        %v3596 = vadd.f32 %v3504, %v3560
        %v3597 = vadd.f32 %v3505, %v3561
        %v3598 = vadd.f32 %v3506, %v3563
        %v3599 = vadd.f32 %v3507, %v3564
        %v3600 = vadd.f32 %v3508, %v3566
        %v3601 = vadd.f32 %v3509, %v3567
        %v3602 = vadd.f32 %v3510, %v3569
        %v3603 = vadd.f32 %v3511, %v3570
        %v3604 = vadd.f32 %v3512, %v3572
        %v3605 = vlaneseq
        %v3606 = vshrl.u32 %v3605, 7
        %v3607 = vsub.s32 5, %v3606
        %v3608 = vrot.slane %v454, %v3607
        %v3609 = vmul.f32 %v494, %v3608
        %v3610 = vmul.f32 %v495, %v3608
        %v3611 = vmul.f32 %v497, %v3608
        %v3612 = vmul.f32 %v498, %v3608
        %v3613 = vmul.f32 %v500, %v3608
        %v3614 = vmul.f32 %v501, %v3608
        %v3615 = vmul.f32 %v503, %v3608
        %v3616 = vmul.f32 %v504, %v3608
        %v3617 = vmul.f32 %v506, %v3608
        %v3618 = vmul.f32 %v507, %v3608
        %v3619 = vmul.f32 %v509, %v3608
        %v3620 = vmul.f32 %v510, %v3608
        %v3621 = vmul.f32 %v512, %v3608
        %v3622 = vmul.f32 %v513, %v3608
        %v3623 = vmul.f32 %v515, %v3608
        %v3624 = vmul.f32 %v516, %v3608
        %v3641 = vrot.slane %v3609, 5
        %v3642 = vrot.slane %v3610, 5
        %v3643 = vsel %vm3088, %v3641, %v3642
        %v3644 = vrot.slane %v3611, 5
        %v3645 = vrot.slane %v3612, 5
        %v3646 = vsel %vm3088, %v3644, %v3645
        %v3647 = vrot.slane %v3613, 5
        %v3648 = vrot.slane %v3614, 5
        %v3649 = vsel %vm3088, %v3647, %v3648
        %v3650 = vrot.slane %v3615, 5
        %v3651 = vrot.slane %v3616, 5
        %v3652 = vsel %vm3088, %v3650, %v3651
        %v3653 = vrot.slane %v3617, 5
        %v3654 = vrot.slane %v3618, 5
        %v3655 = vsel %vm3088, %v3653, %v3654
        %v3656 = vrot.slane %v3619, 5
        %v3657 = vrot.slane %v3620, 5
        %v3658 = vsel %vm3088, %v3656, %v3657
        %v3659 = vrot.slane %v3621, 5
        %v3660 = vrot.slane %v3622, 5
        %v3661 = vsel %vm3088, %v3659, %v3660
        %v3662 = vrot.slane %v3623, 5
        %v3663 = vrot.slane %v3624, 5
        %v3664 = vsel %vm3088, %v3662, %v3663
        %v3681 = vadd.f32 %v3589, %v3641
        %v3682 = vadd.f32 %v3590, %v3643
        %v3683 = vadd.f32 %v3591, %v3644
        %v3684 = vadd.f32 %v3592, %v3646
        %v3685 = vadd.f32 %v3593, %v3647
        %v3686 = vadd.f32 %v3594, %v3649
        %v3687 = vadd.f32 %v3595, %v3650
        %v3688 = vadd.f32 %v3596, %v3652
        %v3689 = vadd.f32 %v3597, %v3653
        %v3690 = vadd.f32 %v3598, %v3655
        %v3691 = vadd.f32 %v3599, %v3656
        %v3692 = vadd.f32 %v3600, %v3658
        %v3693 = vadd.f32 %v3601, %v3659
        %v3694 = vadd.f32 %v3602, %v3661
        %v3695 = vadd.f32 %v3603, %v3662
        %v3696 = vadd.f32 %v3604, %v3664
        %v3697 = vlaneseq
        %v3698 = vshrl.u32 %v3697, 7
        %v3699 = vsub.s32 6, %v3698
        %v3700 = vrot.slane %v448, %v3699
        %v3701 = vmul.f32 %v476, %v3700
        %v3702 = vmul.f32 %v477, %v3700
        %v3703 = vmul.f32 %v479, %v3700
        %v3704 = vmul.f32 %v480, %v3700
        %v3705 = vmul.f32 %v482, %v3700
        %v3706 = vmul.f32 %v483, %v3700
        %v3707 = vmul.f32 %v485, %v3700
        %v3708 = vmul.f32 %v486, %v3700
        %v3709 = vmul.f32 %v488, %v3700
        %v3710 = vmul.f32 %v489, %v3700
        %v3711 = vmul.f32 %v491, %v3700
        %v3712 = vmul.f32 %v492, %v3700
        %v3713 = vmul.f32 %v494, %v3700
        %v3714 = vmul.f32 %v495, %v3700
        %v3715 = vmul.f32 %v497, %v3700
        %v3716 = vmul.f32 %v498, %v3700
        %vm3733 = vcmask 1041408
        %v3734 = vrot.slane %v3701, 6
        %v3735 = vrot.slane %v3702, 6
        %v3736 = vsel %vm3733, %v3734, %v3735
        %v3737 = vrot.slane %v3703, 6
        %v3738 = vrot.slane %v3704, 6
        %v3739 = vsel %vm3733, %v3737, %v3738
        %v3740 = vrot.slane %v3705, 6
        %v3741 = vrot.slane %v3706, 6
        %v3742 = vsel %vm3733, %v3740, %v3741
        %v3743 = vrot.slane %v3707, 6
        %v3744 = vrot.slane %v3708, 6
        %v3745 = vsel %vm3733, %v3743, %v3744
        %v3746 = vrot.slane %v3709, 6
        %v3747 = vrot.slane %v3710, 6
        %v3748 = vsel %vm3733, %v3746, %v3747
        %v3749 = vrot.slane %v3711, 6
        %v3750 = vrot.slane %v3712, 6
        %v3751 = vsel %vm3733, %v3749, %v3750
        %v3752 = vrot.slane %v3713, 6
        %v3753 = vrot.slane %v3714, 6
        %v3754 = vsel %vm3733, %v3752, %v3753
        %v3755 = vrot.slane %v3715, 6
        %v3756 = vrot.slane %v3716, 6
        %v3757 = vsel %vm3733, %v3755, %v3756
        %v3774 = vadd.f32 %v3681, %v3734
        %v3775 = vadd.f32 %v3682, %v3736
        %v3776 = vadd.f32 %v3683, %v3737
        %v3777 = vadd.f32 %v3684, %v3739
        %v3778 = vadd.f32 %v3685, %v3740
        %v3779 = vadd.f32 %v3686, %v3742
        %v3780 = vadd.f32 %v3687, %v3743
        %v3781 = vadd.f32 %v3688, %v3745
        %v3782 = vadd.f32 %v3689, %v3746
        %v3783 = vadd.f32 %v3690, %v3748
        %v3784 = vadd.f32 %v3691, %v3749
        %v3785 = vadd.f32 %v3692, %v3751
        %v3786 = vadd.f32 %v3693, %v3752
        %v3787 = vadd.f32 %v3694, %v3754
        %v3788 = vadd.f32 %v3695, %v3755
        %v3789 = vadd.f32 %v3696, %v3757
        %v3790 = vlaneseq
        %v3791 = vshrl.u32 %v3790, 7
        %v3792 = vsub.s32 6, %v3791
        %v3793 = vrot.slane %v449, %v3792
        %v3794 = vmul.f32 %v479, %v3793
        %v3795 = vmul.f32 %v480, %v3793
        %v3796 = vmul.f32 %v482, %v3793
        %v3797 = vmul.f32 %v483, %v3793
        %v3798 = vmul.f32 %v485, %v3793
        %v3799 = vmul.f32 %v486, %v3793
        %v3800 = vmul.f32 %v488, %v3793
        %v3801 = vmul.f32 %v489, %v3793
        %v3802 = vmul.f32 %v491, %v3793
        %v3803 = vmul.f32 %v492, %v3793
        %v3804 = vmul.f32 %v494, %v3793
        %v3805 = vmul.f32 %v495, %v3793
        %v3806 = vmul.f32 %v497, %v3793
        %v3807 = vmul.f32 %v498, %v3793
        %v3808 = vmul.f32 %v500, %v3793
        %v3809 = vmul.f32 %v501, %v3793
        %v3826 = vrot.slane %v3794, 6
        %v3827 = vrot.slane %v3795, 6
        %v3828 = vsel %vm3733, %v3826, %v3827
        %v3829 = vrot.slane %v3796, 6
        %v3830 = vrot.slane %v3797, 6
        %v3831 = vsel %vm3733, %v3829, %v3830
        %v3832 = vrot.slane %v3798, 6
        %v3833 = vrot.slane %v3799, 6
        %v3834 = vsel %vm3733, %v3832, %v3833
        %v3835 = vrot.slane %v3800, 6
        %v3836 = vrot.slane %v3801, 6
        %v3837 = vsel %vm3733, %v3835, %v3836
        %v3838 = vrot.slane %v3802, 6
        %v3839 = vrot.slane %v3803, 6
        %v3840 = vsel %vm3733, %v3838, %v3839
        %v3841 = vrot.slane %v3804, 6
        %v3842 = vrot.slane %v3805, 6
        %v3843 = vsel %vm3733, %v3841, %v3842
        %v3844 = vrot.slane %v3806, 6
        %v3845 = vrot.slane %v3807, 6
        %v3846 = vsel %vm3733, %v3844, %v3845
        %v3847 = vrot.slane %v3808, 6
        %v3848 = vrot.slane %v3809, 6
        %v3849 = vsel %vm3733, %v3847, %v3848
        %v3866 = vadd.f32 %v3774, %v3826
        %v3867 = vadd.f32 %v3775, %v3828
        %v3868 = vadd.f32 %v3776, %v3829
        %v3869 = vadd.f32 %v3777, %v3831
        %v3870 = vadd.f32 %v3778, %v3832
        %v3871 = vadd.f32 %v3779, %v3834
        %v3872 = vadd.f32 %v3780, %v3835
        %v3873 = vadd.f32 %v3781, %v3837
        %v3874 = vadd.f32 %v3782, %v3838
        %v3875 = vadd.f32 %v3783, %v3840
        %v3876 = vadd.f32 %v3784, %v3841
        %v3877 = vadd.f32 %v3785, %v3843
        %v3878 = vadd.f32 %v3786, %v3844
        %v3879 = vadd.f32 %v3787, %v3846
        %v3880 = vadd.f32 %v3788, %v3847
        %v3881 = vadd.f32 %v3789, %v3849
        %v3882 = vlaneseq
        %v3883 = vshrl.u32 %v3882, 7
        %v3884 = vsub.s32 6, %v3883
        %v3885 = vrot.slane %v450, %v3884
        %v3886 = vmul.f32 %v482, %v3885
        %v3887 = vmul.f32 %v483, %v3885
        %v3888 = vmul.f32 %v485, %v3885
        %v3889 = vmul.f32 %v486, %v3885
        %v3890 = vmul.f32 %v488, %v3885
        %v3891 = vmul.f32 %v489, %v3885
        %v3892 = vmul.f32 %v491, %v3885
        %v3893 = vmul.f32 %v492, %v3885
        %v3894 = vmul.f32 %v494, %v3885
        %v3895 = vmul.f32 %v495, %v3885
        %v3896 = vmul.f32 %v497, %v3885
        %v3897 = vmul.f32 %v498, %v3885
        %v3898 = vmul.f32 %v500, %v3885
        %v3899 = vmul.f32 %v501, %v3885
        %v3900 = vmul.f32 %v503, %v3885
        %v3901 = vmul.f32 %v504, %v3885
        %v3918 = vrot.slane %v3886, 6
        %v3919 = vrot.slane %v3887, 6
        %v3920 = vsel %vm3733, %v3918, %v3919
        %v3921 = vrot.slane %v3888, 6
        %v3922 = vrot.slane %v3889, 6
        %v3923 = vsel %vm3733, %v3921, %v3922
        %v3924 = vrot.slane %v3890, 6
        %v3925 = vrot.slane %v3891, 6
        %v3926 = vsel %vm3733, %v3924, %v3925
        %v3927 = vrot.slane %v3892, 6
        %v3928 = vrot.slane %v3893, 6
        %v3929 = vsel %vm3733, %v3927, %v3928
        %v3930 = vrot.slane %v3894, 6
        %v3931 = vrot.slane %v3895, 6
        %v3932 = vsel %vm3733, %v3930, %v3931
        %v3933 = vrot.slane %v3896, 6
        %v3934 = vrot.slane %v3897, 6
        %v3935 = vsel %vm3733, %v3933, %v3934
        %v3936 = vrot.slane %v3898, 6
        %v3937 = vrot.slane %v3899, 6
        %v3938 = vsel %vm3733, %v3936, %v3937
        %v3939 = vrot.slane %v3900, 6
        %v3940 = vrot.slane %v3901, 6
        %v3941 = vsel %vm3733, %v3939, %v3940
        %v3958 = vadd.f32 %v3866, %v3918
        %v3959 = vadd.f32 %v3867, %v3920
        %v3960 = vadd.f32 %v3868, %v3921
        %v3961 = vadd.f32 %v3869, %v3923
        %v3962 = vadd.f32 %v3870, %v3924
        %v3963 = vadd.f32 %v3871, %v3926
        %v3964 = vadd.f32 %v3872, %v3927
        %v3965 = vadd.f32 %v3873, %v3929
        %v3966 = vadd.f32 %v3874, %v3930
        %v3967 = vadd.f32 %v3875, %v3932
        %v3968 = vadd.f32 %v3876, %v3933
        %v3969 = vadd.f32 %v3877, %v3935
        %v3970 = vadd.f32 %v3878, %v3936
        %v3971 = vadd.f32 %v3879, %v3938
        %v3972 = vadd.f32 %v3880, %v3939
        %v3973 = vadd.f32 %v3881, %v3941
        %v3974 = vlaneseq
        %v3975 = vshrl.u32 %v3974, 7
        %v3976 = vsub.s32 6, %v3975
        %v3977 = vrot.slane %v451, %v3976
        %v3978 = vmul.f32 %v485, %v3977
        %v3979 = vmul.f32 %v486, %v3977
        %v3980 = vmul.f32 %v488, %v3977
        %v3981 = vmul.f32 %v489, %v3977
        %v3982 = vmul.f32 %v491, %v3977
        %v3983 = vmul.f32 %v492, %v3977
        %v3984 = vmul.f32 %v494, %v3977
        %v3985 = vmul.f32 %v495, %v3977
        %v3986 = vmul.f32 %v497, %v3977
        %v3987 = vmul.f32 %v498, %v3977
        %v3988 = vmul.f32 %v500, %v3977
        %v3989 = vmul.f32 %v501, %v3977
        %v3990 = vmul.f32 %v503, %v3977
        %v3991 = vmul.f32 %v504, %v3977
        %v3992 = vmul.f32 %v506, %v3977
        %v3993 = vmul.f32 %v507, %v3977
        %v4010 = vrot.slane %v3978, 6
        %v4011 = vrot.slane %v3979, 6
        %v4012 = vsel %vm3733, %v4010, %v4011
        %v4013 = vrot.slane %v3980, 6
        %v4014 = vrot.slane %v3981, 6
        %v4015 = vsel %vm3733, %v4013, %v4014
        %v4016 = vrot.slane %v3982, 6
        %v4017 = vrot.slane %v3983, 6
        %v4018 = vsel %vm3733, %v4016, %v4017
        %v4019 = vrot.slane %v3984, 6
        %v4020 = vrot.slane %v3985, 6
        %v4021 = vsel %vm3733, %v4019, %v4020
        %v4022 = vrot.slane %v3986, 6
        %v4023 = vrot.slane %v3987, 6
        %v4024 = vsel %vm3733, %v4022, %v4023
        %v4025 = vrot.slane %v3988, 6
        %v4026 = vrot.slane %v3989, 6
        %v4027 = vsel %vm3733, %v4025, %v4026
        %v4028 = vrot.slane %v3990, 6
        %v4029 = vrot.slane %v3991, 6
        %v4030 = vsel %vm3733, %v4028, %v4029
        %v4031 = vrot.slane %v3992, 6
        %v4032 = vrot.slane %v3993, 6
        %v4033 = vsel %vm3733, %v4031, %v4032
        %v4050 = vadd.f32 %v3958, %v4010
        %v4051 = vadd.f32 %v3959, %v4012
        %v4052 = vadd.f32 %v3960, %v4013
        %v4053 = vadd.f32 %v3961, %v4015
        %v4054 = vadd.f32 %v3962, %v4016
        %v4055 = vadd.f32 %v3963, %v4018
        %v4056 = vadd.f32 %v3964, %v4019
        %v4057 = vadd.f32 %v3965, %v4021
        %v4058 = vadd.f32 %v3966, %v4022
        %v4059 = vadd.f32 %v3967, %v4024
        %v4060 = vadd.f32 %v3968, %v4025
        %v4061 = vadd.f32 %v3969, %v4027
        %v4062 = vadd.f32 %v3970, %v4028
        %v4063 = vadd.f32 %v3971, %v4030
        %v4064 = vadd.f32 %v3972, %v4031
        %v4065 = vadd.f32 %v3973, %v4033
        %v4066 = vlaneseq
        %v4067 = vshrl.u32 %v4066, 7
        %v4068 = vsub.s32 6, %v4067
        %v4069 = vrot.slane %v452, %v4068
        %v4070 = vmul.f32 %v488, %v4069
        %v4071 = vmul.f32 %v489, %v4069
        %v4072 = vmul.f32 %v491, %v4069
        %v4073 = vmul.f32 %v492, %v4069
        %v4074 = vmul.f32 %v494, %v4069
        %v4075 = vmul.f32 %v495, %v4069
        %v4076 = vmul.f32 %v497, %v4069
        %v4077 = vmul.f32 %v498, %v4069
        %v4078 = vmul.f32 %v500, %v4069
        %v4079 = vmul.f32 %v501, %v4069
        %v4080 = vmul.f32 %v503, %v4069
        %v4081 = vmul.f32 %v504, %v4069
        %v4082 = vmul.f32 %v506, %v4069
        %v4083 = vmul.f32 %v507, %v4069
        %v4084 = vmul.f32 %v509, %v4069
        %v4085 = vmul.f32 %v510, %v4069
        %v4102 = vrot.slane %v4070, 6
        %v4103 = vrot.slane %v4071, 6
        %v4104 = vsel %vm3733, %v4102, %v4103
        %v4105 = vrot.slane %v4072, 6
        %v4106 = vrot.slane %v4073, 6
        %v4107 = vsel %vm3733, %v4105, %v4106
        %v4108 = vrot.slane %v4074, 6
        %v4109 = vrot.slane %v4075, 6
        %v4110 = vsel %vm3733, %v4108, %v4109
        %v4111 = vrot.slane %v4076, 6
        %v4112 = vrot.slane %v4077, 6
        %v4113 = vsel %vm3733, %v4111, %v4112
        %v4114 = vrot.slane %v4078, 6
        %v4115 = vrot.slane %v4079, 6
        %v4116 = vsel %vm3733, %v4114, %v4115
        %v4117 = vrot.slane %v4080, 6
        %v4118 = vrot.slane %v4081, 6
        %v4119 = vsel %vm3733, %v4117, %v4118
        %v4120 = vrot.slane %v4082, 6
        %v4121 = vrot.slane %v4083, 6
        %v4122 = vsel %vm3733, %v4120, %v4121
        %v4123 = vrot.slane %v4084, 6
        %v4124 = vrot.slane %v4085, 6
        %v4125 = vsel %vm3733, %v4123, %v4124
        %v4142 = vadd.f32 %v4050, %v4102
        %v4143 = vadd.f32 %v4051, %v4104
        %v4144 = vadd.f32 %v4052, %v4105
        %v4145 = vadd.f32 %v4053, %v4107
        %v4146 = vadd.f32 %v4054, %v4108
        %v4147 = vadd.f32 %v4055, %v4110
        %v4148 = vadd.f32 %v4056, %v4111
        %v4149 = vadd.f32 %v4057, %v4113
        %v4150 = vadd.f32 %v4058, %v4114
        %v4151 = vadd.f32 %v4059, %v4116
        %v4152 = vadd.f32 %v4060, %v4117
        %v4153 = vadd.f32 %v4061, %v4119
        %v4154 = vadd.f32 %v4062, %v4120
        %v4155 = vadd.f32 %v4063, %v4122
        %v4156 = vadd.f32 %v4064, %v4123
        %v4157 = vadd.f32 %v4065, %v4125
        %v4158 = vlaneseq
        %v4159 = vshrl.u32 %v4158, 7
        %v4160 = vsub.s32 6, %v4159
        %v4161 = vrot.slane %v453, %v4160
        %v4162 = vmul.f32 %v491, %v4161
        %v4163 = vmul.f32 %v492, %v4161
        %v4164 = vmul.f32 %v494, %v4161
        %v4165 = vmul.f32 %v495, %v4161
        %v4166 = vmul.f32 %v497, %v4161
        %v4167 = vmul.f32 %v498, %v4161
        %v4168 = vmul.f32 %v500, %v4161
        %v4169 = vmul.f32 %v501, %v4161
        %v4170 = vmul.f32 %v503, %v4161
        %v4171 = vmul.f32 %v504, %v4161
        %v4172 = vmul.f32 %v506, %v4161
        %v4173 = vmul.f32 %v507, %v4161
        %v4174 = vmul.f32 %v509, %v4161
        %v4175 = vmul.f32 %v510, %v4161
        %v4176 = vmul.f32 %v512, %v4161
        %v4177 = vmul.f32 %v513, %v4161
        %v4194 = vrot.slane %v4162, 6
        %v4195 = vrot.slane %v4163, 6
        %v4196 = vsel %vm3733, %v4194, %v4195
        %v4197 = vrot.slane %v4164, 6
        %v4198 = vrot.slane %v4165, 6
        %v4199 = vsel %vm3733, %v4197, %v4198
        %v4200 = vrot.slane %v4166, 6
        %v4201 = vrot.slane %v4167, 6
        %v4202 = vsel %vm3733, %v4200, %v4201
        %v4203 = vrot.slane %v4168, 6
        %v4204 = vrot.slane %v4169, 6
        %v4205 = vsel %vm3733, %v4203, %v4204
        %v4206 = vrot.slane %v4170, 6
        %v4207 = vrot.slane %v4171, 6
        %v4208 = vsel %vm3733, %v4206, %v4207
        %v4209 = vrot.slane %v4172, 6
        %v4210 = vrot.slane %v4173, 6
        %v4211 = vsel %vm3733, %v4209, %v4210
        %v4212 = vrot.slane %v4174, 6
        %v4213 = vrot.slane %v4175, 6
        %v4214 = vsel %vm3733, %v4212, %v4213
        %v4215 = vrot.slane %v4176, 6
        %v4216 = vrot.slane %v4177, 6
        %v4217 = vsel %vm3733, %v4215, %v4216
        %v4234 = vadd.f32 %v4142, %v4194
        %v4235 = vadd.f32 %v4143, %v4196
        %v4236 = vadd.f32 %v4144, %v4197
        %v4237 = vadd.f32 %v4145, %v4199
        %v4238 = vadd.f32 %v4146, %v4200
        %v4239 = vadd.f32 %v4147, %v4202
        %v4240 = vadd.f32 %v4148, %v4203
        %v4241 = vadd.f32 %v4149, %v4205
        %v4242 = vadd.f32 %v4150, %v4206
        %v4243 = vadd.f32 %v4151, %v4208
        %v4244 = vadd.f32 %v4152, %v4209
        %v4245 = vadd.f32 %v4153, %v4211
        %v4246 = vadd.f32 %v4154, %v4212
        %v4247 = vadd.f32 %v4155, %v4214
        %v4248 = vadd.f32 %v4156, %v4215
        %v4249 = vadd.f32 %v4157, %v4217
        %v4250 = vlaneseq
        %v4251 = vshrl.u32 %v4250, 7
        %v4252 = vsub.s32 6, %v4251
        %v4253 = vrot.slane %v454, %v4252
        %v4254 = vmul.f32 %v494, %v4253
        %v4255 = vmul.f32 %v495, %v4253
        %v4256 = vmul.f32 %v497, %v4253
        %v4257 = vmul.f32 %v498, %v4253
        %v4258 = vmul.f32 %v500, %v4253
        %v4259 = vmul.f32 %v501, %v4253
        %v4260 = vmul.f32 %v503, %v4253
        %v4261 = vmul.f32 %v504, %v4253
        %v4262 = vmul.f32 %v506, %v4253
        %v4263 = vmul.f32 %v507, %v4253
        %v4264 = vmul.f32 %v509, %v4253
        %v4265 = vmul.f32 %v510, %v4253
        %v4266 = vmul.f32 %v512, %v4253
        %v4267 = vmul.f32 %v513, %v4253
        %v4268 = vmul.f32 %v515, %v4253
        %v4269 = vmul.f32 %v516, %v4253
        %v4286 = vrot.slane %v4254, 6
        %v4287 = vrot.slane %v4255, 6
        %v4288 = vsel %vm3733, %v4286, %v4287
        %v4289 = vrot.slane %v4256, 6
        %v4290 = vrot.slane %v4257, 6
        %v4291 = vsel %vm3733, %v4289, %v4290
        %v4292 = vrot.slane %v4258, 6
        %v4293 = vrot.slane %v4259, 6
        %v4294 = vsel %vm3733, %v4292, %v4293
        %v4295 = vrot.slane %v4260, 6
        %v4296 = vrot.slane %v4261, 6
        %v4297 = vsel %vm3733, %v4295, %v4296
        %v4298 = vrot.slane %v4262, 6
        %v4299 = vrot.slane %v4263, 6
        %v4300 = vsel %vm3733, %v4298, %v4299
        %v4301 = vrot.slane %v4264, 6
        %v4302 = vrot.slane %v4265, 6
        %v4303 = vsel %vm3733, %v4301, %v4302
        %v4304 = vrot.slane %v4266, 6
        %v4305 = vrot.slane %v4267, 6
        %v4306 = vsel %vm3733, %v4304, %v4305
        %v4307 = vrot.slane %v4268, 6
        %v4308 = vrot.slane %v4269, 6
        %v4309 = vsel %vm3733, %v4307, %v4308
        %v4326 = vadd.f32 %v4234, %v4286
        %v4327 = vadd.f32 %v4235, %v4288
        %v4328 = vadd.f32 %v4236, %v4289
        %v4329 = vadd.f32 %v4237, %v4291
        %v4330 = vadd.f32 %v4238, %v4292
        %v4331 = vadd.f32 %v4239, %v4294
        %v4332 = vadd.f32 %v4240, %v4295
        %v4333 = vadd.f32 %v4241, %v4297
        %v4334 = vadd.f32 %v4242, %v4298
        %v4335 = vadd.f32 %v4243, %v4300
        %v4336 = vadd.f32 %v4244, %v4301
        %v4337 = vadd.f32 %v4245, %v4303
        %v4338 = vadd.f32 %v4246, %v4304
        %v4339 = vadd.f32 %v4247, %v4306
        %v4340 = vadd.f32 %v4248, %v4307
        %v4341 = vadd.f32 %v4249, %v4309
        %v4358 = vrot.slane %v4326, 5
        %v4359 = vrot.slane %v4327, 5
        %v4360 = vsel %vm3088, %v4358, %v4359
        %v4361 = vrot.slane %v4328, 5
        %v4362 = vrot.slane %v4329, 5
        %v4363 = vsel %vm3088, %v4361, %v4362
        %v4364 = vrot.slane %v4330, 5
        %v4365 = vrot.slane %v4331, 5
        %v4366 = vsel %vm3088, %v4364, %v4365
        %v4367 = vrot.slane %v4332, 5
        %v4368 = vrot.slane %v4333, 5
        %v4369 = vsel %vm3088, %v4367, %v4368
        %v4370 = vrot.slane %v4334, 5
        %v4371 = vrot.slane %v4335, 5
        %v4372 = vsel %vm3088, %v4370, %v4371
        %v4373 = vrot.slane %v4336, 5
        %v4374 = vrot.slane %v4337, 5
        %v4375 = vsel %vm3088, %v4373, %v4374
        %v4376 = vrot.slane %v4338, 5
        %v4377 = vrot.slane %v4339, 5
        %v4378 = vsel %vm3088, %v4376, %v4377
        %v4379 = vrot.slane %v4340, 5
        %v4380 = vrot.slane %v4341, 5
        %v4381 = vsel %vm3088, %v4379, %v4380
        %v4391 = vlaneseq
        %v4392 = vshrl.u32 %v4391, 7
        %v4393 = vsub.s32 0, %v4392
        %v4394 = vrot.slane %v455, %v4393
        %v4396 = vadd.f32 %v4360, %v4394
        %v4397 = vadd.f32 %v4363, %v4394
        %v4398 = vadd.f32 %v4366, %v4394
        %v4399 = vadd.f32 %v4369, %v4394
        %v4400 = vadd.f32 %v4372, %v4394
        %v4401 = vadd.f32 %v4375, %v4394
        %v4402 = vadd.f32 %v4378, %v4394
        %v4403 = vadd.f32 %v4381, %v4394
        %v4404 = vsel %vm405, %v4396, 0.0
        %4405 = vadd.xlane.f32.xlu0 %v4404
        %v4406 = vpop.xlane.xlu0 %4405
        %v4407 = vsel %vm405, %v4397, 0.0
        %4408 = vadd.xlane.f32.xlu0 %v4407
        %v4409 = vpop.xlane.xlu0 %4408
        %v4410 = vsel %vm405, %v4398, 0.0
        %4411 = vadd.xlane.f32.xlu0 %v4410
        %v4412 = vpop.xlane.xlu0 %4411
        %v4413 = vsel %vm405, %v4399, 0.0
        %4414 = vadd.xlane.f32.xlu0 %v4413
        %v4415 = vpop.xlane.xlu0 %4414
        %v4416 = vsel %vm405, %v4400, 0.0
        %4417 = vadd.xlane.f32.xlu0 %v4416
        %v4418 = vpop.xlane.xlu0 %4417
        %v4419 = vsel %vm405, %v4401, 0.0
        %4420 = vadd.xlane.f32.xlu0 %v4419
        %v4421 = vpop.xlane.xlu0 %4420
        %v4422 = vsel %vm405, %v4402, 0.0
        %4423 = vadd.xlane.f32.xlu0 %v4422
        %v4424 = vpop.xlane.xlu0 %4423
        %v4425 = vsel %vm405, %v4403, 0.0
        %4426 = vadd.xlane.f32.xlu0 %v4425
        %v4427 = vpop.xlane.xlu0 %4426
        %v4428 = vrcp.pop 32.0
        %v4429 = vmul.f32 %v4406, %v4428
        %v4430 = vmul.f32 %v4409, %v4428
        %v4431 = vmul.f32 %v4412, %v4428
        %v4432 = vmul.f32 %v4415, %v4428
        %v4433 = vmul.f32 %v4418, %v4428
        %v4434 = vmul.f32 %v4421, %v4428
        %v4435 = vmul.f32 %v4424, %v4428
        %v4436 = vmul.f32 %v4427, %v4428
        %v4437 = vsub.f32 %v4396, %v4429
        %v4438 = vsub.f32 %v4397, %v4430
        %v4439 = vsub.f32 %v4398, %v4431
        %v4440 = vsub.f32 %v4399, %v4432
        %v4441 = vsub.f32 %v4400, %v4433
        %v4442 = vsub.f32 %v4401, %v4434
        %v4443 = vsub.f32 %v4402, %v4435
        %v4444 = vsub.f32 %v4403, %v4436
        %v4445 = vmul.f32 %v4437, %v4437
        %v4446 = vmul.f32 %v4438, %v4438
        %v4447 = vmul.f32 %v4439, %v4439
        %v4448 = vmul.f32 %v4440, %v4440
        %v4449 = vmul.f32 %v4441, %v4441
        %v4450 = vmul.f32 %v4442, %v4442
        %v4451 = vmul.f32 %v4443, %v4443
        %v4452 = vmul.f32 %v4444, %v4444
        %v4453 = vsel %vm405, %v4445, 0.0
        %4454 = vadd.xlane.f32.xlu0 %v4453
        %v4455 = vpop.xlane.xlu0 %4454
        %v4456 = vsel %vm405, %v4446, 0.0
        %4457 = vadd.xlane.f32.xlu0 %v4456
        %v4458 = vpop.xlane.xlu0 %4457
        %v4459 = vsel %vm405, %v4447, 0.0
        %4460 = vadd.xlane.f32.xlu0 %v4459
        %v4461 = vpop.xlane.xlu0 %4460
        %v4462 = vsel %vm405, %v4448, 0.0
        %4463 = vadd.xlane.f32.xlu0 %v4462
        %v4464 = vpop.xlane.xlu0 %4463
        %v4465 = vsel %vm405, %v4449, 0.0
        %4466 = vadd.xlane.f32.xlu0 %v4465
        %v4467 = vpop.xlane.xlu0 %4466
        %v4468 = vsel %vm405, %v4450, 0.0
        %4469 = vadd.xlane.f32.xlu0 %v4468
        %v4470 = vpop.xlane.xlu0 %4469
        %v4471 = vsel %vm405, %v4451, 0.0
        %4472 = vadd.xlane.f32.xlu0 %v4471
        %v4473 = vpop.xlane.xlu0 %4472
        %v4474 = vsel %vm405, %v4452, 0.0
        %4475 = vadd.xlane.f32.xlu0 %v4474
        %v4476 = vpop.xlane.xlu0 %4475
        %v4477 = vmul.f32 %v4455, %v4428
        %v4478 = vmul.f32 %v4458, %v4428
        %v4479 = vmul.f32 %v4461, %v4428
        %v4480 = vmul.f32 %v4464, %v4428
        %v4481 = vmul.f32 %v4467, %v4428
        %v4482 = vmul.f32 %v4470, %v4428
        %v4483 = vmul.f32 %v4473, %v4428
        %v4484 = vmul.f32 %v4476, %v4428
        %v4485 = vadd.f32 %v4477, 1e-06
        %v4486 = vadd.f32 %v4478, 1e-06
        %v4487 = vadd.f32 %v4479, 1e-06
        %v4488 = vadd.f32 %v4480, 1e-06
        %v4489 = vadd.f32 %v4481, 1e-06
        %v4490 = vadd.f32 %v4482, 1e-06
        %v4491 = vadd.f32 %v4483, 1e-06
        %v4492 = vadd.f32 %v4484, 1e-06
        %v4493 = vrsqrt.pop %v4485
        %v4494 = vrsqrt.pop %v4486
        %v4495 = vrsqrt.pop %v4487
        %v4496 = vrsqrt.pop %v4488
        %v4497 = vrsqrt.pop %v4489
        %v4498 = vrsqrt.pop %v4490
        %v4499 = vrsqrt.pop %v4491
        %v4500 = vrsqrt.pop %v4492
        %v4501 = vmul.f32 %v4437, %v4493
        %v4502 = vmul.f32 %v4438, %v4494
        %v4503 = vmul.f32 %v4439, %v4495
        %v4504 = vmul.f32 %v4440, %v4496
        %v4505 = vmul.f32 %v4441, %v4497
        %v4506 = vmul.f32 %v4442, %v4498
        %v4507 = vmul.f32 %v4443, %v4499
        %v4508 = vmul.f32 %v4444, %v4500
        %v4510 = vlaneseq
        %v4511 = vshrl.u32 %v4510, 7
        %v4512 = vsub.s32 0, %v4511
        %v4513 = vrot.slane %v456, %v4512
        %v4515 = vmul.f32 %v4501, %v4513
        %v4516 = vmul.f32 %v4502, %v4513
        %v4517 = vmul.f32 %v4503, %v4513
        %v4518 = vmul.f32 %v4504, %v4513
        %v4519 = vmul.f32 %v4505, %v4513
        %v4520 = vmul.f32 %v4506, %v4513
        %v4521 = vmul.f32 %v4507, %v4513
        %v4522 = vmul.f32 %v4508, %v4513
        %v4524 = vlaneseq
        %v4525 = vshrl.u32 %v4524, 7
        %v4526 = vsub.s32 0, %v4525
        %v4527 = vrot.slane %v457, %v4526
        %v4529 = vadd.f32 %v4515, %v4527
        %v4530 = vadd.f32 %v4516, %v4527
        %v4531 = vadd.f32 %v4517, %v4527
        %v4532 = vadd.f32 %v4518, %v4527
        %v4533 = vadd.f32 %v4519, %v4527
        %v4534 = vadd.f32 %v4520, %v4527
        %v4535 = vadd.f32 %v4521, %v4527
        %v4536 = vadd.f32 %v4522, %v4527
        %4537 = vst.msk [vmem:[#allocation3] sm:$0xff] %vm405, %v4529
        %4538 = vst.msk [vmem:[#allocation3 + $0x8] sm:$0xff] %vm405, %v4530
        %4539 = vst.msk [vmem:[#allocation3 + $0x10] sm:$0xff] %vm405, %v4531
        %4540 = vst.msk [vmem:[#allocation3 + $0x18] sm:$0xff] %vm405, %v4532
        %4541 = vst.msk [vmem:[#allocation3 + $0x20] sm:$0xff] %vm405, %v4533
        %4542 = vst.msk [vmem:[#allocation3 + $0x28] sm:$0xff] %vm405, %v4534
        %4543 = vst.msk [vmem:[#allocation3 + $0x30] sm:$0xff] %vm405, %v4535
        %4544 = vst.msk [vmem:[#allocation3 + $0x38] sm:$0xff] %vm405, %v4536
        %s4545 = scalar_lea.vmem %s366, 64 [#allocation5]
        %v4546 = vld [vmem:[%s4545] sm:$0xff]
        %v4547 = vld [vmem:[%s4545 + $0x8] sm:$0xff]
        %v4548 = vld [vmem:[%s4545 + $0x10] sm:$0xff]
        %v4549 = vld [vmem:[%s4545 + $0x18] sm:$0xff]
        %v4550 = vld [vmem:[%s4545 + $0x20] sm:$0xff]
        %v4551 = vld [vmem:[%s4545 + $0x28] sm:$0xff]
        %v4552 = vld [vmem:[%s4545 + $0x30] sm:$0xff]
        %v4553 = vld [vmem:[%s4545 + $0x38] sm:$0xff]
        %4554 = vst.msk [vmem:[%s466 + $0x8] sm:$0xff] %vm405, %v4546
        %4555 = vst.msk [vmem:[%s466 + $0x20] sm:$0xff] %vm405, %v4547
        %4556 = vst.msk [vmem:[%s466 + $0x38] sm:$0xff] %vm405, %v4548
        %4557 = vst.msk [vmem:[%s466 + $0x50] sm:$0xff] %vm405, %v4549
        %4558 = vst.msk [vmem:[%s466 + $0x68] sm:$0xff] %vm405, %v4550
        %4559 = vst.msk [vmem:[%s466 + $0x80] sm:$0xff] %vm405, %v4551
        %4560 = vst.msk [vmem:[%s466 + $0x98] sm:$0xff] %vm405, %v4552
        %4561 = vst.msk [vmem:[%s466 + $0xb0] sm:$0xff] %vm405, %v4553
        %v4562 = vld [vmem:[#allocation2] sm:$0xff]
        %v4563 = vld [vmem:[#allocation2 + $0x8] sm:$0xff]
        %v4564 = vld [vmem:[#allocation2 + $0x10] sm:$0xff]
        %v4565 = vld [vmem:[#allocation2 + $0x18] sm:$0xff]
        %v4566 = vld [vmem:[#allocation2 + $0x20] sm:$0xff]
        %v4567 = vld [vmem:[#allocation2 + $0x28] sm:$0xff]
        %v4568 = vld [vmem:[#allocation2 + $0x30] sm:$0xff]
        %v4569 = vld [vmem:[#allocation2 + $0x38] sm:$0xff]
        %v4570 = vld [vmem:[#allocation2 + $0x40] sm:$0xff]
        %v4571 = vld [vmem:[#allocation2 + $0x48] sm:$0xff]
        %v4572 = vld [vmem:[#allocation2 + $0x50] sm:$0xff]
        %v4573 = vld [vmem:[#allocation2 + $0x58] sm:$0xff]
        %v4574 = vld [vmem:[#allocation2 + $0x60] sm:$0xff]
        %v4575 = vld [vmem:[#allocation2 + $0x68] sm:$0xff]
        %v4576 = vld [vmem:[#allocation2 + $0x70] sm:$0xff]
        %v4577 = vld [vmem:[#allocation2 + $0x78] sm:$0xff]
        %v4578 = vld [vmem:[#allocation2 + $0x80] sm:$0xff]
        %v4579 = vld [vmem:[#allocation2 + $0x88] sm:$0xff]
        %v4580 = vld [vmem:[#allocation2 + $0x90] sm:$0xff]
        %v4581 = vld [vmem:[#allocation2 + $0x98] sm:$0xff]
        %v4582 = vld [vmem:[#allocation2 + $0xa0] sm:$0xff]
        %v4583 = vld [vmem:[#allocation2 + $0xa8] sm:$0xff]
        %v4584 = vld [vmem:[#allocation2 + $0xb0] sm:$0xff]
        %v4585 = vld [vmem:[#allocation2 + $0xb8] sm:$0xff]
        %v4586 = vld [vmem:[#allocation2 + $0xc0] sm:$0xff]
        %v4587 = vld [vmem:[#allocation2 + $0xc8] sm:$0xff]
        %v4588 = vld [vmem:[#allocation2 + $0xd0] sm:$0xff]
        %v4589 = vld [vmem:[#allocation2 + $0xd8] sm:$0xff]
        %v4590 = vld [vmem:[#allocation2 + $0xe0] sm:$0xff]
        %v4591 = vld [vmem:[#allocation2 + $0xe8] sm:$0xff]
        %v4592 = vld [vmem:[#allocation2 + $0xf0] sm:$0xff]
        %v4593 = vld [vmem:[#allocation2 + $0xf8] sm:$0xff]
        %v4594 = vld [vmem:[#allocation2 + $0x100] sm:$0xff]
        %v4595 = vld [vmem:[#allocation2 + $0x108] sm:$0xff]
        %v4596 = vld [vmem:[#allocation2 + $0x110] sm:$0xff]
        %v4597 = vld [vmem:[#allocation2 + $0x118] sm:$0xff]
        %v4598 = vld [vmem:[#allocation2 + $0x120] sm:$0xff]
        %v4599 = vld [vmem:[#allocation2 + $0x128] sm:$0xff]
        %v4600 = vld [vmem:[#allocation2 + $0x130] sm:$0xff]
        %v4601 = vld [vmem:[#allocation2 + $0x138] sm:$0xff]
        %v4602 = vld [vmem:[#allocation2 + $0x140] sm:$0xff]
        %v4603 = vld [vmem:[#allocation2 + $0x148] sm:$0xff]
        %v4604 = vmul.f32 %v4562, %v520
        %v4605 = vmul.f32 %v4563, %v520
        %v4606 = vmul.f32 %v4565, %v520
        %v4607 = vmul.f32 %v4566, %v520
        %v4608 = vmul.f32 %v4568, %v520
        %v4609 = vmul.f32 %v4569, %v520
        %v4610 = vmul.f32 %v4571, %v520
        %v4611 = vmul.f32 %v4572, %v520
        %v4612 = vmul.f32 %v4574, %v520
        %v4613 = vmul.f32 %v4575, %v520
        %v4614 = vmul.f32 %v4577, %v520
        %v4615 = vmul.f32 %v4578, %v520
        %v4616 = vmul.f32 %v4580, %v520
        %v4617 = vmul.f32 %v4581, %v520
        %v4618 = vmul.f32 %v4583, %v520
        %v4619 = vmul.f32 %v4584, %v520
        %v4620 = vmul.f32 %v4565, %v540
        %v4621 = vmul.f32 %v4566, %v540
        %v4622 = vmul.f32 %v4568, %v540
        %v4623 = vmul.f32 %v4569, %v540
        %v4624 = vmul.f32 %v4571, %v540
        %v4625 = vmul.f32 %v4572, %v540
        %v4626 = vmul.f32 %v4574, %v540
        %v4627 = vmul.f32 %v4575, %v540
        %v4628 = vmul.f32 %v4577, %v540
        %v4629 = vmul.f32 %v4578, %v540
        %v4630 = vmul.f32 %v4580, %v540
        %v4631 = vmul.f32 %v4581, %v540
        %v4632 = vmul.f32 %v4583, %v540
        %v4633 = vmul.f32 %v4584, %v540
        %v4634 = vmul.f32 %v4586, %v540
        %v4635 = vmul.f32 %v4587, %v540
        %v4636 = vadd.f32 %v4604, %v4620
        %v4637 = vadd.f32 %v4605, %v4621
        %v4638 = vadd.f32 %v4606, %v4622
        %v4639 = vadd.f32 %v4607, %v4623
        %v4640 = vadd.f32 %v4608, %v4624
        %v4641 = vadd.f32 %v4609, %v4625
        %v4642 = vadd.f32 %v4610, %v4626
        %v4643 = vadd.f32 %v4611, %v4627
        %v4644 = vadd.f32 %v4612, %v4628
        %v4645 = vadd.f32 %v4613, %v4629
        %v4646 = vadd.f32 %v4614, %v4630
        %v4647 = vadd.f32 %v4615, %v4631
        %v4648 = vadd.f32 %v4616, %v4632
        %v4649 = vadd.f32 %v4617, %v4633
        %v4650 = vadd.f32 %v4618, %v4634
        %v4651 = vadd.f32 %v4619, %v4635
        %v4652 = vmul.f32 %v4568, %v576
        %v4653 = vmul.f32 %v4569, %v576
        %v4654 = vmul.f32 %v4571, %v576
        %v4655 = vmul.f32 %v4572, %v576
        %v4656 = vmul.f32 %v4574, %v576
        %v4657 = vmul.f32 %v4575, %v576
        %v4658 = vmul.f32 %v4577, %v576
        %v4659 = vmul.f32 %v4578, %v576
        %v4660 = vmul.f32 %v4580, %v576
        %v4661 = vmul.f32 %v4581, %v576
        %v4662 = vmul.f32 %v4583, %v576
        %v4663 = vmul.f32 %v4584, %v576
        %v4664 = vmul.f32 %v4586, %v576
        %v4665 = vmul.f32 %v4587, %v576
        %v4666 = vmul.f32 %v4589, %v576
        %v4667 = vmul.f32 %v4590, %v576
        %v4668 = vadd.f32 %v4636, %v4652
        %v4669 = vadd.f32 %v4637, %v4653
        %v4670 = vadd.f32 %v4638, %v4654
        %v4671 = vadd.f32 %v4639, %v4655
        %v4672 = vadd.f32 %v4640, %v4656
        %v4673 = vadd.f32 %v4641, %v4657
        %v4674 = vadd.f32 %v4642, %v4658
        %v4675 = vadd.f32 %v4643, %v4659
        %v4676 = vadd.f32 %v4644, %v4660
        %v4677 = vadd.f32 %v4645, %v4661
        %v4678 = vadd.f32 %v4646, %v4662
        %v4679 = vadd.f32 %v4647, %v4663
        %v4680 = vadd.f32 %v4648, %v4664
        %v4681 = vadd.f32 %v4649, %v4665
        %v4682 = vadd.f32 %v4650, %v4666
        %v4683 = vadd.f32 %v4651, %v4667
        %v4684 = vmul.f32 %v4571, %v612
        %v4685 = vmul.f32 %v4572, %v612
        %v4686 = vmul.f32 %v4574, %v612
        %v4687 = vmul.f32 %v4575, %v612
        %v4688 = vmul.f32 %v4577, %v612
        %v4689 = vmul.f32 %v4578, %v612
        %v4690 = vmul.f32 %v4580, %v612
        %v4691 = vmul.f32 %v4581, %v612
        %v4692 = vmul.f32 %v4583, %v612
        %v4693 = vmul.f32 %v4584, %v612
        %v4694 = vmul.f32 %v4586, %v612
        %v4695 = vmul.f32 %v4587, %v612
        %v4696 = vmul.f32 %v4589, %v612
        %v4697 = vmul.f32 %v4590, %v612
        %v4698 = vmul.f32 %v4592, %v612
        %v4699 = vmul.f32 %v4593, %v612
        %v4700 = vadd.f32 %v4668, %v4684
        %v4701 = vadd.f32 %v4669, %v4685
        %v4702 = vadd.f32 %v4670, %v4686
        %v4703 = vadd.f32 %v4671, %v4687
        %v4704 = vadd.f32 %v4672, %v4688
        %v4705 = vadd.f32 %v4673, %v4689
        %v4706 = vadd.f32 %v4674, %v4690
        %v4707 = vadd.f32 %v4675, %v4691
        %v4708 = vadd.f32 %v4676, %v4692
        %v4709 = vadd.f32 %v4677, %v4693
        %v4710 = vadd.f32 %v4678, %v4694
        %v4711 = vadd.f32 %v4679, %v4695
        %v4712 = vadd.f32 %v4680, %v4696
        %v4713 = vadd.f32 %v4681, %v4697
        %v4714 = vadd.f32 %v4682, %v4698
        %v4715 = vadd.f32 %v4683, %v4699
        %v4716 = vmul.f32 %v4574, %v648
        %v4717 = vmul.f32 %v4575, %v648
        %v4718 = vmul.f32 %v4577, %v648
        %v4719 = vmul.f32 %v4578, %v648
        %v4720 = vmul.f32 %v4580, %v648
        %v4721 = vmul.f32 %v4581, %v648
        %v4722 = vmul.f32 %v4583, %v648
        %v4723 = vmul.f32 %v4584, %v648
        %v4724 = vmul.f32 %v4586, %v648
        %v4725 = vmul.f32 %v4587, %v648
        %v4726 = vmul.f32 %v4589, %v648
        %v4727 = vmul.f32 %v4590, %v648
        %v4728 = vmul.f32 %v4592, %v648
        %v4729 = vmul.f32 %v4593, %v648
        %v4730 = vmul.f32 %v4595, %v648
        %v4731 = vmul.f32 %v4596, %v648
        %v4732 = vadd.f32 %v4700, %v4716
        %v4733 = vadd.f32 %v4701, %v4717
        %v4734 = vadd.f32 %v4702, %v4718
        %v4735 = vadd.f32 %v4703, %v4719
        %v4736 = vadd.f32 %v4704, %v4720
        %v4737 = vadd.f32 %v4705, %v4721
        %v4738 = vadd.f32 %v4706, %v4722
        %v4739 = vadd.f32 %v4707, %v4723
        %v4740 = vadd.f32 %v4708, %v4724
        %v4741 = vadd.f32 %v4709, %v4725
        %v4742 = vadd.f32 %v4710, %v4726
        %v4743 = vadd.f32 %v4711, %v4727
        %v4744 = vadd.f32 %v4712, %v4728
        %v4745 = vadd.f32 %v4713, %v4729
        %v4746 = vadd.f32 %v4714, %v4730
        %v4747 = vadd.f32 %v4715, %v4731
        %v4748 = vmul.f32 %v4577, %v684
        %v4749 = vmul.f32 %v4578, %v684
        %v4750 = vmul.f32 %v4580, %v684
        %v4751 = vmul.f32 %v4581, %v684
        %v4752 = vmul.f32 %v4583, %v684
        %v4753 = vmul.f32 %v4584, %v684
        %v4754 = vmul.f32 %v4586, %v684
        %v4755 = vmul.f32 %v4587, %v684
        %v4756 = vmul.f32 %v4589, %v684
        %v4757 = vmul.f32 %v4590, %v684
        %v4758 = vmul.f32 %v4592, %v684
        %v4759 = vmul.f32 %v4593, %v684
        %v4760 = vmul.f32 %v4595, %v684
        %v4761 = vmul.f32 %v4596, %v684
        %v4762 = vmul.f32 %v4598, %v684
        %v4763 = vmul.f32 %v4599, %v684
        %v4764 = vadd.f32 %v4732, %v4748
        %v4765 = vadd.f32 %v4733, %v4749
        %v4766 = vadd.f32 %v4734, %v4750
        %v4767 = vadd.f32 %v4735, %v4751
        %v4768 = vadd.f32 %v4736, %v4752
        %v4769 = vadd.f32 %v4737, %v4753
        %v4770 = vadd.f32 %v4738, %v4754
        %v4771 = vadd.f32 %v4739, %v4755
        %v4772 = vadd.f32 %v4740, %v4756
        %v4773 = vadd.f32 %v4741, %v4757
        %v4774 = vadd.f32 %v4742, %v4758
        %v4775 = vadd.f32 %v4743, %v4759
        %v4776 = vadd.f32 %v4744, %v4760
        %v4777 = vadd.f32 %v4745, %v4761
        %v4778 = vadd.f32 %v4746, %v4762
        %v4779 = vadd.f32 %v4747, %v4763
        %v4780 = vmul.f32 %v4580, %v720
        %v4781 = vmul.f32 %v4581, %v720
        %v4782 = vmul.f32 %v4583, %v720
        %v4783 = vmul.f32 %v4584, %v720
        %v4784 = vmul.f32 %v4586, %v720
        %v4785 = vmul.f32 %v4587, %v720
        %v4786 = vmul.f32 %v4589, %v720
        %v4787 = vmul.f32 %v4590, %v720
        %v4788 = vmul.f32 %v4592, %v720
        %v4789 = vmul.f32 %v4593, %v720
        %v4790 = vmul.f32 %v4595, %v720
        %v4791 = vmul.f32 %v4596, %v720
        %v4792 = vmul.f32 %v4598, %v720
        %v4793 = vmul.f32 %v4599, %v720
        %v4794 = vmul.f32 %v4601, %v720
        %v4795 = vmul.f32 %v4602, %v720
        %v4796 = vadd.f32 %v4764, %v4780
        %v4797 = vadd.f32 %v4765, %v4781
        %v4798 = vadd.f32 %v4766, %v4782
        %v4799 = vadd.f32 %v4767, %v4783
        %v4800 = vadd.f32 %v4768, %v4784
        %v4801 = vadd.f32 %v4769, %v4785
        %v4802 = vadd.f32 %v4770, %v4786
        %v4803 = vadd.f32 %v4771, %v4787
        %v4804 = vadd.f32 %v4772, %v4788
        %v4805 = vadd.f32 %v4773, %v4789
        %v4806 = vadd.f32 %v4774, %v4790
        %v4807 = vadd.f32 %v4775, %v4791
        %v4808 = vadd.f32 %v4776, %v4792
        %v4809 = vadd.f32 %v4777, %v4793
        %v4810 = vadd.f32 %v4778, %v4794
        %v4811 = vadd.f32 %v4779, %v4795
        %v4812 = vmul.f32 %v4562, %v756
        %v4813 = vmul.f32 %v4563, %v756
        %v4814 = vmul.f32 %v4565, %v756
        %v4815 = vmul.f32 %v4566, %v756
        %v4816 = vmul.f32 %v4568, %v756
        %v4817 = vmul.f32 %v4569, %v756
        %v4818 = vmul.f32 %v4571, %v756
        %v4819 = vmul.f32 %v4572, %v756
        %v4820 = vmul.f32 %v4574, %v756
        %v4821 = vmul.f32 %v4575, %v756
        %v4822 = vmul.f32 %v4577, %v756
        %v4823 = vmul.f32 %v4578, %v756
        %v4824 = vmul.f32 %v4580, %v756
        %v4825 = vmul.f32 %v4581, %v756
        %v4826 = vmul.f32 %v4583, %v756
        %v4827 = vmul.f32 %v4584, %v756
        %v4844 = vrot.slane %v4812, 1
        %v4845 = vrot.slane %v4813, 1
        %v4846 = vsel %vm789, %v4844, %v4845
        %v4847 = vrot.slane %v4814, 1
        %v4848 = vrot.slane %v4815, 1
        %v4849 = vsel %vm789, %v4847, %v4848
        %v4850 = vrot.slane %v4816, 1
        %v4851 = vrot.slane %v4817, 1
        %v4852 = vsel %vm789, %v4850, %v4851
        %v4853 = vrot.slane %v4818, 1
        %v4854 = vrot.slane %v4819, 1
        %v4855 = vsel %vm789, %v4853, %v4854
        %v4856 = vrot.slane %v4820, 1
        %v4857 = vrot.slane %v4821, 1
        %v4858 = vsel %vm789, %v4856, %v4857
        %v4859 = vrot.slane %v4822, 1
        %v4860 = vrot.slane %v4823, 1
        %v4861 = vsel %vm789, %v4859, %v4860
        %v4862 = vrot.slane %v4824, 1
        %v4863 = vrot.slane %v4825, 1
        %v4864 = vsel %vm789, %v4862, %v4863
        %v4865 = vrot.slane %v4826, 1
        %v4866 = vrot.slane %v4827, 1
        %v4867 = vsel %vm789, %v4865, %v4866
        %v4884 = vadd.f32 %v4796, %v4846
        %v4885 = vadd.f32 %v4797, %v4845
        %v4886 = vadd.f32 %v4798, %v4849
        %v4887 = vadd.f32 %v4799, %v4848
        %v4888 = vadd.f32 %v4800, %v4852
        %v4889 = vadd.f32 %v4801, %v4851
        %v4890 = vadd.f32 %v4802, %v4855
        %v4891 = vadd.f32 %v4803, %v4854
        %v4892 = vadd.f32 %v4804, %v4858
        %v4893 = vadd.f32 %v4805, %v4857
        %v4894 = vadd.f32 %v4806, %v4861
        %v4895 = vadd.f32 %v4807, %v4860
        %v4896 = vadd.f32 %v4808, %v4864
        %v4897 = vadd.f32 %v4809, %v4863
        %v4898 = vadd.f32 %v4810, %v4867
        %v4899 = vadd.f32 %v4811, %v4866
        %v4900 = vmul.f32 %v4565, %v849
        %v4901 = vmul.f32 %v4566, %v849
        %v4902 = vmul.f32 %v4568, %v849
        %v4903 = vmul.f32 %v4569, %v849
        %v4904 = vmul.f32 %v4571, %v849
        %v4905 = vmul.f32 %v4572, %v849
        %v4906 = vmul.f32 %v4574, %v849
        %v4907 = vmul.f32 %v4575, %v849
        %v4908 = vmul.f32 %v4577, %v849
        %v4909 = vmul.f32 %v4578, %v849
        %v4910 = vmul.f32 %v4580, %v849
        %v4911 = vmul.f32 %v4581, %v849
        %v4912 = vmul.f32 %v4583, %v849
        %v4913 = vmul.f32 %v4584, %v849
        %v4914 = vmul.f32 %v4586, %v849
        %v4915 = vmul.f32 %v4587, %v849
        %v4932 = vrot.slane %v4900, 1
        %v4933 = vrot.slane %v4901, 1
        %v4934 = vsel %vm789, %v4932, %v4933
        %v4935 = vrot.slane %v4902, 1
        %v4936 = vrot.slane %v4903, 1
        %v4937 = vsel %vm789, %v4935, %v4936
        %v4938 = vrot.slane %v4904, 1
        %v4939 = vrot.slane %v4905, 1
        %v4940 = vsel %vm789, %v4938, %v4939
        %v4941 = vrot.slane %v4906, 1
        %v4942 = vrot.slane %v4907, 1
        %v4943 = vsel %vm789, %v4941, %v4942
        %v4944 = vrot.slane %v4908, 1
        %v4945 = vrot.slane %v4909, 1
        %v4946 = vsel %vm789, %v4944, %v4945
        %v4947 = vrot.slane %v4910, 1
        %v4948 = vrot.slane %v4911, 1
        %v4949 = vsel %vm789, %v4947, %v4948
        %v4950 = vrot.slane %v4912, 1
        %v4951 = vrot.slane %v4913, 1
        %v4952 = vsel %vm789, %v4950, %v4951
        %v4953 = vrot.slane %v4914, 1
        %v4954 = vrot.slane %v4915, 1
        %v4955 = vsel %vm789, %v4953, %v4954
        %v4972 = vadd.f32 %v4884, %v4934
        %v4973 = vadd.f32 %v4885, %v4933
        %v4974 = vadd.f32 %v4886, %v4937
        %v4975 = vadd.f32 %v4887, %v4936
        %v4976 = vadd.f32 %v4888, %v4940
        %v4977 = vadd.f32 %v4889, %v4939
        %v4978 = vadd.f32 %v4890, %v4943
        %v4979 = vadd.f32 %v4891, %v4942
        %v4980 = vadd.f32 %v4892, %v4946
        %v4981 = vadd.f32 %v4893, %v4945
        %v4982 = vadd.f32 %v4894, %v4949
        %v4983 = vadd.f32 %v4895, %v4948
        %v4984 = vadd.f32 %v4896, %v4952
        %v4985 = vadd.f32 %v4897, %v4951
        %v4986 = vadd.f32 %v4898, %v4955
        %v4987 = vadd.f32 %v4899, %v4954
        %v4988 = vmul.f32 %v4568, %v941
        %v4989 = vmul.f32 %v4569, %v941
        %v4990 = vmul.f32 %v4571, %v941
        %v4991 = vmul.f32 %v4572, %v941
        %v4992 = vmul.f32 %v4574, %v941
        %v4993 = vmul.f32 %v4575, %v941
        %v4994 = vmul.f32 %v4577, %v941
        %v4995 = vmul.f32 %v4578, %v941
        %v4996 = vmul.f32 %v4580, %v941
        %v4997 = vmul.f32 %v4581, %v941
        %v4998 = vmul.f32 %v4583, %v941
        %v4999 = vmul.f32 %v4584, %v941
        %v5000 = vmul.f32 %v4586, %v941
        %v5001 = vmul.f32 %v4587, %v941
        %v5002 = vmul.f32 %v4589, %v941
        %v5003 = vmul.f32 %v4590, %v941
        %v5020 = vrot.slane %v4988, 1
        %v5021 = vrot.slane %v4989, 1
        %v5022 = vsel %vm789, %v5020, %v5021
        %v5023 = vrot.slane %v4990, 1
        %v5024 = vrot.slane %v4991, 1
        %v5025 = vsel %vm789, %v5023, %v5024
        %v5026 = vrot.slane %v4992, 1
        %v5027 = vrot.slane %v4993, 1
        %v5028 = vsel %vm789, %v5026, %v5027
        %v5029 = vrot.slane %v4994, 1
        %v5030 = vrot.slane %v4995, 1
        %v5031 = vsel %vm789, %v5029, %v5030
        %v5032 = vrot.slane %v4996, 1
        %v5033 = vrot.slane %v4997, 1
        %v5034 = vsel %vm789, %v5032, %v5033
        %v5035 = vrot.slane %v4998, 1
        %v5036 = vrot.slane %v4999, 1
        %v5037 = vsel %vm789, %v5035, %v5036
        %v5038 = vrot.slane %v5000, 1
        %v5039 = vrot.slane %v5001, 1
        %v5040 = vsel %vm789, %v5038, %v5039
        %v5041 = vrot.slane %v5002, 1
        %v5042 = vrot.slane %v5003, 1
        %v5043 = vsel %vm789, %v5041, %v5042
        %v5060 = vadd.f32 %v4972, %v5022
        %v5061 = vadd.f32 %v4973, %v5021
        %v5062 = vadd.f32 %v4974, %v5025
        %v5063 = vadd.f32 %v4975, %v5024
        %v5064 = vadd.f32 %v4976, %v5028
        %v5065 = vadd.f32 %v4977, %v5027
        %v5066 = vadd.f32 %v4978, %v5031
        %v5067 = vadd.f32 %v4979, %v5030
        %v5068 = vadd.f32 %v4980, %v5034
        %v5069 = vadd.f32 %v4981, %v5033
        %v5070 = vadd.f32 %v4982, %v5037
        %v5071 = vadd.f32 %v4983, %v5036
        %v5072 = vadd.f32 %v4984, %v5040
        %v5073 = vadd.f32 %v4985, %v5039
        %v5074 = vadd.f32 %v4986, %v5043
        %v5075 = vadd.f32 %v4987, %v5042
        %v5076 = vmul.f32 %v4571, %v1033
        %v5077 = vmul.f32 %v4572, %v1033
        %v5078 = vmul.f32 %v4574, %v1033
        %v5079 = vmul.f32 %v4575, %v1033
        %v5080 = vmul.f32 %v4577, %v1033
        %v5081 = vmul.f32 %v4578, %v1033
        %v5082 = vmul.f32 %v4580, %v1033
        %v5083 = vmul.f32 %v4581, %v1033
        %v5084 = vmul.f32 %v4583, %v1033
        %v5085 = vmul.f32 %v4584, %v1033
        %v5086 = vmul.f32 %v4586, %v1033
        %v5087 = vmul.f32 %v4587, %v1033
        %v5088 = vmul.f32 %v4589, %v1033
        %v5089 = vmul.f32 %v4590, %v1033
        %v5090 = vmul.f32 %v4592, %v1033
        %v5091 = vmul.f32 %v4593, %v1033
        %v5108 = vrot.slane %v5076, 1
        %v5109 = vrot.slane %v5077, 1
        %v5110 = vsel %vm789, %v5108, %v5109
        %v5111 = vrot.slane %v5078, 1
        %v5112 = vrot.slane %v5079, 1
        %v5113 = vsel %vm789, %v5111, %v5112
        %v5114 = vrot.slane %v5080, 1
        %v5115 = vrot.slane %v5081, 1
        %v5116 = vsel %vm789, %v5114, %v5115
        %v5117 = vrot.slane %v5082, 1
        %v5118 = vrot.slane %v5083, 1
        %v5119 = vsel %vm789, %v5117, %v5118
        %v5120 = vrot.slane %v5084, 1
        %v5121 = vrot.slane %v5085, 1
        %v5122 = vsel %vm789, %v5120, %v5121
        %v5123 = vrot.slane %v5086, 1
        %v5124 = vrot.slane %v5087, 1
        %v5125 = vsel %vm789, %v5123, %v5124
        %v5126 = vrot.slane %v5088, 1
        %v5127 = vrot.slane %v5089, 1
        %v5128 = vsel %vm789, %v5126, %v5127
        %v5129 = vrot.slane %v5090, 1
        %v5130 = vrot.slane %v5091, 1
        %v5131 = vsel %vm789, %v5129, %v5130
        %v5148 = vadd.f32 %v5060, %v5110
        %v5149 = vadd.f32 %v5061, %v5109
        %v5150 = vadd.f32 %v5062, %v5113
        %v5151 = vadd.f32 %v5063, %v5112
        %v5152 = vadd.f32 %v5064, %v5116
        %v5153 = vadd.f32 %v5065, %v5115
        %v5154 = vadd.f32 %v5066, %v5119
        %v5155 = vadd.f32 %v5067, %v5118
        %v5156 = vadd.f32 %v5068, %v5122
        %v5157 = vadd.f32 %v5069, %v5121
        %v5158 = vadd.f32 %v5070, %v5125
        %v5159 = vadd.f32 %v5071, %v5124
        %v5160 = vadd.f32 %v5072, %v5128
        %v5161 = vadd.f32 %v5073, %v5127
        %v5162 = vadd.f32 %v5074, %v5131
        %v5163 = vadd.f32 %v5075, %v5130
        %v5164 = vmul.f32 %v4574, %v1125
        %v5165 = vmul.f32 %v4575, %v1125
        %v5166 = vmul.f32 %v4577, %v1125
        %v5167 = vmul.f32 %v4578, %v1125
        %v5168 = vmul.f32 %v4580, %v1125
        %v5169 = vmul.f32 %v4581, %v1125
        %v5170 = vmul.f32 %v4583, %v1125
        %v5171 = vmul.f32 %v4584, %v1125
        %v5172 = vmul.f32 %v4586, %v1125
        %v5173 = vmul.f32 %v4587, %v1125
        %v5174 = vmul.f32 %v4589, %v1125
        %v5175 = vmul.f32 %v4590, %v1125
        %v5176 = vmul.f32 %v4592, %v1125
        %v5177 = vmul.f32 %v4593, %v1125
        %v5178 = vmul.f32 %v4595, %v1125
        %v5179 = vmul.f32 %v4596, %v1125
        %v5196 = vrot.slane %v5164, 1
        %v5197 = vrot.slane %v5165, 1
        %v5198 = vsel %vm789, %v5196, %v5197
        %v5199 = vrot.slane %v5166, 1
        %v5200 = vrot.slane %v5167, 1
        %v5201 = vsel %vm789, %v5199, %v5200
        %v5202 = vrot.slane %v5168, 1
        %v5203 = vrot.slane %v5169, 1
        %v5204 = vsel %vm789, %v5202, %v5203
        %v5205 = vrot.slane %v5170, 1
        %v5206 = vrot.slane %v5171, 1
        %v5207 = vsel %vm789, %v5205, %v5206
        %v5208 = vrot.slane %v5172, 1
        %v5209 = vrot.slane %v5173, 1
        %v5210 = vsel %vm789, %v5208, %v5209
        %v5211 = vrot.slane %v5174, 1
        %v5212 = vrot.slane %v5175, 1
        %v5213 = vsel %vm789, %v5211, %v5212
        %v5214 = vrot.slane %v5176, 1
        %v5215 = vrot.slane %v5177, 1
        %v5216 = vsel %vm789, %v5214, %v5215
        %v5217 = vrot.slane %v5178, 1
        %v5218 = vrot.slane %v5179, 1
        %v5219 = vsel %vm789, %v5217, %v5218
        %v5236 = vadd.f32 %v5148, %v5198
        %v5237 = vadd.f32 %v5149, %v5197
        %v5238 = vadd.f32 %v5150, %v5201
        %v5239 = vadd.f32 %v5151, %v5200
        %v5240 = vadd.f32 %v5152, %v5204
        %v5241 = vadd.f32 %v5153, %v5203
        %v5242 = vadd.f32 %v5154, %v5207
        %v5243 = vadd.f32 %v5155, %v5206
        %v5244 = vadd.f32 %v5156, %v5210
        %v5245 = vadd.f32 %v5157, %v5209
        %v5246 = vadd.f32 %v5158, %v5213
        %v5247 = vadd.f32 %v5159, %v5212
        %v5248 = vadd.f32 %v5160, %v5216
        %v5249 = vadd.f32 %v5161, %v5215
        %v5250 = vadd.f32 %v5162, %v5219
        %v5251 = vadd.f32 %v5163, %v5218
        %v5252 = vmul.f32 %v4577, %v1217
        %v5253 = vmul.f32 %v4578, %v1217
        %v5254 = vmul.f32 %v4580, %v1217
        %v5255 = vmul.f32 %v4581, %v1217
        %v5256 = vmul.f32 %v4583, %v1217
        %v5257 = vmul.f32 %v4584, %v1217
        %v5258 = vmul.f32 %v4586, %v1217
        %v5259 = vmul.f32 %v4587, %v1217
        %v5260 = vmul.f32 %v4589, %v1217
        %v5261 = vmul.f32 %v4590, %v1217
        %v5262 = vmul.f32 %v4592, %v1217
        %v5263 = vmul.f32 %v4593, %v1217
        %v5264 = vmul.f32 %v4595, %v1217
        %v5265 = vmul.f32 %v4596, %v1217
        %v5266 = vmul.f32 %v4598, %v1217
        %v5267 = vmul.f32 %v4599, %v1217
        %v5284 = vrot.slane %v5252, 1
        %v5285 = vrot.slane %v5253, 1
        %v5286 = vsel %vm789, %v5284, %v5285
        %v5287 = vrot.slane %v5254, 1
        %v5288 = vrot.slane %v5255, 1
        %v5289 = vsel %vm789, %v5287, %v5288
        %v5290 = vrot.slane %v5256, 1
        %v5291 = vrot.slane %v5257, 1
        %v5292 = vsel %vm789, %v5290, %v5291
        %v5293 = vrot.slane %v5258, 1
        %v5294 = vrot.slane %v5259, 1
        %v5295 = vsel %vm789, %v5293, %v5294
        %v5296 = vrot.slane %v5260, 1
        %v5297 = vrot.slane %v5261, 1
        %v5298 = vsel %vm789, %v5296, %v5297
        %v5299 = vrot.slane %v5262, 1
        %v5300 = vrot.slane %v5263, 1
        %v5301 = vsel %vm789, %v5299, %v5300
        %v5302 = vrot.slane %v5264, 1
        %v5303 = vrot.slane %v5265, 1
        %v5304 = vsel %vm789, %v5302, %v5303
        %v5305 = vrot.slane %v5266, 1
        %v5306 = vrot.slane %v5267, 1
        %v5307 = vsel %vm789, %v5305, %v5306
        %v5324 = vadd.f32 %v5236, %v5286
        %v5325 = vadd.f32 %v5237, %v5285
        %v5326 = vadd.f32 %v5238, %v5289
        %v5327 = vadd.f32 %v5239, %v5288
        %v5328 = vadd.f32 %v5240, %v5292
        %v5329 = vadd.f32 %v5241, %v5291
        %v5330 = vadd.f32 %v5242, %v5295
        %v5331 = vadd.f32 %v5243, %v5294
        %v5332 = vadd.f32 %v5244, %v5298
        %v5333 = vadd.f32 %v5245, %v5297
        %v5334 = vadd.f32 %v5246, %v5301
        %v5335 = vadd.f32 %v5247, %v5300
        %v5336 = vadd.f32 %v5248, %v5304
        %v5337 = vadd.f32 %v5249, %v5303
        %v5338 = vadd.f32 %v5250, %v5307
        %v5339 = vadd.f32 %v5251, %v5306
        %v5340 = vmul.f32 %v4580, %v1309
        %v5341 = vmul.f32 %v4581, %v1309
        %v5342 = vmul.f32 %v4583, %v1309
        %v5343 = vmul.f32 %v4584, %v1309
        %v5344 = vmul.f32 %v4586, %v1309
        %v5345 = vmul.f32 %v4587, %v1309
        %v5346 = vmul.f32 %v4589, %v1309
        %v5347 = vmul.f32 %v4590, %v1309
        %v5348 = vmul.f32 %v4592, %v1309
        %v5349 = vmul.f32 %v4593, %v1309
        %v5350 = vmul.f32 %v4595, %v1309
        %v5351 = vmul.f32 %v4596, %v1309
        %v5352 = vmul.f32 %v4598, %v1309
        %v5353 = vmul.f32 %v4599, %v1309
        %v5354 = vmul.f32 %v4601, %v1309
        %v5355 = vmul.f32 %v4602, %v1309
        %v5372 = vrot.slane %v5340, 1
        %v5373 = vrot.slane %v5341, 1
        %v5374 = vsel %vm789, %v5372, %v5373
        %v5375 = vrot.slane %v5342, 1
        %v5376 = vrot.slane %v5343, 1
        %v5377 = vsel %vm789, %v5375, %v5376
        %v5378 = vrot.slane %v5344, 1
        %v5379 = vrot.slane %v5345, 1
        %v5380 = vsel %vm789, %v5378, %v5379
        %v5381 = vrot.slane %v5346, 1
        %v5382 = vrot.slane %v5347, 1
        %v5383 = vsel %vm789, %v5381, %v5382
        %v5384 = vrot.slane %v5348, 1
        %v5385 = vrot.slane %v5349, 1
        %v5386 = vsel %vm789, %v5384, %v5385
        %v5387 = vrot.slane %v5350, 1
        %v5388 = vrot.slane %v5351, 1
        %v5389 = vsel %vm789, %v5387, %v5388
        %v5390 = vrot.slane %v5352, 1
        %v5391 = vrot.slane %v5353, 1
        %v5392 = vsel %vm789, %v5390, %v5391
        %v5393 = vrot.slane %v5354, 1
        %v5394 = vrot.slane %v5355, 1
        %v5395 = vsel %vm789, %v5393, %v5394
        %v5412 = vadd.f32 %v5324, %v5374
        %v5413 = vadd.f32 %v5325, %v5373
        %v5414 = vadd.f32 %v5326, %v5377
        %v5415 = vadd.f32 %v5327, %v5376
        %v5416 = vadd.f32 %v5328, %v5380
        %v5417 = vadd.f32 %v5329, %v5379
        %v5418 = vadd.f32 %v5330, %v5383
        %v5419 = vadd.f32 %v5331, %v5382
        %v5420 = vadd.f32 %v5332, %v5386
        %v5421 = vadd.f32 %v5333, %v5385
        %v5422 = vadd.f32 %v5334, %v5389
        %v5423 = vadd.f32 %v5335, %v5388
        %v5424 = vadd.f32 %v5336, %v5392
        %v5425 = vadd.f32 %v5337, %v5391
        %v5426 = vadd.f32 %v5338, %v5395
        %v5427 = vadd.f32 %v5339, %v5394
        %v5428 = vmul.f32 %v4562, %v1401
        %v5429 = vmul.f32 %v4563, %v1401
        %v5430 = vmul.f32 %v4565, %v1401
        %v5431 = vmul.f32 %v4566, %v1401
        %v5432 = vmul.f32 %v4568, %v1401
        %v5433 = vmul.f32 %v4569, %v1401
        %v5434 = vmul.f32 %v4571, %v1401
        %v5435 = vmul.f32 %v4572, %v1401
        %v5436 = vmul.f32 %v4574, %v1401
        %v5437 = vmul.f32 %v4575, %v1401
        %v5438 = vmul.f32 %v4577, %v1401
        %v5439 = vmul.f32 %v4578, %v1401
        %v5440 = vmul.f32 %v4580, %v1401
        %v5441 = vmul.f32 %v4581, %v1401
        %v5442 = vmul.f32 %v4583, %v1401
        %v5443 = vmul.f32 %v4584, %v1401
        %v5460 = vrot.slane %v5428, 2
        %v5461 = vrot.slane %v5429, 2
        %v5462 = vsel %vm1434, %v5460, %v5461
        %v5463 = vrot.slane %v5430, 2
        %v5464 = vrot.slane %v5431, 2
        %v5465 = vsel %vm1434, %v5463, %v5464
        %v5466 = vrot.slane %v5432, 2
        %v5467 = vrot.slane %v5433, 2
        %v5468 = vsel %vm1434, %v5466, %v5467
        %v5469 = vrot.slane %v5434, 2
        %v5470 = vrot.slane %v5435, 2
        %v5471 = vsel %vm1434, %v5469, %v5470
        %v5472 = vrot.slane %v5436, 2
        %v5473 = vrot.slane %v5437, 2
        %v5474 = vsel %vm1434, %v5472, %v5473
        %v5475 = vrot.slane %v5438, 2
        %v5476 = vrot.slane %v5439, 2
        %v5477 = vsel %vm1434, %v5475, %v5476
        %v5478 = vrot.slane %v5440, 2
        %v5479 = vrot.slane %v5441, 2
        %v5480 = vsel %vm1434, %v5478, %v5479
        %v5481 = vrot.slane %v5442, 2
        %v5482 = vrot.slane %v5443, 2
        %v5483 = vsel %vm1434, %v5481, %v5482
        %v5500 = vadd.f32 %v5412, %v5462
        %v5501 = vadd.f32 %v5413, %v5461
        %v5502 = vadd.f32 %v5414, %v5465
        %v5503 = vadd.f32 %v5415, %v5464
        %v5504 = vadd.f32 %v5416, %v5468
        %v5505 = vadd.f32 %v5417, %v5467
        %v5506 = vadd.f32 %v5418, %v5471
        %v5507 = vadd.f32 %v5419, %v5470
        %v5508 = vadd.f32 %v5420, %v5474
        %v5509 = vadd.f32 %v5421, %v5473
        %v5510 = vadd.f32 %v5422, %v5477
        %v5511 = vadd.f32 %v5423, %v5476
        %v5512 = vadd.f32 %v5424, %v5480
        %v5513 = vadd.f32 %v5425, %v5479
        %v5514 = vadd.f32 %v5426, %v5483
        %v5515 = vadd.f32 %v5427, %v5482
        %v5516 = vmul.f32 %v4565, %v1494
        %v5517 = vmul.f32 %v4566, %v1494
        %v5518 = vmul.f32 %v4568, %v1494
        %v5519 = vmul.f32 %v4569, %v1494
        %v5520 = vmul.f32 %v4571, %v1494
        %v5521 = vmul.f32 %v4572, %v1494
        %v5522 = vmul.f32 %v4574, %v1494
        %v5523 = vmul.f32 %v4575, %v1494
        %v5524 = vmul.f32 %v4577, %v1494
        %v5525 = vmul.f32 %v4578, %v1494
        %v5526 = vmul.f32 %v4580, %v1494
        %v5527 = vmul.f32 %v4581, %v1494
        %v5528 = vmul.f32 %v4583, %v1494
        %v5529 = vmul.f32 %v4584, %v1494
        %v5530 = vmul.f32 %v4586, %v1494
        %v5531 = vmul.f32 %v4587, %v1494
        %v5548 = vrot.slane %v5516, 2
        %v5549 = vrot.slane %v5517, 2
        %v5550 = vsel %vm1434, %v5548, %v5549
        %v5551 = vrot.slane %v5518, 2
        %v5552 = vrot.slane %v5519, 2
        %v5553 = vsel %vm1434, %v5551, %v5552
        %v5554 = vrot.slane %v5520, 2
        %v5555 = vrot.slane %v5521, 2
        %v5556 = vsel %vm1434, %v5554, %v5555
        %v5557 = vrot.slane %v5522, 2
        %v5558 = vrot.slane %v5523, 2
        %v5559 = vsel %vm1434, %v5557, %v5558
        %v5560 = vrot.slane %v5524, 2
        %v5561 = vrot.slane %v5525, 2
        %v5562 = vsel %vm1434, %v5560, %v5561
        %v5563 = vrot.slane %v5526, 2
        %v5564 = vrot.slane %v5527, 2
        %v5565 = vsel %vm1434, %v5563, %v5564
        %v5566 = vrot.slane %v5528, 2
        %v5567 = vrot.slane %v5529, 2
        %v5568 = vsel %vm1434, %v5566, %v5567
        %v5569 = vrot.slane %v5530, 2
        %v5570 = vrot.slane %v5531, 2
        %v5571 = vsel %vm1434, %v5569, %v5570
        %v5588 = vadd.f32 %v5500, %v5550
        %v5589 = vadd.f32 %v5501, %v5549
        %v5590 = vadd.f32 %v5502, %v5553
        %v5591 = vadd.f32 %v5503, %v5552
        %v5592 = vadd.f32 %v5504, %v5556
        %v5593 = vadd.f32 %v5505, %v5555
        %v5594 = vadd.f32 %v5506, %v5559
        %v5595 = vadd.f32 %v5507, %v5558
        %v5596 = vadd.f32 %v5508, %v5562
        %v5597 = vadd.f32 %v5509, %v5561
        %v5598 = vadd.f32 %v5510, %v5565
        %v5599 = vadd.f32 %v5511, %v5564
        %v5600 = vadd.f32 %v5512, %v5568
        %v5601 = vadd.f32 %v5513, %v5567
        %v5602 = vadd.f32 %v5514, %v5571
        %v5603 = vadd.f32 %v5515, %v5570
        %v5604 = vmul.f32 %v4568, %v1586
        %v5605 = vmul.f32 %v4569, %v1586
        %v5606 = vmul.f32 %v4571, %v1586
        %v5607 = vmul.f32 %v4572, %v1586
        %v5608 = vmul.f32 %v4574, %v1586
        %v5609 = vmul.f32 %v4575, %v1586
        %v5610 = vmul.f32 %v4577, %v1586
        %v5611 = vmul.f32 %v4578, %v1586
        %v5612 = vmul.f32 %v4580, %v1586
        %v5613 = vmul.f32 %v4581, %v1586
        %v5614 = vmul.f32 %v4583, %v1586
        %v5615 = vmul.f32 %v4584, %v1586
        %v5616 = vmul.f32 %v4586, %v1586
        %v5617 = vmul.f32 %v4587, %v1586
        %v5618 = vmul.f32 %v4589, %v1586
        %v5619 = vmul.f32 %v4590, %v1586
        %v5636 = vrot.slane %v5604, 2
        %v5637 = vrot.slane %v5605, 2
        %v5638 = vsel %vm1434, %v5636, %v5637
        %v5639 = vrot.slane %v5606, 2
        %v5640 = vrot.slane %v5607, 2
        %v5641 = vsel %vm1434, %v5639, %v5640
        %v5642 = vrot.slane %v5608, 2
        %v5643 = vrot.slane %v5609, 2
        %v5644 = vsel %vm1434, %v5642, %v5643
        %v5645 = vrot.slane %v5610, 2
        %v5646 = vrot.slane %v5611, 2
        %v5647 = vsel %vm1434, %v5645, %v5646
        %v5648 = vrot.slane %v5612, 2
        %v5649 = vrot.slane %v5613, 2
        %v5650 = vsel %vm1434, %v5648, %v5649
        %v5651 = vrot.slane %v5614, 2
        %v5652 = vrot.slane %v5615, 2
        %v5653 = vsel %vm1434, %v5651, %v5652
        %v5654 = vrot.slane %v5616, 2
        %v5655 = vrot.slane %v5617, 2
        %v5656 = vsel %vm1434, %v5654, %v5655
        %v5657 = vrot.slane %v5618, 2
        %v5658 = vrot.slane %v5619, 2
        %v5659 = vsel %vm1434, %v5657, %v5658
        %v5676 = vadd.f32 %v5588, %v5638
        %v5677 = vadd.f32 %v5589, %v5637
        %v5678 = vadd.f32 %v5590, %v5641
        %v5679 = vadd.f32 %v5591, %v5640
        %v5680 = vadd.f32 %v5592, %v5644
        %v5681 = vadd.f32 %v5593, %v5643
        %v5682 = vadd.f32 %v5594, %v5647
        %v5683 = vadd.f32 %v5595, %v5646
        %v5684 = vadd.f32 %v5596, %v5650
        %v5685 = vadd.f32 %v5597, %v5649
        %v5686 = vadd.f32 %v5598, %v5653
        %v5687 = vadd.f32 %v5599, %v5652
        %v5688 = vadd.f32 %v5600, %v5656
        %v5689 = vadd.f32 %v5601, %v5655
        %v5690 = vadd.f32 %v5602, %v5659
        %v5691 = vadd.f32 %v5603, %v5658
        %v5692 = vmul.f32 %v4571, %v1678
        %v5693 = vmul.f32 %v4572, %v1678
        %v5694 = vmul.f32 %v4574, %v1678
        %v5695 = vmul.f32 %v4575, %v1678
        %v5696 = vmul.f32 %v4577, %v1678
        %v5697 = vmul.f32 %v4578, %v1678
        %v5698 = vmul.f32 %v4580, %v1678
        %v5699 = vmul.f32 %v4581, %v1678
        %v5700 = vmul.f32 %v4583, %v1678
        %v5701 = vmul.f32 %v4584, %v1678
        %v5702 = vmul.f32 %v4586, %v1678
        %v5703 = vmul.f32 %v4587, %v1678
        %v5704 = vmul.f32 %v4589, %v1678
        %v5705 = vmul.f32 %v4590, %v1678
        %v5706 = vmul.f32 %v4592, %v1678
        %v5707 = vmul.f32 %v4593, %v1678
        %v5724 = vrot.slane %v5692, 2
        %v5725 = vrot.slane %v5693, 2
        %v5726 = vsel %vm1434, %v5724, %v5725
        %v5727 = vrot.slane %v5694, 2
        %v5728 = vrot.slane %v5695, 2
        %v5729 = vsel %vm1434, %v5727, %v5728
        %v5730 = vrot.slane %v5696, 2
        %v5731 = vrot.slane %v5697, 2
        %v5732 = vsel %vm1434, %v5730, %v5731
        %v5733 = vrot.slane %v5698, 2
        %v5734 = vrot.slane %v5699, 2
        %v5735 = vsel %vm1434, %v5733, %v5734
        %v5736 = vrot.slane %v5700, 2
        %v5737 = vrot.slane %v5701, 2
        %v5738 = vsel %vm1434, %v5736, %v5737
        %v5739 = vrot.slane %v5702, 2
        %v5740 = vrot.slane %v5703, 2
        %v5741 = vsel %vm1434, %v5739, %v5740
        %v5742 = vrot.slane %v5704, 2
        %v5743 = vrot.slane %v5705, 2
        %v5744 = vsel %vm1434, %v5742, %v5743
        %v5745 = vrot.slane %v5706, 2
        %v5746 = vrot.slane %v5707, 2
        %v5747 = vsel %vm1434, %v5745, %v5746
        %v5764 = vadd.f32 %v5676, %v5726
        %v5765 = vadd.f32 %v5677, %v5725
        %v5766 = vadd.f32 %v5678, %v5729
        %v5767 = vadd.f32 %v5679, %v5728
        %v5768 = vadd.f32 %v5680, %v5732
        %v5769 = vadd.f32 %v5681, %v5731
        %v5770 = vadd.f32 %v5682, %v5735
        %v5771 = vadd.f32 %v5683, %v5734
        %v5772 = vadd.f32 %v5684, %v5738
        %v5773 = vadd.f32 %v5685, %v5737
        %v5774 = vadd.f32 %v5686, %v5741
        %v5775 = vadd.f32 %v5687, %v5740
        %v5776 = vadd.f32 %v5688, %v5744
        %v5777 = vadd.f32 %v5689, %v5743
        %v5778 = vadd.f32 %v5690, %v5747
        %v5779 = vadd.f32 %v5691, %v5746
        %v5780 = vmul.f32 %v4574, %v1770
        %v5781 = vmul.f32 %v4575, %v1770
        %v5782 = vmul.f32 %v4577, %v1770
        %v5783 = vmul.f32 %v4578, %v1770
        %v5784 = vmul.f32 %v4580, %v1770
        %v5785 = vmul.f32 %v4581, %v1770
        %v5786 = vmul.f32 %v4583, %v1770
        %v5787 = vmul.f32 %v4584, %v1770
        %v5788 = vmul.f32 %v4586, %v1770
        %v5789 = vmul.f32 %v4587, %v1770
        %v5790 = vmul.f32 %v4589, %v1770
        %v5791 = vmul.f32 %v4590, %v1770
        %v5792 = vmul.f32 %v4592, %v1770
        %v5793 = vmul.f32 %v4593, %v1770
        %v5794 = vmul.f32 %v4595, %v1770
        %v5795 = vmul.f32 %v4596, %v1770
        %v5812 = vrot.slane %v5780, 2
        %v5813 = vrot.slane %v5781, 2
        %v5814 = vsel %vm1434, %v5812, %v5813
        %v5815 = vrot.slane %v5782, 2
        %v5816 = vrot.slane %v5783, 2
        %v5817 = vsel %vm1434, %v5815, %v5816
        %v5818 = vrot.slane %v5784, 2
        %v5819 = vrot.slane %v5785, 2
        %v5820 = vsel %vm1434, %v5818, %v5819
        %v5821 = vrot.slane %v5786, 2
        %v5822 = vrot.slane %v5787, 2
        %v5823 = vsel %vm1434, %v5821, %v5822
        %v5824 = vrot.slane %v5788, 2
        %v5825 = vrot.slane %v5789, 2
        %v5826 = vsel %vm1434, %v5824, %v5825
        %v5827 = vrot.slane %v5790, 2
        %v5828 = vrot.slane %v5791, 2
        %v5829 = vsel %vm1434, %v5827, %v5828
        %v5830 = vrot.slane %v5792, 2
        %v5831 = vrot.slane %v5793, 2
        %v5832 = vsel %vm1434, %v5830, %v5831
        %v5833 = vrot.slane %v5794, 2
        %v5834 = vrot.slane %v5795, 2
        %v5835 = vsel %vm1434, %v5833, %v5834
        %v5852 = vadd.f32 %v5764, %v5814
        %v5853 = vadd.f32 %v5765, %v5813
        %v5854 = vadd.f32 %v5766, %v5817
        %v5855 = vadd.f32 %v5767, %v5816
        %v5856 = vadd.f32 %v5768, %v5820
        %v5857 = vadd.f32 %v5769, %v5819
        %v5858 = vadd.f32 %v5770, %v5823
        %v5859 = vadd.f32 %v5771, %v5822
        %v5860 = vadd.f32 %v5772, %v5826
        %v5861 = vadd.f32 %v5773, %v5825
        %v5862 = vadd.f32 %v5774, %v5829
        %v5863 = vadd.f32 %v5775, %v5828
        %v5864 = vadd.f32 %v5776, %v5832
        %v5865 = vadd.f32 %v5777, %v5831
        %v5866 = vadd.f32 %v5778, %v5835
        %v5867 = vadd.f32 %v5779, %v5834
        %v5868 = vmul.f32 %v4577, %v1862
        %v5869 = vmul.f32 %v4578, %v1862
        %v5870 = vmul.f32 %v4580, %v1862
        %v5871 = vmul.f32 %v4581, %v1862
        %v5872 = vmul.f32 %v4583, %v1862
        %v5873 = vmul.f32 %v4584, %v1862
        %v5874 = vmul.f32 %v4586, %v1862
        %v5875 = vmul.f32 %v4587, %v1862
        %v5876 = vmul.f32 %v4589, %v1862
        %v5877 = vmul.f32 %v4590, %v1862
        %v5878 = vmul.f32 %v4592, %v1862
        %v5879 = vmul.f32 %v4593, %v1862
        %v5880 = vmul.f32 %v4595, %v1862
        %v5881 = vmul.f32 %v4596, %v1862
        %v5882 = vmul.f32 %v4598, %v1862
        %v5883 = vmul.f32 %v4599, %v1862
        %v5900 = vrot.slane %v5868, 2
        %v5901 = vrot.slane %v5869, 2
        %v5902 = vsel %vm1434, %v5900, %v5901
        %v5903 = vrot.slane %v5870, 2
        %v5904 = vrot.slane %v5871, 2
        %v5905 = vsel %vm1434, %v5903, %v5904
        %v5906 = vrot.slane %v5872, 2
        %v5907 = vrot.slane %v5873, 2
        %v5908 = vsel %vm1434, %v5906, %v5907
        %v5909 = vrot.slane %v5874, 2
        %v5910 = vrot.slane %v5875, 2
        %v5911 = vsel %vm1434, %v5909, %v5910
        %v5912 = vrot.slane %v5876, 2
        %v5913 = vrot.slane %v5877, 2
        %v5914 = vsel %vm1434, %v5912, %v5913
        %v5915 = vrot.slane %v5878, 2
        %v5916 = vrot.slane %v5879, 2
        %v5917 = vsel %vm1434, %v5915, %v5916
        %v5918 = vrot.slane %v5880, 2
        %v5919 = vrot.slane %v5881, 2
        %v5920 = vsel %vm1434, %v5918, %v5919
        %v5921 = vrot.slane %v5882, 2
        %v5922 = vrot.slane %v5883, 2
        %v5923 = vsel %vm1434, %v5921, %v5922
        %v5940 = vadd.f32 %v5852, %v5902
        %v5941 = vadd.f32 %v5853, %v5901
        %v5942 = vadd.f32 %v5854, %v5905
        %v5943 = vadd.f32 %v5855, %v5904
        %v5944 = vadd.f32 %v5856, %v5908
        %v5945 = vadd.f32 %v5857, %v5907
        %v5946 = vadd.f32 %v5858, %v5911
        %v5947 = vadd.f32 %v5859, %v5910
        %v5948 = vadd.f32 %v5860, %v5914
        %v5949 = vadd.f32 %v5861, %v5913
        %v5950 = vadd.f32 %v5862, %v5917
        %v5951 = vadd.f32 %v5863, %v5916
        %v5952 = vadd.f32 %v5864, %v5920
        %v5953 = vadd.f32 %v5865, %v5919
        %v5954 = vadd.f32 %v5866, %v5923
        %v5955 = vadd.f32 %v5867, %v5922
        %v5956 = vmul.f32 %v4580, %v1954
        %v5957 = vmul.f32 %v4581, %v1954
        %v5958 = vmul.f32 %v4583, %v1954
        %v5959 = vmul.f32 %v4584, %v1954
        %v5960 = vmul.f32 %v4586, %v1954
        %v5961 = vmul.f32 %v4587, %v1954
        %v5962 = vmul.f32 %v4589, %v1954
        %v5963 = vmul.f32 %v4590, %v1954
        %v5964 = vmul.f32 %v4592, %v1954
        %v5965 = vmul.f32 %v4593, %v1954
        %v5966 = vmul.f32 %v4595, %v1954
        %v5967 = vmul.f32 %v4596, %v1954
        %v5968 = vmul.f32 %v4598, %v1954
        %v5969 = vmul.f32 %v4599, %v1954
        %v5970 = vmul.f32 %v4601, %v1954
        %v5971 = vmul.f32 %v4602, %v1954
        %v5988 = vrot.slane %v5956, 2
        %v5989 = vrot.slane %v5957, 2
        %v5990 = vsel %vm1434, %v5988, %v5989
        %v5991 = vrot.slane %v5958, 2
        %v5992 = vrot.slane %v5959, 2
        %v5993 = vsel %vm1434, %v5991, %v5992
        %v5994 = vrot.slane %v5960, 2
        %v5995 = vrot.slane %v5961, 2
        %v5996 = vsel %vm1434, %v5994, %v5995
        %v5997 = vrot.slane %v5962, 2
        %v5998 = vrot.slane %v5963, 2
        %v5999 = vsel %vm1434, %v5997, %v5998
        %v6000 = vrot.slane %v5964, 2
        %v6001 = vrot.slane %v5965, 2
        %v6002 = vsel %vm1434, %v6000, %v6001
        %v6003 = vrot.slane %v5966, 2
        %v6004 = vrot.slane %v5967, 2
        %v6005 = vsel %vm1434, %v6003, %v6004
        %v6006 = vrot.slane %v5968, 2
        %v6007 = vrot.slane %v5969, 2
        %v6008 = vsel %vm1434, %v6006, %v6007
        %v6009 = vrot.slane %v5970, 2
        %v6010 = vrot.slane %v5971, 2
        %v6011 = vsel %vm1434, %v6009, %v6010
        %v6028 = vadd.f32 %v5940, %v5990
        %v6029 = vadd.f32 %v5941, %v5989
        %v6030 = vadd.f32 %v5942, %v5993
        %v6031 = vadd.f32 %v5943, %v5992
        %v6032 = vadd.f32 %v5944, %v5996
        %v6033 = vadd.f32 %v5945, %v5995
        %v6034 = vadd.f32 %v5946, %v5999
        %v6035 = vadd.f32 %v5947, %v5998
        %v6036 = vadd.f32 %v5948, %v6002
        %v6037 = vadd.f32 %v5949, %v6001
        %v6038 = vadd.f32 %v5950, %v6005
        %v6039 = vadd.f32 %v5951, %v6004
        %v6040 = vadd.f32 %v5952, %v6008
        %v6041 = vadd.f32 %v5953, %v6007
        %v6042 = vadd.f32 %v5954, %v6011
        %v6043 = vadd.f32 %v5955, %v6010
        %v6044 = vmul.f32 %v4563, %v2046
        %v6045 = vmul.f32 %v4566, %v2046
        %v6046 = vmul.f32 %v4569, %v2046
        %v6047 = vmul.f32 %v4572, %v2046
        %v6048 = vmul.f32 %v4575, %v2046
        %v6049 = vmul.f32 %v4578, %v2046
        %v6050 = vmul.f32 %v4581, %v2046
        %v6051 = vmul.f32 %v4584, %v2046
        %v6060 = vrot.slane %v6044, 3
        %v6061 = vrot.slane %v6045, 3
        %v6062 = vrot.slane %v6046, 3
        %v6063 = vrot.slane %v6047, 3
        %v6064 = vrot.slane %v6048, 3
        %v6065 = vrot.slane %v6049, 3
        %v6066 = vrot.slane %v6050, 3
        %v6067 = vrot.slane %v6051, 3
        %v6076 = vadd.f32 %v6028, %v6060
        %v6077 = vadd.f32 %v6029, %v6060
        %v6078 = vadd.f32 %v6030, %v6061
        %v6079 = vadd.f32 %v6031, %v6061
        %v6080 = vadd.f32 %v6032, %v6062
        %v6081 = vadd.f32 %v6033, %v6062
        %v6082 = vadd.f32 %v6034, %v6063
        %v6083 = vadd.f32 %v6035, %v6063
        %v6084 = vadd.f32 %v6036, %v6064
        %v6085 = vadd.f32 %v6037, %v6064
        %v6086 = vadd.f32 %v6038, %v6065
        %v6087 = vadd.f32 %v6039, %v6065
        %v6088 = vadd.f32 %v6040, %v6066
        %v6089 = vadd.f32 %v6041, %v6066
        %v6090 = vadd.f32 %v6042, %v6067
        %v6091 = vadd.f32 %v6043, %v6067
        %v6092 = vmul.f32 %v4566, %v2098
        %v6093 = vmul.f32 %v4569, %v2098
        %v6094 = vmul.f32 %v4572, %v2098
        %v6095 = vmul.f32 %v4575, %v2098
        %v6096 = vmul.f32 %v4578, %v2098
        %v6097 = vmul.f32 %v4581, %v2098
        %v6098 = vmul.f32 %v4584, %v2098
        %v6099 = vmul.f32 %v4587, %v2098
        %v6108 = vrot.slane %v6092, 3
        %v6109 = vrot.slane %v6093, 3
        %v6110 = vrot.slane %v6094, 3
        %v6111 = vrot.slane %v6095, 3
        %v6112 = vrot.slane %v6096, 3
        %v6113 = vrot.slane %v6097, 3
        %v6114 = vrot.slane %v6098, 3
        %v6115 = vrot.slane %v6099, 3
        %v6124 = vadd.f32 %v6076, %v6108
        %v6125 = vadd.f32 %v6077, %v6108
        %v6126 = vadd.f32 %v6078, %v6109
        %v6127 = vadd.f32 %v6079, %v6109
        %v6128 = vadd.f32 %v6080, %v6110
        %v6129 = vadd.f32 %v6081, %v6110
        %v6130 = vadd.f32 %v6082, %v6111
        %v6131 = vadd.f32 %v6083, %v6111
        %v6132 = vadd.f32 %v6084, %v6112
        %v6133 = vadd.f32 %v6085, %v6112
        %v6134 = vadd.f32 %v6086, %v6113
        %v6135 = vadd.f32 %v6087, %v6113
        %v6136 = vadd.f32 %v6088, %v6114
        %v6137 = vadd.f32 %v6089, %v6114
        %v6138 = vadd.f32 %v6090, %v6115
        %v6139 = vadd.f32 %v6091, %v6115
        %v6140 = vmul.f32 %v4569, %v2150
        %v6141 = vmul.f32 %v4572, %v2150
        %v6142 = vmul.f32 %v4575, %v2150
        %v6143 = vmul.f32 %v4578, %v2150
        %v6144 = vmul.f32 %v4581, %v2150
        %v6145 = vmul.f32 %v4584, %v2150
        %v6146 = vmul.f32 %v4587, %v2150
        %v6147 = vmul.f32 %v4590, %v2150
        %v6156 = vrot.slane %v6140, 3
        %v6157 = vrot.slane %v6141, 3
        %v6158 = vrot.slane %v6142, 3
        %v6159 = vrot.slane %v6143, 3
        %v6160 = vrot.slane %v6144, 3
        %v6161 = vrot.slane %v6145, 3
        %v6162 = vrot.slane %v6146, 3
        %v6163 = vrot.slane %v6147, 3
        %v6172 = vadd.f32 %v6124, %v6156
        %v6173 = vadd.f32 %v6125, %v6156
        %v6174 = vadd.f32 %v6126, %v6157
        %v6175 = vadd.f32 %v6127, %v6157
        %v6176 = vadd.f32 %v6128, %v6158
        %v6177 = vadd.f32 %v6129, %v6158
        %v6178 = vadd.f32 %v6130, %v6159
        %v6179 = vadd.f32 %v6131, %v6159
        %v6180 = vadd.f32 %v6132, %v6160
        %v6181 = vadd.f32 %v6133, %v6160
        %v6182 = vadd.f32 %v6134, %v6161
        %v6183 = vadd.f32 %v6135, %v6161
        %v6184 = vadd.f32 %v6136, %v6162
        %v6185 = vadd.f32 %v6137, %v6162
        %v6186 = vadd.f32 %v6138, %v6163
        %v6187 = vadd.f32 %v6139, %v6163
        %v6188 = vmul.f32 %v4572, %v2202
        %v6189 = vmul.f32 %v4575, %v2202
        %v6190 = vmul.f32 %v4578, %v2202
        %v6191 = vmul.f32 %v4581, %v2202
        %v6192 = vmul.f32 %v4584, %v2202
        %v6193 = vmul.f32 %v4587, %v2202
        %v6194 = vmul.f32 %v4590, %v2202
        %v6195 = vmul.f32 %v4593, %v2202
        %v6204 = vrot.slane %v6188, 3
        %v6205 = vrot.slane %v6189, 3
        %v6206 = vrot.slane %v6190, 3
        %v6207 = vrot.slane %v6191, 3
        %v6208 = vrot.slane %v6192, 3
        %v6209 = vrot.slane %v6193, 3
        %v6210 = vrot.slane %v6194, 3
        %v6211 = vrot.slane %v6195, 3
        %v6220 = vadd.f32 %v6172, %v6204
        %v6221 = vadd.f32 %v6173, %v6204
        %v6222 = vadd.f32 %v6174, %v6205
        %v6223 = vadd.f32 %v6175, %v6205
        %v6224 = vadd.f32 %v6176, %v6206
        %v6225 = vadd.f32 %v6177, %v6206
        %v6226 = vadd.f32 %v6178, %v6207
        %v6227 = vadd.f32 %v6179, %v6207
        %v6228 = vadd.f32 %v6180, %v6208
        %v6229 = vadd.f32 %v6181, %v6208
        %v6230 = vadd.f32 %v6182, %v6209
        %v6231 = vadd.f32 %v6183, %v6209
        %v6232 = vadd.f32 %v6184, %v6210
        %v6233 = vadd.f32 %v6185, %v6210
        %v6234 = vadd.f32 %v6186, %v6211
        %v6235 = vadd.f32 %v6187, %v6211
        %v6236 = vmul.f32 %v4575, %v2254
        %v6237 = vmul.f32 %v4578, %v2254
        %v6238 = vmul.f32 %v4581, %v2254
        %v6239 = vmul.f32 %v4584, %v2254
        %v6240 = vmul.f32 %v4587, %v2254
        %v6241 = vmul.f32 %v4590, %v2254
        %v6242 = vmul.f32 %v4593, %v2254
        %v6243 = vmul.f32 %v4596, %v2254
        %v6252 = vrot.slane %v6236, 3
        %v6253 = vrot.slane %v6237, 3
        %v6254 = vrot.slane %v6238, 3
        %v6255 = vrot.slane %v6239, 3
        %v6256 = vrot.slane %v6240, 3
        %v6257 = vrot.slane %v6241, 3
        %v6258 = vrot.slane %v6242, 3
        %v6259 = vrot.slane %v6243, 3
        %v6268 = vadd.f32 %v6220, %v6252
        %v6269 = vadd.f32 %v6221, %v6252
        %v6270 = vadd.f32 %v6222, %v6253
        %v6271 = vadd.f32 %v6223, %v6253
        %v6272 = vadd.f32 %v6224, %v6254
        %v6273 = vadd.f32 %v6225, %v6254
        %v6274 = vadd.f32 %v6226, %v6255
        %v6275 = vadd.f32 %v6227, %v6255
        %v6276 = vadd.f32 %v6228, %v6256
        %v6277 = vadd.f32 %v6229, %v6256
        %v6278 = vadd.f32 %v6230, %v6257
        %v6279 = vadd.f32 %v6231, %v6257
        %v6280 = vadd.f32 %v6232, %v6258
        %v6281 = vadd.f32 %v6233, %v6258
        %v6282 = vadd.f32 %v6234, %v6259
        %v6283 = vadd.f32 %v6235, %v6259
        %v6284 = vmul.f32 %v4578, %v2306
        %v6285 = vmul.f32 %v4581, %v2306
        %v6286 = vmul.f32 %v4584, %v2306
        %v6287 = vmul.f32 %v4587, %v2306
        %v6288 = vmul.f32 %v4590, %v2306
        %v6289 = vmul.f32 %v4593, %v2306
        %v6290 = vmul.f32 %v4596, %v2306
        %v6291 = vmul.f32 %v4599, %v2306
        %v6300 = vrot.slane %v6284, 3
        %v6301 = vrot.slane %v6285, 3
        %v6302 = vrot.slane %v6286, 3
        %v6303 = vrot.slane %v6287, 3
        %v6304 = vrot.slane %v6288, 3
        %v6305 = vrot.slane %v6289, 3
        %v6306 = vrot.slane %v6290, 3
        %v6307 = vrot.slane %v6291, 3
        %v6316 = vadd.f32 %v6268, %v6300
        %v6317 = vadd.f32 %v6269, %v6300
        %v6318 = vadd.f32 %v6270, %v6301
        %v6319 = vadd.f32 %v6271, %v6301
        %v6320 = vadd.f32 %v6272, %v6302
        %v6321 = vadd.f32 %v6273, %v6302
        %v6322 = vadd.f32 %v6274, %v6303
        %v6323 = vadd.f32 %v6275, %v6303
        %v6324 = vadd.f32 %v6276, %v6304
        %v6325 = vadd.f32 %v6277, %v6304
        %v6326 = vadd.f32 %v6278, %v6305
        %v6327 = vadd.f32 %v6279, %v6305
        %v6328 = vadd.f32 %v6280, %v6306
        %v6329 = vadd.f32 %v6281, %v6306
        %v6330 = vadd.f32 %v6282, %v6307
        %v6331 = vadd.f32 %v6283, %v6307
        %v6332 = vmul.f32 %v4581, %v2358
        %v6333 = vmul.f32 %v4584, %v2358
        %v6334 = vmul.f32 %v4587, %v2358
        %v6335 = vmul.f32 %v4590, %v2358
        %v6336 = vmul.f32 %v4593, %v2358
        %v6337 = vmul.f32 %v4596, %v2358
        %v6338 = vmul.f32 %v4599, %v2358
        %v6339 = vmul.f32 %v4602, %v2358
        %v6348 = vrot.slane %v6332, 3
        %v6349 = vrot.slane %v6333, 3
        %v6350 = vrot.slane %v6334, 3
        %v6351 = vrot.slane %v6335, 3
        %v6352 = vrot.slane %v6336, 3
        %v6353 = vrot.slane %v6337, 3
        %v6354 = vrot.slane %v6338, 3
        %v6355 = vrot.slane %v6339, 3
        %v6364 = vadd.f32 %v6316, %v6348
        %v6365 = vadd.f32 %v6317, %v6348
        %v6366 = vadd.f32 %v6318, %v6349
        %v6367 = vadd.f32 %v6319, %v6349
        %v6368 = vadd.f32 %v6320, %v6350
        %v6369 = vadd.f32 %v6321, %v6350
        %v6370 = vadd.f32 %v6322, %v6351
        %v6371 = vadd.f32 %v6323, %v6351
        %v6372 = vadd.f32 %v6324, %v6352
        %v6373 = vadd.f32 %v6325, %v6352
        %v6374 = vadd.f32 %v6326, %v6353
        %v6375 = vadd.f32 %v6327, %v6353
        %v6376 = vadd.f32 %v6328, %v6354
        %v6377 = vadd.f32 %v6329, %v6354
        %v6378 = vadd.f32 %v6330, %v6355
        %v6379 = vadd.f32 %v6331, %v6355
        %v6380 = vmul.f32 %v4563, %v2410
        %v6381 = vmul.f32 %v4564, %v2410
        %v6382 = vmul.f32 %v4566, %v2410
        %v6383 = vmul.f32 %v4567, %v2410
        %v6384 = vmul.f32 %v4569, %v2410
        %v6385 = vmul.f32 %v4570, %v2410
        %v6386 = vmul.f32 %v4572, %v2410
        %v6387 = vmul.f32 %v4573, %v2410
        %v6388 = vmul.f32 %v4575, %v2410
        %v6389 = vmul.f32 %v4576, %v2410
        %v6390 = vmul.f32 %v4578, %v2410
        %v6391 = vmul.f32 %v4579, %v2410
        %v6392 = vmul.f32 %v4581, %v2410
        %v6393 = vmul.f32 %v4582, %v2410
        %v6394 = vmul.f32 %v4584, %v2410
        %v6395 = vmul.f32 %v4585, %v2410
        %v6412 = vrot.slane %v6380, 4
        %v6413 = vrot.slane %v6381, 4
        %v6414 = vsel %vm2443, %v6412, %v6413
        %v6415 = vrot.slane %v6382, 4
        %v6416 = vrot.slane %v6383, 4
        %v6417 = vsel %vm2443, %v6415, %v6416
        %v6418 = vrot.slane %v6384, 4
        %v6419 = vrot.slane %v6385, 4
        %v6420 = vsel %vm2443, %v6418, %v6419
        %v6421 = vrot.slane %v6386, 4
        %v6422 = vrot.slane %v6387, 4
        %v6423 = vsel %vm2443, %v6421, %v6422
        %v6424 = vrot.slane %v6388, 4
        %v6425 = vrot.slane %v6389, 4
        %v6426 = vsel %vm2443, %v6424, %v6425
        %v6427 = vrot.slane %v6390, 4
        %v6428 = vrot.slane %v6391, 4
        %v6429 = vsel %vm2443, %v6427, %v6428
        %v6430 = vrot.slane %v6392, 4
        %v6431 = vrot.slane %v6393, 4
        %v6432 = vsel %vm2443, %v6430, %v6431
        %v6433 = vrot.slane %v6394, 4
        %v6434 = vrot.slane %v6395, 4
        %v6435 = vsel %vm2443, %v6433, %v6434
        %v6452 = vadd.f32 %v6364, %v6412
        %v6453 = vadd.f32 %v6365, %v6414
        %v6454 = vadd.f32 %v6366, %v6415
        %v6455 = vadd.f32 %v6367, %v6417
        %v6456 = vadd.f32 %v6368, %v6418
        %v6457 = vadd.f32 %v6369, %v6420
        %v6458 = vadd.f32 %v6370, %v6421
        %v6459 = vadd.f32 %v6371, %v6423
        %v6460 = vadd.f32 %v6372, %v6424
        %v6461 = vadd.f32 %v6373, %v6426
        %v6462 = vadd.f32 %v6374, %v6427
        %v6463 = vadd.f32 %v6375, %v6429
        %v6464 = vadd.f32 %v6376, %v6430
        %v6465 = vadd.f32 %v6377, %v6432
        %v6466 = vadd.f32 %v6378, %v6433
        %v6467 = vadd.f32 %v6379, %v6435
        %v6468 = vmul.f32 %v4566, %v2503
        %v6469 = vmul.f32 %v4567, %v2503
        %v6470 = vmul.f32 %v4569, %v2503
        %v6471 = vmul.f32 %v4570, %v2503
        %v6472 = vmul.f32 %v4572, %v2503
        %v6473 = vmul.f32 %v4573, %v2503
        %v6474 = vmul.f32 %v4575, %v2503
        %v6475 = vmul.f32 %v4576, %v2503
        %v6476 = vmul.f32 %v4578, %v2503
        %v6477 = vmul.f32 %v4579, %v2503
        %v6478 = vmul.f32 %v4581, %v2503
        %v6479 = vmul.f32 %v4582, %v2503
        %v6480 = vmul.f32 %v4584, %v2503
        %v6481 = vmul.f32 %v4585, %v2503
        %v6482 = vmul.f32 %v4587, %v2503
        %v6483 = vmul.f32 %v4588, %v2503
        %v6500 = vrot.slane %v6468, 4
        %v6501 = vrot.slane %v6469, 4
        %v6502 = vsel %vm2443, %v6500, %v6501
        %v6503 = vrot.slane %v6470, 4
        %v6504 = vrot.slane %v6471, 4
        %v6505 = vsel %vm2443, %v6503, %v6504
        %v6506 = vrot.slane %v6472, 4
        %v6507 = vrot.slane %v6473, 4
        %v6508 = vsel %vm2443, %v6506, %v6507
        %v6509 = vrot.slane %v6474, 4
        %v6510 = vrot.slane %v6475, 4
        %v6511 = vsel %vm2443, %v6509, %v6510
        %v6512 = vrot.slane %v6476, 4
        %v6513 = vrot.slane %v6477, 4
        %v6514 = vsel %vm2443, %v6512, %v6513
        %v6515 = vrot.slane %v6478, 4
        %v6516 = vrot.slane %v6479, 4
        %v6517 = vsel %vm2443, %v6515, %v6516
        %v6518 = vrot.slane %v6480, 4
        %v6519 = vrot.slane %v6481, 4
        %v6520 = vsel %vm2443, %v6518, %v6519
        %v6521 = vrot.slane %v6482, 4
        %v6522 = vrot.slane %v6483, 4
        %v6523 = vsel %vm2443, %v6521, %v6522
        %v6540 = vadd.f32 %v6452, %v6500
        %v6541 = vadd.f32 %v6453, %v6502
        %v6542 = vadd.f32 %v6454, %v6503
        %v6543 = vadd.f32 %v6455, %v6505
        %v6544 = vadd.f32 %v6456, %v6506
        %v6545 = vadd.f32 %v6457, %v6508
        %v6546 = vadd.f32 %v6458, %v6509
        %v6547 = vadd.f32 %v6459, %v6511
        %v6548 = vadd.f32 %v6460, %v6512
        %v6549 = vadd.f32 %v6461, %v6514
        %v6550 = vadd.f32 %v6462, %v6515
        %v6551 = vadd.f32 %v6463, %v6517
        %v6552 = vadd.f32 %v6464, %v6518
        %v6553 = vadd.f32 %v6465, %v6520
        %v6554 = vadd.f32 %v6466, %v6521
        %v6555 = vadd.f32 %v6467, %v6523
        %v6556 = vmul.f32 %v4569, %v2595
        %v6557 = vmul.f32 %v4570, %v2595
        %v6558 = vmul.f32 %v4572, %v2595
        %v6559 = vmul.f32 %v4573, %v2595
        %v6560 = vmul.f32 %v4575, %v2595
        %v6561 = vmul.f32 %v4576, %v2595
        %v6562 = vmul.f32 %v4578, %v2595
        %v6563 = vmul.f32 %v4579, %v2595
        %v6564 = vmul.f32 %v4581, %v2595
        %v6565 = vmul.f32 %v4582, %v2595
        %v6566 = vmul.f32 %v4584, %v2595
        %v6567 = vmul.f32 %v4585, %v2595
        %v6568 = vmul.f32 %v4587, %v2595
        %v6569 = vmul.f32 %v4588, %v2595
        %v6570 = vmul.f32 %v4590, %v2595
        %v6571 = vmul.f32 %v4591, %v2595
        %v6588 = vrot.slane %v6556, 4
        %v6589 = vrot.slane %v6557, 4
        %v6590 = vsel %vm2443, %v6588, %v6589
        %v6591 = vrot.slane %v6558, 4
        %v6592 = vrot.slane %v6559, 4
        %v6593 = vsel %vm2443, %v6591, %v6592
        %v6594 = vrot.slane %v6560, 4
        %v6595 = vrot.slane %v6561, 4
        %v6596 = vsel %vm2443, %v6594, %v6595
        %v6597 = vrot.slane %v6562, 4
        %v6598 = vrot.slane %v6563, 4
        %v6599 = vsel %vm2443, %v6597, %v6598
        %v6600 = vrot.slane %v6564, 4
        %v6601 = vrot.slane %v6565, 4
        %v6602 = vsel %vm2443, %v6600, %v6601
        %v6603 = vrot.slane %v6566, 4
        %v6604 = vrot.slane %v6567, 4
        %v6605 = vsel %vm2443, %v6603, %v6604
        %v6606 = vrot.slane %v6568, 4
        %v6607 = vrot.slane %v6569, 4
        %v6608 = vsel %vm2443, %v6606, %v6607
        %v6609 = vrot.slane %v6570, 4
        %v6610 = vrot.slane %v6571, 4
        %v6611 = vsel %vm2443, %v6609, %v6610
        %v6628 = vadd.f32 %v6540, %v6588
        %v6629 = vadd.f32 %v6541, %v6590
        %v6630 = vadd.f32 %v6542, %v6591
        %v6631 = vadd.f32 %v6543, %v6593
        %v6632 = vadd.f32 %v6544, %v6594
        %v6633 = vadd.f32 %v6545, %v6596
        %v6634 = vadd.f32 %v6546, %v6597
        %v6635 = vadd.f32 %v6547, %v6599
        %v6636 = vadd.f32 %v6548, %v6600
        %v6637 = vadd.f32 %v6549, %v6602
        %v6638 = vadd.f32 %v6550, %v6603
        %v6639 = vadd.f32 %v6551, %v6605
        %v6640 = vadd.f32 %v6552, %v6606
        %v6641 = vadd.f32 %v6553, %v6608
        %v6642 = vadd.f32 %v6554, %v6609
        %v6643 = vadd.f32 %v6555, %v6611
        %v6644 = vmul.f32 %v4572, %v2687
        %v6645 = vmul.f32 %v4573, %v2687
        %v6646 = vmul.f32 %v4575, %v2687
        %v6647 = vmul.f32 %v4576, %v2687
        %v6648 = vmul.f32 %v4578, %v2687
        %v6649 = vmul.f32 %v4579, %v2687
        %v6650 = vmul.f32 %v4581, %v2687
        %v6651 = vmul.f32 %v4582, %v2687
        %v6652 = vmul.f32 %v4584, %v2687
        %v6653 = vmul.f32 %v4585, %v2687
        %v6654 = vmul.f32 %v4587, %v2687
        %v6655 = vmul.f32 %v4588, %v2687
        %v6656 = vmul.f32 %v4590, %v2687
        %v6657 = vmul.f32 %v4591, %v2687
        %v6658 = vmul.f32 %v4593, %v2687
        %v6659 = vmul.f32 %v4594, %v2687
        %v6676 = vrot.slane %v6644, 4
        %v6677 = vrot.slane %v6645, 4
        %v6678 = vsel %vm2443, %v6676, %v6677
        %v6679 = vrot.slane %v6646, 4
        %v6680 = vrot.slane %v6647, 4
        %v6681 = vsel %vm2443, %v6679, %v6680
        %v6682 = vrot.slane %v6648, 4
        %v6683 = vrot.slane %v6649, 4
        %v6684 = vsel %vm2443, %v6682, %v6683
        %v6685 = vrot.slane %v6650, 4
        %v6686 = vrot.slane %v6651, 4
        %v6687 = vsel %vm2443, %v6685, %v6686
        %v6688 = vrot.slane %v6652, 4
        %v6689 = vrot.slane %v6653, 4
        %v6690 = vsel %vm2443, %v6688, %v6689
        %v6691 = vrot.slane %v6654, 4
        %v6692 = vrot.slane %v6655, 4
        %v6693 = vsel %vm2443, %v6691, %v6692
        %v6694 = vrot.slane %v6656, 4
        %v6695 = vrot.slane %v6657, 4
        %v6696 = vsel %vm2443, %v6694, %v6695
        %v6697 = vrot.slane %v6658, 4
        %v6698 = vrot.slane %v6659, 4
        %v6699 = vsel %vm2443, %v6697, %v6698
        %v6716 = vadd.f32 %v6628, %v6676
        %v6717 = vadd.f32 %v6629, %v6678
        %v6718 = vadd.f32 %v6630, %v6679
        %v6719 = vadd.f32 %v6631, %v6681
        %v6720 = vadd.f32 %v6632, %v6682
        %v6721 = vadd.f32 %v6633, %v6684
        %v6722 = vadd.f32 %v6634, %v6685
        %v6723 = vadd.f32 %v6635, %v6687
        %v6724 = vadd.f32 %v6636, %v6688
        %v6725 = vadd.f32 %v6637, %v6690
        %v6726 = vadd.f32 %v6638, %v6691
        %v6727 = vadd.f32 %v6639, %v6693
        %v6728 = vadd.f32 %v6640, %v6694
        %v6729 = vadd.f32 %v6641, %v6696
        %v6730 = vadd.f32 %v6642, %v6697
        %v6731 = vadd.f32 %v6643, %v6699
        %v6732 = vmul.f32 %v4575, %v2779
        %v6733 = vmul.f32 %v4576, %v2779
        %v6734 = vmul.f32 %v4578, %v2779
        %v6735 = vmul.f32 %v4579, %v2779
        %v6736 = vmul.f32 %v4581, %v2779
        %v6737 = vmul.f32 %v4582, %v2779
        %v6738 = vmul.f32 %v4584, %v2779
        %v6739 = vmul.f32 %v4585, %v2779
        %v6740 = vmul.f32 %v4587, %v2779
        %v6741 = vmul.f32 %v4588, %v2779
        %v6742 = vmul.f32 %v4590, %v2779
        %v6743 = vmul.f32 %v4591, %v2779
        %v6744 = vmul.f32 %v4593, %v2779
        %v6745 = vmul.f32 %v4594, %v2779
        %v6746 = vmul.f32 %v4596, %v2779
        %v6747 = vmul.f32 %v4597, %v2779
        %v6764 = vrot.slane %v6732, 4
        %v6765 = vrot.slane %v6733, 4
        %v6766 = vsel %vm2443, %v6764, %v6765
        %v6767 = vrot.slane %v6734, 4
        %v6768 = vrot.slane %v6735, 4
        %v6769 = vsel %vm2443, %v6767, %v6768
        %v6770 = vrot.slane %v6736, 4
        %v6771 = vrot.slane %v6737, 4
        %v6772 = vsel %vm2443, %v6770, %v6771
        %v6773 = vrot.slane %v6738, 4
        %v6774 = vrot.slane %v6739, 4
        %v6775 = vsel %vm2443, %v6773, %v6774
        %v6776 = vrot.slane %v6740, 4
        %v6777 = vrot.slane %v6741, 4
        %v6778 = vsel %vm2443, %v6776, %v6777
        %v6779 = vrot.slane %v6742, 4
        %v6780 = vrot.slane %v6743, 4
        %v6781 = vsel %vm2443, %v6779, %v6780
        %v6782 = vrot.slane %v6744, 4
        %v6783 = vrot.slane %v6745, 4
        %v6784 = vsel %vm2443, %v6782, %v6783
        %v6785 = vrot.slane %v6746, 4
        %v6786 = vrot.slane %v6747, 4
        %v6787 = vsel %vm2443, %v6785, %v6786
        %v6804 = vadd.f32 %v6716, %v6764
        %v6805 = vadd.f32 %v6717, %v6766
        %v6806 = vadd.f32 %v6718, %v6767
        %v6807 = vadd.f32 %v6719, %v6769
        %v6808 = vadd.f32 %v6720, %v6770
        %v6809 = vadd.f32 %v6721, %v6772
        %v6810 = vadd.f32 %v6722, %v6773
        %v6811 = vadd.f32 %v6723, %v6775
        %v6812 = vadd.f32 %v6724, %v6776
        %v6813 = vadd.f32 %v6725, %v6778
        %v6814 = vadd.f32 %v6726, %v6779
        %v6815 = vadd.f32 %v6727, %v6781
        %v6816 = vadd.f32 %v6728, %v6782
        %v6817 = vadd.f32 %v6729, %v6784
        %v6818 = vadd.f32 %v6730, %v6785
        %v6819 = vadd.f32 %v6731, %v6787
        %v6820 = vmul.f32 %v4578, %v2871
        %v6821 = vmul.f32 %v4579, %v2871
        %v6822 = vmul.f32 %v4581, %v2871
        %v6823 = vmul.f32 %v4582, %v2871
        %v6824 = vmul.f32 %v4584, %v2871
        %v6825 = vmul.f32 %v4585, %v2871
        %v6826 = vmul.f32 %v4587, %v2871
        %v6827 = vmul.f32 %v4588, %v2871
        %v6828 = vmul.f32 %v4590, %v2871
        %v6829 = vmul.f32 %v4591, %v2871
        %v6830 = vmul.f32 %v4593, %v2871
        %v6831 = vmul.f32 %v4594, %v2871
        %v6832 = vmul.f32 %v4596, %v2871
        %v6833 = vmul.f32 %v4597, %v2871
        %v6834 = vmul.f32 %v4599, %v2871
        %v6835 = vmul.f32 %v4600, %v2871
        %v6852 = vrot.slane %v6820, 4
        %v6853 = vrot.slane %v6821, 4
        %v6854 = vsel %vm2443, %v6852, %v6853
        %v6855 = vrot.slane %v6822, 4
        %v6856 = vrot.slane %v6823, 4
        %v6857 = vsel %vm2443, %v6855, %v6856
        %v6858 = vrot.slane %v6824, 4
        %v6859 = vrot.slane %v6825, 4
        %v6860 = vsel %vm2443, %v6858, %v6859
        %v6861 = vrot.slane %v6826, 4
        %v6862 = vrot.slane %v6827, 4
        %v6863 = vsel %vm2443, %v6861, %v6862
        %v6864 = vrot.slane %v6828, 4
        %v6865 = vrot.slane %v6829, 4
        %v6866 = vsel %vm2443, %v6864, %v6865
        %v6867 = vrot.slane %v6830, 4
        %v6868 = vrot.slane %v6831, 4
        %v6869 = vsel %vm2443, %v6867, %v6868
        %v6870 = vrot.slane %v6832, 4
        %v6871 = vrot.slane %v6833, 4
        %v6872 = vsel %vm2443, %v6870, %v6871
        %v6873 = vrot.slane %v6834, 4
        %v6874 = vrot.slane %v6835, 4
        %v6875 = vsel %vm2443, %v6873, %v6874
        %v6892 = vadd.f32 %v6804, %v6852
        %v6893 = vadd.f32 %v6805, %v6854
        %v6894 = vadd.f32 %v6806, %v6855
        %v6895 = vadd.f32 %v6807, %v6857
        %v6896 = vadd.f32 %v6808, %v6858
        %v6897 = vadd.f32 %v6809, %v6860
        %v6898 = vadd.f32 %v6810, %v6861
        %v6899 = vadd.f32 %v6811, %v6863
        %v6900 = vadd.f32 %v6812, %v6864
        %v6901 = vadd.f32 %v6813, %v6866
        %v6902 = vadd.f32 %v6814, %v6867
        %v6903 = vadd.f32 %v6815, %v6869
        %v6904 = vadd.f32 %v6816, %v6870
        %v6905 = vadd.f32 %v6817, %v6872
        %v6906 = vadd.f32 %v6818, %v6873
        %v6907 = vadd.f32 %v6819, %v6875
        %v6908 = vmul.f32 %v4581, %v2963
        %v6909 = vmul.f32 %v4582, %v2963
        %v6910 = vmul.f32 %v4584, %v2963
        %v6911 = vmul.f32 %v4585, %v2963
        %v6912 = vmul.f32 %v4587, %v2963
        %v6913 = vmul.f32 %v4588, %v2963
        %v6914 = vmul.f32 %v4590, %v2963
        %v6915 = vmul.f32 %v4591, %v2963
        %v6916 = vmul.f32 %v4593, %v2963
        %v6917 = vmul.f32 %v4594, %v2963
        %v6918 = vmul.f32 %v4596, %v2963
        %v6919 = vmul.f32 %v4597, %v2963
        %v6920 = vmul.f32 %v4599, %v2963
        %v6921 = vmul.f32 %v4600, %v2963
        %v6922 = vmul.f32 %v4602, %v2963
        %v6923 = vmul.f32 %v4603, %v2963
        %v6940 = vrot.slane %v6908, 4
        %v6941 = vrot.slane %v6909, 4
        %v6942 = vsel %vm2443, %v6940, %v6941
        %v6943 = vrot.slane %v6910, 4
        %v6944 = vrot.slane %v6911, 4
        %v6945 = vsel %vm2443, %v6943, %v6944
        %v6946 = vrot.slane %v6912, 4
        %v6947 = vrot.slane %v6913, 4
        %v6948 = vsel %vm2443, %v6946, %v6947
        %v6949 = vrot.slane %v6914, 4
        %v6950 = vrot.slane %v6915, 4
        %v6951 = vsel %vm2443, %v6949, %v6950
        %v6952 = vrot.slane %v6916, 4
        %v6953 = vrot.slane %v6917, 4
        %v6954 = vsel %vm2443, %v6952, %v6953
        %v6955 = vrot.slane %v6918, 4
        %v6956 = vrot.slane %v6919, 4
        %v6957 = vsel %vm2443, %v6955, %v6956
        %v6958 = vrot.slane %v6920, 4
        %v6959 = vrot.slane %v6921, 4
        %v6960 = vsel %vm2443, %v6958, %v6959
        %v6961 = vrot.slane %v6922, 4
        %v6962 = vrot.slane %v6923, 4
        %v6963 = vsel %vm2443, %v6961, %v6962
        %v6980 = vadd.f32 %v6892, %v6940
        %v6981 = vadd.f32 %v6893, %v6942
        %v6982 = vadd.f32 %v6894, %v6943
        %v6983 = vadd.f32 %v6895, %v6945
        %v6984 = vadd.f32 %v6896, %v6946
        %v6985 = vadd.f32 %v6897, %v6948
        %v6986 = vadd.f32 %v6898, %v6949
        %v6987 = vadd.f32 %v6899, %v6951
        %v6988 = vadd.f32 %v6900, %v6952
        %v6989 = vadd.f32 %v6901, %v6954
        %v6990 = vadd.f32 %v6902, %v6955
        %v6991 = vadd.f32 %v6903, %v6957
        %v6992 = vadd.f32 %v6904, %v6958
        %v6993 = vadd.f32 %v6905, %v6960
        %v6994 = vadd.f32 %v6906, %v6961
        %v6995 = vadd.f32 %v6907, %v6963
        %v6996 = vmul.f32 %v4563, %v3055
        %v6997 = vmul.f32 %v4564, %v3055
        %v6998 = vmul.f32 %v4566, %v3055
        %v6999 = vmul.f32 %v4567, %v3055
        %v7000 = vmul.f32 %v4569, %v3055
        %v7001 = vmul.f32 %v4570, %v3055
        %v7002 = vmul.f32 %v4572, %v3055
        %v7003 = vmul.f32 %v4573, %v3055
        %v7004 = vmul.f32 %v4575, %v3055
        %v7005 = vmul.f32 %v4576, %v3055
        %v7006 = vmul.f32 %v4578, %v3055
        %v7007 = vmul.f32 %v4579, %v3055
        %v7008 = vmul.f32 %v4581, %v3055
        %v7009 = vmul.f32 %v4582, %v3055
        %v7010 = vmul.f32 %v4584, %v3055
        %v7011 = vmul.f32 %v4585, %v3055
        %v7028 = vrot.slane %v6996, 5
        %v7029 = vrot.slane %v6997, 5
        %v7030 = vsel %vm3088, %v7028, %v7029
        %v7031 = vrot.slane %v6998, 5
        %v7032 = vrot.slane %v6999, 5
        %v7033 = vsel %vm3088, %v7031, %v7032
        %v7034 = vrot.slane %v7000, 5
        %v7035 = vrot.slane %v7001, 5
        %v7036 = vsel %vm3088, %v7034, %v7035
        %v7037 = vrot.slane %v7002, 5
        %v7038 = vrot.slane %v7003, 5
        %v7039 = vsel %vm3088, %v7037, %v7038
        %v7040 = vrot.slane %v7004, 5
        %v7041 = vrot.slane %v7005, 5
        %v7042 = vsel %vm3088, %v7040, %v7041
        %v7043 = vrot.slane %v7006, 5
        %v7044 = vrot.slane %v7007, 5
        %v7045 = vsel %vm3088, %v7043, %v7044
        %v7046 = vrot.slane %v7008, 5
        %v7047 = vrot.slane %v7009, 5
        %v7048 = vsel %vm3088, %v7046, %v7047
        %v7049 = vrot.slane %v7010, 5
        %v7050 = vrot.slane %v7011, 5
        %v7051 = vsel %vm3088, %v7049, %v7050
        %v7068 = vadd.f32 %v6980, %v7028
        %v7069 = vadd.f32 %v6981, %v7030
        %v7070 = vadd.f32 %v6982, %v7031
        %v7071 = vadd.f32 %v6983, %v7033
        %v7072 = vadd.f32 %v6984, %v7034
        %v7073 = vadd.f32 %v6985, %v7036
        %v7074 = vadd.f32 %v6986, %v7037
        %v7075 = vadd.f32 %v6987, %v7039
        %v7076 = vadd.f32 %v6988, %v7040
        %v7077 = vadd.f32 %v6989, %v7042
        %v7078 = vadd.f32 %v6990, %v7043
        %v7079 = vadd.f32 %v6991, %v7045
        %v7080 = vadd.f32 %v6992, %v7046
        %v7081 = vadd.f32 %v6993, %v7048
        %v7082 = vadd.f32 %v6994, %v7049
        %v7083 = vadd.f32 %v6995, %v7051
        %v7084 = vmul.f32 %v4566, %v3148
        %v7085 = vmul.f32 %v4567, %v3148
        %v7086 = vmul.f32 %v4569, %v3148
        %v7087 = vmul.f32 %v4570, %v3148
        %v7088 = vmul.f32 %v4572, %v3148
        %v7089 = vmul.f32 %v4573, %v3148
        %v7090 = vmul.f32 %v4575, %v3148
        %v7091 = vmul.f32 %v4576, %v3148
        %v7092 = vmul.f32 %v4578, %v3148
        %v7093 = vmul.f32 %v4579, %v3148
        %v7094 = vmul.f32 %v4581, %v3148
        %v7095 = vmul.f32 %v4582, %v3148
        %v7096 = vmul.f32 %v4584, %v3148
        %v7097 = vmul.f32 %v4585, %v3148
        %v7098 = vmul.f32 %v4587, %v3148
        %v7099 = vmul.f32 %v4588, %v3148
        %v7116 = vrot.slane %v7084, 5
        %v7117 = vrot.slane %v7085, 5
        %v7118 = vsel %vm3088, %v7116, %v7117
        %v7119 = vrot.slane %v7086, 5
        %v7120 = vrot.slane %v7087, 5
        %v7121 = vsel %vm3088, %v7119, %v7120
        %v7122 = vrot.slane %v7088, 5
        %v7123 = vrot.slane %v7089, 5
        %v7124 = vsel %vm3088, %v7122, %v7123
        %v7125 = vrot.slane %v7090, 5
        %v7126 = vrot.slane %v7091, 5
        %v7127 = vsel %vm3088, %v7125, %v7126
        %v7128 = vrot.slane %v7092, 5
        %v7129 = vrot.slane %v7093, 5
        %v7130 = vsel %vm3088, %v7128, %v7129
        %v7131 = vrot.slane %v7094, 5
        %v7132 = vrot.slane %v7095, 5
        %v7133 = vsel %vm3088, %v7131, %v7132
        %v7134 = vrot.slane %v7096, 5
        %v7135 = vrot.slane %v7097, 5
        %v7136 = vsel %vm3088, %v7134, %v7135
        %v7137 = vrot.slane %v7098, 5
        %v7138 = vrot.slane %v7099, 5
        %v7139 = vsel %vm3088, %v7137, %v7138
        %v7156 = vadd.f32 %v7068, %v7116
        %v7157 = vadd.f32 %v7069, %v7118
        %v7158 = vadd.f32 %v7070, %v7119
        %v7159 = vadd.f32 %v7071, %v7121
        %v7160 = vadd.f32 %v7072, %v7122
        %v7161 = vadd.f32 %v7073, %v7124
        %v7162 = vadd.f32 %v7074, %v7125
        %v7163 = vadd.f32 %v7075, %v7127
        %v7164 = vadd.f32 %v7076, %v7128
        %v7165 = vadd.f32 %v7077, %v7130
        %v7166 = vadd.f32 %v7078, %v7131
        %v7167 = vadd.f32 %v7079, %v7133
        %v7168 = vadd.f32 %v7080, %v7134
        %v7169 = vadd.f32 %v7081, %v7136
        %v7170 = vadd.f32 %v7082, %v7137
        %v7171 = vadd.f32 %v7083, %v7139
        %v7172 = vmul.f32 %v4569, %v3240
        %v7173 = vmul.f32 %v4570, %v3240
        %v7174 = vmul.f32 %v4572, %v3240
        %v7175 = vmul.f32 %v4573, %v3240
        %v7176 = vmul.f32 %v4575, %v3240
        %v7177 = vmul.f32 %v4576, %v3240
        %v7178 = vmul.f32 %v4578, %v3240
        %v7179 = vmul.f32 %v4579, %v3240
        %v7180 = vmul.f32 %v4581, %v3240
        %v7181 = vmul.f32 %v4582, %v3240
        %v7182 = vmul.f32 %v4584, %v3240
        %v7183 = vmul.f32 %v4585, %v3240
        %v7184 = vmul.f32 %v4587, %v3240
        %v7185 = vmul.f32 %v4588, %v3240
        %v7186 = vmul.f32 %v4590, %v3240
        %v7187 = vmul.f32 %v4591, %v3240
        %v7204 = vrot.slane %v7172, 5
        %v7205 = vrot.slane %v7173, 5
        %v7206 = vsel %vm3088, %v7204, %v7205
        %v7207 = vrot.slane %v7174, 5
        %v7208 = vrot.slane %v7175, 5
        %v7209 = vsel %vm3088, %v7207, %v7208
        %v7210 = vrot.slane %v7176, 5
        %v7211 = vrot.slane %v7177, 5
        %v7212 = vsel %vm3088, %v7210, %v7211
        %v7213 = vrot.slane %v7178, 5
        %v7214 = vrot.slane %v7179, 5
        %v7215 = vsel %vm3088, %v7213, %v7214
        %v7216 = vrot.slane %v7180, 5
        %v7217 = vrot.slane %v7181, 5
        %v7218 = vsel %vm3088, %v7216, %v7217
        %v7219 = vrot.slane %v7182, 5
        %v7220 = vrot.slane %v7183, 5
        %v7221 = vsel %vm3088, %v7219, %v7220
        %v7222 = vrot.slane %v7184, 5
        %v7223 = vrot.slane %v7185, 5
        %v7224 = vsel %vm3088, %v7222, %v7223
        %v7225 = vrot.slane %v7186, 5
        %v7226 = vrot.slane %v7187, 5
        %v7227 = vsel %vm3088, %v7225, %v7226
        %v7244 = vadd.f32 %v7156, %v7204
        %v7245 = vadd.f32 %v7157, %v7206
        %v7246 = vadd.f32 %v7158, %v7207
        %v7247 = vadd.f32 %v7159, %v7209
        %v7248 = vadd.f32 %v7160, %v7210
        %v7249 = vadd.f32 %v7161, %v7212
        %v7250 = vadd.f32 %v7162, %v7213
        %v7251 = vadd.f32 %v7163, %v7215
        %v7252 = vadd.f32 %v7164, %v7216
        %v7253 = vadd.f32 %v7165, %v7218
        %v7254 = vadd.f32 %v7166, %v7219
        %v7255 = vadd.f32 %v7167, %v7221
        %v7256 = vadd.f32 %v7168, %v7222
        %v7257 = vadd.f32 %v7169, %v7224
        %v7258 = vadd.f32 %v7170, %v7225
        %v7259 = vadd.f32 %v7171, %v7227
        %v7260 = vmul.f32 %v4572, %v3332
        %v7261 = vmul.f32 %v4573, %v3332
        %v7262 = vmul.f32 %v4575, %v3332
        %v7263 = vmul.f32 %v4576, %v3332
        %v7264 = vmul.f32 %v4578, %v3332
        %v7265 = vmul.f32 %v4579, %v3332
        %v7266 = vmul.f32 %v4581, %v3332
        %v7267 = vmul.f32 %v4582, %v3332
        %v7268 = vmul.f32 %v4584, %v3332
        %v7269 = vmul.f32 %v4585, %v3332
        %v7270 = vmul.f32 %v4587, %v3332
        %v7271 = vmul.f32 %v4588, %v3332
        %v7272 = vmul.f32 %v4590, %v3332
        %v7273 = vmul.f32 %v4591, %v3332
        %v7274 = vmul.f32 %v4593, %v3332
        %v7275 = vmul.f32 %v4594, %v3332
        %v7292 = vrot.slane %v7260, 5
        %v7293 = vrot.slane %v7261, 5
        %v7294 = vsel %vm3088, %v7292, %v7293
        %v7295 = vrot.slane %v7262, 5
        %v7296 = vrot.slane %v7263, 5
        %v7297 = vsel %vm3088, %v7295, %v7296
        %v7298 = vrot.slane %v7264, 5
        %v7299 = vrot.slane %v7265, 5
        %v7300 = vsel %vm3088, %v7298, %v7299
        %v7301 = vrot.slane %v7266, 5
        %v7302 = vrot.slane %v7267, 5
        %v7303 = vsel %vm3088, %v7301, %v7302
        %v7304 = vrot.slane %v7268, 5
        %v7305 = vrot.slane %v7269, 5
        %v7306 = vsel %vm3088, %v7304, %v7305
        %v7307 = vrot.slane %v7270, 5
        %v7308 = vrot.slane %v7271, 5
        %v7309 = vsel %vm3088, %v7307, %v7308
        %v7310 = vrot.slane %v7272, 5
        %v7311 = vrot.slane %v7273, 5
        %v7312 = vsel %vm3088, %v7310, %v7311
        %v7313 = vrot.slane %v7274, 5
        %v7314 = vrot.slane %v7275, 5
        %v7315 = vsel %vm3088, %v7313, %v7314
        %v7332 = vadd.f32 %v7244, %v7292
        %v7333 = vadd.f32 %v7245, %v7294
        %v7334 = vadd.f32 %v7246, %v7295
        %v7335 = vadd.f32 %v7247, %v7297
        %v7336 = vadd.f32 %v7248, %v7298
        %v7337 = vadd.f32 %v7249, %v7300
        %v7338 = vadd.f32 %v7250, %v7301
        %v7339 = vadd.f32 %v7251, %v7303
        %v7340 = vadd.f32 %v7252, %v7304
        %v7341 = vadd.f32 %v7253, %v7306
        %v7342 = vadd.f32 %v7254, %v7307
        %v7343 = vadd.f32 %v7255, %v7309
        %v7344 = vadd.f32 %v7256, %v7310
        %v7345 = vadd.f32 %v7257, %v7312
        %v7346 = vadd.f32 %v7258, %v7313
        %v7347 = vadd.f32 %v7259, %v7315
        %v7348 = vmul.f32 %v4575, %v3424
        %v7349 = vmul.f32 %v4576, %v3424
        %v7350 = vmul.f32 %v4578, %v3424
        %v7351 = vmul.f32 %v4579, %v3424
        %v7352 = vmul.f32 %v4581, %v3424
        %v7353 = vmul.f32 %v4582, %v3424
        %v7354 = vmul.f32 %v4584, %v3424
        %v7355 = vmul.f32 %v4585, %v3424
        %v7356 = vmul.f32 %v4587, %v3424
        %v7357 = vmul.f32 %v4588, %v3424
        %v7358 = vmul.f32 %v4590, %v3424
        %v7359 = vmul.f32 %v4591, %v3424
        %v7360 = vmul.f32 %v4593, %v3424
        %v7361 = vmul.f32 %v4594, %v3424
        %v7362 = vmul.f32 %v4596, %v3424
        %v7363 = vmul.f32 %v4597, %v3424
        %v7380 = vrot.slane %v7348, 5
        %v7381 = vrot.slane %v7349, 5
        %v7382 = vsel %vm3088, %v7380, %v7381
        %v7383 = vrot.slane %v7350, 5
        %v7384 = vrot.slane %v7351, 5
        %v7385 = vsel %vm3088, %v7383, %v7384
        %v7386 = vrot.slane %v7352, 5
        %v7387 = vrot.slane %v7353, 5
        %v7388 = vsel %vm3088, %v7386, %v7387
        %v7389 = vrot.slane %v7354, 5
        %v7390 = vrot.slane %v7355, 5
        %v7391 = vsel %vm3088, %v7389, %v7390
        %v7392 = vrot.slane %v7356, 5
        %v7393 = vrot.slane %v7357, 5
        %v7394 = vsel %vm3088, %v7392, %v7393
        %v7395 = vrot.slane %v7358, 5
        %v7396 = vrot.slane %v7359, 5
        %v7397 = vsel %vm3088, %v7395, %v7396
        %v7398 = vrot.slane %v7360, 5
        %v7399 = vrot.slane %v7361, 5
        %v7400 = vsel %vm3088, %v7398, %v7399
        %v7401 = vrot.slane %v7362, 5
        %v7402 = vrot.slane %v7363, 5
        %v7403 = vsel %vm3088, %v7401, %v7402
        %v7420 = vadd.f32 %v7332, %v7380
        %v7421 = vadd.f32 %v7333, %v7382
        %v7422 = vadd.f32 %v7334, %v7383
        %v7423 = vadd.f32 %v7335, %v7385
        %v7424 = vadd.f32 %v7336, %v7386
        %v7425 = vadd.f32 %v7337, %v7388
        %v7426 = vadd.f32 %v7338, %v7389
        %v7427 = vadd.f32 %v7339, %v7391
        %v7428 = vadd.f32 %v7340, %v7392
        %v7429 = vadd.f32 %v7341, %v7394
        %v7430 = vadd.f32 %v7342, %v7395
        %v7431 = vadd.f32 %v7343, %v7397
        %v7432 = vadd.f32 %v7344, %v7398
        %v7433 = vadd.f32 %v7345, %v7400
        %v7434 = vadd.f32 %v7346, %v7401
        %v7435 = vadd.f32 %v7347, %v7403
        %v7436 = vmul.f32 %v4578, %v3516
        %v7437 = vmul.f32 %v4579, %v3516
        %v7438 = vmul.f32 %v4581, %v3516
        %v7439 = vmul.f32 %v4582, %v3516
        %v7440 = vmul.f32 %v4584, %v3516
        %v7441 = vmul.f32 %v4585, %v3516
        %v7442 = vmul.f32 %v4587, %v3516
        %v7443 = vmul.f32 %v4588, %v3516
        %v7444 = vmul.f32 %v4590, %v3516
        %v7445 = vmul.f32 %v4591, %v3516
        %v7446 = vmul.f32 %v4593, %v3516
        %v7447 = vmul.f32 %v4594, %v3516
        %v7448 = vmul.f32 %v4596, %v3516
        %v7449 = vmul.f32 %v4597, %v3516
        %v7450 = vmul.f32 %v4599, %v3516
        %v7451 = vmul.f32 %v4600, %v3516
        %v7468 = vrot.slane %v7436, 5
        %v7469 = vrot.slane %v7437, 5
        %v7470 = vsel %vm3088, %v7468, %v7469
        %v7471 = vrot.slane %v7438, 5
        %v7472 = vrot.slane %v7439, 5
        %v7473 = vsel %vm3088, %v7471, %v7472
        %v7474 = vrot.slane %v7440, 5
        %v7475 = vrot.slane %v7441, 5
        %v7476 = vsel %vm3088, %v7474, %v7475
        %v7477 = vrot.slane %v7442, 5
        %v7478 = vrot.slane %v7443, 5
        %v7479 = vsel %vm3088, %v7477, %v7478
        %v7480 = vrot.slane %v7444, 5
        %v7481 = vrot.slane %v7445, 5
        %v7482 = vsel %vm3088, %v7480, %v7481
        %v7483 = vrot.slane %v7446, 5
        %v7484 = vrot.slane %v7447, 5
        %v7485 = vsel %vm3088, %v7483, %v7484
        %v7486 = vrot.slane %v7448, 5
        %v7487 = vrot.slane %v7449, 5
        %v7488 = vsel %vm3088, %v7486, %v7487
        %v7489 = vrot.slane %v7450, 5
        %v7490 = vrot.slane %v7451, 5
        %v7491 = vsel %vm3088, %v7489, %v7490
        %v7508 = vadd.f32 %v7420, %v7468
        %v7509 = vadd.f32 %v7421, %v7470
        %v7510 = vadd.f32 %v7422, %v7471
        %v7511 = vadd.f32 %v7423, %v7473
        %v7512 = vadd.f32 %v7424, %v7474
        %v7513 = vadd.f32 %v7425, %v7476
        %v7514 = vadd.f32 %v7426, %v7477
        %v7515 = vadd.f32 %v7427, %v7479
        %v7516 = vadd.f32 %v7428, %v7480
        %v7517 = vadd.f32 %v7429, %v7482
        %v7518 = vadd.f32 %v7430, %v7483
        %v7519 = vadd.f32 %v7431, %v7485
        %v7520 = vadd.f32 %v7432, %v7486
        %v7521 = vadd.f32 %v7433, %v7488
        %v7522 = vadd.f32 %v7434, %v7489
        %v7523 = vadd.f32 %v7435, %v7491
        %v7524 = vmul.f32 %v4581, %v3608
        %v7525 = vmul.f32 %v4582, %v3608
        %v7526 = vmul.f32 %v4584, %v3608
        %v7527 = vmul.f32 %v4585, %v3608
        %v7528 = vmul.f32 %v4587, %v3608
        %v7529 = vmul.f32 %v4588, %v3608
        %v7530 = vmul.f32 %v4590, %v3608
        %v7531 = vmul.f32 %v4591, %v3608
        %v7532 = vmul.f32 %v4593, %v3608
        %v7533 = vmul.f32 %v4594, %v3608
        %v7534 = vmul.f32 %v4596, %v3608
        %v7535 = vmul.f32 %v4597, %v3608
        %v7536 = vmul.f32 %v4599, %v3608
        %v7537 = vmul.f32 %v4600, %v3608
        %v7538 = vmul.f32 %v4602, %v3608
        %v7539 = vmul.f32 %v4603, %v3608
        %v7556 = vrot.slane %v7524, 5
        %v7557 = vrot.slane %v7525, 5
        %v7558 = vsel %vm3088, %v7556, %v7557
        %v7559 = vrot.slane %v7526, 5
        %v7560 = vrot.slane %v7527, 5
        %v7561 = vsel %vm3088, %v7559, %v7560
        %v7562 = vrot.slane %v7528, 5
        %v7563 = vrot.slane %v7529, 5
        %v7564 = vsel %vm3088, %v7562, %v7563
        %v7565 = vrot.slane %v7530, 5
        %v7566 = vrot.slane %v7531, 5
        %v7567 = vsel %vm3088, %v7565, %v7566
        %v7568 = vrot.slane %v7532, 5
        %v7569 = vrot.slane %v7533, 5
        %v7570 = vsel %vm3088, %v7568, %v7569
        %v7571 = vrot.slane %v7534, 5
        %v7572 = vrot.slane %v7535, 5
        %v7573 = vsel %vm3088, %v7571, %v7572
        %v7574 = vrot.slane %v7536, 5
        %v7575 = vrot.slane %v7537, 5
        %v7576 = vsel %vm3088, %v7574, %v7575
        %v7577 = vrot.slane %v7538, 5
        %v7578 = vrot.slane %v7539, 5
        %v7579 = vsel %vm3088, %v7577, %v7578
        %v7596 = vadd.f32 %v7508, %v7556
        %v7597 = vadd.f32 %v7509, %v7558
        %v7598 = vadd.f32 %v7510, %v7559
        %v7599 = vadd.f32 %v7511, %v7561
        %v7600 = vadd.f32 %v7512, %v7562
        %v7601 = vadd.f32 %v7513, %v7564
        %v7602 = vadd.f32 %v7514, %v7565
        %v7603 = vadd.f32 %v7515, %v7567
        %v7604 = vadd.f32 %v7516, %v7568
        %v7605 = vadd.f32 %v7517, %v7570
        %v7606 = vadd.f32 %v7518, %v7571
        %v7607 = vadd.f32 %v7519, %v7573
        %v7608 = vadd.f32 %v7520, %v7574
        %v7609 = vadd.f32 %v7521, %v7576
        %v7610 = vadd.f32 %v7522, %v7577
        %v7611 = vadd.f32 %v7523, %v7579
        %v7612 = vmul.f32 %v4563, %v3700
        %v7613 = vmul.f32 %v4564, %v3700
        %v7614 = vmul.f32 %v4566, %v3700
        %v7615 = vmul.f32 %v4567, %v3700
        %v7616 = vmul.f32 %v4569, %v3700
        %v7617 = vmul.f32 %v4570, %v3700
        %v7618 = vmul.f32 %v4572, %v3700
        %v7619 = vmul.f32 %v4573, %v3700
        %v7620 = vmul.f32 %v4575, %v3700
        %v7621 = vmul.f32 %v4576, %v3700
        %v7622 = vmul.f32 %v4578, %v3700
        %v7623 = vmul.f32 %v4579, %v3700
        %v7624 = vmul.f32 %v4581, %v3700
        %v7625 = vmul.f32 %v4582, %v3700
        %v7626 = vmul.f32 %v4584, %v3700
        %v7627 = vmul.f32 %v4585, %v3700
        %v7644 = vrot.slane %v7612, 6
        %v7645 = vrot.slane %v7613, 6
        %v7646 = vsel %vm3733, %v7644, %v7645
        %v7647 = vrot.slane %v7614, 6
        %v7648 = vrot.slane %v7615, 6
        %v7649 = vsel %vm3733, %v7647, %v7648
        %v7650 = vrot.slane %v7616, 6
        %v7651 = vrot.slane %v7617, 6
        %v7652 = vsel %vm3733, %v7650, %v7651
        %v7653 = vrot.slane %v7618, 6
        %v7654 = vrot.slane %v7619, 6
        %v7655 = vsel %vm3733, %v7653, %v7654
        %v7656 = vrot.slane %v7620, 6
        %v7657 = vrot.slane %v7621, 6
        %v7658 = vsel %vm3733, %v7656, %v7657
        %v7659 = vrot.slane %v7622, 6
        %v7660 = vrot.slane %v7623, 6
        %v7661 = vsel %vm3733, %v7659, %v7660
        %v7662 = vrot.slane %v7624, 6
        %v7663 = vrot.slane %v7625, 6
        %v7664 = vsel %vm3733, %v7662, %v7663
        %v7665 = vrot.slane %v7626, 6
        %v7666 = vrot.slane %v7627, 6
        %v7667 = vsel %vm3733, %v7665, %v7666
        %v7684 = vadd.f32 %v7596, %v7644
        %v7685 = vadd.f32 %v7597, %v7646
        %v7686 = vadd.f32 %v7598, %v7647
        %v7687 = vadd.f32 %v7599, %v7649
        %v7688 = vadd.f32 %v7600, %v7650
        %v7689 = vadd.f32 %v7601, %v7652
        %v7690 = vadd.f32 %v7602, %v7653
        %v7691 = vadd.f32 %v7603, %v7655
        %v7692 = vadd.f32 %v7604, %v7656
        %v7693 = vadd.f32 %v7605, %v7658
        %v7694 = vadd.f32 %v7606, %v7659
        %v7695 = vadd.f32 %v7607, %v7661
        %v7696 = vadd.f32 %v7608, %v7662
        %v7697 = vadd.f32 %v7609, %v7664
        %v7698 = vadd.f32 %v7610, %v7665
        %v7699 = vadd.f32 %v7611, %v7667
        %v7700 = vmul.f32 %v4566, %v3793
        %v7701 = vmul.f32 %v4567, %v3793
        %v7702 = vmul.f32 %v4569, %v3793
        %v7703 = vmul.f32 %v4570, %v3793
        %v7704 = vmul.f32 %v4572, %v3793
        %v7705 = vmul.f32 %v4573, %v3793
        %v7706 = vmul.f32 %v4575, %v3793
        %v7707 = vmul.f32 %v4576, %v3793
        %v7708 = vmul.f32 %v4578, %v3793
        %v7709 = vmul.f32 %v4579, %v3793
        %v7710 = vmul.f32 %v4581, %v3793
        %v7711 = vmul.f32 %v4582, %v3793
        %v7712 = vmul.f32 %v4584, %v3793
        %v7713 = vmul.f32 %v4585, %v3793
        %v7714 = vmul.f32 %v4587, %v3793
        %v7715 = vmul.f32 %v4588, %v3793
        %v7732 = vrot.slane %v7700, 6
        %v7733 = vrot.slane %v7701, 6
        %v7734 = vsel %vm3733, %v7732, %v7733
        %v7735 = vrot.slane %v7702, 6
        %v7736 = vrot.slane %v7703, 6
        %v7737 = vsel %vm3733, %v7735, %v7736
        %v7738 = vrot.slane %v7704, 6
        %v7739 = vrot.slane %v7705, 6
        %v7740 = vsel %vm3733, %v7738, %v7739
        %v7741 = vrot.slane %v7706, 6
        %v7742 = vrot.slane %v7707, 6
        %v7743 = vsel %vm3733, %v7741, %v7742
        %v7744 = vrot.slane %v7708, 6
        %v7745 = vrot.slane %v7709, 6
        %v7746 = vsel %vm3733, %v7744, %v7745
        %v7747 = vrot.slane %v7710, 6
        %v7748 = vrot.slane %v7711, 6
        %v7749 = vsel %vm3733, %v7747, %v7748
        %v7750 = vrot.slane %v7712, 6
        %v7751 = vrot.slane %v7713, 6
        %v7752 = vsel %vm3733, %v7750, %v7751
        %v7753 = vrot.slane %v7714, 6
        %v7754 = vrot.slane %v7715, 6
        %v7755 = vsel %vm3733, %v7753, %v7754
        %v7772 = vadd.f32 %v7684, %v7732
        %v7773 = vadd.f32 %v7685, %v7734
        %v7774 = vadd.f32 %v7686, %v7735
        %v7775 = vadd.f32 %v7687, %v7737
        %v7776 = vadd.f32 %v7688, %v7738
        %v7777 = vadd.f32 %v7689, %v7740
        %v7778 = vadd.f32 %v7690, %v7741
        %v7779 = vadd.f32 %v7691, %v7743
        %v7780 = vadd.f32 %v7692, %v7744
        %v7781 = vadd.f32 %v7693, %v7746
        %v7782 = vadd.f32 %v7694, %v7747
        %v7783 = vadd.f32 %v7695, %v7749
        %v7784 = vadd.f32 %v7696, %v7750
        %v7785 = vadd.f32 %v7697, %v7752
        %v7786 = vadd.f32 %v7698, %v7753
        %v7787 = vadd.f32 %v7699, %v7755
        %v7788 = vmul.f32 %v4569, %v3885
        %v7789 = vmul.f32 %v4570, %v3885
        %v7790 = vmul.f32 %v4572, %v3885
        %v7791 = vmul.f32 %v4573, %v3885
        %v7792 = vmul.f32 %v4575, %v3885
        %v7793 = vmul.f32 %v4576, %v3885
        %v7794 = vmul.f32 %v4578, %v3885
        %v7795 = vmul.f32 %v4579, %v3885
        %v7796 = vmul.f32 %v4581, %v3885
        %v7797 = vmul.f32 %v4582, %v3885
        %v7798 = vmul.f32 %v4584, %v3885
        %v7799 = vmul.f32 %v4585, %v3885
        %v7800 = vmul.f32 %v4587, %v3885
        %v7801 = vmul.f32 %v4588, %v3885
        %v7802 = vmul.f32 %v4590, %v3885
        %v7803 = vmul.f32 %v4591, %v3885
        %v7820 = vrot.slane %v7788, 6
        %v7821 = vrot.slane %v7789, 6
        %v7822 = vsel %vm3733, %v7820, %v7821
        %v7823 = vrot.slane %v7790, 6
        %v7824 = vrot.slane %v7791, 6
        %v7825 = vsel %vm3733, %v7823, %v7824
        %v7826 = vrot.slane %v7792, 6
        %v7827 = vrot.slane %v7793, 6
        %v7828 = vsel %vm3733, %v7826, %v7827
        %v7829 = vrot.slane %v7794, 6
        %v7830 = vrot.slane %v7795, 6
        %v7831 = vsel %vm3733, %v7829, %v7830
        %v7832 = vrot.slane %v7796, 6
        %v7833 = vrot.slane %v7797, 6
        %v7834 = vsel %vm3733, %v7832, %v7833
        %v7835 = vrot.slane %v7798, 6
        %v7836 = vrot.slane %v7799, 6
        %v7837 = vsel %vm3733, %v7835, %v7836
        %v7838 = vrot.slane %v7800, 6
        %v7839 = vrot.slane %v7801, 6
        %v7840 = vsel %vm3733, %v7838, %v7839
        %v7841 = vrot.slane %v7802, 6
        %v7842 = vrot.slane %v7803, 6
        %v7843 = vsel %vm3733, %v7841, %v7842
        %v7860 = vadd.f32 %v7772, %v7820
        %v7861 = vadd.f32 %v7773, %v7822
        %v7862 = vadd.f32 %v7774, %v7823
        %v7863 = vadd.f32 %v7775, %v7825
        %v7864 = vadd.f32 %v7776, %v7826
        %v7865 = vadd.f32 %v7777, %v7828
        %v7866 = vadd.f32 %v7778, %v7829
        %v7867 = vadd.f32 %v7779, %v7831
        %v7868 = vadd.f32 %v7780, %v7832
        %v7869 = vadd.f32 %v7781, %v7834
        %v7870 = vadd.f32 %v7782, %v7835
        %v7871 = vadd.f32 %v7783, %v7837
        %v7872 = vadd.f32 %v7784, %v7838
        %v7873 = vadd.f32 %v7785, %v7840
        %v7874 = vadd.f32 %v7786, %v7841
        %v7875 = vadd.f32 %v7787, %v7843
        %v7876 = vmul.f32 %v4572, %v3977
        %v7877 = vmul.f32 %v4573, %v3977
        %v7878 = vmul.f32 %v4575, %v3977
        %v7879 = vmul.f32 %v4576, %v3977
        %v7880 = vmul.f32 %v4578, %v3977
        %v7881 = vmul.f32 %v4579, %v3977
        %v7882 = vmul.f32 %v4581, %v3977
        %v7883 = vmul.f32 %v4582, %v3977
        %v7884 = vmul.f32 %v4584, %v3977
        %v7885 = vmul.f32 %v4585, %v3977
        %v7886 = vmul.f32 %v4587, %v3977
        %v7887 = vmul.f32 %v4588, %v3977
        %v7888 = vmul.f32 %v4590, %v3977
        %v7889 = vmul.f32 %v4591, %v3977
        %v7890 = vmul.f32 %v4593, %v3977
        %v7891 = vmul.f32 %v4594, %v3977
        %v7908 = vrot.slane %v7876, 6
        %v7909 = vrot.slane %v7877, 6
        %v7910 = vsel %vm3733, %v7908, %v7909
        %v7911 = vrot.slane %v7878, 6
        %v7912 = vrot.slane %v7879, 6
        %v7913 = vsel %vm3733, %v7911, %v7912
        %v7914 = vrot.slane %v7880, 6
        %v7915 = vrot.slane %v7881, 6
        %v7916 = vsel %vm3733, %v7914, %v7915
        %v7917 = vrot.slane %v7882, 6
        %v7918 = vrot.slane %v7883, 6
        %v7919 = vsel %vm3733, %v7917, %v7918
        %v7920 = vrot.slane %v7884, 6
        %v7921 = vrot.slane %v7885, 6
        %v7922 = vsel %vm3733, %v7920, %v7921
        %v7923 = vrot.slane %v7886, 6
        %v7924 = vrot.slane %v7887, 6
        %v7925 = vsel %vm3733, %v7923, %v7924
        %v7926 = vrot.slane %v7888, 6
        %v7927 = vrot.slane %v7889, 6
        %v7928 = vsel %vm3733, %v7926, %v7927
        %v7929 = vrot.slane %v7890, 6
        %v7930 = vrot.slane %v7891, 6
        %v7931 = vsel %vm3733, %v7929, %v7930
        %v7948 = vadd.f32 %v7860, %v7908
        %v7949 = vadd.f32 %v7861, %v7910
        %v7950 = vadd.f32 %v7862, %v7911
        %v7951 = vadd.f32 %v7863, %v7913
        %v7952 = vadd.f32 %v7864, %v7914
        %v7953 = vadd.f32 %v7865, %v7916
        %v7954 = vadd.f32 %v7866, %v7917
        %v7955 = vadd.f32 %v7867, %v7919
        %v7956 = vadd.f32 %v7868, %v7920
        %v7957 = vadd.f32 %v7869, %v7922
        %v7958 = vadd.f32 %v7870, %v7923
        %v7959 = vadd.f32 %v7871, %v7925
        %v7960 = vadd.f32 %v7872, %v7926
        %v7961 = vadd.f32 %v7873, %v7928
        %v7962 = vadd.f32 %v7874, %v7929
        %v7963 = vadd.f32 %v7875, %v7931
        %v7964 = vmul.f32 %v4575, %v4069
        %v7965 = vmul.f32 %v4576, %v4069
        %v7966 = vmul.f32 %v4578, %v4069
        %v7967 = vmul.f32 %v4579, %v4069
        %v7968 = vmul.f32 %v4581, %v4069
        %v7969 = vmul.f32 %v4582, %v4069
        %v7970 = vmul.f32 %v4584, %v4069
        %v7971 = vmul.f32 %v4585, %v4069
        %v7972 = vmul.f32 %v4587, %v4069
        %v7973 = vmul.f32 %v4588, %v4069
        %v7974 = vmul.f32 %v4590, %v4069
        %v7975 = vmul.f32 %v4591, %v4069
        %v7976 = vmul.f32 %v4593, %v4069
        %v7977 = vmul.f32 %v4594, %v4069
        %v7978 = vmul.f32 %v4596, %v4069
        %v7979 = vmul.f32 %v4597, %v4069
        %v7996 = vrot.slane %v7964, 6
        %v7997 = vrot.slane %v7965, 6
        %v7998 = vsel %vm3733, %v7996, %v7997
        %v7999 = vrot.slane %v7966, 6
        %v8000 = vrot.slane %v7967, 6
        %v8001 = vsel %vm3733, %v7999, %v8000
        %v8002 = vrot.slane %v7968, 6
        %v8003 = vrot.slane %v7969, 6
        %v8004 = vsel %vm3733, %v8002, %v8003
        %v8005 = vrot.slane %v7970, 6
        %v8006 = vrot.slane %v7971, 6
        %v8007 = vsel %vm3733, %v8005, %v8006
        %v8008 = vrot.slane %v7972, 6
        %v8009 = vrot.slane %v7973, 6
        %v8010 = vsel %vm3733, %v8008, %v8009
        %v8011 = vrot.slane %v7974, 6
        %v8012 = vrot.slane %v7975, 6
        %v8013 = vsel %vm3733, %v8011, %v8012
        %v8014 = vrot.slane %v7976, 6
        %v8015 = vrot.slane %v7977, 6
        %v8016 = vsel %vm3733, %v8014, %v8015
        %v8017 = vrot.slane %v7978, 6
        %v8018 = vrot.slane %v7979, 6
        %v8019 = vsel %vm3733, %v8017, %v8018
        %v8036 = vadd.f32 %v7948, %v7996
        %v8037 = vadd.f32 %v7949, %v7998
        %v8038 = vadd.f32 %v7950, %v7999
        %v8039 = vadd.f32 %v7951, %v8001
        %v8040 = vadd.f32 %v7952, %v8002
        %v8041 = vadd.f32 %v7953, %v8004
        %v8042 = vadd.f32 %v7954, %v8005
        %v8043 = vadd.f32 %v7955, %v8007
        %v8044 = vadd.f32 %v7956, %v8008
        %v8045 = vadd.f32 %v7957, %v8010
        %v8046 = vadd.f32 %v7958, %v8011
        %v8047 = vadd.f32 %v7959, %v8013
        %v8048 = vadd.f32 %v7960, %v8014
        %v8049 = vadd.f32 %v7961, %v8016
        %v8050 = vadd.f32 %v7962, %v8017
        %v8051 = vadd.f32 %v7963, %v8019
        %v8052 = vmul.f32 %v4578, %v4161
        %v8053 = vmul.f32 %v4579, %v4161
        %v8054 = vmul.f32 %v4581, %v4161
        %v8055 = vmul.f32 %v4582, %v4161
        %v8056 = vmul.f32 %v4584, %v4161
        %v8057 = vmul.f32 %v4585, %v4161
        %v8058 = vmul.f32 %v4587, %v4161
        %v8059 = vmul.f32 %v4588, %v4161
        %v8060 = vmul.f32 %v4590, %v4161
        %v8061 = vmul.f32 %v4591, %v4161
        %v8062 = vmul.f32 %v4593, %v4161
        %v8063 = vmul.f32 %v4594, %v4161
        %v8064 = vmul.f32 %v4596, %v4161
        %v8065 = vmul.f32 %v4597, %v4161
        %v8066 = vmul.f32 %v4599, %v4161
        %v8067 = vmul.f32 %v4600, %v4161
        %v8084 = vrot.slane %v8052, 6
        %v8085 = vrot.slane %v8053, 6
        %v8086 = vsel %vm3733, %v8084, %v8085
        %v8087 = vrot.slane %v8054, 6
        %v8088 = vrot.slane %v8055, 6
        %v8089 = vsel %vm3733, %v8087, %v8088
        %v8090 = vrot.slane %v8056, 6
        %v8091 = vrot.slane %v8057, 6
        %v8092 = vsel %vm3733, %v8090, %v8091
        %v8093 = vrot.slane %v8058, 6
        %v8094 = vrot.slane %v8059, 6
        %v8095 = vsel %vm3733, %v8093, %v8094
        %v8096 = vrot.slane %v8060, 6
        %v8097 = vrot.slane %v8061, 6
        %v8098 = vsel %vm3733, %v8096, %v8097
        %v8099 = vrot.slane %v8062, 6
        %v8100 = vrot.slane %v8063, 6
        %v8101 = vsel %vm3733, %v8099, %v8100
        %v8102 = vrot.slane %v8064, 6
        %v8103 = vrot.slane %v8065, 6
        %v8104 = vsel %vm3733, %v8102, %v8103
        %v8105 = vrot.slane %v8066, 6
        %v8106 = vrot.slane %v8067, 6
        %v8107 = vsel %vm3733, %v8105, %v8106
        %v8124 = vadd.f32 %v8036, %v8084
        %v8125 = vadd.f32 %v8037, %v8086
        %v8126 = vadd.f32 %v8038, %v8087
        %v8127 = vadd.f32 %v8039, %v8089
        %v8128 = vadd.f32 %v8040, %v8090
        %v8129 = vadd.f32 %v8041, %v8092
        %v8130 = vadd.f32 %v8042, %v8093
        %v8131 = vadd.f32 %v8043, %v8095
        %v8132 = vadd.f32 %v8044, %v8096
        %v8133 = vadd.f32 %v8045, %v8098
        %v8134 = vadd.f32 %v8046, %v8099
        %v8135 = vadd.f32 %v8047, %v8101
        %v8136 = vadd.f32 %v8048, %v8102
        %v8137 = vadd.f32 %v8049, %v8104
        %v8138 = vadd.f32 %v8050, %v8105
        %v8139 = vadd.f32 %v8051, %v8107
        %v8140 = vmul.f32 %v4581, %v4253
        %v8141 = vmul.f32 %v4582, %v4253
        %v8142 = vmul.f32 %v4584, %v4253
        %v8143 = vmul.f32 %v4585, %v4253
        %v8144 = vmul.f32 %v4587, %v4253
        %v8145 = vmul.f32 %v4588, %v4253
        %v8146 = vmul.f32 %v4590, %v4253
        %v8147 = vmul.f32 %v4591, %v4253
        %v8148 = vmul.f32 %v4593, %v4253
        %v8149 = vmul.f32 %v4594, %v4253
        %v8150 = vmul.f32 %v4596, %v4253
        %v8151 = vmul.f32 %v4597, %v4253
        %v8152 = vmul.f32 %v4599, %v4253
        %v8153 = vmul.f32 %v4600, %v4253
        %v8154 = vmul.f32 %v4602, %v4253
        %v8155 = vmul.f32 %v4603, %v4253
        %v8172 = vrot.slane %v8140, 6
        %v8173 = vrot.slane %v8141, 6
        %v8174 = vsel %vm3733, %v8172, %v8173
        %v8175 = vrot.slane %v8142, 6
        %v8176 = vrot.slane %v8143, 6
        %v8177 = vsel %vm3733, %v8175, %v8176
        %v8178 = vrot.slane %v8144, 6
        %v8179 = vrot.slane %v8145, 6
        %v8180 = vsel %vm3733, %v8178, %v8179
        %v8181 = vrot.slane %v8146, 6
        %v8182 = vrot.slane %v8147, 6
        %v8183 = vsel %vm3733, %v8181, %v8182
        %v8184 = vrot.slane %v8148, 6
        %v8185 = vrot.slane %v8149, 6
        %v8186 = vsel %vm3733, %v8184, %v8185
        %v8187 = vrot.slane %v8150, 6
        %v8188 = vrot.slane %v8151, 6
        %v8189 = vsel %vm3733, %v8187, %v8188
        %v8190 = vrot.slane %v8152, 6
        %v8191 = vrot.slane %v8153, 6
        %v8192 = vsel %vm3733, %v8190, %v8191
        %v8193 = vrot.slane %v8154, 6
        %v8194 = vrot.slane %v8155, 6
        %v8195 = vsel %vm3733, %v8193, %v8194
        %v8212 = vadd.f32 %v8124, %v8172
        %v8213 = vadd.f32 %v8125, %v8174
        %v8214 = vadd.f32 %v8126, %v8175
        %v8215 = vadd.f32 %v8127, %v8177
        %v8216 = vadd.f32 %v8128, %v8178
        %v8217 = vadd.f32 %v8129, %v8180
        %v8218 = vadd.f32 %v8130, %v8181
        %v8219 = vadd.f32 %v8131, %v8183
        %v8220 = vadd.f32 %v8132, %v8184
        %v8221 = vadd.f32 %v8133, %v8186
        %v8222 = vadd.f32 %v8134, %v8187
        %v8223 = vadd.f32 %v8135, %v8189
        %v8224 = vadd.f32 %v8136, %v8190
        %v8225 = vadd.f32 %v8137, %v8192
        %v8226 = vadd.f32 %v8138, %v8193
        %v8227 = vadd.f32 %v8139, %v8195
        %v8244 = vrot.slane %v8212, 5
        %v8245 = vrot.slane %v8213, 5
        %v8246 = vsel %vm3088, %v8244, %v8245
        %v8247 = vrot.slane %v8214, 5
        %v8248 = vrot.slane %v8215, 5
        %v8249 = vsel %vm3088, %v8247, %v8248
        %v8250 = vrot.slane %v8216, 5
        %v8251 = vrot.slane %v8217, 5
        %v8252 = vsel %vm3088, %v8250, %v8251
        %v8253 = vrot.slane %v8218, 5
        %v8254 = vrot.slane %v8219, 5
        %v8255 = vsel %vm3088, %v8253, %v8254
        %v8256 = vrot.slane %v8220, 5
        %v8257 = vrot.slane %v8221, 5
        %v8258 = vsel %vm3088, %v8256, %v8257
        %v8259 = vrot.slane %v8222, 5
        %v8260 = vrot.slane %v8223, 5
        %v8261 = vsel %vm3088, %v8259, %v8260
        %v8262 = vrot.slane %v8224, 5
        %v8263 = vrot.slane %v8225, 5
        %v8264 = vsel %vm3088, %v8262, %v8263
        %v8265 = vrot.slane %v8226, 5
        %v8266 = vrot.slane %v8227, 5
        %v8267 = vsel %vm3088, %v8265, %v8266
        %v8276 = vadd.f32 %v8246, %v4394
        %v8277 = vadd.f32 %v8249, %v4394
        %v8278 = vadd.f32 %v8252, %v4394
        %v8279 = vadd.f32 %v8255, %v4394
        %v8280 = vadd.f32 %v8258, %v4394
        %v8281 = vadd.f32 %v8261, %v4394
        %v8282 = vadd.f32 %v8264, %v4394
        %v8283 = vadd.f32 %v8267, %v4394
        %v8284 = vsel %vm405, %v8276, 0.0
        %8285 = vadd.xlane.f32.xlu0 %v8284
        %v8286 = vpop.xlane.xlu0 %8285
        %v8287 = vsel %vm405, %v8277, 0.0
        %8288 = vadd.xlane.f32.xlu0 %v8287
        %v8289 = vpop.xlane.xlu0 %8288
        %v8290 = vsel %vm405, %v8278, 0.0
        %8291 = vadd.xlane.f32.xlu0 %v8290
        %v8292 = vpop.xlane.xlu0 %8291
        %v8293 = vsel %vm405, %v8279, 0.0
        %8294 = vadd.xlane.f32.xlu0 %v8293
        %v8295 = vpop.xlane.xlu0 %8294
        %v8296 = vsel %vm405, %v8280, 0.0
        %8297 = vadd.xlane.f32.xlu0 %v8296
        %v8298 = vpop.xlane.xlu0 %8297
        %v8299 = vsel %vm405, %v8281, 0.0
        %8300 = vadd.xlane.f32.xlu0 %v8299
        %v8301 = vpop.xlane.xlu0 %8300
        %v8302 = vsel %vm405, %v8282, 0.0
        %8303 = vadd.xlane.f32.xlu0 %v8302
        %v8304 = vpop.xlane.xlu0 %8303
        %v8305 = vsel %vm405, %v8283, 0.0
        %8306 = vadd.xlane.f32.xlu0 %v8305
        %v8307 = vpop.xlane.xlu0 %8306
        %v8308 = vmul.f32 %v8286, %v4428
        %v8309 = vmul.f32 %v8289, %v4428
        %v8310 = vmul.f32 %v8292, %v4428
        %v8311 = vmul.f32 %v8295, %v4428
        %v8312 = vmul.f32 %v8298, %v4428
        %v8313 = vmul.f32 %v8301, %v4428
        %v8314 = vmul.f32 %v8304, %v4428
        %v8315 = vmul.f32 %v8307, %v4428
        %v8316 = vsub.f32 %v8276, %v8308
        %v8317 = vsub.f32 %v8277, %v8309
        %v8318 = vsub.f32 %v8278, %v8310
        %v8319 = vsub.f32 %v8279, %v8311
        %v8320 = vsub.f32 %v8280, %v8312
        %v8321 = vsub.f32 %v8281, %v8313
        %v8322 = vsub.f32 %v8282, %v8314
        %v8323 = vsub.f32 %v8283, %v8315
        %v8324 = vmul.f32 %v8316, %v8316
        %v8325 = vmul.f32 %v8317, %v8317
        %v8326 = vmul.f32 %v8318, %v8318
        %v8327 = vmul.f32 %v8319, %v8319
        %v8328 = vmul.f32 %v8320, %v8320
        %v8329 = vmul.f32 %v8321, %v8321
        %v8330 = vmul.f32 %v8322, %v8322
        %v8331 = vmul.f32 %v8323, %v8323
        %v8332 = vsel %vm405, %v8324, 0.0
        %8333 = vadd.xlane.f32.xlu0 %v8332
        %v8334 = vpop.xlane.xlu0 %8333
        %v8335 = vsel %vm405, %v8325, 0.0
        %8336 = vadd.xlane.f32.xlu0 %v8335
        %v8337 = vpop.xlane.xlu0 %8336
        %v8338 = vsel %vm405, %v8326, 0.0
        %8339 = vadd.xlane.f32.xlu0 %v8338
        %v8340 = vpop.xlane.xlu0 %8339
        %v8341 = vsel %vm405, %v8327, 0.0
        %8342 = vadd.xlane.f32.xlu0 %v8341
        %v8343 = vpop.xlane.xlu0 %8342
        %v8344 = vsel %vm405, %v8328, 0.0
        %8345 = vadd.xlane.f32.xlu0 %v8344
        %v8346 = vpop.xlane.xlu0 %8345
        %v8347 = vsel %vm405, %v8329, 0.0
        %8348 = vadd.xlane.f32.xlu0 %v8347
        %v8349 = vpop.xlane.xlu0 %8348
        %v8350 = vsel %vm405, %v8330, 0.0
        %8351 = vadd.xlane.f32.xlu0 %v8350
        %v8352 = vpop.xlane.xlu0 %8351
        %v8353 = vsel %vm405, %v8331, 0.0
        %8354 = vadd.xlane.f32.xlu0 %v8353
        %v8355 = vpop.xlane.xlu0 %8354
        %v8356 = vmul.f32 %v8334, %v4428
        %v8357 = vmul.f32 %v8337, %v4428
        %v8358 = vmul.f32 %v8340, %v4428
        %v8359 = vmul.f32 %v8343, %v4428
        %v8360 = vmul.f32 %v8346, %v4428
        %v8361 = vmul.f32 %v8349, %v4428
        %v8362 = vmul.f32 %v8352, %v4428
        %v8363 = vmul.f32 %v8355, %v4428
        %v8364 = vadd.f32 %v8356, 1e-06
        %v8365 = vadd.f32 %v8357, 1e-06
        %v8366 = vadd.f32 %v8358, 1e-06
        %v8367 = vadd.f32 %v8359, 1e-06
        %v8368 = vadd.f32 %v8360, 1e-06
        %v8369 = vadd.f32 %v8361, 1e-06
        %v8370 = vadd.f32 %v8362, 1e-06
        %v8371 = vadd.f32 %v8363, 1e-06
        %v8372 = vrsqrt.pop %v8364
        %v8373 = vrsqrt.pop %v8365
        %v8374 = vrsqrt.pop %v8366
        %v8375 = vrsqrt.pop %v8367
        %v8376 = vrsqrt.pop %v8368
        %v8377 = vrsqrt.pop %v8369
        %v8378 = vrsqrt.pop %v8370
        %v8379 = vrsqrt.pop %v8371
        %v8380 = vmul.f32 %v8316, %v8372
        %v8381 = vmul.f32 %v8317, %v8373
        %v8382 = vmul.f32 %v8318, %v8374
        %v8383 = vmul.f32 %v8319, %v8375
        %v8384 = vmul.f32 %v8320, %v8376
        %v8385 = vmul.f32 %v8321, %v8377
        %v8386 = vmul.f32 %v8322, %v8378
        %v8387 = vmul.f32 %v8323, %v8379
        %v8388 = vmul.f32 %v8380, %v4513
        %v8389 = vmul.f32 %v8381, %v4513
        %v8390 = vmul.f32 %v8382, %v4513
        %v8391 = vmul.f32 %v8383, %v4513
        %v8392 = vmul.f32 %v8384, %v4513
        %v8393 = vmul.f32 %v8385, %v4513
        %v8394 = vmul.f32 %v8386, %v4513
        %v8395 = vmul.f32 %v8387, %v4513
        %v8396 = vadd.f32 %v8388, %v4527
        %v8397 = vadd.f32 %v8389, %v4527
        %v8398 = vadd.f32 %v8390, %v4527
        %v8399 = vadd.f32 %v8391, %v4527
        %v8400 = vadd.f32 %v8392, %v4527
        %v8401 = vadd.f32 %v8393, %v4527
        %v8402 = vadd.f32 %v8394, %v4527
        %v8403 = vadd.f32 %v8395, %v4527
        %s8404 = scalar_lea.vmem [#allocation3], 64
        %8405 = vst.msk [vmem:[%s8404] sm:$0xff] %vm405, %v8396
        %8406 = vst.msk [vmem:[%s8404 + $0x8] sm:$0xff] %vm405, %v8397
        %8407 = vst.msk [vmem:[%s8404 + $0x10] sm:$0xff] %vm405, %v8398
        %8408 = vst.msk [vmem:[%s8404 + $0x18] sm:$0xff] %vm405, %v8399
        %8409 = vst.msk [vmem:[%s8404 + $0x20] sm:$0xff] %vm405, %v8400
        %8410 = vst.msk [vmem:[%s8404 + $0x28] sm:$0xff] %vm405, %v8401
        %8411 = vst.msk [vmem:[%s8404 + $0x30] sm:$0xff] %vm405, %v8402
        %8412 = vst.msk [vmem:[%s8404 + $0x38] sm:$0xff] %vm405, %v8403
        %v8413 = vld [vmem:[%s5] sm:$0xff]
        %v8414 = vld [vmem:[%s5 + $0x8] sm:$0xff]
        %v8415 = vld [vmem:[%s5 + $0x10] sm:$0xff]
        %v8416 = vld [vmem:[%s5 + $0x18] sm:$0xff]
        %v8417 = vld [vmem:[%s6] sm:$0x1]
        %v8418 = vld [vmem:[#allocation3] sm:$0xff]
        %v8419 = vld [vmem:[#allocation3 + $0x8] sm:$0xff]
        %v8420 = vld [vmem:[#allocation3 + $0x10] sm:$0xff]
        %v8421 = vld [vmem:[#allocation3 + $0x18] sm:$0xff]
        %v8422 = vld [vmem:[#allocation3 + $0x20] sm:$0xff]
        %v8423 = vld [vmem:[#allocation3 + $0x28] sm:$0xff]
        %v8424 = vld [vmem:[#allocation3 + $0x30] sm:$0xff]
        %v8425 = vld [vmem:[#allocation3 + $0x38] sm:$0xff]
        %v8426 = vld [vmem:[#allocation3 + $0x40] sm:$0xff]
        %v8427 = vld [vmem:[#allocation3 + $0x48] sm:$0xff]
        %v8428 = vld [vmem:[#allocation3 + $0x50] sm:$0xff]
        %v8429 = vld [vmem:[#allocation3 + $0x58] sm:$0xff]
        %v8430 = vld [vmem:[#allocation3 + $0x60] sm:$0xff]
        %v8431 = vld [vmem:[#allocation3 + $0x68] sm:$0xff]
        %v8432 = vld [vmem:[#allocation3 + $0x70] sm:$0xff]
        %v8433 = vld [vmem:[#allocation3 + $0x78] sm:$0xff]
        %v8435 = vlaneseq
        %v8436 = vshrl.u32 %v8435, 7
        %v8437 = vsub.s32 0, %v8436
        %v8438 = vrot.slane %v8417, %v8437
        %v8441 = vsel %vm405, %v8418, 0
        %v8444 = vsel %vm405, %v8419, 0
        %v8447 = vsel %vm405, %v8420, 0
        %v8450 = vsel %vm405, %v8421, 0
        %v8453 = vsel %vm405, %v8422, 0
        %v8456 = vsel %vm405, %v8423, 0
        %v8459 = vsel %vm405, %v8424, 0
        %v8462 = vsel %vm405, %v8425, 0
        %v8465 = vsel %vm405, %v8426, 0
        %v8468 = vsel %vm405, %v8427, 0
        %v8471 = vsel %vm405, %v8428, 0
        %v8474 = vsel %vm405, %v8429, 0
        %v8477 = vsel %vm405, %v8430, 0
        %v8480 = vsel %vm405, %v8431, 0
        %v8483 = vsel %vm405, %v8432, 0
        %v8486 = vsel %vm405, %v8433, 0
        %8488 = vmatprep.subr.mxu0 0.0
        %8489 = vmatpush1.msra.mxu0 %v8413
        %8490 = vmatprep.subr.mxu0 0.0
        %8491 = vmatpush1.msra.mxu0 %v8414
        %8492 = vmatprep.subr.mxu0 0.0
        %8493 = vmatpush1.msra.mxu0 %v8415
        %8494 = vmatprep.subr.mxu0 0.0
        %8495 = vmatpush1.msra.mxu0 %v8416
        %8496 = vmatprep.subr.mxu0 0.0
        %8497 = vmatpush1.msra.mxu0 0.0
        %8498 = vmatprep.subr.mxu0 0.0
        %8499 = vmatpush1.msra.mxu0 0.0
        %8500 = vmatprep.subr.mxu0 0.0
        %8501 = vmatpush1.msra.mxu0 0.0
        %8502 = vmatprep.subr.mxu0 0.0
        %8503 = vmatpush1.msra.mxu0 0.0
        %8504 = vmatprep.subr.mxu0 0.0
        %8505 = vmatpush1.msra.mxu0 0.0
        %8506 = vmatprep.subr.mxu0 0.0
        %8507 = vmatpush1.msra.mxu0 0.0
        %8508 = vmatprep.subr.mxu0 0.0
        %8509 = vmatpush1.msra.mxu0 0.0
        %8510 = vmatprep.subr.mxu0 0.0
        %8511 = vmatpush1.msra.mxu0 0.0
        %8512 = vmatprep.subr.mxu0 0.0
        %8513 = vmatpush1.msra.mxu0 0.0
        %8514 = vmatprep.subr.mxu0 0.0
        %8515 = vmatpush1.msra.mxu0 0.0
        %8516 = vmatprep.subr.mxu0 0.0
        %8517 = vmatpush1.msra.mxu0 0.0
        %8518 = vmatprep.subr.mxu0 0.0
        %8519 = vmatpush1.msra.mxu0 0.0
        %8520 = vmatprep.subr.mxu0 0.0
        %8521 = vmatpush1.msra.mxu0 0.0
        %8522 = vmatprep.subr.mxu0 0.0
        %8523 = vmatpush1.msra.mxu0 0.0
        %8524 = vmatprep.subr.mxu0 0.0
        %8525 = vmatpush1.msra.mxu0 0.0
        %8526 = vmatprep.subr.mxu0 0.0
        %8527 = vmatpush1.msra.mxu0 0.0
        %8528 = vmatprep.subr.mxu0 0.0
        %8529 = vmatpush1.msra.mxu0 0.0
        %8530 = vmatprep.subr.mxu0 0.0
        %8531 = vmatpush1.msra.mxu0 0.0
        %8532 = vmatprep.subr.mxu0 0.0
        %8533 = vmatpush1.msra.mxu0 0.0
        %8534 = vmatprep.subr.mxu0 0.0
        %8535 = vmatpush1.msra.mxu0 0.0
        %8536 = vmatprep.subr.mxu0 0.0
        %8537 = vmatpush1.msra.mxu0 0.0
        %8538 = vmatprep.subr.mxu0 0.0
        %8539 = vmatpush1.msra.mxu0 0.0
        %8540 = vmatprep.subr.mxu0 0.0
        %8541 = vmatpush1.msra.mxu0 0.0
        %8542 = vmatprep.subr.mxu0 0.0
        %8543 = vmatpush1.msra.mxu0 0.0
        %8544 = vmatprep.subr.mxu0 0.0
        %8545 = vmatpush1.msra.mxu0 0.0
        %8546 = vmatprep.subr.mxu0 0.0
        %8547 = vmatpush1.msra.mxu0 0.0
        %8548 = vmatprep.subr.mxu0 0.0
        %8549 = vmatpush1.msra.mxu0 0.0
        %8550 = vmatprep.subr.mxu0 0.0
        %8551 = vmatpush1.msra.mxu0 0.0
        %8552 = vmatprep.mubr.f32.mxu0 0.0
        %8553 = vmatmul.mubr.f32.gmra.mrb[0].mxu0 %v8441
        %v8554 = vpop.f32.mrb[0].mxu0
        %v8555 = vadd.f32 %v8438, %v8554
        %v8556 = vpop.f32.mrb[0].mxu0
        %8557 = vmatprep.mubr.f32.mxu0 0.0
        %8558 = vmatmul.mubr.f32.gmra.mrb[0].mxu0 %v8444
        %v8559 = vpop.f32.mrb[0].mxu0
        %v8560 = vadd.f32 %v8438, %v8559
        %v8561 = vpop.f32.mrb[0].mxu0
        %8562 = vmatprep.mubr.f32.mxu0 0.0
        %8563 = vmatmul.mubr.f32.gmra.mrb[0].mxu0 %v8447
        %v8564 = vpop.f32.mrb[0].mxu0
        %v8565 = vadd.f32 %v8438, %v8564
        %v8566 = vpop.f32.mrb[0].mxu0
        %8567 = vmatprep.mubr.f32.mxu0 0.0
        %8568 = vmatmul.mubr.f32.gmra.mrb[0].mxu0 %v8450
        %v8569 = vpop.f32.mrb[0].mxu0
        %v8570 = vadd.f32 %v8438, %v8569
        %v8571 = vpop.f32.mrb[0].mxu0
        %8572 = vmatprep.mubr.f32.mxu0 0.0
        %8573 = vmatmul.mubr.f32.gmra.mrb[0].mxu0 %v8453
        %v8574 = vpop.f32.mrb[0].mxu0
        %v8575 = vadd.f32 %v8438, %v8574
        %v8576 = vpop.f32.mrb[0].mxu0
        %8577 = vmatprep.mubr.f32.mxu0 0.0
        %8578 = vmatmul.mubr.f32.gmra.mrb[0].mxu0 %v8456
        %v8579 = vpop.f32.mrb[0].mxu0
        %v8580 = vadd.f32 %v8438, %v8579
        %v8581 = vpop.f32.mrb[0].mxu0
        %8582 = vmatprep.mubr.f32.mxu0 0.0
        %8583 = vmatmul.mubr.f32.gmra.mrb[0].mxu0 %v8459
        %v8584 = vpop.f32.mrb[0].mxu0
        %v8585 = vadd.f32 %v8438, %v8584
        %v8586 = vpop.f32.mrb[0].mxu0
        %8587 = vmatprep.mubr.f32.mxu0 0.0
        %8588 = vmatmul.mubr.f32.gmra.mrb[0].mxu0 %v8462
        %v8589 = vpop.f32.mrb[0].mxu0
        %v8590 = vadd.f32 %v8438, %v8589
        %v8591 = vpop.f32.mrb[0].mxu0
        %8592 = vmatprep.mubr.f32.mxu0 0.0
        %8593 = vmatmul.mubr.f32.gmra.mrb[0].mxu0 %v8465
        %v8594 = vpop.f32.mrb[0].mxu0
        %v8595 = vadd.f32 %v8438, %v8594
        %v8596 = vpop.f32.mrb[0].mxu0
        %8597 = vmatprep.mubr.f32.mxu0 0.0
        %8598 = vmatmul.mubr.f32.gmra.mrb[0].mxu0 %v8468
        %v8599 = vpop.f32.mrb[0].mxu0
        %v8600 = vadd.f32 %v8438, %v8599
        %v8601 = vpop.f32.mrb[0].mxu0
        %8602 = vmatprep.mubr.f32.mxu0 0.0
        %8603 = vmatmul.mubr.f32.gmra.mrb[0].mxu0 %v8471
        %v8604 = vpop.f32.mrb[0].mxu0
        %v8605 = vadd.f32 %v8438, %v8604
        %v8606 = vpop.f32.mrb[0].mxu0
        %8607 = vmatprep.mubr.f32.mxu0 0.0
        %8608 = vmatmul.mubr.f32.gmra.mrb[0].mxu0 %v8474
        %v8609 = vpop.f32.mrb[0].mxu0
        %v8610 = vadd.f32 %v8438, %v8609
        %v8611 = vpop.f32.mrb[0].mxu0
        %8612 = vmatprep.mubr.f32.mxu0 0.0
        %8613 = vmatmul.mubr.f32.gmra.mrb[0].mxu0 %v8477
        %v8614 = vpop.f32.mrb[0].mxu0
        %v8615 = vadd.f32 %v8438, %v8614
        %v8616 = vpop.f32.mrb[0].mxu0
        %8617 = vmatprep.mubr.f32.mxu0 0.0
        %8618 = vmatmul.mubr.f32.gmra.mrb[0].mxu0 %v8480
        %v8619 = vpop.f32.mrb[0].mxu0
        %v8620 = vadd.f32 %v8438, %v8619
        %v8621 = vpop.f32.mrb[0].mxu0
        %8622 = vmatprep.mubr.f32.mxu0 0.0
        %8623 = vmatmul.mubr.f32.gmra.mrb[0].mxu0 %v8483
        %v8624 = vpop.f32.mrb[0].mxu0
        %v8625 = vadd.f32 %v8438, %v8624
        %v8626 = vpop.f32.mrb[0].mxu0
        %8627 = vmatprep.mubr.f32.mxu0 0.0
        %8628 = vmatmul.mubr.f32.gmra.mrb[0].mxu0 %v8486
        %v8629 = vpop.f32.mrb[0].mxu0
        %v8630 = vadd.f32 %v8438, %v8629
        %v8631 = vpop.f32.mrb[0].mxu0
        %8632 = vdwg.mxu0
        %v8633 = vmul.f32 %v8555, 0.5
        %v8634 = vmul.f32 %v8560, 0.5
        %v8635 = vmul.f32 %v8565, 0.5
        %v8636 = vmul.f32 %v8570, 0.5
        %v8637 = vmul.f32 %v8575, 0.5
        %v8638 = vmul.f32 %v8580, 0.5
        %v8639 = vmul.f32 %v8585, 0.5
        %v8640 = vmul.f32 %v8590, 0.5
        %v8641 = vmul.f32 %v8595, 0.5
        %v8642 = vmul.f32 %v8600, 0.5
        %v8643 = vmul.f32 %v8605, 0.5
        %v8644 = vmul.f32 %v8610, 0.5
        %v8645 = vmul.f32 %v8615, 0.5
        %v8646 = vmul.f32 %v8620, 0.5
        %v8647 = vmul.f32 %v8625, 0.5
        %v8648 = vmul.f32 %v8630, 0.5
        %v8649 = vmul.f32 %v8555, 0.70710677
        %v8650 = vmul.f32 %v8560, 0.70710677
        %v8651 = vmul.f32 %v8565, 0.70710677
        %v8652 = vmul.f32 %v8570, 0.70710677
        %v8653 = vmul.f32 %v8575, 0.70710677
        %v8654 = vmul.f32 %v8580, 0.70710677
        %v8655 = vmul.f32 %v8585, 0.70710677
        %v8656 = vmul.f32 %v8590, 0.70710677
        %v8657 = vmul.f32 %v8595, 0.70710677
        %v8658 = vmul.f32 %v8600, 0.70710677
        %v8659 = vmul.f32 %v8605, 0.70710677
        %v8660 = vmul.f32 %v8610, 0.70710677
        %v8661 = vmul.f32 %v8615, 0.70710677
        %v8662 = vmul.f32 %v8620, 0.70710677
        %v8663 = vmul.f32 %v8625, 0.70710677
        %v8664 = vmul.f32 %v8630, 0.70710677
        %v8665 = vand.u32 2147483647, %v8649
        %v8666 = vand.u32 2147483647, %v8650
        %v8667 = vand.u32 2147483647, %v8651
        %v8668 = vand.u32 2147483647, %v8652
        %v8669 = vand.u32 2147483647, %v8653
        %v8670 = vand.u32 2147483647, %v8654
        %v8671 = vand.u32 2147483647, %v8655
        %v8672 = vand.u32 2147483647, %v8656
        %v8673 = vand.u32 2147483647, %v8657
        %v8674 = vand.u32 2147483647, %v8658
        %v8675 = vand.u32 2147483647, %v8659
        %v8676 = vand.u32 2147483647, %v8660
        %v8677 = vand.u32 2147483647, %v8661
        %v8678 = vand.u32 2147483647, %v8662
        %v8679 = vand.u32 2147483647, %v8663
        %v8680 = vand.u32 2147483647, %v8664
        %v8681 = vmul.f32 %v8665, 0.3275911
        %v8682 = vmul.f32 %v8666, 0.3275911
        %v8683 = vmul.f32 %v8667, 0.3275911
        %v8684 = vmul.f32 %v8668, 0.3275911
        %v8685 = vmul.f32 %v8669, 0.3275911
        %v8686 = vmul.f32 %v8670, 0.3275911
        %v8687 = vmul.f32 %v8671, 0.3275911
        %v8688 = vmul.f32 %v8672, 0.3275911
        %v8689 = vmul.f32 %v8673, 0.3275911
        %v8690 = vmul.f32 %v8674, 0.3275911
        %v8691 = vmul.f32 %v8675, 0.3275911
        %v8692 = vmul.f32 %v8676, 0.3275911
        %v8693 = vmul.f32 %v8677, 0.3275911
        %v8694 = vmul.f32 %v8678, 0.3275911
        %v8695 = vmul.f32 %v8679, 0.3275911
        %v8696 = vmul.f32 %v8680, 0.3275911
        %v8697 = vadd.f32 %v8681, 1.0
        %v8698 = vadd.f32 %v8682, 1.0
        %v8699 = vadd.f32 %v8683, 1.0
        %v8700 = vadd.f32 %v8684, 1.0
        %v8701 = vadd.f32 %v8685, 1.0
        %v8702 = vadd.f32 %v8686, 1.0
        %v8703 = vadd.f32 %v8687, 1.0
        %v8704 = vadd.f32 %v8688, 1.0
        %v8705 = vadd.f32 %v8689, 1.0
        %v8706 = vadd.f32 %v8690, 1.0
        %v8707 = vadd.f32 %v8691, 1.0
        %v8708 = vadd.f32 %v8692, 1.0
        %v8709 = vadd.f32 %v8693, 1.0
        %v8710 = vadd.f32 %v8694, 1.0
        %v8711 = vadd.f32 %v8695, 1.0
        %v8712 = vadd.f32 %v8696, 1.0
        %v8713 = vrcp.pop %v8697
        %v8714 = vmul.f32 1.0, %v8713
        %v8715 = vrcp.pop %v8698
        %v8716 = vmul.f32 1.0, %v8715
        %v8717 = vrcp.pop %v8699
        %v8718 = vmul.f32 1.0, %v8717
        %v8719 = vrcp.pop %v8700
        %v8720 = vmul.f32 1.0, %v8719
        %v8721 = vrcp.pop %v8701
        %v8722 = vmul.f32 1.0, %v8721
        %v8723 = vrcp.pop %v8702
        %v8724 = vmul.f32 1.0, %v8723
        %v8725 = vrcp.pop %v8703
        %v8726 = vmul.f32 1.0, %v8725
        %v8727 = vrcp.pop %v8704
        %v8728 = vmul.f32 1.0, %v8727
        %v8729 = vrcp.pop %v8705
        %v8730 = vmul.f32 1.0, %v8729
        %v8731 = vrcp.pop %v8706
        %v8732 = vmul.f32 1.0, %v8731
        %v8733 = vrcp.pop %v8707
        %v8734 = vmul.f32 1.0, %v8733
        %v8735 = vrcp.pop %v8708
        %v8736 = vmul.f32 1.0, %v8735
        %v8737 = vrcp.pop %v8709
        %v8738 = vmul.f32 1.0, %v8737
        %v8739 = vrcp.pop %v8710
        %v8740 = vmul.f32 1.0, %v8739
        %v8741 = vrcp.pop %v8711
        %v8742 = vmul.f32 1.0, %v8741
        %v8743 = vrcp.pop %v8712
        %v8744 = vmul.f32 1.0, %v8743
        %v8745 = vmul.f32 %v8714, 1.0614054
        %v8746 = vmul.f32 %v8716, 1.0614054
        %v8747 = vmul.f32 %v8718, 1.0614054
        %v8748 = vmul.f32 %v8720, 1.0614054
        %v8749 = vmul.f32 %v8722, 1.0614054
        %v8750 = vmul.f32 %v8724, 1.0614054
        %v8751 = vmul.f32 %v8726, 1.0614054
        %v8752 = vmul.f32 %v8728, 1.0614054
        %v8753 = vmul.f32 %v8730, 1.0614054
        %v8754 = vmul.f32 %v8732, 1.0614054
        %v8755 = vmul.f32 %v8734, 1.0614054
        %v8756 = vmul.f32 %v8736, 1.0614054
        %v8757 = vmul.f32 %v8738, 1.0614054
        %v8758 = vmul.f32 %v8740, 1.0614054
        %v8759 = vmul.f32 %v8742, 1.0614054
        %v8760 = vmul.f32 %v8744, 1.0614054
        %v8761 = vadd.f32 %v8745, -1.4531521
        %v8762 = vadd.f32 %v8746, -1.4531521
        %v8763 = vadd.f32 %v8747, -1.4531521
        %v8764 = vadd.f32 %v8748, -1.4531521
        %v8765 = vadd.f32 %v8749, -1.4531521
        %v8766 = vadd.f32 %v8750, -1.4531521
        %v8767 = vadd.f32 %v8751, -1.4531521
        %v8768 = vadd.f32 %v8752, -1.4531521
        %v8769 = vadd.f32 %v8753, -1.4531521
        %v8770 = vadd.f32 %v8754, -1.4531521
        %v8771 = vadd.f32 %v8755, -1.4531521
        %v8772 = vadd.f32 %v8756, -1.4531521
        %v8773 = vadd.f32 %v8757, -1.4531521
        %v8774 = vadd.f32 %v8758, -1.4531521
        %v8775 = vadd.f32 %v8759, -1.4531521
        %v8776 = vadd.f32 %v8760, -1.4531521
        %v8777 = vmul.f32 %v8761, %v8714
        %v8778 = vmul.f32 %v8762, %v8716
        %v8779 = vmul.f32 %v8763, %v8718
        %v8780 = vmul.f32 %v8764, %v8720
        %v8781 = vmul.f32 %v8765, %v8722
        %v8782 = vmul.f32 %v8766, %v8724
        %v8783 = vmul.f32 %v8767, %v8726
        %v8784 = vmul.f32 %v8768, %v8728
        %v8785 = vmul.f32 %v8769, %v8730
        %v8786 = vmul.f32 %v8770, %v8732
        %v8787 = vmul.f32 %v8771, %v8734
        %v8788 = vmul.f32 %v8772, %v8736
        %v8789 = vmul.f32 %v8773, %v8738
        %v8790 = vmul.f32 %v8774, %v8740
        %v8791 = vmul.f32 %v8775, %v8742
        %v8792 = vmul.f32 %v8776, %v8744
        %v8793 = vadd.f32 %v8777, 1.4214138
        %v8794 = vadd.f32 %v8778, 1.4214138
        %v8795 = vadd.f32 %v8779, 1.4214138
        %v8796 = vadd.f32 %v8780, 1.4214138
        %v8797 = vadd.f32 %v8781, 1.4214138
        %v8798 = vadd.f32 %v8782, 1.4214138
        %v8799 = vadd.f32 %v8783, 1.4214138
        %v8800 = vadd.f32 %v8784, 1.4214138
        %v8801 = vadd.f32 %v8785, 1.4214138
        %v8802 = vadd.f32 %v8786, 1.4214138
        %v8803 = vadd.f32 %v8787, 1.4214138
        %v8804 = vadd.f32 %v8788, 1.4214138
        %v8805 = vadd.f32 %v8789, 1.4214138
        %v8806 = vadd.f32 %v8790, 1.4214138
        %v8807 = vadd.f32 %v8791, 1.4214138
        %v8808 = vadd.f32 %v8792, 1.4214138
        %v8809 = vmul.f32 %v8793, %v8714
        %v8810 = vmul.f32 %v8794, %v8716
        %v8811 = vmul.f32 %v8795, %v8718
        %v8812 = vmul.f32 %v8796, %v8720
        %v8813 = vmul.f32 %v8797, %v8722
        %v8814 = vmul.f32 %v8798, %v8724
        %v8815 = vmul.f32 %v8799, %v8726
        %v8816 = vmul.f32 %v8800, %v8728
        %v8817 = vmul.f32 %v8801, %v8730
        %v8818 = vmul.f32 %v8802, %v8732
        %v8819 = vmul.f32 %v8803, %v8734
        %v8820 = vmul.f32 %v8804, %v8736
        %v8821 = vmul.f32 %v8805, %v8738
        %v8822 = vmul.f32 %v8806, %v8740
        %v8823 = vmul.f32 %v8807, %v8742
        %v8824 = vmul.f32 %v8808, %v8744
        %v8825 = vadd.f32 %v8809, -0.28449672
        %v8826 = vadd.f32 %v8810, -0.28449672
        %v8827 = vadd.f32 %v8811, -0.28449672
        %v8828 = vadd.f32 %v8812, -0.28449672
        %v8829 = vadd.f32 %v8813, -0.28449672
        %v8830 = vadd.f32 %v8814, -0.28449672
        %v8831 = vadd.f32 %v8815, -0.28449672
        %v8832 = vadd.f32 %v8816, -0.28449672
        %v8833 = vadd.f32 %v8817, -0.28449672
        %v8834 = vadd.f32 %v8818, -0.28449672
        %v8835 = vadd.f32 %v8819, -0.28449672
        %v8836 = vadd.f32 %v8820, -0.28449672
        %v8837 = vadd.f32 %v8821, -0.28449672
        %v8838 = vadd.f32 %v8822, -0.28449672
        %v8839 = vadd.f32 %v8823, -0.28449672
        %v8840 = vadd.f32 %v8824, -0.28449672
        %v8841 = vmul.f32 %v8825, %v8714
        %v8842 = vmul.f32 %v8826, %v8716
        %v8843 = vmul.f32 %v8827, %v8718
        %v8844 = vmul.f32 %v8828, %v8720
        %v8845 = vmul.f32 %v8829, %v8722
        %v8846 = vmul.f32 %v8830, %v8724
        %v8847 = vmul.f32 %v8831, %v8726
        %v8848 = vmul.f32 %v8832, %v8728
        %v8849 = vmul.f32 %v8833, %v8730
        %v8850 = vmul.f32 %v8834, %v8732
        %v8851 = vmul.f32 %v8835, %v8734
        %v8852 = vmul.f32 %v8836, %v8736
        %v8853 = vmul.f32 %v8837, %v8738
        %v8854 = vmul.f32 %v8838, %v8740
        %v8855 = vmul.f32 %v8839, %v8742
        %v8856 = vmul.f32 %v8840, %v8744
        %v8857 = vadd.f32 %v8841, 0.2548296
        %v8858 = vadd.f32 %v8842, 0.2548296
        %v8859 = vadd.f32 %v8843, 0.2548296
        %v8860 = vadd.f32 %v8844, 0.2548296
        %v8861 = vadd.f32 %v8845, 0.2548296
        %v8862 = vadd.f32 %v8846, 0.2548296
        %v8863 = vadd.f32 %v8847, 0.2548296
        %v8864 = vadd.f32 %v8848, 0.2548296
        %v8865 = vadd.f32 %v8849, 0.2548296
        %v8866 = vadd.f32 %v8850, 0.2548296
        %v8867 = vadd.f32 %v8851, 0.2548296
        %v8868 = vadd.f32 %v8852, 0.2548296
        %v8869 = vadd.f32 %v8853, 0.2548296
        %v8870 = vadd.f32 %v8854, 0.2548296
        %v8871 = vadd.f32 %v8855, 0.2548296
        %v8872 = vadd.f32 %v8856, 0.2548296
        %v8873 = vmul.f32 %v8857, %v8714
        %v8874 = vmul.f32 %v8858, %v8716
        %v8875 = vmul.f32 %v8859, %v8718
        %v8876 = vmul.f32 %v8860, %v8720
        %v8877 = vmul.f32 %v8861, %v8722
        %v8878 = vmul.f32 %v8862, %v8724
        %v8879 = vmul.f32 %v8863, %v8726
        %v8880 = vmul.f32 %v8864, %v8728
        %v8881 = vmul.f32 %v8865, %v8730
        %v8882 = vmul.f32 %v8866, %v8732
        %v8883 = vmul.f32 %v8867, %v8734
        %v8884 = vmul.f32 %v8868, %v8736
        %v8885 = vmul.f32 %v8869, %v8738
        %v8886 = vmul.f32 %v8870, %v8740
        %v8887 = vmul.f32 %v8871, %v8742
        %v8888 = vmul.f32 %v8872, %v8744
        %v8889 = vsub.f32 0.0, %v8665
        %v8890 = vsub.f32 0.0, %v8666
        %v8891 = vsub.f32 0.0, %v8667
        %v8892 = vsub.f32 0.0, %v8668
        %v8893 = vsub.f32 0.0, %v8669
        %v8894 = vsub.f32 0.0, %v8670
        %v8895 = vsub.f32 0.0, %v8671
        %v8896 = vsub.f32 0.0, %v8672
        %v8897 = vsub.f32 0.0, %v8673
        %v8898 = vsub.f32 0.0, %v8674
        %v8899 = vsub.f32 0.0, %v8675
        %v8900 = vsub.f32 0.0, %v8676
        %v8901 = vsub.f32 0.0, %v8677
        %v8902 = vsub.f32 0.0, %v8678
        %v8903 = vsub.f32 0.0, %v8679
        %v8904 = vsub.f32 0.0, %v8680
        %v8905 = vmul.f32 %v8889, %v8665
        %v8906 = vmul.f32 %v8890, %v8666
        %v8907 = vmul.f32 %v8891, %v8667
        %v8908 = vmul.f32 %v8892, %v8668
        %v8909 = vmul.f32 %v8893, %v8669
        %v8910 = vmul.f32 %v8894, %v8670
        %v8911 = vmul.f32 %v8895, %v8671
        %v8912 = vmul.f32 %v8896, %v8672
        %v8913 = vmul.f32 %v8897, %v8673
        %v8914 = vmul.f32 %v8898, %v8674
        %v8915 = vmul.f32 %v8899, %v8675
        %v8916 = vmul.f32 %v8900, %v8676
        %v8917 = vmul.f32 %v8901, %v8677
        %v8918 = vmul.f32 %v8902, %v8678
        %v8919 = vmul.f32 %v8903, %v8679
        %v8920 = vmul.f32 %v8904, %v8680
        %v8921 = vmul.f32 %v8905, 1.442695
        %v8922 = vpow.pop %v8921
        %v8923 = vmul.f32 %v8906, 1.442695
        %v8924 = vpow.pop %v8923
        %v8925 = vmul.f32 %v8907, 1.442695
        %v8926 = vpow.pop %v8925
        %v8927 = vmul.f32 %v8908, 1.442695
        %v8928 = vpow.pop %v8927
        %v8929 = vmul.f32 %v8909, 1.442695
        %v8930 = vpow.pop %v8929
        %v8931 = vmul.f32 %v8910, 1.442695
        %v8932 = vpow.pop %v8931
        %v8933 = vmul.f32 %v8911, 1.442695
        %v8934 = vpow.pop %v8933
        %v8935 = vmul.f32 %v8912, 1.442695
        %v8936 = vpow.pop %v8935
        %v8937 = vmul.f32 %v8913, 1.442695
        %v8938 = vpow.pop %v8937
        %v8939 = vmul.f32 %v8914, 1.442695
        %v8940 = vpow.pop %v8939
        %v8941 = vmul.f32 %v8915, 1.442695
        %v8942 = vpow.pop %v8941
        %v8943 = vmul.f32 %v8916, 1.442695
        %v8944 = vpow.pop %v8943
        %v8945 = vmul.f32 %v8917, 1.442695
        %v8946 = vpow.pop %v8945
        %v8947 = vmul.f32 %v8918, 1.442695
        %v8948 = vpow.pop %v8947
        %v8949 = vmul.f32 %v8919, 1.442695
        %v8950 = vpow.pop %v8949
        %v8951 = vmul.f32 %v8920, 1.442695
        %v8952 = vpow.pop %v8951
        %v8953 = vmul.f32 %v8873, %v8922
        %v8954 = vmul.f32 %v8874, %v8924
        %v8955 = vmul.f32 %v8875, %v8926
        %v8956 = vmul.f32 %v8876, %v8928
        %v8957 = vmul.f32 %v8877, %v8930
        %v8958 = vmul.f32 %v8878, %v8932
        %v8959 = vmul.f32 %v8879, %v8934
        %v8960 = vmul.f32 %v8880, %v8936
        %v8961 = vmul.f32 %v8881, %v8938
        %v8962 = vmul.f32 %v8882, %v8940
        %v8963 = vmul.f32 %v8883, %v8942
        %v8964 = vmul.f32 %v8884, %v8944
        %v8965 = vmul.f32 %v8885, %v8946
        %v8966 = vmul.f32 %v8886, %v8948
        %v8967 = vmul.f32 %v8887, %v8950
        %v8968 = vmul.f32 %v8888, %v8952
        %v8969 = vsub.f32 1.0, %v8953
        %v8970 = vsub.f32 1.0, %v8954
        %v8971 = vsub.f32 1.0, %v8955
        %v8972 = vsub.f32 1.0, %v8956
        %v8973 = vsub.f32 1.0, %v8957
        %v8974 = vsub.f32 1.0, %v8958
        %v8975 = vsub.f32 1.0, %v8959
        %v8976 = vsub.f32 1.0, %v8960
        %v8977 = vsub.f32 1.0, %v8961
        %v8978 = vsub.f32 1.0, %v8962
        %v8979 = vsub.f32 1.0, %v8963
        %v8980 = vsub.f32 1.0, %v8964
        %v8981 = vsub.f32 1.0, %v8965
        %v8982 = vsub.f32 1.0, %v8966
        %v8983 = vsub.f32 1.0, %v8967
        %v8984 = vsub.f32 1.0, %v8968
        %vm8985 = vcmp.lt.f32.partialorder %v8649, 0.0
        %vm8986 = vcmp.lt.f32.partialorder %v8650, 0.0
        %vm8987 = vcmp.lt.f32.partialorder %v8651, 0.0
        %vm8988 = vcmp.lt.f32.partialorder %v8652, 0.0
        %vm8989 = vcmp.lt.f32.partialorder %v8653, 0.0
        %vm8990 = vcmp.lt.f32.partialorder %v8654, 0.0
        %vm8991 = vcmp.lt.f32.partialorder %v8655, 0.0
        %vm8992 = vcmp.lt.f32.partialorder %v8656, 0.0
        %vm8993 = vcmp.lt.f32.partialorder %v8657, 0.0
        %vm8994 = vcmp.lt.f32.partialorder %v8658, 0.0
        %vm8995 = vcmp.lt.f32.partialorder %v8659, 0.0
        %vm8996 = vcmp.lt.f32.partialorder %v8660, 0.0
        %vm8997 = vcmp.lt.f32.partialorder %v8661, 0.0
        %vm8998 = vcmp.lt.f32.partialorder %v8662, 0.0
        %vm8999 = vcmp.lt.f32.partialorder %v8663, 0.0
        %vm9000 = vcmp.lt.f32.partialorder %v8664, 0.0
        %v9001 = vsub.f32 0.0, %v8969
        %v9002 = vsub.f32 0.0, %v8970
        %v9003 = vsub.f32 0.0, %v8971
        %v9004 = vsub.f32 0.0, %v8972
        %v9005 = vsub.f32 0.0, %v8973
        %v9006 = vsub.f32 0.0, %v8974
        %v9007 = vsub.f32 0.0, %v8975
        %v9008 = vsub.f32 0.0, %v8976
        %v9009 = vsub.f32 0.0, %v8977
        %v9010 = vsub.f32 0.0, %v8978
        %v9011 = vsub.f32 0.0, %v8979
        %v9012 = vsub.f32 0.0, %v8980
        %v9013 = vsub.f32 0.0, %v8981
        %v9014 = vsub.f32 0.0, %v8982
        %v9015 = vsub.f32 0.0, %v8983
        %v9016 = vsub.f32 0.0, %v8984
        %v9017 = vsel %vm8985, %v9001, %v8969
        %v9018 = vsel %vm8986, %v9002, %v8970
        %v9019 = vsel %vm8987, %v9003, %v8971
        %v9020 = vsel %vm8988, %v9004, %v8972
        %v9021 = vsel %vm8989, %v9005, %v8973
        %v9022 = vsel %vm8990, %v9006, %v8974
        %v9023 = vsel %vm8991, %v9007, %v8975
        %v9024 = vsel %vm8992, %v9008, %v8976
        %v9025 = vsel %vm8993, %v9009, %v8977
        %v9026 = vsel %vm8994, %v9010, %v8978
        %v9027 = vsel %vm8995, %v9011, %v8979
        %v9028 = vsel %vm8996, %v9012, %v8980
        %v9029 = vsel %vm8997, %v9013, %v8981
        %v9030 = vsel %vm8998, %v9014, %v8982
        %v9031 = vsel %vm8999, %v9015, %v8983
        %v9032 = vsel %vm9000, %v9016, %v8984
        %v9033 = vadd.f32 %v9017, 1.0
        %v9034 = vadd.f32 %v9018, 1.0
        %v9035 = vadd.f32 %v9019, 1.0
        %v9036 = vadd.f32 %v9020, 1.0
        %v9037 = vadd.f32 %v9021, 1.0
        %v9038 = vadd.f32 %v9022, 1.0
        %v9039 = vadd.f32 %v9023, 1.0
        %v9040 = vadd.f32 %v9024, 1.0
        %v9041 = vadd.f32 %v9025, 1.0
        %v9042 = vadd.f32 %v9026, 1.0
        %v9043 = vadd.f32 %v9027, 1.0
        %v9044 = vadd.f32 %v9028, 1.0
        %v9045 = vadd.f32 %v9029, 1.0
        %v9046 = vadd.f32 %v9030, 1.0
        %v9047 = vadd.f32 %v9031, 1.0
        %v9048 = vadd.f32 %v9032, 1.0
        %v9049 = vmul.f32 %v8633, %v9033
        %v9050 = vmul.f32 %v8634, %v9034
        %v9051 = vmul.f32 %v8635, %v9035
        %v9052 = vmul.f32 %v8636, %v9036
        %v9053 = vmul.f32 %v8637, %v9037
        %v9054 = vmul.f32 %v8638, %v9038
        %v9055 = vmul.f32 %v8639, %v9039
        %v9056 = vmul.f32 %v8640, %v9040
        %v9057 = vmul.f32 %v8641, %v9041
        %v9058 = vmul.f32 %v8642, %v9042
        %v9059 = vmul.f32 %v8643, %v9043
        %v9060 = vmul.f32 %v8644, %v9044
        %v9061 = vmul.f32 %v8645, %v9045
        %v9062 = vmul.f32 %v8646, %v9046
        %v9063 = vmul.f32 %v8647, %v9047
        %v9064 = vmul.f32 %v8648, %v9048
        %9065 = vst [vmem:[#allocation4] sm:$0xff] %v9049
        %9066 = vst [vmem:[#allocation4 + $0x8] sm:$0xff] %v9050
        %9067 = vst [vmem:[#allocation4 + $0x10] sm:$0xff] %v9051
        %9068 = vst [vmem:[#allocation4 + $0x18] sm:$0xff] %v9052
        %9069 = vst [vmem:[#allocation4 + $0x20] sm:$0xff] %v9053
        %9070 = vst [vmem:[#allocation4 + $0x28] sm:$0xff] %v9054
        %9071 = vst [vmem:[#allocation4 + $0x30] sm:$0xff] %v9055
        %9072 = vst [vmem:[#allocation4 + $0x38] sm:$0xff] %v9056
        %9073 = vst [vmem:[#allocation4 + $0x40] sm:$0xff] %v9057
        %9074 = vst [vmem:[#allocation4 + $0x48] sm:$0xff] %v9058
        %9075 = vst [vmem:[#allocation4 + $0x50] sm:$0xff] %v9059
        %9076 = vst [vmem:[#allocation4 + $0x58] sm:$0xff] %v9060
        %9077 = vst [vmem:[#allocation4 + $0x60] sm:$0xff] %v9061
        %9078 = vst [vmem:[#allocation4 + $0x68] sm:$0xff] %v9062
        %9079 = vst [vmem:[#allocation4 + $0x70] sm:$0xff] %v9063
        %9080 = vst [vmem:[#allocation4 + $0x78] sm:$0xff] %v9064
        %v9081 = vmul.f32 %v9049, %v9049
        %v9082 = vmul.f32 %v9050, %v9050
        %v9083 = vmul.f32 %v9051, %v9051
        %v9084 = vmul.f32 %v9052, %v9052
        %v9085 = vmul.f32 %v9053, %v9053
        %v9086 = vmul.f32 %v9054, %v9054
        %v9087 = vmul.f32 %v9055, %v9055
        %v9088 = vmul.f32 %v9056, %v9056
        %v9089 = vmul.f32 %v9057, %v9057
        %v9090 = vmul.f32 %v9058, %v9058
        %v9091 = vmul.f32 %v9059, %v9059
        %v9092 = vmul.f32 %v9060, %v9060
        %v9093 = vmul.f32 %v9061, %v9061
        %v9094 = vmul.f32 %v9062, %v9062
        %v9095 = vmul.f32 %v9063, %v9063
        %v9096 = vmul.f32 %v9064, %v9064
        %v9097 = vadd.f32 %v9081, %v9082
        %v9098 = vadd.f32 %v9097, %v9083
        %v9099 = vadd.f32 %v9098, %v9084
        %v9100 = vadd.f32 %v9099, %v9085
        %v9101 = vadd.f32 %v9100, %v9086
        %v9102 = vadd.f32 %v9101, %v9087
        %v9103 = vadd.f32 %v9102, %v9088
        %v9104 = vadd.f32 %v9103, %v9089
        %v9105 = vadd.f32 %v9104, %v9090
        %v9106 = vadd.f32 %v9105, %v9091
        %v9107 = vadd.f32 %v9106, %v9092
        %v9108 = vadd.f32 %v9107, %v9093
        %v9109 = vadd.f32 %v9108, %v9094
        %v9110 = vadd.f32 %v9109, %v9095
        %v9111 = vadd.f32 %v9110, %v9096
        %v9112 = vrot.slane %v9111, 4
        %v9113 = vadd.f32 %v9111, %v9112
        %v9114 = vrot.slane %v9113, 2
        %v9115 = vadd.f32 %v9113, %v9114
        %v9116 = vrot.slane %v9115, 1
        %v9117 = vadd.f32 %v9115, %v9116
        %v9118 = vadd.f32 %v9117, 0.0
        %v9119 = vrsqrt.pop %v9118
        %v9120 = vmul.f32 %v9118, %v9119
        %vm9121 = vcmp.eq.f32.partialorder %v9118, inf
        %v9122 = vsel %vm9121, %v9118, %v9120
        %vm9123 = vcmp.eq.f32.partialorder %v9118, 0.0
        %v9124 = vand.u32 %v9118, 2147483648
        %v9125 = vsel %vm9123, %v9124, %v9122
        %9126 = vadd.xlane.f32.xlu0 %v9125
        %v9127 = vpop.xlane.xlu0 %9126
        %v9128 = vrcp.pop 128.0
        %v9129 = vmul.f32 %v9127, %v9128
        %v9130 = vadd.f32 %v9129, 1e-06
        %v9131 = vrcp.pop %v9130
        %v9132 = vmul.f32 %v9125, %v9131
        %v9133 = vld [vmem:[%s7] sm:$0x1]
        %v9134 = vmul.f32 %v9133, %v9132
        %v9135 = vadd.f32 %v9134, 1.0
        %v9136 = vld [vmem:[%s8] sm:$0x1]
        %v9137 = vld [vmem:[%s10] sm:$0x1]
        %v9138 = vld [vmem:[%s9] sm:$0xff]
        %v9139 = vld [vmem:[%s9 + $0x8] sm:$0xff]
        %v9140 = vld [vmem:[%s9 + $0x10] sm:$0xff]
        %v9141 = vld [vmem:[%s9 + $0x18] sm:$0xff]
        %v9142 = vld [vmem:[%s9 + $0x20] sm:$0xff]
        %v9143 = vld [vmem:[%s9 + $0x28] sm:$0xff]
        %v9144 = vld [vmem:[%s9 + $0x30] sm:$0xff]
        %v9145 = vld [vmem:[%s9 + $0x38] sm:$0xff]
        %v9146 = vld [vmem:[%s9 + $0x40] sm:$0xff]
        %v9147 = vld [vmem:[%s9 + $0x48] sm:$0xff]
        %v9148 = vld [vmem:[%s9 + $0x50] sm:$0xff]
        %v9149 = vld [vmem:[%s9 + $0x58] sm:$0xff]
        %v9150 = vld [vmem:[%s9 + $0x60] sm:$0xff]
        %v9151 = vld [vmem:[%s9 + $0x68] sm:$0xff]
        %v9152 = vld [vmem:[%s9 + $0x70] sm:$0xff]
        %v9153 = vld [vmem:[%s9 + $0x78] sm:$0xff]
        %v9154 = vld [vmem:[#allocation4] sm:$0xff]
        %v9155 = vld [vmem:[#allocation4 + $0x8] sm:$0xff]
        %v9156 = vld [vmem:[#allocation4 + $0x10] sm:$0xff]
        %v9157 = vld [vmem:[#allocation4 + $0x18] sm:$0xff]
        %v9158 = vld [vmem:[#allocation4 + $0x20] sm:$0xff]
        %v9159 = vld [vmem:[#allocation4 + $0x28] sm:$0xff]
        %v9160 = vld [vmem:[#allocation4 + $0x30] sm:$0xff]
        %v9161 = vld [vmem:[#allocation4 + $0x38] sm:$0xff]
        %v9162 = vld [vmem:[#allocation4 + $0x40] sm:$0xff]
        %v9163 = vld [vmem:[#allocation4 + $0x48] sm:$0xff]
        %v9164 = vld [vmem:[#allocation4 + $0x50] sm:$0xff]
        %v9165 = vld [vmem:[#allocation4 + $0x58] sm:$0xff]
        %v9166 = vld [vmem:[#allocation4 + $0x60] sm:$0xff]
        %v9167 = vld [vmem:[#allocation4 + $0x68] sm:$0xff]
        %v9168 = vld [vmem:[#allocation4 + $0x70] sm:$0xff]
        %v9169 = vld [vmem:[#allocation4 + $0x78] sm:$0xff]
        %v9171 = vlaneseq
        %v9172 = vshrl.u32 %v9171, 7
        %v9173 = vsub.s32 0, %v9172
        %v9174 = vrot.slane %v9135, %v9173
        %v9176 = vmul.f32 %v9154, %v9174
        %v9177 = vmul.f32 %v9155, %v9174
        %v9178 = vmul.f32 %v9156, %v9174
        %v9179 = vmul.f32 %v9157, %v9174
        %v9180 = vmul.f32 %v9158, %v9174
        %v9181 = vmul.f32 %v9159, %v9174
        %v9182 = vmul.f32 %v9160, %v9174
        %v9183 = vmul.f32 %v9161, %v9174
        %v9184 = vmul.f32 %v9162, %v9174
        %v9185 = vmul.f32 %v9163, %v9174
        %v9186 = vmul.f32 %v9164, %v9174
        %v9187 = vmul.f32 %v9165, %v9174
        %v9188 = vmul.f32 %v9166, %v9174
        %v9189 = vmul.f32 %v9167, %v9174
        %v9190 = vmul.f32 %v9168, %v9174
        %v9191 = vmul.f32 %v9169, %v9174
        %v9193 = vlaneseq
        %v9194 = vshrl.u32 %v9193, 7
        %v9195 = vsub.s32 0, %v9194
        %v9196 = vrot.slane %v9136, %v9195
        %v9198 = vadd.f32 %v9176, %v9196
        %v9199 = vadd.f32 %v9177, %v9196
        %v9200 = vadd.f32 %v9178, %v9196
        %v9201 = vadd.f32 %v9179, %v9196
        %v9202 = vadd.f32 %v9180, %v9196
        %v9203 = vadd.f32 %v9181, %v9196
        %v9204 = vadd.f32 %v9182, %v9196
        %v9205 = vadd.f32 %v9183, %v9196
        %v9206 = vadd.f32 %v9184, %v9196
        %v9207 = vadd.f32 %v9185, %v9196
        %v9208 = vadd.f32 %v9186, %v9196
        %v9209 = vadd.f32 %v9187, %v9196
        %v9210 = vadd.f32 %v9188, %v9196
        %v9211 = vadd.f32 %v9189, %v9196
        %v9212 = vadd.f32 %v9190, %v9196
        %v9213 = vadd.f32 %v9191, %v9196
        %v9215 = vlaneseq
        %v9216 = vshrl.u32 %v9215, 7
        %v9217 = vsub.s32 0, %v9216
        %v9218 = vrot.slane %v9137, %v9217
        %9220 = vmatprep.subr.mxu0 0.0
        %9221 = vmatpush1.msra.mxu0 %v9138
        %9222 = vmatprep.subr.mxu0 0.0
        %9223 = vmatpush1.msra.mxu0 %v9139
        %9224 = vmatprep.subr.mxu0 0.0
        %9225 = vmatpush1.msra.mxu0 %v9140
        %9226 = vmatprep.subr.mxu0 0.0
        %9227 = vmatpush1.msra.mxu0 %v9141
        %9228 = vmatprep.subr.mxu0 0.0
        %9229 = vmatpush1.msra.mxu0 %v9142
        %9230 = vmatprep.subr.mxu0 0.0
        %9231 = vmatpush1.msra.mxu0 %v9143
        %9232 = vmatprep.subr.mxu0 0.0
        %9233 = vmatpush1.msra.mxu0 %v9144
        %9234 = vmatprep.subr.mxu0 0.0
        %9235 = vmatpush1.msra.mxu0 %v9145
        %9236 = vmatprep.subr.mxu0 0.0
        %9237 = vmatpush1.msra.mxu0 %v9146
        %9238 = vmatprep.subr.mxu0 0.0
        %9239 = vmatpush1.msra.mxu0 %v9147
        %9240 = vmatprep.subr.mxu0 0.0
        %9241 = vmatpush1.msra.mxu0 %v9148
        %9242 = vmatprep.subr.mxu0 0.0
        %9243 = vmatpush1.msra.mxu0 %v9149
        %9244 = vmatprep.subr.mxu0 0.0
        %9245 = vmatpush1.msra.mxu0 %v9150
        %9246 = vmatprep.subr.mxu0 0.0
        %9247 = vmatpush1.msra.mxu0 %v9151
        %9248 = vmatprep.subr.mxu0 0.0
        %9249 = vmatpush1.msra.mxu0 %v9152
        %9250 = vmatprep.subr.mxu0 0.0
        %9251 = vmatpush1.msra.mxu0 %v9153
        %9252 = vmatprep.subr.mxu0 0.0
        %9253 = vmatpush1.msra.mxu0 0.0
        %9254 = vmatprep.subr.mxu0 0.0
        %9255 = vmatpush1.msra.mxu0 0.0
        %9256 = vmatprep.subr.mxu0 0.0
        %9257 = vmatpush1.msra.mxu0 0.0
        %9258 = vmatprep.subr.mxu0 0.0
        %9259 = vmatpush1.msra.mxu0 0.0
        %9260 = vmatprep.subr.mxu0 0.0
        %9261 = vmatpush1.msra.mxu0 0.0
        %9262 = vmatprep.subr.mxu0 0.0
        %9263 = vmatpush1.msra.mxu0 0.0
        %9264 = vmatprep.subr.mxu0 0.0
        %9265 = vmatpush1.msra.mxu0 0.0
        %9266 = vmatprep.subr.mxu0 0.0
        %9267 = vmatpush1.msra.mxu0 0.0
        %9268 = vmatprep.subr.mxu0 0.0
        %9269 = vmatpush1.msra.mxu0 0.0
        %9270 = vmatprep.subr.mxu0 0.0
        %9271 = vmatpush1.msra.mxu0 0.0
        %9272 = vmatprep.subr.mxu0 0.0
        %9273 = vmatpush1.msra.mxu0 0.0
        %9274 = vmatprep.subr.mxu0 0.0
        %9275 = vmatpush1.msra.mxu0 0.0
        %9276 = vmatprep.subr.mxu0 0.0
        %9277 = vmatpush1.msra.mxu0 0.0
        %9278 = vmatprep.subr.mxu0 0.0
        %9279 = vmatpush1.msra.mxu0 0.0
        %9280 = vmatprep.subr.mxu0 0.0
        %9281 = vmatpush1.msra.mxu0 0.0
        %9282 = vmatprep.subr.mxu0 0.0
        %9283 = vmatpush1.msra.mxu0 0.0
        %9284 = vmatprep.mubr.f32.mxu0 0.0
        %9285 = vmatmul.mubr.f32.gmra.mrb[0].mxu0 %v9198
        %v9286 = vpop.f32.mrb[0].mxu0
        %v9287 = vadd.f32 %v9218, %v9286
        %v9288 = vpop.f32.mrb[0].mxu0
        %9289 = vmatprep.mubr.f32.mxu0 0.0
        %9290 = vmatmul.mubr.f32.gmra.mrb[0].mxu0 %v9199
        %v9291 = vpop.f32.mrb[0].mxu0
        %v9292 = vadd.f32 %v9218, %v9291
        %v9293 = vpop.f32.mrb[0].mxu0
        %9294 = vmatprep.mubr.f32.mxu0 0.0
        %9295 = vmatmul.mubr.f32.gmra.mrb[0].mxu0 %v9200
        %v9296 = vpop.f32.mrb[0].mxu0
        %v9297 = vadd.f32 %v9218, %v9296
        %v9298 = vpop.f32.mrb[0].mxu0
        %9299 = vmatprep.mubr.f32.mxu0 0.0
        %9300 = vmatmul.mubr.f32.gmra.mrb[0].mxu0 %v9201
        %v9301 = vpop.f32.mrb[0].mxu0
        %v9302 = vadd.f32 %v9218, %v9301
        %v9303 = vpop.f32.mrb[0].mxu0
        %9304 = vmatprep.mubr.f32.mxu0 0.0
        %9305 = vmatmul.mubr.f32.gmra.mrb[0].mxu0 %v9202
        %v9306 = vpop.f32.mrb[0].mxu0
        %v9307 = vadd.f32 %v9218, %v9306
        %v9308 = vpop.f32.mrb[0].mxu0
        %9309 = vmatprep.mubr.f32.mxu0 0.0
        %9310 = vmatmul.mubr.f32.gmra.mrb[0].mxu0 %v9203
        %v9311 = vpop.f32.mrb[0].mxu0
        %v9312 = vadd.f32 %v9218, %v9311
        %v9313 = vpop.f32.mrb[0].mxu0
        %9314 = vmatprep.mubr.f32.mxu0 0.0
        %9315 = vmatmul.mubr.f32.gmra.mrb[0].mxu0 %v9204
        %v9316 = vpop.f32.mrb[0].mxu0
        %v9317 = vadd.f32 %v9218, %v9316
        %v9318 = vpop.f32.mrb[0].mxu0
        %9319 = vmatprep.mubr.f32.mxu0 0.0
        %9320 = vmatmul.mubr.f32.gmra.mrb[0].mxu0 %v9205
        %v9321 = vpop.f32.mrb[0].mxu0
        %v9322 = vadd.f32 %v9218, %v9321
        %v9323 = vpop.f32.mrb[0].mxu0
        %9324 = vmatprep.mubr.f32.mxu0 0.0
        %9325 = vmatmul.mubr.f32.gmra.mrb[0].mxu0 %v9206
        %v9326 = vpop.f32.mrb[0].mxu0
        %v9327 = vadd.f32 %v9218, %v9326
        %v9328 = vpop.f32.mrb[0].mxu0
        %9329 = vmatprep.mubr.f32.mxu0 0.0
        %9330 = vmatmul.mubr.f32.gmra.mrb[0].mxu0 %v9207
        %v9331 = vpop.f32.mrb[0].mxu0
        %v9332 = vadd.f32 %v9218, %v9331
        %v9333 = vpop.f32.mrb[0].mxu0
        %9334 = vmatprep.mubr.f32.mxu0 0.0
        %9335 = vmatmul.mubr.f32.gmra.mrb[0].mxu0 %v9208
        %v9336 = vpop.f32.mrb[0].mxu0
        %v9337 = vadd.f32 %v9218, %v9336
        %v9338 = vpop.f32.mrb[0].mxu0
        %9339 = vmatprep.mubr.f32.mxu0 0.0
        %9340 = vmatmul.mubr.f32.gmra.mrb[0].mxu0 %v9209
        %v9341 = vpop.f32.mrb[0].mxu0
        %v9342 = vadd.f32 %v9218, %v9341
        %v9343 = vpop.f32.mrb[0].mxu0
        %9344 = vmatprep.mubr.f32.mxu0 0.0
        %9345 = vmatmul.mubr.f32.gmra.mrb[0].mxu0 %v9210
        %v9346 = vpop.f32.mrb[0].mxu0
        %v9347 = vadd.f32 %v9218, %v9346
        %v9348 = vpop.f32.mrb[0].mxu0
        %9349 = vmatprep.mubr.f32.mxu0 0.0
        %9350 = vmatmul.mubr.f32.gmra.mrb[0].mxu0 %v9211
        %v9351 = vpop.f32.mrb[0].mxu0
        %v9352 = vadd.f32 %v9218, %v9351
        %v9353 = vpop.f32.mrb[0].mxu0
        %9354 = vmatprep.mubr.f32.mxu0 0.0
        %9355 = vmatmul.mubr.f32.gmra.mrb[0].mxu0 %v9212
        %v9356 = vpop.f32.mrb[0].mxu0
        %v9357 = vadd.f32 %v9218, %v9356
        %v9358 = vpop.f32.mrb[0].mxu0
        %9359 = vmatprep.mubr.f32.mxu0 0.0
        %9360 = vmatmul.mubr.f32.gmra.mrb[0].mxu0 %v9213
        %v9361 = vpop.f32.mrb[0].mxu0
        %v9362 = vadd.f32 %v9218, %v9361
        %v9363 = vpop.f32.mrb[0].mxu0
        %9364 = vdwg.mxu0
        %s9365 = smul.u32 0, 64
        %s9366 = scalar_lea.vmem %s366, %s9365 [#allocation5]
        %v9367 = vld [vmem:[%s9366] sm:$0xff]
        %v9368 = vld [vmem:[%s9366 + $0x8] sm:$0xff]
        %v9369 = vld [vmem:[%s9366 + $0x10] sm:$0xff]
        %v9370 = vld [vmem:[%s9366 + $0x18] sm:$0xff]
        %v9371 = vld [vmem:[%s9366 + $0x20] sm:$0xff]
        %v9372 = vld [vmem:[%s9366 + $0x28] sm:$0xff]
        %v9373 = vld [vmem:[%s9366 + $0x30] sm:$0xff]
        %v9374 = vld [vmem:[%s9366 + $0x38] sm:$0xff]
        %v9375 = vld [vmem:[%s9366 + $0x40] sm:$0xff]
        %v9376 = vld [vmem:[%s9366 + $0x48] sm:$0xff]
        %v9377 = vld [vmem:[%s9366 + $0x50] sm:$0xff]
        %v9378 = vld [vmem:[%s9366 + $0x58] sm:$0xff]
        %v9379 = vld [vmem:[%s9366 + $0x60] sm:$0xff]
        %v9380 = vld [vmem:[%s9366 + $0x68] sm:$0xff]
        %v9381 = vld [vmem:[%s9366 + $0x70] sm:$0xff]
        %v9382 = vld [vmem:[%s9366 + $0x78] sm:$0xff]
        %v9383 = vadd.f32 %v9367, %v9287
        %v9384 = vadd.f32 %v9368, %v9292
        %v9385 = vadd.f32 %v9369, %v9297
        %v9386 = vadd.f32 %v9370, %v9302
        %v9387 = vadd.f32 %v9371, %v9307
        %v9388 = vadd.f32 %v9372, %v9312
        %v9389 = vadd.f32 %v9373, %v9317
        %v9390 = vadd.f32 %v9374, %v9322
        %v9391 = vadd.f32 %v9375, %v9327
        %v9392 = vadd.f32 %v9376, %v9332
        %v9393 = vadd.f32 %v9377, %v9337
        %v9394 = vadd.f32 %v9378, %v9342
        %v9395 = vadd.f32 %v9379, %v9347
        %v9396 = vadd.f32 %v9380, %v9352
        %v9397 = vadd.f32 %v9381, %v9357
        %v9398 = vadd.f32 %v9382, %v9362
        %v9399 = vcombine.low %v9383, %v9385
        %v9400 = vcombine.high %v9383, %v9385
        %v9402 = vunpack.c.l.s4 1983009808
        %v9403 = vunpack.c.0.s8 %v9402
        %v9404 = vlaneseq
        %v9405 = vshrl.u32 %v9404, 7
        %v9406 = vsub.s32 %v9403, %v9405
        %v9407 = vrot.slane %v9399, %v9406
        %v9409 = vunpack.c.l.s4 1983009808
        %v9410 = vunpack.c.0.s8 %v9409
        %v9411 = vlaneseq
        %v9412 = vshrl.u32 %v9411, 7
        %v9413 = vsub.s32 %v9410, %v9412
        %v9414 = vrot.slane %v9400, %v9413
        %v9415 = vcombine.low %v9384, %v9386
        %v9416 = vcombine.high %v9384, %v9386
        %v9418 = vunpack.c.l.s4 1983009808
        %v9419 = vunpack.c.0.s8 %v9418
        %v9420 = vlaneseq
        %v9421 = vshrl.u32 %v9420, 7
        %v9422 = vsub.s32 %v9419, %v9421
        %v9423 = vrot.slane %v9415, %v9422
        %v9425 = vunpack.c.l.s4 1983009808
        %v9426 = vunpack.c.0.s8 %v9425
        %v9427 = vlaneseq
        %v9428 = vshrl.u32 %v9427, 7
        %v9429 = vsub.s32 %v9426, %v9428
        %v9430 = vrot.slane %v9416, %v9429
        %v9431 = vcombine.low %v9387, %v9389
        %v9432 = vcombine.high %v9387, %v9389
        %v9434 = vunpack.c.l.s4 1983009808
        %v9435 = vunpack.c.0.s8 %v9434
        %v9436 = vlaneseq
        %v9437 = vshrl.u32 %v9436, 7
        %v9438 = vsub.s32 %v9435, %v9437
        %v9439 = vrot.slane %v9431, %v9438
        %v9441 = vunpack.c.l.s4 1983009808
        %v9442 = vunpack.c.0.s8 %v9441
        %v9443 = vlaneseq
        %v9444 = vshrl.u32 %v9443, 7
        %v9445 = vsub.s32 %v9442, %v9444
        %v9446 = vrot.slane %v9432, %v9445
        %v9447 = vcombine.low %v9388, %v9390
        %v9448 = vcombine.high %v9388, %v9390
        %v9450 = vunpack.c.l.s4 1983009808
        %v9451 = vunpack.c.0.s8 %v9450
        %v9452 = vlaneseq
        %v9453 = vshrl.u32 %v9452, 7
        %v9454 = vsub.s32 %v9451, %v9453
        %v9455 = vrot.slane %v9447, %v9454
        %v9457 = vunpack.c.l.s4 1983009808
        %v9458 = vunpack.c.0.s8 %v9457
        %v9459 = vlaneseq
        %v9460 = vshrl.u32 %v9459, 7
        %v9461 = vsub.s32 %v9458, %v9460
        %v9462 = vrot.slane %v9448, %v9461
        %v9463 = vcombine.low %v9407, %v9423
        %v9464 = vcombine.high %v9407, %v9423
        %v9466 = vunpack.c.l.s4 1934713408
        %v9467 = vunpack.c.0.s8 %v9466
        %v9468 = vlaneseq
        %v9469 = vshrl.u32 %v9468, 7
        %v9470 = vsub.s32 %v9467, %v9469
        %v9471 = vrot.slane %v9463, %v9470
        %v9473 = vunpack.c.l.s4 1934713408
        %v9474 = vunpack.c.0.s8 %v9473
        %v9475 = vlaneseq
        %v9476 = vshrl.u32 %v9475, 7
        %v9477 = vsub.s32 %v9474, %v9476
        %v9478 = vrot.slane %v9464, %v9477
        %v9479 = vcombine.low %v9414, %v9430
        %v9480 = vcombine.high %v9414, %v9430
        %v9482 = vunpack.c.l.s4 1934713408
        %v9483 = vunpack.c.0.s8 %v9482
        %v9484 = vlaneseq
        %v9485 = vshrl.u32 %v9484, 7
        %v9486 = vsub.s32 %v9483, %v9485
        %v9487 = vrot.slane %v9479, %v9486
        %v9489 = vunpack.c.l.s4 1934713408
        %v9490 = vunpack.c.0.s8 %v9489
        %v9491 = vlaneseq
        %v9492 = vshrl.u32 %v9491, 7
        %v9493 = vsub.s32 %v9490, %v9492
        %v9494 = vrot.slane %v9480, %v9493
        %v9495 = vcombine.low %v9439, %v9455
        %v9496 = vcombine.high %v9439, %v9455
        %v9498 = vunpack.c.l.s4 1934713408
        %v9499 = vunpack.c.0.s8 %v9498
        %v9500 = vlaneseq
        %v9501 = vshrl.u32 %v9500, 7
        %v9502 = vsub.s32 %v9499, %v9501
        %v9503 = vrot.slane %v9495, %v9502
        %v9505 = vunpack.c.l.s4 1934713408
        %v9506 = vunpack.c.0.s8 %v9505
        %v9507 = vlaneseq
        %v9508 = vshrl.u32 %v9507, 7
        %v9509 = vsub.s32 %v9506, %v9508
        %v9510 = vrot.slane %v9496, %v9509
        %v9511 = vcombine.low %v9446, %v9462
        %v9512 = vcombine.high %v9446, %v9462
        %v9514 = vunpack.c.l.s4 1934713408
        %v9515 = vunpack.c.0.s8 %v9514
        %v9516 = vlaneseq
        %v9517 = vshrl.u32 %v9516, 7
        %v9518 = vsub.s32 %v9515, %v9517
        %v9519 = vrot.slane %v9511, %v9518
        %v9521 = vunpack.c.l.s4 1934713408
        %v9522 = vunpack.c.0.s8 %v9521
        %v9523 = vlaneseq
        %v9524 = vshrl.u32 %v9523, 7
        %v9525 = vsub.s32 %v9522, %v9524
        %v9526 = vrot.slane %v9512, %v9525
        %v9527 = vcombine.low %v9471, %v9503
        %v9528 = vcombine.high %v9471, %v9503
        %v9529 = vcombine.low %v9478, %v9510
        %v9530 = vcombine.high %v9478, %v9510
        %v9531 = vcombine.low %v9487, %v9519
        %v9532 = vcombine.high %v9487, %v9519
        %v9533 = vcombine.low %v9494, %v9526
        %v9534 = vcombine.high %v9494, %v9526
        %v9535 = vcombine.low %v9391, %v9393
        %v9536 = vcombine.high %v9391, %v9393
        %v9538 = vunpack.c.l.s4 1983009808
        %v9539 = vunpack.c.0.s8 %v9538
        %v9540 = vlaneseq
        %v9541 = vshrl.u32 %v9540, 7
        %v9542 = vsub.s32 %v9539, %v9541
        %v9543 = vrot.slane %v9535, %v9542
        %v9545 = vunpack.c.l.s4 1983009808
        %v9546 = vunpack.c.0.s8 %v9545
        %v9547 = vlaneseq
        %v9548 = vshrl.u32 %v9547, 7
        %v9549 = vsub.s32 %v9546, %v9548
        %v9550 = vrot.slane %v9536, %v9549
        %v9551 = vcombine.low %v9392, %v9394
        %v9552 = vcombine.high %v9392, %v9394
        %v9554 = vunpack.c.l.s4 1983009808
        %v9555 = vunpack.c.0.s8 %v9554
        %v9556 = vlaneseq
        %v9557 = vshrl.u32 %v9556, 7
        %v9558 = vsub.s32 %v9555, %v9557
        %v9559 = vrot.slane %v9551, %v9558
        %v9561 = vunpack.c.l.s4 1983009808
        %v9562 = vunpack.c.0.s8 %v9561
        %v9563 = vlaneseq
        %v9564 = vshrl.u32 %v9563, 7
        %v9565 = vsub.s32 %v9562, %v9564
        %v9566 = vrot.slane %v9552, %v9565
        %v9567 = vcombine.low %v9395, %v9397
        %v9568 = vcombine.high %v9395, %v9397
        %v9570 = vunpack.c.l.s4 1983009808
        %v9571 = vunpack.c.0.s8 %v9570
        %v9572 = vlaneseq
        %v9573 = vshrl.u32 %v9572, 7
        %v9574 = vsub.s32 %v9571, %v9573
        %v9575 = vrot.slane %v9567, %v9574
        %v9577 = vunpack.c.l.s4 1983009808
        %v9578 = vunpack.c.0.s8 %v9577
        %v9579 = vlaneseq
        %v9580 = vshrl.u32 %v9579, 7
        %v9581 = vsub.s32 %v9578, %v9580
        %v9582 = vrot.slane %v9568, %v9581
        %v9583 = vcombine.low %v9396, %v9398
        %v9584 = vcombine.high %v9396, %v9398
        %v9586 = vunpack.c.l.s4 1983009808
        %v9587 = vunpack.c.0.s8 %v9586
        %v9588 = vlaneseq
        %v9589 = vshrl.u32 %v9588, 7
        %v9590 = vsub.s32 %v9587, %v9589
        %v9591 = vrot.slane %v9583, %v9590
        %v9593 = vunpack.c.l.s4 1983009808
        %v9594 = vunpack.c.0.s8 %v9593
        %v9595 = vlaneseq
        %v9596 = vshrl.u32 %v9595, 7
        %v9597 = vsub.s32 %v9594, %v9596
        %v9598 = vrot.slane %v9584, %v9597
        %v9599 = vcombine.low %v9543, %v9559
        %v9600 = vcombine.high %v9543, %v9559
        %v9602 = vunpack.c.l.s4 1934713408
        %v9603 = vunpack.c.0.s8 %v9602
        %v9604 = vlaneseq
        %v9605 = vshrl.u32 %v9604, 7
        %v9606 = vsub.s32 %v9603, %v9605
        %v9607 = vrot.slane %v9599, %v9606
        %v9609 = vunpack.c.l.s4 1934713408
        %v9610 = vunpack.c.0.s8 %v9609
        %v9611 = vlaneseq
        %v9612 = vshrl.u32 %v9611, 7
        %v9613 = vsub.s32 %v9610, %v9612
        %v9614 = vrot.slane %v9600, %v9613
        %v9615 = vcombine.low %v9550, %v9566
        %v9616 = vcombine.high %v9550, %v9566
        %v9618 = vunpack.c.l.s4 1934713408
        %v9619 = vunpack.c.0.s8 %v9618
        %v9620 = vlaneseq
        %v9621 = vshrl.u32 %v9620, 7
        %v9622 = vsub.s32 %v9619, %v9621
        %v9623 = vrot.slane %v9615, %v9622
        %v9625 = vunpack.c.l.s4 1934713408
        %v9626 = vunpack.c.0.s8 %v9625
        %v9627 = vlaneseq
        %v9628 = vshrl.u32 %v9627, 7
        %v9629 = vsub.s32 %v9626, %v9628
        %v9630 = vrot.slane %v9616, %v9629
        %v9631 = vcombine.low %v9575, %v9591
        %v9632 = vcombine.high %v9575, %v9591
        %v9634 = vunpack.c.l.s4 1934713408
        %v9635 = vunpack.c.0.s8 %v9634
        %v9636 = vlaneseq
        %v9637 = vshrl.u32 %v9636, 7
        %v9638 = vsub.s32 %v9635, %v9637
        %v9639 = vrot.slane %v9631, %v9638
        %v9641 = vunpack.c.l.s4 1934713408
        %v9642 = vunpack.c.0.s8 %v9641
        %v9643 = vlaneseq
        %v9644 = vshrl.u32 %v9643, 7
        %v9645 = vsub.s32 %v9642, %v9644
        %v9646 = vrot.slane %v9632, %v9645
        %v9647 = vcombine.low %v9582, %v9598
        %v9648 = vcombine.high %v9582, %v9598
        %v9650 = vunpack.c.l.s4 1934713408
        %v9651 = vunpack.c.0.s8 %v9650
        %v9652 = vlaneseq
        %v9653 = vshrl.u32 %v9652, 7
        %v9654 = vsub.s32 %v9651, %v9653
        %v9655 = vrot.slane %v9647, %v9654
        %v9657 = vunpack.c.l.s4 1934713408
        %v9658 = vunpack.c.0.s8 %v9657
        %v9659 = vlaneseq
        %v9660 = vshrl.u32 %v9659, 7
        %v9661 = vsub.s32 %v9658, %v9660
        %v9662 = vrot.slane %v9648, %v9661
        %v9663 = vcombine.low %v9607, %v9639
        %v9664 = vcombine.high %v9607, %v9639
        %v9665 = vcombine.low %v9614, %v9646
        %v9666 = vcombine.high %v9614, %v9646
        %v9667 = vcombine.low %v9623, %v9655
        %v9668 = vcombine.high %v9623, %v9655
        %v9669 = vcombine.low %v9630, %v9662
        %v9670 = vcombine.high %v9630, %v9662
        %9673 = vrot.lane.b32.xlu0 %v9528, 32
        %v9674 = vpop.permute.xlu0 %9673
        %9675 = vrot.lane.b32.xlu0 %v9664, 32
        %v9676 = vpop.permute.xlu0 %9675
        %9681 = vrot.lane.b32.xlu0 %v9529, 64
        %v9682 = vpop.permute.xlu0 %9681
        %9683 = vrot.lane.b32.xlu0 %v9665, 64
        %v9684 = vpop.permute.xlu0 %9683
        %9689 = vrot.lane.b32.xlu0 %v9530, 96
        %v9690 = vpop.permute.xlu0 %9689
        %9691 = vrot.lane.b32.xlu0 %v9666, 96
        %v9692 = vpop.permute.xlu0 %9691
        %9697 = vrot.lane.b32.xlu0 %v9532, 32
        %v9698 = vpop.permute.xlu0 %9697
        %9699 = vrot.lane.b32.xlu0 %v9668, 32
        %v9700 = vpop.permute.xlu0 %9699
        %9705 = vrot.lane.b32.xlu0 %v9533, 64
        %v9706 = vpop.permute.xlu0 %9705
        %9707 = vrot.lane.b32.xlu0 %v9669, 64
        %v9708 = vpop.permute.xlu0 %9707
        %9713 = vrot.lane.b32.xlu0 %v9534, 96
        %v9714 = vpop.permute.xlu0 %9713
        %9715 = vrot.lane.b32.xlu0 %v9670, 96
        %v9716 = vpop.permute.xlu0 %9715
        %v9719 = vsel %vm405, %v9527, %v9674
        %v9720 = vsel %vm405, %v9663, %v9676
        %vm9721 = vcmask 523264
        %v9722 = vsel %vm9721, %v9719, %v9682
        %v9723 = vsel %vm9721, %v9720, %v9684
        %vm9724 = vcmask 785408
        %v9725 = vsel %vm9724, %v9722, %v9690
        %v9726 = vsel %vm9724, %v9723, %v9692
        %v9727 = vsel %vm405, %v9531, %v9698
        %v9728 = vsel %vm405, %v9667, %v9700
        %v9729 = vsel %vm9721, %v9727, %v9706
        %v9730 = vsel %vm9721, %v9728, %v9708
        %v9731 = vsel %vm9724, %v9729, %v9714
        %v9732 = vsel %vm9724, %v9730, %v9716
        %s9733 = smul.u32 0, 2
        %s9734 = smul.addr %s9733, 8
        %s9735 = scalar_lea.vmem %s404, %s9734 [#allocation8]
        %9736 = vst [vmem:[%s9735] sm:$0xff] %v9725
        %9737 = vst [vmem:[%s9735 + $0x8] sm:$0xff] %v9731
        %9738 = vst [vmem:[%s9735 + $0x10] sm:$0xff] %v9726
        %9739 = vst [vmem:[%s9735 + $0x18] sm:$0xff] %v9732
        %s9740 = sand.u32 %s272, 1
        %s9741 = scalar_lea.sflag [#allocation7], %s9740
        %s9742 = sand.u32 %s272, 1
        %s9743 = smul.addr %s9742, 32
        %s9744 = scalar_lea.vmem [#allocation8], %s9743
        // Predicated region
        $region69: #{tpu_custom_call.1} parent=63 // pred_check
          %p9745 = pneg %p282
        $region70: #{tpu_custom_call.1} parent=63 // pred_check_branch
          %9747 = sbr.rel (%p9745) target = $region72
        $region71: #{tpu_custom_call.1} parent=63 // pred_region
          %s9749 = ssub.s32 512, 512
          %9750 = vsyncadd %s9741, %s9749
          %s9751 = smul.addr %s28, 4
          %s9752 = smul.addr %s9751, 128
          %s9753 = scalar_lea.hbm %s11, %s9752
          %s9754 = sshll.u32 %s9744, 4
          %s9755 = int_to_ptr.vmem [resolvable:$true] %s9754
          %9760 = dma.vmem_to_hbm [thread:$0]  %s9755, 512, %s9753, %s9741, 256, 256, 16
        $region72: #{tpu_custom_call.1} parent=63 // pred_fallthru
          _
      $region64: #{tpu_custom_call.1} parent=5 // pred_fallthru
        _
      %p9761 = scmp.le.s32.totalorder 2, %s23
      // Predicated region
      $region73: #{tpu_custom_call.1} parent=5 // pred_check
        %p9762 = pneg %p9761
      $region74: #{tpu_custom_call.1} parent=5 // pred_check_branch
        %9764 = sbr.rel (%p9762) target = $region76
      $region75: #{tpu_custom_call.1} parent=5 // pred_region
        %s9765 = ssub.s32 %s23, 2
        // Predicated region
        $region77: #{tpu_custom_call.1} parent=75 // pred_check
          %p9766 = pneg %p288
        $region78: #{tpu_custom_call.1} parent=75 // pred_check_branch
          %9768 = sbr.rel (%p9766) target = $region80
        $region79: #{tpu_custom_call.1} parent=75 // pred_region
          %s9769 = sand.u32 %s273, 1
          %s9770 = scalar_lea.sflag [#allocation7], %s9769
          %s9771 = sand.u32 %s273, 1
          %s9772 = smul.addr %s9771, 32
          %s9773 = scalar_lea.vmem [#allocation8], %s9772
          %9774 = dma.done %s9770, 512
        $region80: #{tpu_custom_call.1} parent=75 // pred_fallthru
          _
      $region76: #{tpu_custom_call.1} parent=5 // pred_fallthru
        _
    $region6: #{tpu_custom_call.1} parent=1 // loop_footer
      %s27 = sadd.s32 1, %s23
    $region7: #{tpu_custom_call.1} parent=1 // loop_footer_branch
      %22 = sbr.rel target = $region3
    $region8: #{tpu_custom_call.1} parent=1 // loop_exit
      _
    %9775 = vsyncpa [#allocation6], 1
    %s9776 = scalar_lea.sflag [#allocation6], 1
    %9777 = vsyncpa %s9776, 1
    %9778 = vsyncpa [#allocation7], 1
    %s9779 = scalar_lea.sflag [#allocation7], 1
    %9780 = vsyncpa %s9779, 1

</llo_original>
